<compile_context>
chip_gen: v7x
topology: tpu7x:2x2x1
jax: 0.10.0
libtpu: 0.0.40
codegen_flags: <defaults>
</compile_context>

<pallas_src>
import jax
import jax.numpy as jnp
from jax.experimental import pallas as pl
from jax.experimental.pallas import tpu as pltpu

MORPH_KS = 5      # QuadraticMorpho kernel size (fixed to 5 in MRMBlock)
MAX_VAL = 1e4     # kornia morphology max_val default


# --------------------------------------------------------------------------
# Fused Pallas kernel (one grid step == Bt batch elements folded into lanes)
# --------------------------------------------------------------------------
def _make_mrm_kernel(H, W, Bt, c_in, f1, f2, f3, rm_ks, P, hw_max, buf_rows):
    HW = H * W
    L = Bt * HW
    cmid = f1 + f2 + f3
    rp = (rm_ks - 1) // 2
    mp = MORPH_KS // 2
    T = 2 * hw_max + 1
    T2 = T * T
    K2 = rm_ks * rm_ks

    def tab_idx(oy, ox):
        return (oy + hw_max) * T + (ox + hw_max)

    def kernel(tab_ref, x_ref, w1a_ref, w2a_ref, w3a_ref,
               w1b_ref, w2b_ref, w3b_ref, o_ref, buf_ref, taps_ref):
        # Zero only the halo strips; the center region is always overwritten.
        zstrip = jnp.zeros((buf_rows, P), jnp.float32)
        buf_ref[:, 0:P] = zstrip
        buf_ref[:, P + L:P + L + P] = zstrip
        # Ones row for the fused bias (column 0 of every packed weight matrix).
        taps_ref[0:1, :] = jnp.ones((1, L), jnp.float32)

        def fill_buf(v, nc):
            buf_ref[0:nc, P:P + L] = v

        def conv_level(nc, w_ref):
            # Stack the K2 masked shifted taps, then ONE dot for this level.
            for k in range(K2):
                dy, dx = k // rm_ks, k % rm_ks
                oy, ox = dy - rp, dx - rp
                ti = tab_idx(oy, ox)
                start = P + oy * W + ox
                taps_ref[1 + k * nc:1 + (k + 1) * nc, :] = (
                    buf_ref[0:nc, start:start + L] * tab_ref[ti:ti + 1, :])
            return jnp.dot(w_ref[...], taps_ref[0:1 + K2 * nc, :],
                           preferred_element_type=jnp.float32)

        def rm_block(nc, w1_ref, w2_ref, w3_ref):
            # Input is already resident in buf rows [0:nc].
            y = conv_level(nc, w1_ref)           # (f1 + cmid, L): conv1 ++ conv_res
            x1 = y[0:f1, :]
            xr = y[f1:f1 + cmid, :]
            fill_buf(x1, f1)
            x2 = conv_level(f1, w2_ref)          # (f2, L)
            fill_buf(x2, f2)
            x3 = conv_level(f2, w3_ref)          # (f3, L)
            return x1, x2, x3, xr

        # ---- rm1 ----
        fill_buf(x_ref[...], c_in)
        x1, x2, x3, xr = rm_block(c_in, w1a_ref, w2a_ref, w3a_ref)
        # h1 = concat(x1, x2, x3) + x_res, written straight into the shift buffer
        # (read by both the morphology and rm2's first conv level).
        buf_ref[0:f1, P:P + L] = x1 + xr[0:f1, :]
        buf_ref[f1:f1 + f2, P:P + L] = x2 + xr[f1:f1 + f2, :]
        buf_ref[f1 + f2:cmid, P:P + L] = x3 + xr[f1 + f2:cmid, :]

        # ---- dilation - erosion on h1 (geodesic border, center tap skipped) ----
        dil = None
        ero = None
        for dy in range(MORPH_KS):
            for dx in range(MORPH_KS):
                oy, ox = dy - mp, dx - mp
                if oy == 0 and ox == 0:
                    continue    # SE center is -MAX_VAL in both nb's -> never wins
                ti = tab_idx(oy, ox)
                start = P + oy * W + ox
                tm = buf_ref[0:cmid, start:start + L] * tab_ref[ti:ti + 1, :]
                dt = tm + tab_ref[T2 + ti:T2 + ti + 1, :]        # + nb_d / -MAX border
                et = tm + tab_ref[2 * T2 + ti:2 * T2 + ti + 1, :]  # - nb_e / +MAX border
                dil = dt if dil is None else jnp.maximum(dil, dt)
                ero = et if ero is None else jnp.minimum(ero, et)
        ed = dil - ero                            # (cmid, L)

        # ---- rm2 (h1 still resident in buf); concat+residual+ed fused in store ----
        y1, y2, y3, yr = rm_block(cmid, w1b_ref, w2b_ref, w3b_ref)
        o_ref[0:f1, :] = ed[0:f1, :] + y1 + yr[0:f1, :]
        o_ref[f1:f1 + f2, :] = ed[f1:f1 + f2, :] + y2 + yr[f1:f1 + f2, :]
        o_ref[f1 + f2:cmid, :] = ed[f1 + f2:cmid, :] + y3 + yr[f1 + f2:cmid, :]

    return kernel


# --------------------------------------------------------------------------
# Wrapper-side packing helpers
# --------------------------------------------------------------------------
def _pack_level(w, b):
    """HWIO weight + bias -> (Cout, 1 + KH*KW*Cin); column 0 is the bias."""
    KH, KW, ci, co = w.shape
    w_mat = jnp.transpose(w.reshape(KH * KW * ci, co)).astype(jnp.float32)
    return jnp.concatenate([b.reshape(co, 1).astype(jnp.float32), w_mat], axis=1)


def _pack_rm(p):
    w1 = jnp.concatenate([_pack_level(p['w1'], p['b1']),
                          _pack_level(p['wr'], p['br'])], axis=0)  # conv1 ++ conv_res
    return w1, _pack_level(p['w2'], p['b2']), _pack_level(p['w3'], p['b3'])


def _pick_batch_fold(N, HW, max_lanes=4096):
    """Largest Bt dividing N with >=2 grid steps (v7x megacore) and bounded lanes."""
    bt = 1
    for d in range(1, N + 1):
        if N % d != 0 or d * HW > max_lanes:
            continue
        if N // d >= 2 or N == 1:
            bt = d
    return bt


def _build_tables(H, W, Bt, nb_d, nb_e, hw_max):
    """(3*T2, Bt*H*W) table: [conv 0/1 mask | dilation offset | erosion offset]."""
    T = 2 * hw_max + 1
    T2 = T * T
    mp = MORPH_KS // 2
    HW = H * W
    p = jnp.arange(HW, dtype=jnp.int32)
    row, col = p // W, p % W
    masks = []
    for oy in range(-hw_max, hw_max + 1):
        for ox in range(-hw_max, hw_max + 1):
            valid = ((row + oy >= 0) & (row + oy < H) &
                     (col + ox >= 0) & (col + ox < W))
            masks.append(valid.astype(jnp.float32))
    mask = jnp.stack(masks, axis=0)                       # (T2, HW)
    nb_d2 = nb_d.reshape(MORPH_KS, MORPH_KS)
    nb_e2 = nb_e.reshape(MORPH_KS, MORPH_KS)
    dil_add = jnp.zeros((T2, HW), jnp.float32)
    ero_add = jnp.zeros((T2, HW), jnp.float32)
    for dy in range(MORPH_KS):
        for dx in range(MORPH_KS):
            oy, ox = dy - mp, dx - mp
            ti = (oy + hw_max) * T + (ox + hw_max)
            m = mask[ti]
            dil_add = dil_add.at[ti].set(nb_d2[dy, dx] - (1.0 - m) * MAX_VAL)
            ero_add = ero_add.at[ti].set(-nb_e2[dy, dx] + (1.0 - m) * MAX_VAL)
    tab = jnp.concatenate([mask, dil_add, ero_add], axis=0)   # (3*T2, HW)
    return jnp.tile(tab, (1, Bt))                             # (3*T2, Bt*HW)


# --------------------------------------------------------------------------
# Forward wrapper around pallas_call
# --------------------------------------------------------------------------
def mrm_block_forward(x_nchw, params):
    """x_nchw: (N, Cin, H, W) f32. Returns (N, f1+f2+f3, H, W) f32."""
    N, c_in, H, W = x_nchw.shape
    HW = H * W
    rm_ks = params['rm1']['w1'].shape[0]
    f1 = params['rm1']['w1'].shape[-1]
    f2 = params['rm1']['w2'].shape[-1]
    f3 = params['rm1']['w3'].shape[-1]
    cmid = f1 + f2 + f3
    rp = (rm_ks - 1) // 2
    mp = MORPH_KS // 2
    hw_max = max(rp, mp)
    K2 = rm_ks * rm_ks

    Bt = _pick_batch_fold(N, HW)
    G = N // Bt
    L = Bt * HW

    halo = hw_max * W + hw_max
    P = ((halo + 127) // 128) * 128               # lane-aligned halo padding
    buf_rows = max(c_in, f1, f2, cmid)
    taps_rows = 1 + K2 * max(c_in, f1, f2, cmid)

    # Lane layout per grid step: [bt (folded batch), H, W]
    x_flat = (x_nchw.astype(jnp.float32)
              .reshape(G, Bt, c_in, HW)
              .transpose(0, 2, 1, 3)
              .reshape(G, c_in, L))

    tab = _build_tables(H, W, Bt, params['nb_d'], params['nb_e'], hw_max)
    w1a, w2a, w3a = _pack_rm(params['rm1'])
    w1b, w2b, w3b = _pack_rm(params['rm2'])
    weights = [w1a, w2a, w3a, w1b, w2b, w3b]

    in_specs = [pl.BlockSpec(tab.shape, lambda n: (0, 0)),        # mask/offset table
                pl.BlockSpec((None, c_in, L), lambda n: (n, 0, 0))]
    in_specs += [pl.BlockSpec(w.shape, lambda n: (0, 0)) for w in weights]

    kernel = _make_mrm_kernel(H, W, Bt, c_in, f1, f2, f3, rm_ks, P, hw_max, buf_rows)

    # Advisory cost estimate.
    dot_macs = L * ((f1 + cmid) * (1 + K2 * c_in) + (f1 + cmid) * (1 + K2 * cmid)
                    + 2 * f2 * (1 + K2 * f1) + 2 * f3 * (1 + K2 * f2))
    flops = G * (2 * dot_macs + 24 * 4 * cmid * L)
    bytes_accessed = 4 * (int(x_flat.size) + G * cmid * L + int(tab.size)
                          + sum(int(w.size) for w in weights))

    vmem_need = 4 * (buf_rows * (L + 2 * P) + taps_rows * L + 2 * int(tab.size)
                     + 2 * (c_in + cmid) * L + sum(int(w.size) for w in weights))
    vmem_limit = int(min(64 * 1024 * 1024, max(32 * 1024 * 1024, 4 * vmem_need)))

    out = pl.pallas_call(
        kernel,
        out_shape=jax.ShapeDtypeStruct((G, cmid, L), jnp.float32),
        grid_spec=pltpu.PrefetchScalarGridSpec(
            num_scalar_prefetch=0,
            grid=(G,),
            in_specs=in_specs,
            out_specs=pl.BlockSpec((None, cmid, L), lambda n: (n, 0, 0)),
            scratch_shapes=[
                pltpu.VMEM((buf_rows, L + 2 * P), jnp.float32),   # shift buffer
                pltpu.VMEM((taps_rows, L), jnp.float32),          # stacked conv taps
            ],
        ),
        compiler_params=pltpu.CompilerParams(
            dimension_semantics=("parallel",),
            vmem_limit_bytes=vmem_limit),
        cost_estimate=pl.CostEstimate(flops=int(flops), transcendentals=0,
                                      bytes_accessed=int(bytes_accessed)),
    )(tab, x_flat, *weights)

    return (out.reshape(G, cmid, Bt, HW)
            .transpose(0, 2, 1, 3)
            .reshape(N, cmid, H, W))


# --------------------------------------------------------------------------
# Parameter setup (deterministic, matches PyTorch module shapes / semantics)
# --------------------------------------------------------------------------
def quadratic_structuring_element(k1, k2, ks=MORPH_KS):
    c = jnp.arange(-(ks // 2), ks // 2 + 1, dtype=jnp.float32)
    xg, yg = jnp.meshgrid(c, c, indexing='xy')
    se = k1 * xg ** 2 + k2 * yg ** 2
    se = se / jnp.max(se)
    return -se


def morpho_neighborhoods(se_dil, se_ero, ks=MORPH_KS):
    center = (ks // 2, ks // 2)
    nb_d = se_dil.at[center].set(-MAX_VAL)   # kernel center == 0 -> masked out
    nb_e = se_ero.at[center].set(-MAX_VAL)
    nb_d = jnp.flip(nb_d, (0, 1))            # kornia dilation flips the SE
    return nb_d.reshape(-1), nb_e.reshape(-1)


def init_conv(key, kh, kw, cin, cout):
    kw_key, kb_key = jax.random.split(key)
    fan_in = kh * kw * cin
    w = jax.random.normal(kw_key, (kh, kw, cin, cout), jnp.float32) / jnp.sqrt(fan_in)
    b = 0.1 * jax.random.normal(kb_key, (cout,), jnp.float32)
    return w, b


def init_rm(key, ks, cin, f1, f2, f3):
    k1, k2, k3, kr = jax.random.split(key, 4)
    w1, b1 = init_conv(k1, ks, ks, cin, f1)
    w2, b2 = init_conv(k2, ks, ks, f1, f2)
    w3, b3 = init_conv(k3, ks, ks, f2, f3)
    wr, br = init_conv(kr, ks, ks, cin, f1 + f2 + f3)
    return dict(w1=w1, b1=b1, w2=w2, b2=b2, w3=w3, b3=b3, wr=wr, br=br)


# --------------------------------------------------------------------------
# Pure-JAX reference for numerical verification (kornia 'unfold' semantics)
# --------------------------------------------------------------------------
def _conv_ref(x, w, b):
    y = jax.lax.conv_general_dilated(
        x, w, window_strides=(1, 1), padding='SAME',
        dimension_numbers=('NHWC', 'HWIO', 'NHWC'),
        precision=jax.lax.Precision.HIGHEST)
    return y + b


def _rm_ref(x, p):
    x1 = _conv_ref(x, p['w1'], p['b1'])
    x2 = _conv_ref(x1, p['w2'], p['b2'])
    x3 = _conv_ref(x2, p['w3'], p['b3'])
    return jnp.concatenate([x1, x2, x3], -1) + _conv_ref(x, p['wr'], p['br'])


def _morpho_ref(x, nb_d, nb_e):
    N, H, W, C = x.shape
    p = MORPH_KS // 2
    xd = jnp.pad(x, ((0, 0), (p, p), (p, p), (0, 0)), constant_values=-MAX_VAL)
    xe = jnp.pad(x, ((0, 0), (p, p), (p, p), (0, 0)), constant_values=MAX_VAL)
    nbd = nb_d.reshape(MORPH_KS, MORPH_KS)
    nbe = nb_e.reshape(MORPH_KS, MORPH_KS)
    d = jnp.stack([xd[:, dy:dy + H, dx:dx + W, :] + nbd[dy, dx]
                   for dy in range(MORPH_KS) for dx in range(MORPH_KS)]).max(0)
    e = jnp.stack([xe[:, dy:dy + H, dx:dx + W, :] - nbe[dy, dx]
                   for dy in range(MORPH_KS) for dx in range(MORPH_KS)]).min(0)
    return d - e


def mrm_ref(x_nchw, params):
    x = jnp.transpose(x_nchw, (0, 2, 3, 1))
    x = _rm_ref(x, params['rm1'])
    out = _morpho_ref(x, params['nb_d'], params['nb_e']) + _rm_ref(x, params['rm2'])
    return jnp.transpose(out, (0, 3, 1, 2))


# --------------------------------------------------------------------------
if __name__ == "__main__":
    key = jax.random.PRNGKey(0)
    k_rm1, k_rm2, k_dil, k_ero, k_x = jax.random.split(key, 5)

    N, Cin, H, W = 2, 4, 16, 16
    f1, f2, f3 = 4, 4, 4
    rm_ks = 3

    params = {
        'rm1': init_rm(k_rm1, rm_ks, Cin, f1, f2, f3),
        'rm2': init_rm(k_rm2, rm_ks, f1 + f2 + f3, f1, f2, f3),
    }

    # QuadraticMorpho params k1, k2 ~ U[0,1) per dilation/erosion module
    kd = jax.random.uniform(k_dil, (2,), jnp.float32)
    ke = jax.random.uniform(k_ero, (2,), jnp.float32)
    se_d = quadratic_structuring_element(kd[0], kd[1])
    se_e = quadratic_structuring_element(ke[0], ke[1])
    nb_d, nb_e = morpho_neighborhoods(se_d, se_e)
    params['nb_d'] = nb_d
    params['nb_e'] = nb_e

    x = jax.random.normal(k_x, (N, Cin, H, W), jnp.float32)

    out = mrm_block_forward(x, params)
    out = jax.block_until_ready(out)
    assert out.shape == (N, f1 + f2 + f3, H, W), out.shape
    assert bool(jnp.all(jnp.isfinite(out)))

    ref = mrm_ref(x, params)
    max_err = float(jnp.max(jnp.abs(out - ref)))
    assert max_err < 5e-2, f"max abs error vs reference: {max_err}"

    print("KERNEL_OK")
</pallas_src>

<mosaic_0001>
module attributes {stable_mosaic.version = 11 : i64} {
  func.func @kernel(%arg0: i32, %arg1: memref<75x256xf32, #tpu.memory_space<vmem>>, %arg2: memref<1x4x256xf32, #tpu.memory_space<vmem>>, %arg3: memref<16x37xf32, #tpu.memory_space<vmem>>, %arg4: memref<4x37xf32, #tpu.memory_space<vmem>>, %arg5: memref<4x37xf32, #tpu.memory_space<vmem>>, %arg6: memref<16x109xf32, #tpu.memory_space<vmem>>, %arg7: memref<4x37xf32, #tpu.memory_space<vmem>>, %arg8: memref<4x37xf32, #tpu.memory_space<vmem>>, %arg9: memref<1x12x256xf32, #tpu.memory_space<vmem>>, %arg10: memref<12x512xf32, #tpu.memory_space<vmem>>, %arg11: memref<109x256xf32, #tpu.memory_space<vmem>>) attributes {dimension_semantics = [#tpu.dimension_semantics<parallel>], iteration_bounds = array<i64: 2>, scalar_prefetch = 0 : i64, scratch_operands = 2 : i64, tpu.core_type = #tpu.core_type<tc>, window_params = [{pipeline_mode = #tpu.pipeline_mode<synchronous>, transform_indices = @transform_0, window_bounds = array<i64: 75, 256>}, {transform_indices = @transform_1, window_bounds = array<i64: 1, 4, 256>}, {pipeline_mode = #tpu.pipeline_mode<synchronous>, transform_indices = @transform_2, window_bounds = array<i64: 16, 37>}, {pipeline_mode = #tpu.pipeline_mode<synchronous>, transform_indices = @transform_3, window_bounds = array<i64: 4, 37>}, {pipeline_mode = #tpu.pipeline_mode<synchronous>, transform_indices = @transform_4, window_bounds = array<i64: 4, 37>}, {pipeline_mode = #tpu.pipeline_mode<synchronous>, transform_indices = @transform_5, window_bounds = array<i64: 16, 109>}, {pipeline_mode = #tpu.pipeline_mode<synchronous>, transform_indices = @transform_6, window_bounds = array<i64: 4, 37>}, {pipeline_mode = #tpu.pipeline_mode<synchronous>, transform_indices = @transform_7, window_bounds = array<i64: 4, 37>}, {transform_indices = @transform_8, window_bounds = array<i64: 1, 12, 256>}]} {
    %cst = arith.constant 0.000000e+00 : f32
    %0 = vector.broadcast %cst : f32 to vector<12x128xf32>
    %c0 = arith.constant 0 : index
    %c0_0 = arith.constant 0 : index
    %1 = vector.load %arg10[%c0, %c0_0] : memref<12x512xf32, #tpu.memory_space<vmem>>, vector<12x128xf32>
    tpu.vector_store %arg10[%c0, %c0_0], %0 {strides = array<i32>} : memref<12x512xf32, #tpu.memory_space<vmem>>, vector<12x128xf32>,
    %c0_1 = arith.constant 0 : index
    %c384 = arith.constant 384 : index
    %2 = vector.load %arg10[%c0_1, %c384] : memref<12x512xf32, #tpu.memory_space<vmem>>, vector<12x128xf32>
    tpu.vector_store %arg10[%c0_1, %c384], %0 {strides = array<i32>} : memref<12x512xf32, #tpu.memory_space<vmem>>, vector<12x128xf32>,
    %cst_2 = arith.constant 1.000000e+00 : f32
    %3 = vector.broadcast %cst_2 : f32 to vector<1x256xf32>
    %c0_3 = arith.constant 0 : index
    %c0_4 = arith.constant 0 : index
    %4 = vector.load %arg11[%c0_3, %c0_4] : memref<109x256xf32, #tpu.memory_space<vmem>>, vector<1x256xf32>
    tpu.vector_store %arg11[%c0_3, %c0_4], %3 {strides = array<i32>} : memref<109x256xf32, #tpu.memory_space<vmem>>, vector<1x256xf32>,
    %c0_5 = arith.constant 0 : index
    %c0_6 = arith.constant 0 : index
    %c0_7 = arith.constant 0 : index
    %5 = vector.load %arg2[%c0_5, %c0_6, %c0_7] : memref<1x4x256xf32, #tpu.memory_space<vmem>>, vector<1x4x256xf32>
    %6 = vector.shape_cast %5 : vector<1x4x256xf32> to vector<4x256xf32>
    %c0_8 = arith.constant 0 : index
    %c128 = arith.constant 128 : index
    %7 = vector.load %arg10[%c0_8, %c128] : memref<12x512xf32, #tpu.memory_space<vmem>>, vector<4x256xf32>
    tpu.vector_store %arg10[%c0_8, %c128], %6 {strides = array<i32>} : memref<12x512xf32, #tpu.memory_space<vmem>>, vector<4x256xf32>,
    %c0_9 = arith.constant 0 : index
    %c111 = arith.constant 111 : index
    %8 = vector.load %arg10[%c0_9, %c111] : memref<12x512xf32, #tpu.memory_space<vmem>>, vector<4x256xf32>
    %c6 = arith.constant 6 : index
    %c0_10 = arith.constant 0 : index
    %9 = vector.load %arg1[%c6, %c0_10] : memref<75x256xf32, #tpu.memory_space<vmem>>, vector<1x256xf32>
    %10 = vector.broadcast %9 : vector<1x256xf32> to vector<4x256xf32>
    %11 = arith.mulf %8, %10 : vector<4x256xf32>
    %c1 = arith.constant 1 : index
    %c0_11 = arith.constant 0 : index
    %12 = vector.load %arg11[%c1, %c0_11] : memref<109x256xf32, #tpu.memory_space<vmem>>, vector<4x256xf32>
    tpu.vector_store %arg11[%c1, %c0_11], %11 {strides = array<i32>} : memref<109x256xf32, #tpu.memory_space<vmem>>, vector<4x256xf32>,
    %c0_12 = arith.constant 0 : index
    %c112 = arith.constant 112 : index
    %13 = vector.load %arg10[%c0_12, %c112] : memref<12x512xf32, #tpu.memory_space<vmem>>, vector<4x256xf32>
    %c7 = arith.constant 7 : index
    %c0_13 = arith.constant 0 : index
    %14 = vector.load %arg1[%c7, %c0_13] : memref<75x256xf32, #tpu.memory_space<vmem>>, vector<1x256xf32>
    %15 = vector.broadcast %14 : vector<1x256xf32> to vector<4x256xf32>
    %16 = arith.mulf %13, %15 : vector<4x256xf32>
    %c5 = arith.constant 5 : index
    %c0_14 = arith.constant 0 : index
    %17 = vector.load %arg11[%c5, %c0_14] : memref<109x256xf32, #tpu.memory_space<vmem>>, vector<4x256xf32>
    tpu.vector_store %arg11[%c5, %c0_14], %16 {strides = array<i32>} : memref<109x256xf32, #tpu.memory_space<vmem>>, vector<4x256xf32>,
    %c0_15 = arith.constant 0 : index
    %c113 = arith.constant 113 : index
    %18 = vector.load %arg10[%c0_15, %c113] : memref<12x512xf32, #tpu.memory_space<vmem>>, vector<4x256xf32>
    %c8 = arith.constant 8 : index
    %c0_16 = arith.constant 0 : index
    %19 = vector.load %arg1[%c8, %c0_16] : memref<75x256xf32, #tpu.memory_space<vmem>>, vector<1x256xf32>
    %20 = vector.broadcast %19 : vector<1x256xf32> to vector<4x256xf32>
    %21 = arith.mulf %18, %20 : vector<4x256xf32>
    %c9 = arith.constant 9 : index
    %c0_17 = arith.constant 0 : index
    %22 = vector.load %arg11[%c9, %c0_17] : memref<109x256xf32, #tpu.memory_space<vmem>>, vector<4x256xf32>
    tpu.vector_store %arg11[%c9, %c0_17], %21 {strides = array<i32>} : memref<109x256xf32, #tpu.memory_space<vmem>>, vector<4x256xf32>,
    %c0_18 = arith.constant 0 : index
    %c127 = arith.constant 127 : index
    %23 = vector.load %arg10[%c0_18, %c127] : memref<12x512xf32, #tpu.memory_space<vmem>>, vector<4x256xf32>
    %c11 = arith.constant 11 : index
    %c0_19 = arith.constant 0 : index
    %24 = vector.load %arg1[%c11, %c0_19] : memref<75x256xf32, #tpu.memory_space<vmem>>, vector<1x256xf32>
    %25 = vector.broadcast %24 : vector<1x256xf32> to vector<4x256xf32>
    %26 = arith.mulf %23, %25 : vector<4x256xf32>
    %c13 = arith.constant 13 : index
    %c0_20 = arith.constant 0 : index
    %27 = vector.load %arg11[%c13, %c0_20] : memref<109x256xf32, #tpu.memory_space<vmem>>, vector<4x256xf32>
    tpu.vector_store %arg11[%c13, %c0_20], %26 {strides = array<i32>} : memref<109x256xf32, #tpu.memory_space<vmem>>, vector<4x256xf32>,
    %c0_21 = arith.constant 0 : index
    %c128_22 = arith.constant 128 : index
    %28 = vector.load %arg10[%c0_21, %c128_22] : memref<12x512xf32, #tpu.memory_space<vmem>>, vector<4x256xf32>
    %c12 = arith.constant 12 : index
    %c0_23 = arith.constant 0 : index
    %29 = vector.load %arg1[%c12, %c0_23] : memref<75x256xf32, #tpu.memory_space<vmem>>, vector<1x256xf32>
    %30 = vector.broadcast %29 : vector<1x256xf32> to vector<4x256xf32>
    %31 = arith.mulf %28, %30 : vector<4x256xf32>
    %c17 = arith.constant 17 : index
    %c0_24 = arith.constant 0 : index
    %32 = vector.load %arg11[%c17, %c0_24] : memref<109x256xf32, #tpu.memory_space<vmem>>, vector<4x256xf32>
    tpu.vector_store %arg11[%c17, %c0_24], %31 {strides = array<i32>} : memref<109x256xf32, #tpu.memory_space<vmem>>, vector<4x256xf32>,
    %c0_25 = arith.constant 0 : index
    %c129 = arith.constant 129 : index
    %33 = vector.load %arg10[%c0_25, %c129] : memref<12x512xf32, #tpu.memory_space<vmem>>, vector<4x256xf32>
    %c13_26 = arith.constant 13 : index
    %c0_27 = arith.constant 0 : index
    %34 = vector.load %arg1[%c13_26, %c0_27] : memref<75x256xf32, #tpu.memory_space<vmem>>, vector<1x256xf32>
    %35 = vector.broadcast %34 : vector<1x256xf32> to vector<4x256xf32>
    %36 = arith.mulf %33, %35 : vector<4x256xf32>
    %c21 = arith.constant 21 : index
    %c0_28 = arith.constant 0 : index
    %37 = vector.load %arg11[%c21, %c0_28] : memref<109x256xf32, #tpu.memory_space<vmem>>, vector<4x256xf32>
    tpu.vector_store %arg11[%c21, %c0_28], %36 {strides = array<i32>} : memref<109x256xf32, #tpu.memory_space<vmem>>, vector<4x256xf32>,
    %c0_29 = arith.constant 0 : index
    %c143 = arith.constant 143 : index
    %38 = vector.load %arg10[%c0_29, %c143] : memref<12x512xf32, #tpu.memory_space<vmem>>, vector<4x256xf32>
    %c16 = arith.constant 16 : index
    %c0_30 = arith.constant 0 : index
    %39 = vector.load %arg1[%c16, %c0_30] : memref<75x256xf32, #tpu.memory_space<vmem>>, vector<1x256xf32>
    %40 = vector.broadcast %39 : vector<1x256xf32> to vector<4x256xf32>
    %41 = arith.mulf %38, %40 : vector<4x256xf32>
    %c25 = arith.constant 25 : index
    %c0_31 = arith.constant 0 : index
    %42 = vector.load %arg11[%c25, %c0_31] : memref<109x256xf32, #tpu.memory_space<vmem>>, vector<4x256xf32>
    tpu.vector_store %arg11[%c25, %c0_31], %41 {strides = array<i32>} : memref<109x256xf32, #tpu.memory_space<vmem>>, vector<4x256xf32>,
    %c0_32 = arith.constant 0 : index
    %c144 = arith.constant 144 : index
    %43 = vector.load %arg10[%c0_32, %c144] : memref<12x512xf32, #tpu.memory_space<vmem>>, vector<4x256xf32>
    %c17_33 = arith.constant 17 : index
    %c0_34 = arith.constant 0 : index
    %44 = vector.load %arg1[%c17_33, %c0_34] : memref<75x256xf32, #tpu.memory_space<vmem>>, vector<1x256xf32>
    %45 = vector.broadcast %44 : vector<1x256xf32> to vector<4x256xf32>
    %46 = arith.mulf %43, %45 : vector<4x256xf32>
    %c29 = arith.constant 29 : index
    %c0_35 = arith.constant 0 : index
    %47 = vector.load %arg11[%c29, %c0_35] : memref<109x256xf32, #tpu.memory_space<vmem>>, vector<4x256xf32>
    tpu.vector_store %arg11[%c29, %c0_35], %46 {strides = array<i32>} : memref<109x256xf32, #tpu.memory_space<vmem>>, vector<4x256xf32>,
    %c0_36 = arith.constant 0 : index
    %c145 = arith.constant 145 : index
    %48 = vector.load %arg10[%c0_36, %c145] : memref<12x512xf32, #tpu.memory_space<vmem>>, vector<4x256xf32>
    %c18 = arith.constant 18 : index
    %c0_37 = arith.constant 0 : index
    %49 = vector.load %arg1[%c18, %c0_37] : memref<75x256xf32, #tpu.memory_space<vmem>>, vector<1x256xf32>
    %50 = vector.broadcast %49 : vector<1x256xf32> to vector<4x256xf32>
    %51 = arith.mulf %48, %50 : vector<4x256xf32>
    %c33 = arith.constant 33 : index
    %c0_38 = arith.constant 0 : index
    %52 = vector.load %arg11[%c33, %c0_38] : memref<109x256xf32, #tpu.memory_space<vmem>>, vector<4x256xf32>
    tpu.vector_store %arg11[%c33, %c0_38], %51 {strides = array<i32>} : memref<109x256xf32, #tpu.memory_space<vmem>>, vector<4x256xf32>,
    %c0_39 = arith.constant 0 : index
    %c0_40 = arith.constant 0 : index
    %53 = vector.load %arg3[%c0_39, %c0_40] : memref<16x37xf32, #tpu.memory_space<vmem>>, vector<16x37xf32>
    %c0_41 = arith.constant 0 : index
    %c0_42 = arith.constant 0 : index
    %54 = vector.load %arg11[%c0_41, %c0_42] : memref<109x256xf32, #tpu.memory_space<vmem>>, vector<37x256xf32>
    %cst_43 = arith.constant dense<0.000000e+00> : vector<16x256xf32>
    %55 = tpu.matmul %53, %54, %cst_43 {dimension_numbers = #tpu.dot_dimension_numbers<[1], [0], [0], [1], [0, 0, 1, 1], [], []>} : vector<16x37xf32>, vector<37x256xf32>, vector<16x256xf32> -> vector<16x256xf32>
    %56 = vector.extract_strided_slice %55 {offsets = [0, 0], sizes = [4, 256], strides = [1, 1]} : vector<16x256xf32> to vector<4x256xf32>
    %57 = vector.extract_strided_slice %55 {offsets = [4, 0], sizes = [12, 256], strides = [1, 1]} : vector<16x256xf32> to vector<12x256xf32>
    %c0_44 = arith.constant 0 : index
    %c128_45 = arith.constant 128 : index
    %58 = vector.load %arg10[%c0_44, %c128_45] : memref<12x512xf32, #tpu.memory_space<vmem>>, vector<4x256xf32>
    tpu.vector_store %arg10[%c0_44, %c128_45], %56 {strides = array<i32>} : memref<12x512xf32, #tpu.memory_space<vmem>>, vector<4x256xf32>,
    %c0_46 = arith.constant 0 : index
    %c111_47 = arith.constant 111 : index
    %59 = vector.load %arg10[%c0_46, %c111_47] : memref<12x512xf32, #tpu.memory_space<vmem>>, vector<4x256xf32>
    %c6_48 = arith.constant 6 : index
    %c0_49 = arith.constant 0 : index
    %60 = vector.load %arg1[%c6_48, %c0_49] : memref<75x256xf32, #tpu.memory_space<vmem>>, vector<1x256xf32>
    %61 = vector.broadcast %60 : vector<1x256xf32> to vector<4x256xf32>
    %62 = arith.mulf %59, %61 : vector<4x256xf32>
    %c1_50 = arith.constant 1 : index
    %c0_51 = arith.constant 0 : index
    %63 = vector.load %arg11[%c1_50, %c0_51] : memref<109x256xf32, #tpu.memory_space<vmem>>, vector<4x256xf32>
    tpu.vector_store %arg11[%c1_50, %c0_51], %62 {strides = array<i32>} : memref<109x256xf32, #tpu.memory_space<vmem>>, vector<4x256xf32>,
    %c0_52 = arith.constant 0 : index
    %c112_53 = arith.constant 112 : index
    %64 = vector.load %arg10[%c0_52, %c112_53] : memref<12x512xf32, #tpu.memory_space<vmem>>, vector<4x256xf32>
    %c7_54 = arith.constant 7 : index
    %c0_55 = arith.constant 0 : index
    %65 = vector.load %arg1[%c7_54, %c0_55] : memref<75x256xf32, #tpu.memory_space<vmem>>, vector<1x256xf32>
    %66 = vector.broadcast %65 : vector<1x256xf32> to vector<4x256xf32>
    %67 = arith.mulf %64, %66 : vector<4x256xf32>
    %c5_56 = arith.constant 5 : index
    %c0_57 = arith.constant 0 : index
    %68 = vector.load %arg11[%c5_56, %c0_57] : memref<109x256xf32, #tpu.memory_space<vmem>>, vector<4x256xf32>
    tpu.vector_store %arg11[%c5_56, %c0_57], %67 {strides = array<i32>} : memref<109x256xf32, #tpu.memory_space<vmem>>, vector<4x256xf32>,
    %c0_58 = arith.constant 0 : index
    %c113_59 = arith.constant 113 : index
    %69 = vector.load %arg10[%c0_58, %c113_59] : memref<12x512xf32, #tpu.memory_space<vmem>>, vector<4x256xf32>
    %c8_60 = arith.constant 8 : index
    %c0_61 = arith.constant 0 : index
    %70 = vector.load %arg1[%c8_60, %c0_61] : memref<75x256xf32, #tpu.memory_space<vmem>>, vector<1x256xf32>
    %71 = vector.broadcast %70 : vector<1x256xf32> to vector<4x256xf32>
    %72 = arith.mulf %69, %71 : vector<4x256xf32>
    %c9_62 = arith.constant 9 : index
    %c0_63 = arith.constant 0 : index
    %73 = vector.load %arg11[%c9_62, %c0_63] : memref<109x256xf32, #tpu.memory_space<vmem>>, vector<4x256xf32>
    tpu.vector_store %arg11[%c9_62, %c0_63], %72 {strides = array<i32>} : memref<109x256xf32, #tpu.memory_space<vmem>>, vector<4x256xf32>,
    %c0_64 = arith.constant 0 : index
    %c127_65 = arith.constant 127 : index
    %74 = vector.load %arg10[%c0_64, %c127_65] : memref<12x512xf32, #tpu.memory_space<vmem>>, vector<4x256xf32>
    %c11_66 = arith.constant 11 : index
    %c0_67 = arith.constant 0 : index
    %75 = vector.load %arg1[%c11_66, %c0_67] : memref<75x256xf32, #tpu.memory_space<vmem>>, vector<1x256xf32>
    %76 = vector.broadcast %75 : vector<1x256xf32> to vector<4x256xf32>
    %77 = arith.mulf %74, %76 : vector<4x256xf32>
    %c13_68 = arith.constant 13 : index
    %c0_69 = arith.constant 0 : index
    %78 = vector.load %arg11[%c13_68, %c0_69] : memref<109x256xf32, #tpu.memory_space<vmem>>, vector<4x256xf32>
    tpu.vector_store %arg11[%c13_68, %c0_69], %77 {strides = array<i32>} : memref<109x256xf32, #tpu.memory_space<vmem>>, vector<4x256xf32>,
    %c0_70 = arith.constant 0 : index
    %c128_71 = arith.constant 128 : index
    %79 = vector.load %arg10[%c0_70, %c128_71] : memref<12x512xf32, #tpu.memory_space<vmem>>, vector<4x256xf32>
    %c12_72 = arith.constant 12 : index
    %c0_73 = arith.constant 0 : index
    %80 = vector.load %arg1[%c12_72, %c0_73] : memref<75x256xf32, #tpu.memory_space<vmem>>, vector<1x256xf32>
    %81 = vector.broadcast %80 : vector<1x256xf32> to vector<4x256xf32>
    %82 = arith.mulf %79, %81 : vector<4x256xf32>
    %c17_74 = arith.constant 17 : index
    %c0_75 = arith.constant 0 : index
    %83 = vector.load %arg11[%c17_74, %c0_75] : memref<109x256xf32, #tpu.memory_space<vmem>>, vector<4x256xf32>
    tpu.vector_store %arg11[%c17_74, %c0_75], %82 {strides = array<i32>} : memref<109x256xf32, #tpu.memory_space<vmem>>, vector<4x256xf32>,
    %c0_76 = arith.constant 0 : index
    %c129_77 = arith.constant 129 : index
    %84 = vector.load %arg10[%c0_76, %c129_77] : memref<12x512xf32, #tpu.memory_space<vmem>>, vector<4x256xf32>
    %c13_78 = arith.constant 13 : index
    %c0_79 = arith.constant 0 : index
    %85 = vector.load %arg1[%c13_78, %c0_79] : memref<75x256xf32, #tpu.memory_space<vmem>>, vector<1x256xf32>
    %86 = vector.broadcast %85 : vector<1x256xf32> to vector<4x256xf32>
    %87 = arith.mulf %84, %86 : vector<4x256xf32>
    %c21_80 = arith.constant 21 : index
    %c0_81 = arith.constant 0 : index
    %88 = vector.load %arg11[%c21_80, %c0_81] : memref<109x256xf32, #tpu.memory_space<vmem>>, vector<4x256xf32>
    tpu.vector_store %arg11[%c21_80, %c0_81], %87 {strides = array<i32>} : memref<109x256xf32, #tpu.memory_space<vmem>>, vector<4x256xf32>,
    %c0_82 = arith.constant 0 : index
    %c143_83 = arith.constant 143 : index
    %89 = vector.load %arg10[%c0_82, %c143_83] : memref<12x512xf32, #tpu.memory_space<vmem>>, vector<4x256xf32>
    %c16_84 = arith.constant 16 : index
    %c0_85 = arith.constant 0 : index
    %90 = vector.load %arg1[%c16_84, %c0_85] : memref<75x256xf32, #tpu.memory_space<vmem>>, vector<1x256xf32>
    %91 = vector.broadcast %90 : vector<1x256xf32> to vector<4x256xf32>
    %92 = arith.mulf %89, %91 : vector<4x256xf32>
    %c25_86 = arith.constant 25 : index
    %c0_87 = arith.constant 0 : index
    %93 = vector.load %arg11[%c25_86, %c0_87] : memref<109x256xf32, #tpu.memory_space<vmem>>, vector<4x256xf32>
    tpu.vector_store %arg11[%c25_86, %c0_87], %92 {strides = array<i32>} : memref<109x256xf32, #tpu.memory_space<vmem>>, vector<4x256xf32>,
    %c0_88 = arith.constant 0 : index
    %c144_89 = arith.constant 144 : index
    %94 = vector.load %arg10[%c0_88, %c144_89] : memref<12x512xf32, #tpu.memory_space<vmem>>, vector<4x256xf32>
    %c17_90 = arith.constant 17 : index
    %c0_91 = arith.constant 0 : index
    %95 = vector.load %arg1[%c17_90, %c0_91] : memref<75x256xf32, #tpu.memory_space<vmem>>, vector<1x256xf32>
    %96 = vector.broadcast %95 : vector<1x256xf32> to vector<4x256xf32>
    %97 = arith.mulf %94, %96 : vector<4x256xf32>
    %c29_92 = arith.constant 29 : index
    %c0_93 = arith.constant 0 : index
    %98 = vector.load %arg11[%c29_92, %c0_93] : memref<109x256xf32, #tpu.memory_space<vmem>>, vector<4x256xf32>
    tpu.vector_store %arg11[%c29_92, %c0_93], %97 {strides = array<i32>} : memref<109x256xf32, #tpu.memory_space<vmem>>, vector<4x256xf32>,
    %c0_94 = arith.constant 0 : index
    %c145_95 = arith.constant 145 : index
    %99 = vector.load %arg10[%c0_94, %c145_95] : memref<12x512xf32, #tpu.memory_space<vmem>>, vector<4x256xf32>
    %c18_96 = arith.constant 18 : index
    %c0_97 = arith.constant 0 : index
    %100 = vector.load %arg1[%c18_96, %c0_97] : memref<75x256xf32, #tpu.memory_space<vmem>>, vector<1x256xf32>
    %101 = vector.broadcast %100 : vector<1x256xf32> to vector<4x256xf32>
    %102 = arith.mulf %99, %101 : vector<4x256xf32>
    %c33_98 = arith.constant 33 : index
    %c0_99 = arith.constant 0 : index
    %103 = vector.load %arg11[%c33_98, %c0_99] : memref<109x256xf32, #tpu.memory_space<vmem>>, vector<4x256xf32>
    tpu.vector_store %arg11[%c33_98, %c0_99], %102 {strides = array<i32>} : memref<109x256xf32, #tpu.memory_space<vmem>>, vector<4x256xf32>,
    %c0_100 = arith.constant 0 : index
    %c0_101 = arith.constant 0 : index
    %104 = vector.load %arg4[%c0_100, %c0_101] : memref<4x37xf32, #tpu.memory_space<vmem>>, vector<4x37xf32>
    %c0_102 = arith.constant 0 : index
    %c0_103 = arith.constant 0 : index
    %105 = vector.load %arg11[%c0_102, %c0_103] : memref<109x256xf32, #tpu.memory_space<vmem>>, vector<37x256xf32>
    %cst_104 = arith.constant dense<0.000000e+00> : vector<4x256xf32>
    %106 = tpu.matmul %104, %105, %cst_104 {dimension_numbers = #tpu.dot_dimension_numbers<[1], [0], [0], [1], [0, 0, 1, 1], [], []>} : vector<4x37xf32>, vector<37x256xf32>, vector<4x256xf32> -> vector<4x256xf32>
    %c0_105 = arith.constant 0 : index
    %c128_106 = arith.constant 128 : index
    %107 = vector.load %arg10[%c0_105, %c128_106] : memref<12x512xf32, #tpu.memory_space<vmem>>, vector<4x256xf32>
    tpu.vector_store %arg10[%c0_105, %c128_106], %106 {strides = array<i32>} : memref<12x512xf32, #tpu.memory_space<vmem>>, vector<4x256xf32>,
    %c0_107 = arith.constant 0 : index
    %c111_108 = arith.constant 111 : index
    %108 = vector.load %arg10[%c0_107, %c111_108] : memref<12x512xf32, #tpu.memory_space<vmem>>, vector<4x256xf32>
    %c6_109 = arith.constant 6 : index
    %c0_110 = arith.constant 0 : index
    %109 = vector.load %arg1[%c6_109, %c0_110] : memref<75x256xf32, #tpu.memory_space<vmem>>, vector<1x256xf32>
    %110 = vector.broadcast %109 : vector<1x256xf32> to vector<4x256xf32>
    %111 = arith.mulf %108, %110 : vector<4x256xf32>
    %c1_111 = arith.constant 1 : index
    %c0_112 = arith.constant 0 : index
    %112 = vector.load %arg11[%c1_111, %c0_112] : memref<109x256xf32, #tpu.memory_space<vmem>>, vector<4x256xf32>
    tpu.vector_store %arg11[%c1_111, %c0_112], %111 {strides = array<i32>} : memref<109x256xf32, #tpu.memory_space<vmem>>, vector<4x256xf32>,
    %c0_113 = arith.constant 0 : index
    %c112_114 = arith.constant 112 : index
    %113 = vector.load %arg10[%c0_113, %c112_114] : memref<12x512xf32, #tpu.memory_space<vmem>>, vector<4x256xf32>
    %c7_115 = arith.constant 7 : index
    %c0_116 = arith.constant 0 : index
    %114 = vector.load %arg1[%c7_115, %c0_116] : memref<75x256xf32, #tpu.memory_space<vmem>>, vector<1x256xf32>
    %115 = vector.broadcast %114 : vector<1x256xf32> to vector<4x256xf32>
    %116 = arith.mulf %113, %115 : vector<4x256xf32>
    %c5_117 = arith.constant 5 : index
    %c0_118 = arith.constant 0 : index
    %117 = vector.load %arg11[%c5_117, %c0_118] : memref<109x256xf32, #tpu.memory_space<vmem>>, vector<4x256xf32>
    tpu.vector_store %arg11[%c5_117, %c0_118], %116 {strides = array<i32>} : memref<109x256xf32, #tpu.memory_space<vmem>>, vector<4x256xf32>,
    %c0_119 = arith.constant 0 : index
    %c113_120 = arith.constant 113 : index
    %118 = vector.load %arg10[%c0_119, %c113_120] : memref<12x512xf32, #tpu.memory_space<vmem>>, vector<4x256xf32>
    %c8_121 = arith.constant 8 : index
    %c0_122 = arith.constant 0 : index
    %119 = vector.load %arg1[%c8_121, %c0_122] : memref<75x256xf32, #tpu.memory_space<vmem>>, vector<1x256xf32>
    %120 = vector.broadcast %119 : vector<1x256xf32> to vector<4x256xf32>
    %121 = arith.mulf %118, %120 : vector<4x256xf32>
    %c9_123 = arith.constant 9 : index
    %c0_124 = arith.constant 0 : index
    %122 = vector.load %arg11[%c9_123, %c0_124] : memref<109x256xf32, #tpu.memory_space<vmem>>, vector<4x256xf32>
    tpu.vector_store %arg11[%c9_123, %c0_124], %121 {strides = array<i32>} : memref<109x256xf32, #tpu.memory_space<vmem>>, vector<4x256xf32>,
    %c0_125 = arith.constant 0 : index
    %c127_126 = arith.constant 127 : index
    %123 = vector.load %arg10[%c0_125, %c127_126] : memref<12x512xf32, #tpu.memory_space<vmem>>, vector<4x256xf32>
    %c11_127 = arith.constant 11 : index
    %c0_128 = arith.constant 0 : index
    %124 = vector.load %arg1[%c11_127, %c0_128] : memref<75x256xf32, #tpu.memory_space<vmem>>, vector<1x256xf32>
    %125 = vector.broadcast %124 : vector<1x256xf32> to vector<4x256xf32>
    %126 = arith.mulf %123, %125 : vector<4x256xf32>
    %c13_129 = arith.constant 13 : index
    %c0_130 = arith.constant 0 : index
    %127 = vector.load %arg11[%c13_129, %c0_130] : memref<109x256xf32, #tpu.memory_space<vmem>>, vector<4x256xf32>
    tpu.vector_store %arg11[%c13_129, %c0_130], %126 {strides = array<i32>} : memref<109x256xf32, #tpu.memory_space<vmem>>, vector<4x256xf32>,
    %c0_131 = arith.constant 0 : index
    %c128_132 = arith.constant 128 : index
    %128 = vector.load %arg10[%c0_131, %c128_132] : memref<12x512xf32, #tpu.memory_space<vmem>>, vector<4x256xf32>
    %c12_133 = arith.constant 12 : index
    %c0_134 = arith.constant 0 : index
    %129 = vector.load %arg1[%c12_133, %c0_134] : memref<75x256xf32, #tpu.memory_space<vmem>>, vector<1x256xf32>
    %130 = vector.broadcast %129 : vector<1x256xf32> to vector<4x256xf32>
    %131 = arith.mulf %128, %130 : vector<4x256xf32>
    %c17_135 = arith.constant 17 : index
    %c0_136 = arith.constant 0 : index
    %132 = vector.load %arg11[%c17_135, %c0_136] : memref<109x256xf32, #tpu.memory_space<vmem>>, vector<4x256xf32>
    tpu.vector_store %arg11[%c17_135, %c0_136], %131 {strides = array<i32>} : memref<109x256xf32, #tpu.memory_space<vmem>>, vector<4x256xf32>,
    %c0_137 = arith.constant 0 : index
    %c129_138 = arith.constant 129 : index
    %133 = vector.load %arg10[%c0_137, %c129_138] : memref<12x512xf32, #tpu.memory_space<vmem>>, vector<4x256xf32>
    %c13_139 = arith.constant 13 : index
    %c0_140 = arith.constant 0 : index
    %134 = vector.load %arg1[%c13_139, %c0_140] : memref<75x256xf32, #tpu.memory_space<vmem>>, vector<1x256xf32>
    %135 = vector.broadcast %134 : vector<1x256xf32> to vector<4x256xf32>
    %136 = arith.mulf %133, %135 : vector<4x256xf32>
    %c21_141 = arith.constant 21 : index
    %c0_142 = arith.constant 0 : index
    %137 = vector.load %arg11[%c21_141, %c0_142] : memref<109x256xf32, #tpu.memory_space<vmem>>, vector<4x256xf32>
    tpu.vector_store %arg11[%c21_141, %c0_142], %136 {strides = array<i32>} : memref<109x256xf32, #tpu.memory_space<vmem>>, vector<4x256xf32>,
    %c0_143 = arith.constant 0 : index
    %c143_144 = arith.constant 143 : index
    %138 = vector.load %arg10[%c0_143, %c143_144] : memref<12x512xf32, #tpu.memory_space<vmem>>, vector<4x256xf32>
    %c16_145 = arith.constant 16 : index
    %c0_146 = arith.constant 0 : index
    %139 = vector.load %arg1[%c16_145, %c0_146] : memref<75x256xf32, #tpu.memory_space<vmem>>, vector<1x256xf32>
    %140 = vector.broadcast %139 : vector<1x256xf32> to vector<4x256xf32>
    %141 = arith.mulf %138, %140 : vector<4x256xf32>
    %c25_147 = arith.constant 25 : index
    %c0_148 = arith.constant 0 : index
    %142 = vector.load %arg11[%c25_147, %c0_148] : memref<109x256xf32, #tpu.memory_space<vmem>>, vector<4x256xf32>
    tpu.vector_store %arg11[%c25_147, %c0_148], %141 {strides = array<i32>} : memref<109x256xf32, #tpu.memory_space<vmem>>, vector<4x256xf32>,
    %c0_149 = arith.constant 0 : index
    %c144_150 = arith.constant 144 : index
    %143 = vector.load %arg10[%c0_149, %c144_150] : memref<12x512xf32, #tpu.memory_space<vmem>>, vector<4x256xf32>
    %c17_151 = arith.constant 17 : index
    %c0_152 = arith.constant 0 : index
    %144 = vector.load %arg1[%c17_151, %c0_152] : memref<75x256xf32, #tpu.memory_space<vmem>>, vector<1x256xf32>
    %145 = vector.broadcast %144 : vector<1x256xf32> to vector<4x256xf32>
    %146 = arith.mulf %143, %145 : vector<4x256xf32>
    %c29_153 = arith.constant 29 : index
    %c0_154 = arith.constant 0 : index
    %147 = vector.load %arg11[%c29_153, %c0_154] : memref<109x256xf32, #tpu.memory_space<vmem>>, vector<4x256xf32>
    tpu.vector_store %arg11[%c29_153, %c0_154], %146 {strides = array<i32>} : memref<109x256xf32, #tpu.memory_space<vmem>>, vector<4x256xf32>,
    %c0_155 = arith.constant 0 : index
    %c145_156 = arith.constant 145 : index
    %148 = vector.load %arg10[%c0_155, %c145_156] : memref<12x512xf32, #tpu.memory_space<vmem>>, vector<4x256xf32>
    %c18_157 = arith.constant 18 : index
    %c0_158 = arith.constant 0 : index
    %149 = vector.load %arg1[%c18_157, %c0_158] : memref<75x256xf32, #tpu.memory_space<vmem>>, vector<1x256xf32>
    %150 = vector.broadcast %149 : vector<1x256xf32> to vector<4x256xf32>
    %151 = arith.mulf %148, %150 : vector<4x256xf32>
    %c33_159 = arith.constant 33 : index
    %c0_160 = arith.constant 0 : index
    %152 = vector.load %arg11[%c33_159, %c0_160] : memref<109x256xf32, #tpu.memory_space<vmem>>, vector<4x256xf32>
    tpu.vector_store %arg11[%c33_159, %c0_160], %151 {strides = array<i32>} : memref<109x256xf32, #tpu.memory_space<vmem>>, vector<4x256xf32>,
    %c0_161 = arith.constant 0 : index
    %c0_162 = arith.constant 0 : index
    %153 = vector.load %arg5[%c0_161, %c0_162] : memref<4x37xf32, #tpu.memory_space<vmem>>, vector<4x37xf32>
    %c0_163 = arith.constant 0 : index
    %c0_164 = arith.constant 0 : index
    %154 = vector.load %arg11[%c0_163, %c0_164] : memref<109x256xf32, #tpu.memory_space<vmem>>, vector<37x256xf32>
    %cst_165 = arith.constant dense<0.000000e+00> : vector<4x256xf32>
    %155 = tpu.matmul %153, %154, %cst_165 {dimension_numbers = #tpu.dot_dimension_numbers<[1], [0], [0], [1], [0, 0, 1, 1], [], []>} : vector<4x37xf32>, vector<37x256xf32>, vector<4x256xf32> -> vector<4x256xf32>
    %156 = vector.extract_strided_slice %57 {offsets = [0, 0], sizes = [4, 256], strides = [1, 1]} : vector<12x256xf32> to vector<4x256xf32>
    %157 = arith.addf %56, %156 : vector<4x256xf32>
    %c0_166 = arith.constant 0 : index
    %c128_167 = arith.constant 128 : index
    %158 = vector.load %arg10[%c0_166, %c128_167] : memref<12x512xf32, #tpu.memory_space<vmem>>, vector<4x256xf32>
    tpu.vector_store %arg10[%c0_166, %c128_167], %157 {strides = array<i32>} : memref<12x512xf32, #tpu.memory_space<vmem>>, vector<4x256xf32>,
    %159 = vector.extract_strided_slice %57 {offsets = [4, 0], sizes = [4, 256], strides = [1, 1]} : vector<12x256xf32> to vector<4x256xf32>
    %160 = arith.addf %106, %159 : vector<4x256xf32>
    %c4 = arith.constant 4 : index
    %c128_168 = arith.constant 128 : index
    %161 = vector.load %arg10[%c4, %c128_168] : memref<12x512xf32, #tpu.memory_space<vmem>>, vector<4x256xf32>
    tpu.vector_store %arg10[%c4, %c128_168], %160 {strides = array<i32>} : memref<12x512xf32, #tpu.memory_space<vmem>>, vector<4x256xf32>,
    %162 = vector.extract_strided_slice %57 {offsets = [8, 0], sizes = [4, 256], strides = [1, 1]} : vector<12x256xf32> to vector<4x256xf32>
    %163 = arith.addf %155, %162 : vector<4x256xf32>
    %c8_169 = arith.constant 8 : index
    %c128_170 = arith.constant 128 : index
    %164 = vector.load %arg10[%c8_169, %c128_170] : memref<12x512xf32, #tpu.memory_space<vmem>>, vector<4x256xf32>
    tpu.vector_store %arg10[%c8_169, %c128_170], %163 {strides = array<i32>} : memref<12x512xf32, #tpu.memory_space<vmem>>, vector<4x256xf32>,
    %c0_171 = arith.constant 0 : index
    %c94 = arith.constant 94 : index
    %165 = vector.load %arg10[%c0_171, %c94] : memref<12x512xf32, #tpu.memory_space<vmem>>, vector<12x256xf32>
    %c0_172 = arith.constant 0 : index
    %c0_173 = arith.constant 0 : index
    %166 = vector.load %arg1[%c0_172, %c0_173] : memref<75x256xf32, #tpu.memory_space<vmem>>, vector<1x256xf32>
    %167 = vector.broadcast %166 : vector<1x256xf32> to vector<12x256xf32>
    %168 = arith.mulf %165, %167 : vector<12x256xf32>
    %c25_174 = arith.constant 25 : index
    %c0_175 = arith.constant 0 : index
    %169 = vector.load %arg1[%c25_174, %c0_175] : memref<75x256xf32, #tpu.memory_space<vmem>>, vector<1x256xf32>
    %170 = vector.broadcast %169 : vector<1x256xf32> to vector<12x256xf32>
    %171 = arith.addf %168, %170 : vector<12x256xf32>
    %c50 = arith.constant 50 : index
    %c0_176 = arith.constant 0 : index
    %172 = vector.load %arg1[%c50, %c0_176] : memref<75x256xf32, #tpu.memory_space<vmem>>, vector<1x256xf32>
    %173 = vector.broadcast %172 : vector<1x256xf32> to vector<12x256xf32>
    %174 = arith.addf %168, %173 : vector<12x256xf32>
    %c0_177 = arith.constant 0 : index
    %c95 = arith.constant 95 : index
    %175 = vector.load %arg10[%c0_177, %c95] : memref<12x512xf32, #tpu.memory_space<vmem>>, vector<12x256xf32>
    %c1_178 = arith.constant 1 : index
    %c0_179 = arith.constant 0 : index
    %176 = vector.load %arg1[%c1_178, %c0_179] : memref<75x256xf32, #tpu.memory_space<vmem>>, vector<1x256xf32>
    %177 = vector.broadcast %176 : vector<1x256xf32> to vector<12x256xf32>
    %178 = arith.mulf %175, %177 : vector<12x256xf32>
    %c26 = arith.constant 26 : index
    %c0_180 = arith.constant 0 : index
    %179 = vector.load %arg1[%c26, %c0_180] : memref<75x256xf32, #tpu.memory_space<vmem>>, vector<1x256xf32>
    %180 = vector.broadcast %179 : vector<1x256xf32> to vector<12x256xf32>
    %181 = arith.addf %178, %180 : vector<12x256xf32>
    %c51 = arith.constant 51 : index
    %c0_181 = arith.constant 0 : index
    %182 = vector.load %arg1[%c51, %c0_181] : memref<75x256xf32, #tpu.memory_space<vmem>>, vector<1x256xf32>
    %183 = vector.broadcast %182 : vector<1x256xf32> to vector<12x256xf32>
    %184 = arith.addf %178, %183 : vector<12x256xf32>
    %185 = arith.maximumf %171, %181 : vector<12x256xf32>
    %186 = arith.minimumf %174, %184 : vector<12x256xf32>
    %c0_182 = arith.constant 0 : index
    %c96 = arith.constant 96 : index
    %187 = vector.load %arg10[%c0_182, %c96] : memref<12x512xf32, #tpu.memory_space<vmem>>, vector<12x256xf32>
    %c2 = arith.constant 2 : index
    %c0_183 = arith.constant 0 : index
    %188 = vector.load %arg1[%c2, %c0_183] : memref<75x256xf32, #tpu.memory_space<vmem>>, vector<1x256xf32>
    %189 = vector.broadcast %188 : vector<1x256xf32> to vector<12x256xf32>
    %190 = arith.mulf %187, %189 : vector<12x256xf32>
    %c27 = arith.constant 27 : index
    %c0_184 = arith.constant 0 : index
    %191 = vector.load %arg1[%c27, %c0_184] : memref<75x256xf32, #tpu.memory_space<vmem>>, vector<1x256xf32>
    %192 = vector.broadcast %191 : vector<1x256xf32> to vector<12x256xf32>
    %193 = arith.addf %190, %192 : vector<12x256xf32>
    %c52 = arith.constant 52 : index
    %c0_185 = arith.constant 0 : index
    %194 = vector.load %arg1[%c52, %c0_185] : memref<75x256xf32, #tpu.memory_space<vmem>>, vector<1x256xf32>
    %195 = vector.broadcast %194 : vector<1x256xf32> to vector<12x256xf32>
    %196 = arith.addf %190, %195 : vector<12x256xf32>
    %197 = arith.maximumf %185, %193 : vector<12x256xf32>
    %198 = arith.minimumf %186, %196 : vector<12x256xf32>
    %c0_186 = arith.constant 0 : index
    %c97 = arith.constant 97 : index
    %199 = vector.load %arg10[%c0_186, %c97] : memref<12x512xf32, #tpu.memory_space<vmem>>, vector<12x256xf32>
    %c3 = arith.constant 3 : index
    %c0_187 = arith.constant 0 : index
    %200 = vector.load %arg1[%c3, %c0_187] : memref<75x256xf32, #tpu.memory_space<vmem>>, vector<1x256xf32>
    %201 = vector.broadcast %200 : vector<1x256xf32> to vector<12x256xf32>
    %202 = arith.mulf %199, %201 : vector<12x256xf32>
    %c28 = arith.constant 28 : index
    %c0_188 = arith.constant 0 : index
    %203 = vector.load %arg1[%c28, %c0_188] : memref<75x256xf32, #tpu.memory_space<vmem>>, vector<1x256xf32>
    %204 = vector.broadcast %203 : vector<1x256xf32> to vector<12x256xf32>
    %205 = arith.addf %202, %204 : vector<12x256xf32>
    %c53 = arith.constant 53 : index
    %c0_189 = arith.constant 0 : index
    %206 = vector.load %arg1[%c53, %c0_189] : memref<75x256xf32, #tpu.memory_space<vmem>>, vector<1x256xf32>
    %207 = vector.broadcast %206 : vector<1x256xf32> to vector<12x256xf32>
    %208 = arith.addf %202, %207 : vector<12x256xf32>
    %209 = arith.maximumf %197, %205 : vector<12x256xf32>
    %210 = arith.minimumf %198, %208 : vector<12x256xf32>
    %c0_190 = arith.constant 0 : index
    %c98 = arith.constant 98 : index
    %211 = vector.load %arg10[%c0_190, %c98] : memref<12x512xf32, #tpu.memory_space<vmem>>, vector<12x256xf32>
    %c4_191 = arith.constant 4 : index
    %c0_192 = arith.constant 0 : index
    %212 = vector.load %arg1[%c4_191, %c0_192] : memref<75x256xf32, #tpu.memory_space<vmem>>, vector<1x256xf32>
    %213 = vector.broadcast %212 : vector<1x256xf32> to vector<12x256xf32>
    %214 = arith.mulf %211, %213 : vector<12x256xf32>
    %c29_193 = arith.constant 29 : index
    %c0_194 = arith.constant 0 : index
    %215 = vector.load %arg1[%c29_193, %c0_194] : memref<75x256xf32, #tpu.memory_space<vmem>>, vector<1x256xf32>
    %216 = vector.broadcast %215 : vector<1x256xf32> to vector<12x256xf32>
    %217 = arith.addf %214, %216 : vector<12x256xf32>
    %c54 = arith.constant 54 : index
    %c0_195 = arith.constant 0 : index
    %218 = vector.load %arg1[%c54, %c0_195] : memref<75x256xf32, #tpu.memory_space<vmem>>, vector<1x256xf32>
    %219 = vector.broadcast %218 : vector<1x256xf32> to vector<12x256xf32>
    %220 = arith.addf %214, %219 : vector<12x256xf32>
    %221 = arith.maximumf %209, %217 : vector<12x256xf32>
    %222 = arith.minimumf %210, %220 : vector<12x256xf32>
    %c0_196 = arith.constant 0 : index
    %c110 = arith.constant 110 : index
    %223 = vector.load %arg10[%c0_196, %c110] : memref<12x512xf32, #tpu.memory_space<vmem>>, vector<12x256xf32>
    %c5_197 = arith.constant 5 : index
    %c0_198 = arith.constant 0 : index
    %224 = vector.load %arg1[%c5_197, %c0_198] : memref<75x256xf32, #tpu.memory_space<vmem>>, vector<1x256xf32>
    %225 = vector.broadcast %224 : vector<1x256xf32> to vector<12x256xf32>
    %226 = arith.mulf %223, %225 : vector<12x256xf32>
    %c30 = arith.constant 30 : index
    %c0_199 = arith.constant 0 : index
    %227 = vector.load %arg1[%c30, %c0_199] : memref<75x256xf32, #tpu.memory_space<vmem>>, vector<1x256xf32>
    %228 = vector.broadcast %227 : vector<1x256xf32> to vector<12x256xf32>
    %229 = arith.addf %226, %228 : vector<12x256xf32>
    %c55 = arith.constant 55 : index
    %c0_200 = arith.constant 0 : index
    %230 = vector.load %arg1[%c55, %c0_200] : memref<75x256xf32, #tpu.memory_space<vmem>>, vector<1x256xf32>
    %231 = vector.broadcast %230 : vector<1x256xf32> to vector<12x256xf32>
    %232 = arith.addf %226, %231 : vector<12x256xf32>
    %233 = arith.maximumf %221, %229 : vector<12x256xf32>
    %234 = arith.minimumf %222, %232 : vector<12x256xf32>
    %c0_201 = arith.constant 0 : index
    %c111_202 = arith.constant 111 : index
    %235 = vector.load %arg10[%c0_201, %c111_202] : memref<12x512xf32, #tpu.memory_space<vmem>>, vector<12x256xf32>
    %c6_203 = arith.constant 6 : index
    %c0_204 = arith.constant 0 : index
    %236 = vector.load %arg1[%c6_203, %c0_204] : memref<75x256xf32, #tpu.memory_space<vmem>>, vector<1x256xf32>
    %237 = vector.broadcast %236 : vector<1x256xf32> to vector<12x256xf32>
    %238 = arith.mulf %235, %237 : vector<12x256xf32>
    %c31 = arith.constant 31 : index
    %c0_205 = arith.constant 0 : index
    %239 = vector.load %arg1[%c31, %c0_205] : memref<75x256xf32, #tpu.memory_space<vmem>>, vector<1x256xf32>
    %240 = vector.broadcast %239 : vector<1x256xf32> to vector<12x256xf32>
    %241 = arith.addf %238, %240 : vector<12x256xf32>
    %c56 = arith.constant 56 : index
    %c0_206 = arith.constant 0 : index
    %242 = vector.load %arg1[%c56, %c0_206] : memref<75x256xf32, #tpu.memory_space<vmem>>, vector<1x256xf32>
    %243 = vector.broadcast %242 : vector<1x256xf32> to vector<12x256xf32>
    %244 = arith.addf %238, %243 : vector<12x256xf32>
    %245 = arith.maximumf %233, %241 : vector<12x256xf32>
    %246 = arith.minimumf %234, %244 : vector<12x256xf32>
    %c0_207 = arith.constant 0 : index
    %c112_208 = arith.constant 112 : index
    %247 = vector.load %arg10[%c0_207, %c112_208] : memref<12x512xf32, #tpu.memory_space<vmem>>, vector<12x256xf32>
    %c7_209 = arith.constant 7 : index
    %c0_210 = arith.constant 0 : index
    %248 = vector.load %arg1[%c7_209, %c0_210] : memref<75x256xf32, #tpu.memory_space<vmem>>, vector<1x256xf32>
    %249 = vector.broadcast %248 : vector<1x256xf32> to vector<12x256xf32>
    %250 = arith.mulf %247, %249 : vector<12x256xf32>
    %c32 = arith.constant 32 : index
    %c0_211 = arith.constant 0 : index
    %251 = vector.load %arg1[%c32, %c0_211] : memref<75x256xf32, #tpu.memory_space<vmem>>, vector<1x256xf32>
    %252 = vector.broadcast %251 : vector<1x256xf32> to vector<12x256xf32>
    %253 = arith.addf %250, %252 : vector<12x256xf32>
    %c57 = arith.constant 57 : index
    %c0_212 = arith.constant 0 : index
    %254 = vector.load %arg1[%c57, %c0_212] : memref<75x256xf32, #tpu.memory_space<vmem>>, vector<1x256xf32>
    %255 = vector.broadcast %254 : vector<1x256xf32> to vector<12x256xf32>
    %256 = arith.addf %250, %255 : vector<12x256xf32>
    %257 = arith.maximumf %245, %253 : vector<12x256xf32>
    %258 = arith.minimumf %246, %256 : vector<12x256xf32>
    %c0_213 = arith.constant 0 : index
    %c113_214 = arith.constant 113 : index
    %259 = vector.load %arg10[%c0_213, %c113_214] : memref<12x512xf32, #tpu.memory_space<vmem>>, vector<12x256xf32>
    %c8_215 = arith.constant 8 : index
    %c0_216 = arith.constant 0 : index
    %260 = vector.load %arg1[%c8_215, %c0_216] : memref<75x256xf32, #tpu.memory_space<vmem>>, vector<1x256xf32>
    %261 = vector.broadcast %260 : vector<1x256xf32> to vector<12x256xf32>
    %262 = arith.mulf %259, %261 : vector<12x256xf32>
    %c33_217 = arith.constant 33 : index
    %c0_218 = arith.constant 0 : index
    %263 = vector.load %arg1[%c33_217, %c0_218] : memref<75x256xf32, #tpu.memory_space<vmem>>, vector<1x256xf32>
    %264 = vector.broadcast %263 : vector<1x256xf32> to vector<12x256xf32>
    %265 = arith.addf %262, %264 : vector<12x256xf32>
    %c58 = arith.constant 58 : index
    %c0_219 = arith.constant 0 : index
    %266 = vector.load %arg1[%c58, %c0_219] : memref<75x256xf32, #tpu.memory_space<vmem>>, vector<1x256xf32>
    %267 = vector.broadcast %266 : vector<1x256xf32> to vector<12x256xf32>
    %268 = arith.addf %262, %267 : vector<12x256xf32>
    %269 = arith.maximumf %257, %265 : vector<12x256xf32>
    %270 = arith.minimumf %258, %268 : vector<12x256xf32>
    %c0_220 = arith.constant 0 : index
    %c114 = arith.constant 114 : index
    %271 = vector.load %arg10[%c0_220, %c114] : memref<12x512xf32, #tpu.memory_space<vmem>>, vector<12x256xf32>
    %c9_221 = arith.constant 9 : index
    %c0_222 = arith.constant 0 : index
    %272 = vector.load %arg1[%c9_221, %c0_222] : memref<75x256xf32, #tpu.memory_space<vmem>>, vector<1x256xf32>
    %273 = vector.broadcast %272 : vector<1x256xf32> to vector<12x256xf32>
    %274 = arith.mulf %271, %273 : vector<12x256xf32>
    %c34 = arith.constant 34 : index
    %c0_223 = arith.constant 0 : index
    %275 = vector.load %arg1[%c34, %c0_223] : memref<75x256xf32, #tpu.memory_space<vmem>>, vector<1x256xf32>
    %276 = vector.broadcast %275 : vector<1x256xf32> to vector<12x256xf32>
    %277 = arith.addf %274, %276 : vector<12x256xf32>
    %c59 = arith.constant 59 : index
    %c0_224 = arith.constant 0 : index
    %278 = vector.load %arg1[%c59, %c0_224] : memref<75x256xf32, #tpu.memory_space<vmem>>, vector<1x256xf32>
    %279 = vector.broadcast %278 : vector<1x256xf32> to vector<12x256xf32>
    %280 = arith.addf %274, %279 : vector<12x256xf32>
    %281 = arith.maximumf %269, %277 : vector<12x256xf32>
    %282 = arith.minimumf %270, %280 : vector<12x256xf32>
    %c0_225 = arith.constant 0 : index
    %c126 = arith.constant 126 : index
    %283 = vector.load %arg10[%c0_225, %c126] : memref<12x512xf32, #tpu.memory_space<vmem>>, vector<12x256xf32>
    %c10 = arith.constant 10 : index
    %c0_226 = arith.constant 0 : index
    %284 = vector.load %arg1[%c10, %c0_226] : memref<75x256xf32, #tpu.memory_space<vmem>>, vector<1x256xf32>
    %285 = vector.broadcast %284 : vector<1x256xf32> to vector<12x256xf32>
    %286 = arith.mulf %283, %285 : vector<12x256xf32>
    %c35 = arith.constant 35 : index
    %c0_227 = arith.constant 0 : index
    %287 = vector.load %arg1[%c35, %c0_227] : memref<75x256xf32, #tpu.memory_space<vmem>>, vector<1x256xf32>
    %288 = vector.broadcast %287 : vector<1x256xf32> to vector<12x256xf32>
    %289 = arith.addf %286, %288 : vector<12x256xf32>
    %c60 = arith.constant 60 : index
    %c0_228 = arith.constant 0 : index
    %290 = vector.load %arg1[%c60, %c0_228] : memref<75x256xf32, #tpu.memory_space<vmem>>, vector<1x256xf32>
    %291 = vector.broadcast %290 : vector<1x256xf32> to vector<12x256xf32>
    %292 = arith.addf %286, %291 : vector<12x256xf32>
    %293 = arith.maximumf %281, %289 : vector<12x256xf32>
    %294 = arith.minimumf %282, %292 : vector<12x256xf32>
    %c0_229 = arith.constant 0 : index
    %c127_230 = arith.constant 127 : index
    %295 = vector.load %arg10[%c0_229, %c127_230] : memref<12x512xf32, #tpu.memory_space<vmem>>, vector<12x256xf32>
    %c11_231 = arith.constant 11 : index
    %c0_232 = arith.constant 0 : index
    %296 = vector.load %arg1[%c11_231, %c0_232] : memref<75x256xf32, #tpu.memory_space<vmem>>, vector<1x256xf32>
    %297 = vector.broadcast %296 : vector<1x256xf32> to vector<12x256xf32>
    %298 = arith.mulf %295, %297 : vector<12x256xf32>
    %c36 = arith.constant 36 : index
    %c0_233 = arith.constant 0 : index
    %299 = vector.load %arg1[%c36, %c0_233] : memref<75x256xf32, #tpu.memory_space<vmem>>, vector<1x256xf32>
    %300 = vector.broadcast %299 : vector<1x256xf32> to vector<12x256xf32>
    %301 = arith.addf %298, %300 : vector<12x256xf32>
    %c61 = arith.constant 61 : index
    %c0_234 = arith.constant 0 : index
    %302 = vector.load %arg1[%c61, %c0_234] : memref<75x256xf32, #tpu.memory_space<vmem>>, vector<1x256xf32>
    %303 = vector.broadcast %302 : vector<1x256xf32> to vector<12x256xf32>
    %304 = arith.addf %298, %303 : vector<12x256xf32>
    %305 = arith.maximumf %293, %301 : vector<12x256xf32>
    %306 = arith.minimumf %294, %304 : vector<12x256xf32>
    %c0_235 = arith.constant 0 : index
    %c129_236 = arith.constant 129 : index
    %307 = vector.load %arg10[%c0_235, %c129_236] : memref<12x512xf32, #tpu.memory_space<vmem>>, vector<12x256xf32>
    %c13_237 = arith.constant 13 : index
    %c0_238 = arith.constant 0 : index
    %308 = vector.load %arg1[%c13_237, %c0_238] : memref<75x256xf32, #tpu.memory_space<vmem>>, vector<1x256xf32>
    %309 = vector.broadcast %308 : vector<1x256xf32> to vector<12x256xf32>
    %310 = arith.mulf %307, %309 : vector<12x256xf32>
    %c38 = arith.constant 38 : index
    %c0_239 = arith.constant 0 : index
    %311 = vector.load %arg1[%c38, %c0_239] : memref<75x256xf32, #tpu.memory_space<vmem>>, vector<1x256xf32>
    %312 = vector.broadcast %311 : vector<1x256xf32> to vector<12x256xf32>
    %313 = arith.addf %310, %312 : vector<12x256xf32>
    %c63 = arith.constant 63 : index
    %c0_240 = arith.constant 0 : index
    %314 = vector.load %arg1[%c63, %c0_240] : memref<75x256xf32, #tpu.memory_space<vmem>>, vector<1x256xf32>
    %315 = vector.broadcast %314 : vector<1x256xf32> to vector<12x256xf32>
    %316 = arith.addf %310, %315 : vector<12x256xf32>
    %317 = arith.maximumf %305, %313 : vector<12x256xf32>
    %318 = arith.minimumf %306, %316 : vector<12x256xf32>
    %c0_241 = arith.constant 0 : index
    %c130 = arith.constant 130 : index
    %319 = vector.load %arg10[%c0_241, %c130] : memref<12x512xf32, #tpu.memory_space<vmem>>, vector<12x256xf32>
    %c14 = arith.constant 14 : index
    %c0_242 = arith.constant 0 : index
    %320 = vector.load %arg1[%c14, %c0_242] : memref<75x256xf32, #tpu.memory_space<vmem>>, vector<1x256xf32>
    %321 = vector.broadcast %320 : vector<1x256xf32> to vector<12x256xf32>
    %322 = arith.mulf %319, %321 : vector<12x256xf32>
    %c39 = arith.constant 39 : index
    %c0_243 = arith.constant 0 : index
    %323 = vector.load %arg1[%c39, %c0_243] : memref<75x256xf32, #tpu.memory_space<vmem>>, vector<1x256xf32>
    %324 = vector.broadcast %323 : vector<1x256xf32> to vector<12x256xf32>
    %325 = arith.addf %322, %324 : vector<12x256xf32>
    %c64 = arith.constant 64 : index
    %c0_244 = arith.constant 0 : index
    %326 = vector.load %arg1[%c64, %c0_244] : memref<75x256xf32, #tpu.memory_space<vmem>>, vector<1x256xf32>
    %327 = vector.broadcast %326 : vector<1x256xf32> to vector<12x256xf32>
    %328 = arith.addf %322, %327 : vector<12x256xf32>
    %329 = arith.maximumf %317, %325 : vector<12x256xf32>
    %330 = arith.minimumf %318, %328 : vector<12x256xf32>
    %c0_245 = arith.constant 0 : index
    %c142 = arith.constant 142 : index
    %331 = vector.load %arg10[%c0_245, %c142] : memref<12x512xf32, #tpu.memory_space<vmem>>, vector<12x256xf32>
    %c15 = arith.constant 15 : index
    %c0_246 = arith.constant 0 : index
    %332 = vector.load %arg1[%c15, %c0_246] : memref<75x256xf32, #tpu.memory_space<vmem>>, vector<1x256xf32>
    %333 = vector.broadcast %332 : vector<1x256xf32> to vector<12x256xf32>
    %334 = arith.mulf %331, %333 : vector<12x256xf32>
    %c40 = arith.constant 40 : index
    %c0_247 = arith.constant 0 : index
    %335 = vector.load %arg1[%c40, %c0_247] : memref<75x256xf32, #tpu.memory_space<vmem>>, vector<1x256xf32>
    %336 = vector.broadcast %335 : vector<1x256xf32> to vector<12x256xf32>
    %337 = arith.addf %334, %336 : vector<12x256xf32>
    %c65 = arith.constant 65 : index
    %c0_248 = arith.constant 0 : index
    %338 = vector.load %arg1[%c65, %c0_248] : memref<75x256xf32, #tpu.memory_space<vmem>>, vector<1x256xf32>
    %339 = vector.broadcast %338 : vector<1x256xf32> to vector<12x256xf32>
    %340 = arith.addf %334, %339 : vector<12x256xf32>
    %341 = arith.maximumf %329, %337 : vector<12x256xf32>
    %342 = arith.minimumf %330, %340 : vector<12x256xf32>
    %c0_249 = arith.constant 0 : index
    %c143_250 = arith.constant 143 : index
    %343 = vector.load %arg10[%c0_249, %c143_250] : memref<12x512xf32, #tpu.memory_space<vmem>>, vector<12x256xf32>
    %c16_251 = arith.constant 16 : index
    %c0_252 = arith.constant 0 : index
    %344 = vector.load %arg1[%c16_251, %c0_252] : memref<75x256xf32, #tpu.memory_space<vmem>>, vector<1x256xf32>
    %345 = vector.broadcast %344 : vector<1x256xf32> to vector<12x256xf32>
    %346 = arith.mulf %343, %345 : vector<12x256xf32>
    %c41 = arith.constant 41 : index
    %c0_253 = arith.constant 0 : index
    %347 = vector.load %arg1[%c41, %c0_253] : memref<75x256xf32, #tpu.memory_space<vmem>>, vector<1x256xf32>
    %348 = vector.broadcast %347 : vector<1x256xf32> to vector<12x256xf32>
    %349 = arith.addf %346, %348 : vector<12x256xf32>
    %c66 = arith.constant 66 : index
    %c0_254 = arith.constant 0 : index
    %350 = vector.load %arg1[%c66, %c0_254] : memref<75x256xf32, #tpu.memory_space<vmem>>, vector<1x256xf32>
    %351 = vector.broadcast %350 : vector<1x256xf32> to vector<12x256xf32>
    %352 = arith.addf %346, %351 : vector<12x256xf32>
    %353 = arith.maximumf %341, %349 : vector<12x256xf32>
    %354 = arith.minimumf %342, %352 : vector<12x256xf32>
    %c0_255 = arith.constant 0 : index
    %c144_256 = arith.constant 144 : index
    %355 = vector.load %arg10[%c0_255, %c144_256] : memref<12x512xf32, #tpu.memory_space<vmem>>, vector<12x256xf32>
    %c17_257 = arith.constant 17 : index
    %c0_258 = arith.constant 0 : index
    %356 = vector.load %arg1[%c17_257, %c0_258] : memref<75x256xf32, #tpu.memory_space<vmem>>, vector<1x256xf32>
    %357 = vector.broadcast %356 : vector<1x256xf32> to vector<12x256xf32>
    %358 = arith.mulf %355, %357 : vector<12x256xf32>
    %c42 = arith.constant 42 : index
    %c0_259 = arith.constant 0 : index
    %359 = vector.load %arg1[%c42, %c0_259] : memref<75x256xf32, #tpu.memory_space<vmem>>, vector<1x256xf32>
    %360 = vector.broadcast %359 : vector<1x256xf32> to vector<12x256xf32>
    %361 = arith.addf %358, %360 : vector<12x256xf32>
    %c67 = arith.constant 67 : index
    %c0_260 = arith.constant 0 : index
    %362 = vector.load %arg1[%c67, %c0_260] : memref<75x256xf32, #tpu.memory_space<vmem>>, vector<1x256xf32>
    %363 = vector.broadcast %362 : vector<1x256xf32> to vector<12x256xf32>
    %364 = arith.addf %358, %363 : vector<12x256xf32>
    %365 = arith.maximumf %353, %361 : vector<12x256xf32>
    %366 = arith.minimumf %354, %364 : vector<12x256xf32>
    %c0_261 = arith.constant 0 : index
    %c145_262 = arith.constant 145 : index
    %367 = vector.load %arg10[%c0_261, %c145_262] : memref<12x512xf32, #tpu.memory_space<vmem>>, vector<12x256xf32>
    %c18_263 = arith.constant 18 : index
    %c0_264 = arith.constant 0 : index
    %368 = vector.load %arg1[%c18_263, %c0_264] : memref<75x256xf32, #tpu.memory_space<vmem>>, vector<1x256xf32>
    %369 = vector.broadcast %368 : vector<1x256xf32> to vector<12x256xf32>
    %370 = arith.mulf %367, %369 : vector<12x256xf32>
    %c43 = arith.constant 43 : index
    %c0_265 = arith.constant 0 : index
    %371 = vector.load %arg1[%c43, %c0_265] : memref<75x256xf32, #tpu.memory_space<vmem>>, vector<1x256xf32>
    %372 = vector.broadcast %371 : vector<1x256xf32> to vector<12x256xf32>
    %373 = arith.addf %370, %372 : vector<12x256xf32>
    %c68 = arith.constant 68 : index
    %c0_266 = arith.constant 0 : index
    %374 = vector.load %arg1[%c68, %c0_266] : memref<75x256xf32, #tpu.memory_space<vmem>>, vector<1x256xf32>
    %375 = vector.broadcast %374 : vector<1x256xf32> to vector<12x256xf32>
    %376 = arith.addf %370, %375 : vector<12x256xf32>
    %377 = arith.maximumf %365, %373 : vector<12x256xf32>
    %378 = arith.minimumf %366, %376 : vector<12x256xf32>
    %c0_267 = arith.constant 0 : index
    %c146 = arith.constant 146 : index
    %379 = vector.load %arg10[%c0_267, %c146] : memref<12x512xf32, #tpu.memory_space<vmem>>, vector<12x256xf32>
    %c19 = arith.constant 19 : index
    %c0_268 = arith.constant 0 : index
    %380 = vector.load %arg1[%c19, %c0_268] : memref<75x256xf32, #tpu.memory_space<vmem>>, vector<1x256xf32>
    %381 = vector.broadcast %380 : vector<1x256xf32> to vector<12x256xf32>
    %382 = arith.mulf %379, %381 : vector<12x256xf32>
    %c44 = arith.constant 44 : index
    %c0_269 = arith.constant 0 : index
    %383 = vector.load %arg1[%c44, %c0_269] : memref<75x256xf32, #tpu.memory_space<vmem>>, vector<1x256xf32>
    %384 = vector.broadcast %383 : vector<1x256xf32> to vector<12x256xf32>
    %385 = arith.addf %382, %384 : vector<12x256xf32>
    %c69 = arith.constant 69 : index
    %c0_270 = arith.constant 0 : index
    %386 = vector.load %arg1[%c69, %c0_270] : memref<75x256xf32, #tpu.memory_space<vmem>>, vector<1x256xf32>
    %387 = vector.broadcast %386 : vector<1x256xf32> to vector<12x256xf32>
    %388 = arith.addf %382, %387 : vector<12x256xf32>
    %389 = arith.maximumf %377, %385 : vector<12x256xf32>
    %390 = arith.minimumf %378, %388 : vector<12x256xf32>
    %c0_271 = arith.constant 0 : index
    %c158 = arith.constant 158 : index
    %391 = vector.load %arg10[%c0_271, %c158] : memref<12x512xf32, #tpu.memory_space<vmem>>, vector<12x256xf32>
    %c20 = arith.constant 20 : index
    %c0_272 = arith.constant 0 : index
    %392 = vector.load %arg1[%c20, %c0_272] : memref<75x256xf32, #tpu.memory_space<vmem>>, vector<1x256xf32>
    %393 = vector.broadcast %392 : vector<1x256xf32> to vector<12x256xf32>
    %394 = arith.mulf %391, %393 : vector<12x256xf32>
    %c45 = arith.constant 45 : index
    %c0_273 = arith.constant 0 : index
    %395 = vector.load %arg1[%c45, %c0_273] : memref<75x256xf32, #tpu.memory_space<vmem>>, vector<1x256xf32>
    %396 = vector.broadcast %395 : vector<1x256xf32> to vector<12x256xf32>
    %397 = arith.addf %394, %396 : vector<12x256xf32>
    %c70 = arith.constant 70 : index
    %c0_274 = arith.constant 0 : index
    %398 = vector.load %arg1[%c70, %c0_274] : memref<75x256xf32, #tpu.memory_space<vmem>>, vector<1x256xf32>
    %399 = vector.broadcast %398 : vector<1x256xf32> to vector<12x256xf32>
    %400 = arith.addf %394, %399 : vector<12x256xf32>
    %401 = arith.maximumf %389, %397 : vector<12x256xf32>
    %402 = arith.minimumf %390, %400 : vector<12x256xf32>
    %c0_275 = arith.constant 0 : index
    %c159 = arith.constant 159 : index
    %403 = vector.load %arg10[%c0_275, %c159] : memref<12x512xf32, #tpu.memory_space<vmem>>, vector<12x256xf32>
    %c21_276 = arith.constant 21 : index
    %c0_277 = arith.constant 0 : index
    %404 = vector.load %arg1[%c21_276, %c0_277] : memref<75x256xf32, #tpu.memory_space<vmem>>, vector<1x256xf32>
    %405 = vector.broadcast %404 : vector<1x256xf32> to vector<12x256xf32>
    %406 = arith.mulf %403, %405 : vector<12x256xf32>
    %c46 = arith.constant 46 : index
    %c0_278 = arith.constant 0 : index
    %407 = vector.load %arg1[%c46, %c0_278] : memref<75x256xf32, #tpu.memory_space<vmem>>, vector<1x256xf32>
    %408 = vector.broadcast %407 : vector<1x256xf32> to vector<12x256xf32>
    %409 = arith.addf %406, %408 : vector<12x256xf32>
    %c71 = arith.constant 71 : index
    %c0_279 = arith.constant 0 : index
    %410 = vector.load %arg1[%c71, %c0_279] : memref<75x256xf32, #tpu.memory_space<vmem>>, vector<1x256xf32>
    %411 = vector.broadcast %410 : vector<1x256xf32> to vector<12x256xf32>
    %412 = arith.addf %406, %411 : vector<12x256xf32>
    %413 = arith.maximumf %401, %409 : vector<12x256xf32>
    %414 = arith.minimumf %402, %412 : vector<12x256xf32>
    %c0_280 = arith.constant 0 : index
    %c160 = arith.constant 160 : index
    %415 = vector.load %arg10[%c0_280, %c160] : memref<12x512xf32, #tpu.memory_space<vmem>>, vector<12x256xf32>
    %c22 = arith.constant 22 : index
    %c0_281 = arith.constant 0 : index
    %416 = vector.load %arg1[%c22, %c0_281] : memref<75x256xf32, #tpu.memory_space<vmem>>, vector<1x256xf32>
    %417 = vector.broadcast %416 : vector<1x256xf32> to vector<12x256xf32>
    %418 = arith.mulf %415, %417 : vector<12x256xf32>
    %c47 = arith.constant 47 : index
    %c0_282 = arith.constant 0 : index
    %419 = vector.load %arg1[%c47, %c0_282] : memref<75x256xf32, #tpu.memory_space<vmem>>, vector<1x256xf32>
    %420 = vector.broadcast %419 : vector<1x256xf32> to vector<12x256xf32>
    %421 = arith.addf %418, %420 : vector<12x256xf32>
    %c72 = arith.constant 72 : index
    %c0_283 = arith.constant 0 : index
    %422 = vector.load %arg1[%c72, %c0_283] : memref<75x256xf32, #tpu.memory_space<vmem>>, vector<1x256xf32>
    %423 = vector.broadcast %422 : vector<1x256xf32> to vector<12x256xf32>
    %424 = arith.addf %418, %423 : vector<12x256xf32>
    %425 = arith.maximumf %413, %421 : vector<12x256xf32>
    %426 = arith.minimumf %414, %424 : vector<12x256xf32>
    %c0_284 = arith.constant 0 : index
    %c161 = arith.constant 161 : index
    %427 = vector.load %arg10[%c0_284, %c161] : memref<12x512xf32, #tpu.memory_space<vmem>>, vector<12x256xf32>
    %c23 = arith.constant 23 : index
    %c0_285 = arith.constant 0 : index
    %428 = vector.load %arg1[%c23, %c0_285] : memref<75x256xf32, #tpu.memory_space<vmem>>, vector<1x256xf32>
    %429 = vector.broadcast %428 : vector<1x256xf32> to vector<12x256xf32>
    %430 = arith.mulf %427, %429 : vector<12x256xf32>
    %c48 = arith.constant 48 : index
    %c0_286 = arith.constant 0 : index
    %431 = vector.load %arg1[%c48, %c0_286] : memref<75x256xf32, #tpu.memory_space<vmem>>, vector<1x256xf32>
    %432 = vector.broadcast %431 : vector<1x256xf32> to vector<12x256xf32>
    %433 = arith.addf %430, %432 : vector<12x256xf32>
    %c73 = arith.constant 73 : index
    %c0_287 = arith.constant 0 : index
    %434 = vector.load %arg1[%c73, %c0_287] : memref<75x256xf32, #tpu.memory_space<vmem>>, vector<1x256xf32>
    %435 = vector.broadcast %434 : vector<1x256xf32> to vector<12x256xf32>
    %436 = arith.addf %430, %435 : vector<12x256xf32>
    %437 = arith.maximumf %425, %433 : vector<12x256xf32>
    %438 = arith.minimumf %426, %436 : vector<12x256xf32>
    %c0_288 = arith.constant 0 : index
    %c162 = arith.constant 162 : index
    %439 = vector.load %arg10[%c0_288, %c162] : memref<12x512xf32, #tpu.memory_space<vmem>>, vector<12x256xf32>
    %c24 = arith.constant 24 : index
    %c0_289 = arith.constant 0 : index
    %440 = vector.load %arg1[%c24, %c0_289] : memref<75x256xf32, #tpu.memory_space<vmem>>, vector<1x256xf32>
    %441 = vector.broadcast %440 : vector<1x256xf32> to vector<12x256xf32>
    %442 = arith.mulf %439, %441 : vector<12x256xf32>
    %c49 = arith.constant 49 : index
    %c0_290 = arith.constant 0 : index
    %443 = vector.load %arg1[%c49, %c0_290] : memref<75x256xf32, #tpu.memory_space<vmem>>, vector<1x256xf32>
    %444 = vector.broadcast %443 : vector<1x256xf32> to vector<12x256xf32>
    %445 = arith.addf %442, %444 : vector<12x256xf32>
    %c74 = arith.constant 74 : index
    %c0_291 = arith.constant 0 : index
    %446 = vector.load %arg1[%c74, %c0_291] : memref<75x256xf32, #tpu.memory_space<vmem>>, vector<1x256xf32>
    %447 = vector.broadcast %446 : vector<1x256xf32> to vector<12x256xf32>
    %448 = arith.addf %442, %447 : vector<12x256xf32>
    %449 = arith.maximumf %437, %445 : vector<12x256xf32>
    %450 = arith.minimumf %438, %448 : vector<12x256xf32>
    %451 = arith.subf %449, %450 : vector<12x256xf32>
    %c0_292 = arith.constant 0 : index
    %c111_293 = arith.constant 111 : index
    %452 = vector.load %arg10[%c0_292, %c111_293] : memref<12x512xf32, #tpu.memory_space<vmem>>, vector<12x256xf32>
    %c6_294 = arith.constant 6 : index
    %c0_295 = arith.constant 0 : index
    %453 = vector.load %arg1[%c6_294, %c0_295] : memref<75x256xf32, #tpu.memory_space<vmem>>, vector<1x256xf32>
    %454 = vector.broadcast %453 : vector<1x256xf32> to vector<12x256xf32>
    %455 = arith.mulf %452, %454 : vector<12x256xf32>
    %c1_296 = arith.constant 1 : index
    %c0_297 = arith.constant 0 : index
    %456 = vector.load %arg11[%c1_296, %c0_297] : memref<109x256xf32, #tpu.memory_space<vmem>>, vector<12x256xf32>
    tpu.vector_store %arg11[%c1_296, %c0_297], %455 {strides = array<i32>} : memref<109x256xf32, #tpu.memory_space<vmem>>, vector<12x256xf32>,
    %c0_298 = arith.constant 0 : index
    %c112_299 = arith.constant 112 : index
    %457 = vector.load %arg10[%c0_298, %c112_299] : memref<12x512xf32, #tpu.memory_space<vmem>>, vector<12x256xf32>
    %c7_300 = arith.constant 7 : index
    %c0_301 = arith.constant 0 : index
    %458 = vector.load %arg1[%c7_300, %c0_301] : memref<75x256xf32, #tpu.memory_space<vmem>>, vector<1x256xf32>
    %459 = vector.broadcast %458 : vector<1x256xf32> to vector<12x256xf32>
    %460 = arith.mulf %457, %459 : vector<12x256xf32>
    %c13_302 = arith.constant 13 : index
    %c0_303 = arith.constant 0 : index
    %461 = vector.load %arg11[%c13_302, %c0_303] : memref<109x256xf32, #tpu.memory_space<vmem>>, vector<12x256xf32>
    tpu.vector_store %arg11[%c13_302, %c0_303], %460 {strides = array<i32>} : memref<109x256xf32, #tpu.memory_space<vmem>>, vector<12x256xf32>,
    %c0_304 = arith.constant 0 : index
    %c113_305 = arith.constant 113 : index
    %462 = vector.load %arg10[%c0_304, %c113_305] : memref<12x512xf32, #tpu.memory_space<vmem>>, vector<12x256xf32>
    %c8_306 = arith.constant 8 : index
    %c0_307 = arith.constant 0 : index
    %463 = vector.load %arg1[%c8_306, %c0_307] : memref<75x256xf32, #tpu.memory_space<vmem>>, vector<1x256xf32>
    %464 = vector.broadcast %463 : vector<1x256xf32> to vector<12x256xf32>
    %465 = arith.mulf %462, %464 : vector<12x256xf32>
    %c25_308 = arith.constant 25 : index
    %c0_309 = arith.constant 0 : index
    %466 = vector.load %arg11[%c25_308, %c0_309] : memref<109x256xf32, #tpu.memory_space<vmem>>, vector<12x256xf32>
    tpu.vector_store %arg11[%c25_308, %c0_309], %465 {strides = array<i32>} : memref<109x256xf32, #tpu.memory_space<vmem>>, vector<12x256xf32>,
    %c0_310 = arith.constant 0 : index
    %c127_311 = arith.constant 127 : index
    %467 = vector.load %arg10[%c0_310, %c127_311] : memref<12x512xf32, #tpu.memory_space<vmem>>, vector<12x256xf32>
    %c11_312 = arith.constant 11 : index
    %c0_313 = arith.constant 0 : index
    %468 = vector.load %arg1[%c11_312, %c0_313] : memref<75x256xf32, #tpu.memory_space<vmem>>, vector<1x256xf32>
    %469 = vector.broadcast %468 : vector<1x256xf32> to vector<12x256xf32>
    %470 = arith.mulf %467, %469 : vector<12x256xf32>
    %c37 = arith.constant 37 : index
    %c0_314 = arith.constant 0 : index
    %471 = vector.load %arg11[%c37, %c0_314] : memref<109x256xf32, #tpu.memory_space<vmem>>, vector<12x256xf32>
    tpu.vector_store %arg11[%c37, %c0_314], %470 {strides = array<i32>} : memref<109x256xf32, #tpu.memory_space<vmem>>, vector<12x256xf32>,
    %c0_315 = arith.constant 0 : index
    %c128_316 = arith.constant 128 : index
    %472 = vector.load %arg10[%c0_315, %c128_316] : memref<12x512xf32, #tpu.memory_space<vmem>>, vector<12x256xf32>
    %c12_317 = arith.constant 12 : index
    %c0_318 = arith.constant 0 : index
    %473 = vector.load %arg1[%c12_317, %c0_318] : memref<75x256xf32, #tpu.memory_space<vmem>>, vector<1x256xf32>
    %474 = vector.broadcast %473 : vector<1x256xf32> to vector<12x256xf32>
    %475 = arith.mulf %472, %474 : vector<12x256xf32>
    %c49_319 = arith.constant 49 : index
    %c0_320 = arith.constant 0 : index
    %476 = vector.load %arg11[%c49_319, %c0_320] : memref<109x256xf32, #tpu.memory_space<vmem>>, vector<12x256xf32>
    tpu.vector_store %arg11[%c49_319, %c0_320], %475 {strides = array<i32>} : memref<109x256xf32, #tpu.memory_space<vmem>>, vector<12x256xf32>,
    %c0_321 = arith.constant 0 : index
    %c129_322 = arith.constant 129 : index
    %477 = vector.load %arg10[%c0_321, %c129_322] : memref<12x512xf32, #tpu.memory_space<vmem>>, vector<12x256xf32>
    %c13_323 = arith.constant 13 : index
    %c0_324 = arith.constant 0 : index
    %478 = vector.load %arg1[%c13_323, %c0_324] : memref<75x256xf32, #tpu.memory_space<vmem>>, vector<1x256xf32>
    %479 = vector.broadcast %478 : vector<1x256xf32> to vector<12x256xf32>
    %480 = arith.mulf %477, %479 : vector<12x256xf32>
    %c61_325 = arith.constant 61 : index
    %c0_326 = arith.constant 0 : index
    %481 = vector.load %arg11[%c61_325, %c0_326] : memref<109x256xf32, #tpu.memory_space<vmem>>, vector<12x256xf32>
    tpu.vector_store %arg11[%c61_325, %c0_326], %480 {strides = array<i32>} : memref<109x256xf32, #tpu.memory_space<vmem>>, vector<12x256xf32>,
    %c0_327 = arith.constant 0 : index
    %c143_328 = arith.constant 143 : index
    %482 = vector.load %arg10[%c0_327, %c143_328] : memref<12x512xf32, #tpu.memory_space<vmem>>, vector<12x256xf32>
    %c16_329 = arith.constant 16 : index
    %c0_330 = arith.constant 0 : index
    %483 = vector.load %arg1[%c16_329, %c0_330] : memref<75x256xf32, #tpu.memory_space<vmem>>, vector<1x256xf32>
    %484 = vector.broadcast %483 : vector<1x256xf32> to vector<12x256xf32>
    %485 = arith.mulf %482, %484 : vector<12x256xf32>
    %c73_331 = arith.constant 73 : index
    %c0_332 = arith.constant 0 : index
    %486 = vector.load %arg11[%c73_331, %c0_332] : memref<109x256xf32, #tpu.memory_space<vmem>>, vector<12x256xf32>
    tpu.vector_store %arg11[%c73_331, %c0_332], %485 {strides = array<i32>} : memref<109x256xf32, #tpu.memory_space<vmem>>, vector<12x256xf32>,
    %c0_333 = arith.constant 0 : index
    %c144_334 = arith.constant 144 : index
    %487 = vector.load %arg10[%c0_333, %c144_334] : memref<12x512xf32, #tpu.memory_space<vmem>>, vector<12x256xf32>
    %c17_335 = arith.constant 17 : index
    %c0_336 = arith.constant 0 : index
    %488 = vector.load %arg1[%c17_335, %c0_336] : memref<75x256xf32, #tpu.memory_space<vmem>>, vector<1x256xf32>
    %489 = vector.broadcast %488 : vector<1x256xf32> to vector<12x256xf32>
    %490 = arith.mulf %487, %489 : vector<12x256xf32>
    %c85 = arith.constant 85 : index
    %c0_337 = arith.constant 0 : index
    %491 = vector.load %arg11[%c85, %c0_337] : memref<109x256xf32, #tpu.memory_space<vmem>>, vector<12x256xf32>
    tpu.vector_store %arg11[%c85, %c0_337], %490 {strides = array<i32>} : memref<109x256xf32, #tpu.memory_space<vmem>>, vector<12x256xf32>,
    %c0_338 = arith.constant 0 : index
    %c145_339 = arith.constant 145 : index
    %492 = vector.load %arg10[%c0_338, %c145_339] : memref<12x512xf32, #tpu.memory_space<vmem>>, vector<12x256xf32>
    %c18_340 = arith.constant 18 : index
    %c0_341 = arith.constant 0 : index
    %493 = vector.load %arg1[%c18_340, %c0_341] : memref<75x256xf32, #tpu.memory_space<vmem>>, vector<1x256xf32>
    %494 = vector.broadcast %493 : vector<1x256xf32> to vector<12x256xf32>
    %495 = arith.mulf %492, %494 : vector<12x256xf32>
    %c97_342 = arith.constant 97 : index
    %c0_343 = arith.constant 0 : index
    %496 = vector.load %arg11[%c97_342, %c0_343] : memref<109x256xf32, #tpu.memory_space<vmem>>, vector<12x256xf32>
    tpu.vector_store %arg11[%c97_342, %c0_343], %495 {strides = array<i32>} : memref<109x256xf32, #tpu.memory_space<vmem>>, vector<12x256xf32>,
    %c0_344 = arith.constant 0 : index
    %c0_345 = arith.constant 0 : index
    %497 = vector.load %arg6[%c0_344, %c0_345] : memref<16x109xf32, #tpu.memory_space<vmem>>, vector<16x109xf32>
    %c0_346 = arith.constant 0 : index
    %c0_347 = arith.constant 0 : index
    %498 = vector.load %arg11[%c0_346, %c0_347] : memref<109x256xf32, #tpu.memory_space<vmem>>, vector<109x256xf32>
    %cst_348 = arith.constant dense<0.000000e+00> : vector<16x256xf32>
    %499 = tpu.matmul %497, %498, %cst_348 {dimension_numbers = #tpu.dot_dimension_numbers<[1], [0], [0], [1], [0, 0, 1, 1], [], []>} : vector<16x109xf32>, vector<109x256xf32>, vector<16x256xf32> -> vector<16x256xf32>
    %500 = vector.extract_strided_slice %499 {offsets = [0, 0], sizes = [4, 256], strides = [1, 1]} : vector<16x256xf32> to vector<4x256xf32>
    %501 = vector.extract_strided_slice %499 {offsets = [4, 0], sizes = [12, 256], strides = [1, 1]} : vector<16x256xf32> to vector<12x256xf32>
    %c0_349 = arith.constant 0 : index
    %c128_350 = arith.constant 128 : index
    %502 = vector.load %arg10[%c0_349, %c128_350] : memref<12x512xf32, #tpu.memory_space<vmem>>, vector<4x256xf32>
    tpu.vector_store %arg10[%c0_349, %c128_350], %500 {strides = array<i32>} : memref<12x512xf32, #tpu.memory_space<vmem>>, vector<4x256xf32>,
    %c0_351 = arith.constant 0 : index
    %c111_352 = arith.constant 111 : index
    %503 = vector.load %arg10[%c0_351, %c111_352] : memref<12x512xf32, #tpu.memory_space<vmem>>, vector<4x256xf32>
    %c6_353 = arith.constant 6 : index
    %c0_354 = arith.constant 0 : index
    %504 = vector.load %arg1[%c6_353, %c0_354] : memref<75x256xf32, #tpu.memory_space<vmem>>, vector<1x256xf32>
    %505 = vector.broadcast %504 : vector<1x256xf32> to vector<4x256xf32>
    %506 = arith.mulf %503, %505 : vector<4x256xf32>
    %c1_355 = arith.constant 1 : index
    %c0_356 = arith.constant 0 : index
    %507 = vector.load %arg11[%c1_355, %c0_356] : memref<109x256xf32, #tpu.memory_space<vmem>>, vector<4x256xf32>
    tpu.vector_store %arg11[%c1_355, %c0_356], %506 {strides = array<i32>} : memref<109x256xf32, #tpu.memory_space<vmem>>, vector<4x256xf32>,
    %c0_357 = arith.constant 0 : index
    %c112_358 = arith.constant 112 : index
    %508 = vector.load %arg10[%c0_357, %c112_358] : memref<12x512xf32, #tpu.memory_space<vmem>>, vector<4x256xf32>
    %c7_359 = arith.constant 7 : index
    %c0_360 = arith.constant 0 : index
    %509 = vector.load %arg1[%c7_359, %c0_360] : memref<75x256xf32, #tpu.memory_space<vmem>>, vector<1x256xf32>
    %510 = vector.broadcast %509 : vector<1x256xf32> to vector<4x256xf32>
    %511 = arith.mulf %508, %510 : vector<4x256xf32>
    %c5_361 = arith.constant 5 : index
    %c0_362 = arith.constant 0 : index
    %512 = vector.load %arg11[%c5_361, %c0_362] : memref<109x256xf32, #tpu.memory_space<vmem>>, vector<4x256xf32>
    tpu.vector_store %arg11[%c5_361, %c0_362], %511 {strides = array<i32>} : memref<109x256xf32, #tpu.memory_space<vmem>>, vector<4x256xf32>,
    %c0_363 = arith.constant 0 : index
    %c113_364 = arith.constant 113 : index
    %513 = vector.load %arg10[%c0_363, %c113_364] : memref<12x512xf32, #tpu.memory_space<vmem>>, vector<4x256xf32>
    %c8_365 = arith.constant 8 : index
    %c0_366 = arith.constant 0 : index
    %514 = vector.load %arg1[%c8_365, %c0_366] : memref<75x256xf32, #tpu.memory_space<vmem>>, vector<1x256xf32>
    %515 = vector.broadcast %514 : vector<1x256xf32> to vector<4x256xf32>
    %516 = arith.mulf %513, %515 : vector<4x256xf32>
    %c9_367 = arith.constant 9 : index
    %c0_368 = arith.constant 0 : index
    %517 = vector.load %arg11[%c9_367, %c0_368] : memref<109x256xf32, #tpu.memory_space<vmem>>, vector<4x256xf32>
    tpu.vector_store %arg11[%c9_367, %c0_368], %516 {strides = array<i32>} : memref<109x256xf32, #tpu.memory_space<vmem>>, vector<4x256xf32>,
    %c0_369 = arith.constant 0 : index
    %c127_370 = arith.constant 127 : index
    %518 = vector.load %arg10[%c0_369, %c127_370] : memref<12x512xf32, #tpu.memory_space<vmem>>, vector<4x256xf32>
    %c11_371 = arith.constant 11 : index
    %c0_372 = arith.constant 0 : index
    %519 = vector.load %arg1[%c11_371, %c0_372] : memref<75x256xf32, #tpu.memory_space<vmem>>, vector<1x256xf32>
    %520 = vector.broadcast %519 : vector<1x256xf32> to vector<4x256xf32>
    %521 = arith.mulf %518, %520 : vector<4x256xf32>
    %c13_373 = arith.constant 13 : index
    %c0_374 = arith.constant 0 : index
    %522 = vector.load %arg11[%c13_373, %c0_374] : memref<109x256xf32, #tpu.memory_space<vmem>>, vector<4x256xf32>
    tpu.vector_store %arg11[%c13_373, %c0_374], %521 {strides = array<i32>} : memref<109x256xf32, #tpu.memory_space<vmem>>, vector<4x256xf32>,
    %c0_375 = arith.constant 0 : index
    %c128_376 = arith.constant 128 : index
    %523 = vector.load %arg10[%c0_375, %c128_376] : memref<12x512xf32, #tpu.memory_space<vmem>>, vector<4x256xf32>
    %c12_377 = arith.constant 12 : index
    %c0_378 = arith.constant 0 : index
    %524 = vector.load %arg1[%c12_377, %c0_378] : memref<75x256xf32, #tpu.memory_space<vmem>>, vector<1x256xf32>
    %525 = vector.broadcast %524 : vector<1x256xf32> to vector<4x256xf32>
    %526 = arith.mulf %523, %525 : vector<4x256xf32>
    %c17_379 = arith.constant 17 : index
    %c0_380 = arith.constant 0 : index
    %527 = vector.load %arg11[%c17_379, %c0_380] : memref<109x256xf32, #tpu.memory_space<vmem>>, vector<4x256xf32>
    tpu.vector_store %arg11[%c17_379, %c0_380], %526 {strides = array<i32>} : memref<109x256xf32, #tpu.memory_space<vmem>>, vector<4x256xf32>,
    %c0_381 = arith.constant 0 : index
    %c129_382 = arith.constant 129 : index
    %528 = vector.load %arg10[%c0_381, %c129_382] : memref<12x512xf32, #tpu.memory_space<vmem>>, vector<4x256xf32>
    %c13_383 = arith.constant 13 : index
    %c0_384 = arith.constant 0 : index
    %529 = vector.load %arg1[%c13_383, %c0_384] : memref<75x256xf32, #tpu.memory_space<vmem>>, vector<1x256xf32>
    %530 = vector.broadcast %529 : vector<1x256xf32> to vector<4x256xf32>
    %531 = arith.mulf %528, %530 : vector<4x256xf32>
    %c21_385 = arith.constant 21 : index
    %c0_386 = arith.constant 0 : index
    %532 = vector.load %arg11[%c21_385, %c0_386] : memref<109x256xf32, #tpu.memory_space<vmem>>, vector<4x256xf32>
    tpu.vector_store %arg11[%c21_385, %c0_386], %531 {strides = array<i32>} : memref<109x256xf32, #tpu.memory_space<vmem>>, vector<4x256xf32>,
    %c0_387 = arith.constant 0 : index
    %c143_388 = arith.constant 143 : index
    %533 = vector.load %arg10[%c0_387, %c143_388] : memref<12x512xf32, #tpu.memory_space<vmem>>, vector<4x256xf32>
    %c16_389 = arith.constant 16 : index
    %c0_390 = arith.constant 0 : index
    %534 = vector.load %arg1[%c16_389, %c0_390] : memref<75x256xf32, #tpu.memory_space<vmem>>, vector<1x256xf32>
    %535 = vector.broadcast %534 : vector<1x256xf32> to vector<4x256xf32>
    %536 = arith.mulf %533, %535 : vector<4x256xf32>
    %c25_391 = arith.constant 25 : index
    %c0_392 = arith.constant 0 : index
    %537 = vector.load %arg11[%c25_391, %c0_392] : memref<109x256xf32, #tpu.memory_space<vmem>>, vector<4x256xf32>
    tpu.vector_store %arg11[%c25_391, %c0_392], %536 {strides = array<i32>} : memref<109x256xf32, #tpu.memory_space<vmem>>, vector<4x256xf32>,
    %c0_393 = arith.constant 0 : index
    %c144_394 = arith.constant 144 : index
    %538 = vector.load %arg10[%c0_393, %c144_394] : memref<12x512xf32, #tpu.memory_space<vmem>>, vector<4x256xf32>
    %c17_395 = arith.constant 17 : index
    %c0_396 = arith.constant 0 : index
    %539 = vector.load %arg1[%c17_395, %c0_396] : memref<75x256xf32, #tpu.memory_space<vmem>>, vector<1x256xf32>
    %540 = vector.broadcast %539 : vector<1x256xf32> to vector<4x256xf32>
    %541 = arith.mulf %538, %540 : vector<4x256xf32>
    %c29_397 = arith.constant 29 : index
    %c0_398 = arith.constant 0 : index
    %542 = vector.load %arg11[%c29_397, %c0_398] : memref<109x256xf32, #tpu.memory_space<vmem>>, vector<4x256xf32>
    tpu.vector_store %arg11[%c29_397, %c0_398], %541 {strides = array<i32>} : memref<109x256xf32, #tpu.memory_space<vmem>>, vector<4x256xf32>,
    %c0_399 = arith.constant 0 : index
    %c145_400 = arith.constant 145 : index
    %543 = vector.load %arg10[%c0_399, %c145_400] : memref<12x512xf32, #tpu.memory_space<vmem>>, vector<4x256xf32>
    %c18_401 = arith.constant 18 : index
    %c0_402 = arith.constant 0 : index
    %544 = vector.load %arg1[%c18_401, %c0_402] : memref<75x256xf32, #tpu.memory_space<vmem>>, vector<1x256xf32>
    %545 = vector.broadcast %544 : vector<1x256xf32> to vector<4x256xf32>
    %546 = arith.mulf %543, %545 : vector<4x256xf32>
    %c33_403 = arith.constant 33 : index
    %c0_404 = arith.constant 0 : index
    %547 = vector.load %arg11[%c33_403, %c0_404] : memref<109x256xf32, #tpu.memory_space<vmem>>, vector<4x256xf32>
    tpu.vector_store %arg11[%c33_403, %c0_404], %546 {strides = array<i32>} : memref<109x256xf32, #tpu.memory_space<vmem>>, vector<4x256xf32>,
    %c0_405 = arith.constant 0 : index
    %c0_406 = arith.constant 0 : index
    %548 = vector.load %arg7[%c0_405, %c0_406] : memref<4x37xf32, #tpu.memory_space<vmem>>, vector<4x37xf32>
    %c0_407 = arith.constant 0 : index
    %c0_408 = arith.constant 0 : index
    %549 = vector.load %arg11[%c0_407, %c0_408] : memref<109x256xf32, #tpu.memory_space<vmem>>, vector<37x256xf32>
    %cst_409 = arith.constant dense<0.000000e+00> : vector<4x256xf32>
    %550 = tpu.matmul %548, %549, %cst_409 {dimension_numbers = #tpu.dot_dimension_numbers<[1], [0], [0], [1], [0, 0, 1, 1], [], []>} : vector<4x37xf32>, vector<37x256xf32>, vector<4x256xf32> -> vector<4x256xf32>
    %c0_410 = arith.constant 0 : index
    %c128_411 = arith.constant 128 : index
    %551 = vector.load %arg10[%c0_410, %c128_411] : memref<12x512xf32, #tpu.memory_space<vmem>>, vector<4x256xf32>
    tpu.vector_store %arg10[%c0_410, %c128_411], %550 {strides = array<i32>} : memref<12x512xf32, #tpu.memory_space<vmem>>, vector<4x256xf32>,
    %c0_412 = arith.constant 0 : index
    %c111_413 = arith.constant 111 : index
    %552 = vector.load %arg10[%c0_412, %c111_413] : memref<12x512xf32, #tpu.memory_space<vmem>>, vector<4x256xf32>
    %c6_414 = arith.constant 6 : index
    %c0_415 = arith.constant 0 : index
    %553 = vector.load %arg1[%c6_414, %c0_415] : memref<75x256xf32, #tpu.memory_space<vmem>>, vector<1x256xf32>
    %554 = vector.broadcast %553 : vector<1x256xf32> to vector<4x256xf32>
    %555 = arith.mulf %552, %554 : vector<4x256xf32>
    %c1_416 = arith.constant 1 : index
    %c0_417 = arith.constant 0 : index
    %556 = vector.load %arg11[%c1_416, %c0_417] : memref<109x256xf32, #tpu.memory_space<vmem>>, vector<4x256xf32>
    tpu.vector_store %arg11[%c1_416, %c0_417], %555 {strides = array<i32>} : memref<109x256xf32, #tpu.memory_space<vmem>>, vector<4x256xf32>,
    %c0_418 = arith.constant 0 : index
    %c112_419 = arith.constant 112 : index
    %557 = vector.load %arg10[%c0_418, %c112_419] : memref<12x512xf32, #tpu.memory_space<vmem>>, vector<4x256xf32>
    %c7_420 = arith.constant 7 : index
    %c0_421 = arith.constant 0 : index
    %558 = vector.load %arg1[%c7_420, %c0_421] : memref<75x256xf32, #tpu.memory_space<vmem>>, vector<1x256xf32>
    %559 = vector.broadcast %558 : vector<1x256xf32> to vector<4x256xf32>
    %560 = arith.mulf %557, %559 : vector<4x256xf32>
    %c5_422 = arith.constant 5 : index
    %c0_423 = arith.constant 0 : index
    %561 = vector.load %arg11[%c5_422, %c0_423] : memref<109x256xf32, #tpu.memory_space<vmem>>, vector<4x256xf32>
    tpu.vector_store %arg11[%c5_422, %c0_423], %560 {strides = array<i32>} : memref<109x256xf32, #tpu.memory_space<vmem>>, vector<4x256xf32>,
    %c0_424 = arith.constant 0 : index
    %c113_425 = arith.constant 113 : index
    %562 = vector.load %arg10[%c0_424, %c113_425] : memref<12x512xf32, #tpu.memory_space<vmem>>, vector<4x256xf32>
    %c8_426 = arith.constant 8 : index
    %c0_427 = arith.constant 0 : index
    %563 = vector.load %arg1[%c8_426, %c0_427] : memref<75x256xf32, #tpu.memory_space<vmem>>, vector<1x256xf32>
    %564 = vector.broadcast %563 : vector<1x256xf32> to vector<4x256xf32>
    %565 = arith.mulf %562, %564 : vector<4x256xf32>
    %c9_428 = arith.constant 9 : index
    %c0_429 = arith.constant 0 : index
    %566 = vector.load %arg11[%c9_428, %c0_429] : memref<109x256xf32, #tpu.memory_space<vmem>>, vector<4x256xf32>
    tpu.vector_store %arg11[%c9_428, %c0_429], %565 {strides = array<i32>} : memref<109x256xf32, #tpu.memory_space<vmem>>, vector<4x256xf32>,
    %c0_430 = arith.constant 0 : index
    %c127_431 = arith.constant 127 : index
    %567 = vector.load %arg10[%c0_430, %c127_431] : memref<12x512xf32, #tpu.memory_space<vmem>>, vector<4x256xf32>
    %c11_432 = arith.constant 11 : index
    %c0_433 = arith.constant 0 : index
    %568 = vector.load %arg1[%c11_432, %c0_433] : memref<75x256xf32, #tpu.memory_space<vmem>>, vector<1x256xf32>
    %569 = vector.broadcast %568 : vector<1x256xf32> to vector<4x256xf32>
    %570 = arith.mulf %567, %569 : vector<4x256xf32>
    %c13_434 = arith.constant 13 : index
    %c0_435 = arith.constant 0 : index
    %571 = vector.load %arg11[%c13_434, %c0_435] : memref<109x256xf32, #tpu.memory_space<vmem>>, vector<4x256xf32>
    tpu.vector_store %arg11[%c13_434, %c0_435], %570 {strides = array<i32>} : memref<109x256xf32, #tpu.memory_space<vmem>>, vector<4x256xf32>,
    %c0_436 = arith.constant 0 : index
    %c128_437 = arith.constant 128 : index
    %572 = vector.load %arg10[%c0_436, %c128_437] : memref<12x512xf32, #tpu.memory_space<vmem>>, vector<4x256xf32>
    %c12_438 = arith.constant 12 : index
    %c0_439 = arith.constant 0 : index
    %573 = vector.load %arg1[%c12_438, %c0_439] : memref<75x256xf32, #tpu.memory_space<vmem>>, vector<1x256xf32>
    %574 = vector.broadcast %573 : vector<1x256xf32> to vector<4x256xf32>
    %575 = arith.mulf %572, %574 : vector<4x256xf32>
    %c17_440 = arith.constant 17 : index
    %c0_441 = arith.constant 0 : index
    %576 = vector.load %arg11[%c17_440, %c0_441] : memref<109x256xf32, #tpu.memory_space<vmem>>, vector<4x256xf32>
    tpu.vector_store %arg11[%c17_440, %c0_441], %575 {strides = array<i32>} : memref<109x256xf32, #tpu.memory_space<vmem>>, vector<4x256xf32>,
    %c0_442 = arith.constant 0 : index
    %c129_443 = arith.constant 129 : index
    %577 = vector.load %arg10[%c0_442, %c129_443] : memref<12x512xf32, #tpu.memory_space<vmem>>, vector<4x256xf32>
    %c13_444 = arith.constant 13 : index
    %c0_445 = arith.constant 0 : index
    %578 = vector.load %arg1[%c13_444, %c0_445] : memref<75x256xf32, #tpu.memory_space<vmem>>, vector<1x256xf32>
    %579 = vector.broadcast %578 : vector<1x256xf32> to vector<4x256xf32>
    %580 = arith.mulf %577, %579 : vector<4x256xf32>
    %c21_446 = arith.constant 21 : index
    %c0_447 = arith.constant 0 : index
    %581 = vector.load %arg11[%c21_446, %c0_447] : memref<109x256xf32, #tpu.memory_space<vmem>>, vector<4x256xf32>
    tpu.vector_store %arg11[%c21_446, %c0_447], %580 {strides = array<i32>} : memref<109x256xf32, #tpu.memory_space<vmem>>, vector<4x256xf32>,
    %c0_448 = arith.constant 0 : index
    %c143_449 = arith.constant 143 : index
    %582 = vector.load %arg10[%c0_448, %c143_449] : memref<12x512xf32, #tpu.memory_space<vmem>>, vector<4x256xf32>
    %c16_450 = arith.constant 16 : index
    %c0_451 = arith.constant 0 : index
    %583 = vector.load %arg1[%c16_450, %c0_451] : memref<75x256xf32, #tpu.memory_space<vmem>>, vector<1x256xf32>
    %584 = vector.broadcast %583 : vector<1x256xf32> to vector<4x256xf32>
    %585 = arith.mulf %582, %584 : vector<4x256xf32>
    %c25_452 = arith.constant 25 : index
    %c0_453 = arith.constant 0 : index
    %586 = vector.load %arg11[%c25_452, %c0_453] : memref<109x256xf32, #tpu.memory_space<vmem>>, vector<4x256xf32>
    tpu.vector_store %arg11[%c25_452, %c0_453], %585 {strides = array<i32>} : memref<109x256xf32, #tpu.memory_space<vmem>>, vector<4x256xf32>,
    %c0_454 = arith.constant 0 : index
    %c144_455 = arith.constant 144 : index
    %587 = vector.load %arg10[%c0_454, %c144_455] : memref<12x512xf32, #tpu.memory_space<vmem>>, vector<4x256xf32>
    %c17_456 = arith.constant 17 : index
    %c0_457 = arith.constant 0 : index
    %588 = vector.load %arg1[%c17_456, %c0_457] : memref<75x256xf32, #tpu.memory_space<vmem>>, vector<1x256xf32>
    %589 = vector.broadcast %588 : vector<1x256xf32> to vector<4x256xf32>
    %590 = arith.mulf %587, %589 : vector<4x256xf32>
    %c29_458 = arith.constant 29 : index
    %c0_459 = arith.constant 0 : index
    %591 = vector.load %arg11[%c29_458, %c0_459] : memref<109x256xf32, #tpu.memory_space<vmem>>, vector<4x256xf32>
    tpu.vector_store %arg11[%c29_458, %c0_459], %590 {strides = array<i32>} : memref<109x256xf32, #tpu.memory_space<vmem>>, vector<4x256xf32>,
    %c0_460 = arith.constant 0 : index
    %c145_461 = arith.constant 145 : index
    %592 = vector.load %arg10[%c0_460, %c145_461] : memref<12x512xf32, #tpu.memory_space<vmem>>, vector<4x256xf32>
    %c18_462 = arith.constant 18 : index
    %c0_463 = arith.constant 0 : index
    %593 = vector.load %arg1[%c18_462, %c0_463] : memref<75x256xf32, #tpu.memory_space<vmem>>, vector<1x256xf32>
    %594 = vector.broadcast %593 : vector<1x256xf32> to vector<4x256xf32>
    %595 = arith.mulf %592, %594 : vector<4x256xf32>
    %c33_464 = arith.constant 33 : index
    %c0_465 = arith.constant 0 : index
    %596 = vector.load %arg11[%c33_464, %c0_465] : memref<109x256xf32, #tpu.memory_space<vmem>>, vector<4x256xf32>
    tpu.vector_store %arg11[%c33_464, %c0_465], %595 {strides = array<i32>} : memref<109x256xf32, #tpu.memory_space<vmem>>, vector<4x256xf32>,
    %c0_466 = arith.constant 0 : index
    %c0_467 = arith.constant 0 : index
    %597 = vector.load %arg8[%c0_466, %c0_467] : memref<4x37xf32, #tpu.memory_space<vmem>>, vector<4x37xf32>
    %c0_468 = arith.constant 0 : index
    %c0_469 = arith.constant 0 : index
    %598 = vector.load %arg11[%c0_468, %c0_469] : memref<109x256xf32, #tpu.memory_space<vmem>>, vector<37x256xf32>
    %cst_470 = arith.constant dense<0.000000e+00> : vector<4x256xf32>
    %599 = tpu.matmul %597, %598, %cst_470 {dimension_numbers = #tpu.dot_dimension_numbers<[1], [0], [0], [1], [0, 0, 1, 1], [], []>} : vector<4x37xf32>, vector<37x256xf32>, vector<4x256xf32> -> vector<4x256xf32>
    %600 = vector.extract_strided_slice %451 {offsets = [0, 0], sizes = [4, 256], strides = [1, 1]} : vector<12x256xf32> to vector<4x256xf32>
    %601 = arith.addf %600, %500 : vector<4x256xf32>
    %602 = vector.extract_strided_slice %501 {offsets = [0, 0], sizes = [4, 256], strides = [1, 1]} : vector<12x256xf32> to vector<4x256xf32>
    %603 = arith.addf %601, %602 : vector<4x256xf32>
    %c0_471 = arith.constant 0 : index
    %c0_472 = arith.constant 0 : index
    %c0_473 = arith.constant 0 : index
    %604 = vector.load %arg9[%c0_471, %c0_472, %c0_473] : memref<1x12x256xf32, #tpu.memory_space<vmem>>, vector<1x4x256xf32>
    %605 = vector.shape_cast %604 : vector<1x4x256xf32> to vector<4x256xf32>
    %606 = vector.shape_cast %603 : vector<4x256xf32> to vector<1x4x256xf32>
    tpu.vector_store %arg9[%c0_471, %c0_472, %c0_473], %606 {strides = array<i32>} : memref<1x12x256xf32, #tpu.memory_space<vmem>>, vector<1x4x256xf32>,
    %607 = vector.extract_strided_slice %451 {offsets = [4, 0], sizes = [4, 256], strides = [1, 1]} : vector<12x256xf32> to vector<4x256xf32>
    %608 = arith.addf %607, %550 : vector<4x256xf32>
    %609 = vector.extract_strided_slice %501 {offsets = [4, 0], sizes = [4, 256], strides = [1, 1]} : vector<12x256xf32> to vector<4x256xf32>
    %610 = arith.addf %608, %609 : vector<4x256xf32>
    %c0_474 = arith.constant 0 : index
    %c4_475 = arith.constant 4 : index
    %c0_476 = arith.constant 0 : index
    %611 = vector.load %arg9[%c0_474, %c4_475, %c0_476] : memref<1x12x256xf32, #tpu.memory_space<vmem>>, vector<1x4x256xf32>
    %612 = vector.shape_cast %611 : vector<1x4x256xf32> to vector<4x256xf32>
    %613 = vector.shape_cast %610 : vector<4x256xf32> to vector<1x4x256xf32>
    tpu.vector_store %arg9[%c0_474, %c4_475, %c0_476], %613 {strides = array<i32>} : memref<1x12x256xf32, #tpu.memory_space<vmem>>, vector<1x4x256xf32>,
    %614 = vector.extract_strided_slice %451 {offsets = [8, 0], sizes = [4, 256], strides = [1, 1]} : vector<12x256xf32> to vector<4x256xf32>
    %615 = arith.addf %614, %599 : vector<4x256xf32>
    %616 = vector.extract_strided_slice %501 {offsets = [8, 0], sizes = [4, 256], strides = [1, 1]} : vector<12x256xf32> to vector<4x256xf32>
    %617 = arith.addf %615, %616 : vector<4x256xf32>
    %c0_477 = arith.constant 0 : index
    %c8_478 = arith.constant 8 : index
    %c0_479 = arith.constant 0 : index
    %618 = vector.load %arg9[%c0_477, %c8_478, %c0_479] : memref<1x12x256xf32, #tpu.memory_space<vmem>>, vector<1x4x256xf32>
    %619 = vector.shape_cast %618 : vector<1x4x256xf32> to vector<4x256xf32>
    %620 = vector.shape_cast %617 : vector<4x256xf32> to vector<1x4x256xf32>
    tpu.vector_store %arg9[%c0_477, %c8_478, %c0_479], %620 {strides = array<i32>} : memref<1x12x256xf32, #tpu.memory_space<vmem>>, vector<1x4x256xf32>,
    return
  }
  func.func @transform_0(%arg0: i32) -> (i32, i32) {
    %c0_i32 = arith.constant 0 : i32
    %c0_i32_0 = arith.constant 0 : i32
    %c0_i32_1 = arith.constant 0 : i32
    return %c0_i32, %c0_i32_0 : i32, i32
  }
  func.func @transform_1(%arg0: i32) -> (i32, i32, i32) {
    %c0_i32 = arith.constant 0 : i32
    %c0_i32_0 = arith.constant 0 : i32
    %c0_i32_1 = arith.constant 0 : i32
    return %arg0, %c0_i32, %c0_i32_0 : i32, i32, i32
  }
  func.func @transform_2(%arg0: i32) -> (i32, i32) {
    %c0_i32 = arith.constant 0 : i32
    %c0_i32_0 = arith.constant 0 : i32
    %c0_i32_1 = arith.constant 0 : i32
    return %c0_i32, %c0_i32_0 : i32, i32
  }
  func.func @transform_3(%arg0: i32) -> (i32, i32) {
    %c0_i32 = arith.constant 0 : i32
    %c0_i32_0 = arith.constant 0 : i32
    %c0_i32_1 = arith.constant 0 : i32
    return %c0_i32, %c0_i32_0 : i32, i32
  }
  func.func @transform_4(%arg0: i32) -> (i32, i32) {
    %c0_i32 = arith.constant 0 : i32
    %c0_i32_0 = arith.constant 0 : i32
    %c0_i32_1 = arith.constant 0 : i32
    return %c0_i32, %c0_i32_0 : i32, i32
  }
  func.func @transform_5(%arg0: i32) -> (i32, i32) {
    %c0_i32 = arith.constant 0 : i32
    %c0_i32_0 = arith.constant 0 : i32
    %c0_i32_1 = arith.constant 0 : i32
    return %c0_i32, %c0_i32_0 : i32, i32
  }
  func.func @transform_6(%arg0: i32) -> (i32, i32) {
    %c0_i32 = arith.constant 0 : i32
    %c0_i32_0 = arith.constant 0 : i32
    %c0_i32_1 = arith.constant 0 : i32
    return %c0_i32, %c0_i32_0 : i32, i32
  }
  func.func @transform_7(%arg0: i32) -> (i32, i32) {
    %c0_i32 = arith.constant 0 : i32
    %c0_i32_0 = arith.constant 0 : i32
    %c0_i32_1 = arith.constant 0 : i32
    return %c0_i32, %c0_i32_0 : i32, i32
  }
  func.func @transform_8(%arg0: i32) -> (i32, i32, i32) {
    %c0_i32 = arith.constant 0 : i32
    %c0_i32_0 = arith.constant 0 : i32
    %c0_i32_1 = arith.constant 0 : i32
    return %arg0, %c0_i32, %c0_i32_0 : i32, i32, i32
  }
}

</mosaic_0001>

<llo_original>
// kernel: tpu_custom_call.1
$region0: #{tpu_custom_call.1}
  #allocation0 [shape = 'u32[]', space=smem, size = 0x4, offset = 0x4, fixed_abs, tag = 'smem constant byte address 0x4 - core index']
  #allocation1 [shape = 'u32[144,128]{1,0:T(1,128)}', space=vmem, size = 0x12000, scoped, tag = 'internal scratch']
  #allocation2 [shape = 'f32[12,512]{1,0:T(8,128)}', space=vmem, size = 0x8000, scoped, tag = 'scratch operand']
  #allocation3 [shape = 'f32[109,256]{1,0:T(8,128)}', space=vmem, size = 0x1c000, scoped, tag = 'scratch operand']
  %s0 = inlined_call_operand.hbm [shape: f32[75,256], index: 0, kind: input, shape index: {}]
  %s1 = inlined_call_operand.hbm [shape: f32[2,4,256], index: 1, kind: input, shape index: {}]
  %s2 = inlined_call_operand.hbm [shape: f32[16,37], index: 2, kind: input, shape index: {}]
  %s3 = inlined_call_operand.hbm [shape: f32[4,37], index: 3, kind: input, shape index: {}]
  %s4 = inlined_call_operand.hbm [shape: f32[4,37], index: 4, kind: input, shape index: {}]
  %s5 = inlined_call_operand.vmem [shape: f32[16,109], index: 5, kind: input, shape index: {}]
  %s6 = inlined_call_operand.vmem [shape: f32[4,37], index: 6, kind: input, shape index: {}]
  %s7 = inlined_call_operand.vmem [shape: f32[4,37], index: 7, kind: input, shape index: {}]
  %s8 = inlined_call_operand.vmem [shape: f32[2,12,256], index: 8, kind: output, shape index: {}]
  %s9 = sld [smem:[#allocation0]]
  $region85: #{tpu_custom_call.1} parent=0
    _
  %s11 = ssub.s32 1, %s9
  %s12 = scalar_select 0, %s11, %s9
  $region1: #{tpu_custom_call.1} parent=0
    #allocation4 [shape = 'u8[81920]{0}', space=vmem, size = 0x14000, scoped, tag = 'input window, operand 0, single buffered']
    #allocation5 [shape = 's32[2]{0}', space=sflag, size = 0x8, scoped, tag = 'scoped memory for tpu_custom_call.1']
    #allocation6 [shape = 'u8[8192]{0}', space=vmem, size = 0x2000, scoped, tag = 'input window, operand 1']
    #allocation7 [shape = 's32[2]{0}', space=sflag, size = 0x8, scoped, tag = 'scoped memory for tpu_custom_call.1']
    #allocation8 [shape = 'u8[8192]{0}', space=vmem, size = 0x2000, scoped, tag = 'input window, operand 2, single buffered']
    #allocation9 [shape = 'u8[2048]{0}', space=vmem, size = 0x800, scoped, tag = 'input window, operand 3, single buffered']
    #allocation10 [shape = 's32[1]{0}', space=sflag, size = 0x4, scoped, tag = 'scoped memory for tpu_custom_call.1']
    #allocation11 [shape = 'u8[2048]{0}', space=vmem, size = 0x800, scoped, tag = 'input window, operand 4, single buffered']
    %13 = vsyncpa [#allocation5], 0
    %14 = vsyncpa [#allocation7], 0
    %s15 = scalar_lea.sflag [#allocation7], 1
    %16 = vsyncpa %s15, 0
    %17 = vsyncpa [#allocation10], 0
    loop: start=0, step=1, limit=4
    $region2: #{tpu_custom_call.1} parent=1 // loop_pre_header
      _
    $region3: #{tpu_custom_call.1} parent=1 // loop_header
      %s19 = sphi 0, %s23
      %p20 = scmp.ge.s32.totalorder %s19, 4
      %s27 = sphi 0, %s27
      %s29 = sphi 0, %s27
      %s30 = sphi 0, %s29
      %s44 = sphi 0, %s30
      %s50 = sphi 0, %s52
      %s53 = sphi 0, %s50
      %s54 = sphi 0, %s53
      %s70 = sphi 0, %s54
      %s74 = sphi 0, %s74
      %s76 = sphi 0, %s74
      %s77 = sphi 0, %s76
      %s91 = sphi 0, %s77
      %s95 = sphi 0, %s95
      %s97 = sphi 0, %s95
      %s98 = sphi 0, %s97
      %s112 = sphi 0, %s98
      %s116 = sphi 0, %s116
      %s118 = sphi 0, %s116
      %s119 = sphi 0, %s118
      %s133 = sphi 0, %s119
      %s137 = sphi 0, %s137
      %s139 = sphi 0, %s137
      %s140 = sphi 0, %s139
      %s154 = sphi 0, %s140
      %s158 = sphi 0, %s158
      %s160 = sphi 0, %s158
      %s161 = sphi 0, %s160
      %s175 = sphi 0, %s161
      %s179 = sphi 0, %s179
      %s181 = sphi 0, %s179
      %s182 = sphi 0, %s181
      %s196 = sphi 0, %s182
      %s202 = sphi 0, %s204
      %s205 = sphi 0, %s202
      %s206 = sphi 0, %s205
      %s222 = sphi 0, %s206
    $region4: #{tpu_custom_call.1} parent=1 // loop_header_branch
      %22 = sbr.rel (%p20) target = $region8
    $region5: #{tpu_custom_call.1} parent=1 // loop_body
      %s24 = ssub.s32 %s19, 1
      %s25 = ssub.s32 %s19, 2
      %s26 = sadd.s32 %s19, 1
      %s28 = sadd.s32 %s27, 1
      %p31 = scmp.eq.s32.totalorder %s19, 1
      %p32 = scmp.ne.s32.totalorder %s27, %s29
      %p33 = scmp.eq.s32.totalorder %s19, 0
      %p34 = por %p32, %p33
      %p35 = scmp.ne.s32.totalorder %s27, %s29
      %p36 = scmp.eq.s32.totalorder %s24, 1
      %p37 = por %p35, %p36
      %p38 = scmp.ne.s32.totalorder %s29, %s30
      %p39 = scmp.eq.s32.totalorder %s24, 0
      %p40 = por %p38, %p39
      %p41 = scmp.ne.s32.totalorder %s29, %s30
      %p42 = scmp.eq.s32.totalorder %s25, 1
      %p43 = por %p41, %p42
      %p45 = scmp.ne.s32.totalorder %s30, %s44
      %p46 = scmp.eq.s32.totalorder %s25, 0
      %p47 = por %p45, %p46
      %s48 = ssub.s32 %s19, %s26
      %p49 = scmp.eq.s32.totalorder %s48, 0
      %s51 = sadd.s32 %s50, 1
      %s52 = scalar_select %p49, %s50, %s51
      %p55 = pneg %p49
      %p56 = scmp.eq.s32.totalorder %s19, 1
      %p57 = por %p55, %p56
      %p58 = scmp.ne.s32.totalorder %s50, %s53
      %p59 = scmp.eq.s32.totalorder %s19, 0
      %p60 = por %p58, %p59
      %p61 = scmp.ne.s32.totalorder %s50, %s53
      %p62 = scmp.eq.s32.totalorder %s24, 1
      %p63 = por %p61, %p62
      %p64 = scmp.ne.s32.totalorder %s53, %s54
      %p65 = scmp.eq.s32.totalorder %s24, 0
      %p66 = por %p64, %p65
      %p67 = scmp.ne.s32.totalorder %s53, %s54
      %p68 = scmp.eq.s32.totalorder %s25, 1
      %p69 = por %p67, %p68
      %p71 = scmp.ne.s32.totalorder %s54, %s70
      %p72 = scmp.eq.s32.totalorder %s25, 0
      %p73 = por %p71, %p72
      %s75 = sadd.s32 %s74, 1
      %p78 = scmp.eq.s32.totalorder %s19, 1
      %p79 = scmp.ne.s32.totalorder %s74, %s76
      %p80 = scmp.eq.s32.totalorder %s19, 0
      %p81 = por %p79, %p80
      %p82 = scmp.ne.s32.totalorder %s74, %s76
      %p83 = scmp.eq.s32.totalorder %s24, 1
      %p84 = por %p82, %p83
      %p85 = scmp.ne.s32.totalorder %s76, %s77
      %p86 = scmp.eq.s32.totalorder %s24, 0
      %p87 = por %p85, %p86
      %p88 = scmp.ne.s32.totalorder %s76, %s77
      %p89 = scmp.eq.s32.totalorder %s25, 1
      %p90 = por %p88, %p89
      %p92 = scmp.ne.s32.totalorder %s77, %s91
      %p93 = scmp.eq.s32.totalorder %s25, 0
      %p94 = por %p92, %p93
      %s96 = sadd.s32 %s95, 1
      %p99 = scmp.eq.s32.totalorder %s19, 1
      %p100 = scmp.ne.s32.totalorder %s95, %s97
      %p101 = scmp.eq.s32.totalorder %s19, 0
      %p102 = por %p100, %p101
      %p103 = scmp.ne.s32.totalorder %s95, %s97
      %p104 = scmp.eq.s32.totalorder %s24, 1
      %p105 = por %p103, %p104
      %p106 = scmp.ne.s32.totalorder %s97, %s98
      %p107 = scmp.eq.s32.totalorder %s24, 0
      %p108 = por %p106, %p107
      %p109 = scmp.ne.s32.totalorder %s97, %s98
      %p110 = scmp.eq.s32.totalorder %s25, 1
      %p111 = por %p109, %p110
      %p113 = scmp.ne.s32.totalorder %s98, %s112
      %p114 = scmp.eq.s32.totalorder %s25, 0
      %p115 = por %p113, %p114
      %s117 = sadd.s32 %s116, 1
      %p120 = scmp.eq.s32.totalorder %s19, 1
      %p121 = scmp.ne.s32.totalorder %s116, %s118
      %p122 = scmp.eq.s32.totalorder %s19, 0
      %p123 = por %p121, %p122
      %p124 = scmp.ne.s32.totalorder %s116, %s118
      %p125 = scmp.eq.s32.totalorder %s24, 1
      %p126 = por %p124, %p125
      %p127 = scmp.ne.s32.totalorder %s118, %s119
      %p128 = scmp.eq.s32.totalorder %s24, 0
      %p129 = por %p127, %p128
      %p130 = scmp.ne.s32.totalorder %s118, %s119
      %p131 = scmp.eq.s32.totalorder %s25, 1
      %p132 = por %p130, %p131
      %p134 = scmp.ne.s32.totalorder %s119, %s133
      %p135 = scmp.eq.s32.totalorder %s25, 0
      %p136 = por %p134, %p135
      %s138 = sadd.s32 %s137, 1
      %p141 = scmp.eq.s32.totalorder %s19, 1
      %p142 = scmp.ne.s32.totalorder %s137, %s139
      %p143 = scmp.eq.s32.totalorder %s19, 0
      %p144 = por %p142, %p143
      %p145 = scmp.ne.s32.totalorder %s137, %s139
      %p146 = scmp.eq.s32.totalorder %s24, 1
      %p147 = por %p145, %p146
      %p148 = scmp.ne.s32.totalorder %s139, %s140
      %p149 = scmp.eq.s32.totalorder %s24, 0
      %p150 = por %p148, %p149
      %p151 = scmp.ne.s32.totalorder %s139, %s140
      %p152 = scmp.eq.s32.totalorder %s25, 1
      %p153 = por %p151, %p152
      %p155 = scmp.ne.s32.totalorder %s140, %s154
      %p156 = scmp.eq.s32.totalorder %s25, 0
      %p157 = por %p155, %p156
      %s159 = sadd.s32 %s158, 1
      %p162 = scmp.eq.s32.totalorder %s19, 1
      %p163 = scmp.ne.s32.totalorder %s158, %s160
      %p164 = scmp.eq.s32.totalorder %s19, 0
      %p165 = por %p163, %p164
      %p166 = scmp.ne.s32.totalorder %s158, %s160
      %p167 = scmp.eq.s32.totalorder %s24, 1
      %p168 = por %p166, %p167
      %p169 = scmp.ne.s32.totalorder %s160, %s161
      %p170 = scmp.eq.s32.totalorder %s24, 0
      %p171 = por %p169, %p170
      %p172 = scmp.ne.s32.totalorder %s160, %s161
      %p173 = scmp.eq.s32.totalorder %s25, 1
      %p174 = por %p172, %p173
      %p176 = scmp.ne.s32.totalorder %s161, %s175
      %p177 = scmp.eq.s32.totalorder %s25, 0
      %p178 = por %p176, %p177
      %s180 = sadd.s32 %s179, 1
      %p183 = scmp.eq.s32.totalorder %s19, 1
      %p184 = scmp.ne.s32.totalorder %s179, %s181
      %p185 = scmp.eq.s32.totalorder %s19, 0
      %p186 = por %p184, %p185
      %p187 = scmp.ne.s32.totalorder %s179, %s181
      %p188 = scmp.eq.s32.totalorder %s24, 1
      %p189 = por %p187, %p188
      %p190 = scmp.ne.s32.totalorder %s181, %s182
      %p191 = scmp.eq.s32.totalorder %s24, 0
      %p192 = por %p190, %p191
      %p193 = scmp.ne.s32.totalorder %s181, %s182
      %p194 = scmp.eq.s32.totalorder %s25, 1
      %p195 = por %p193, %p194
      %p197 = scmp.ne.s32.totalorder %s182, %s196
      %p198 = scmp.eq.s32.totalorder %s25, 0
      %p199 = por %p197, %p198
      %s200 = ssub.s32 %s19, %s26
      %p201 = scmp.eq.s32.totalorder %s200, 0
      %s203 = sadd.s32 %s202, 1
      %s204 = scalar_select %p201, %s202, %s203
      %p207 = pneg %p201
      %p208 = scmp.eq.s32.totalorder %s19, 1
      %p209 = por %p207, %p208
      %p210 = scmp.ne.s32.totalorder %s202, %s205
      %p211 = scmp.eq.s32.totalorder %s19, 0
      %p212 = por %p210, %p211
      %p213 = scmp.ne.s32.totalorder %s202, %s205
      %p214 = scmp.eq.s32.totalorder %s24, 1
      %p215 = por %p213, %p214
      %p216 = scmp.ne.s32.totalorder %s205, %s206
      %p217 = scmp.eq.s32.totalorder %s24, 0
      %p218 = por %p216, %p217
      %p219 = scmp.ne.s32.totalorder %s205, %s206
      %p220 = scmp.eq.s32.totalorder %s25, 1
      %p221 = por %p219, %p220
      %p223 = scmp.ne.s32.totalorder %s206, %s222
      %p224 = scmp.eq.s32.totalorder %s25, 0
      %p225 = por %p223, %p224
      %p226 = scmp.le.s32.totalorder 1, %s19
      %p227 = scmp.lt.s32.totalorder %s19, 3
      %p228 = pnand %p226, %p227
      %p229 = pneg %p228
      // Predicated region
      $region9: #{tpu_custom_call.1} parent=5 // pred_check
        _
      $region10: #{tpu_custom_call.1} parent=5 // pred_check_branch
        %231 = sbr.rel (%p228) target = $region12
      $region11: #{tpu_custom_call.1} parent=5 // pred_region
        %s232 = ssub.s32 %s19, 1
        // Predicated region
        $region13: #{tpu_custom_call.1} parent=11 // pred_check
          %p233 = pneg %p40
        $region14: #{tpu_custom_call.1} parent=11 // pred_check_branch
          %235 = sbr.rel (%p233) target = $region16
        $region15: #{tpu_custom_call.1} parent=11 // pred_region
          %s237 = ssub.s32 2560, 2560
          %238 = vsyncadd [#allocation5], %s237
          %s239 = sshll.u32 [#allocation4], 4
          %s240 = int_to_ptr.vmem [resolvable:$true] %s239
          %245 = dma.hbm_to_vmem [thread:$0]  %s0, 2560, %s240, [#allocation5], 256, 256, 16
        $region16: #{tpu_custom_call.1} parent=11 // pred_fallthru
          _
        // Predicated region
        $region17: #{tpu_custom_call.1} parent=11 // pred_check
          %p246 = pneg %p87
        $region18: #{tpu_custom_call.1} parent=11 // pred_check_branch
          %248 = sbr.rel (%p246) target = $region20
        $region19: #{tpu_custom_call.1} parent=11 // pred_region
          %s250 = ssub.s32 256, 256
          %251 = vsyncadd [#allocation7], %s250
          %s252 = sshll.u32 [#allocation8], 4
          %s253 = int_to_ptr.vmem [resolvable:$true] %s252
          %258 = dma.hbm_to_vmem [thread:$0]  %s2, 256, %s253, [#allocation7], 128, 128, 8
        $region20: #{tpu_custom_call.1} parent=11 // pred_fallthru
          _
        // Predicated region
        $region21: #{tpu_custom_call.1} parent=11 // pred_check
          %p259 = pneg %p108
        $region22: #{tpu_custom_call.1} parent=11 // pred_check_branch
          %261 = sbr.rel (%p259) target = $region24
        $region23: #{tpu_custom_call.1} parent=11 // pred_region
          %s263 = ssub.s32 64, 64
          %264 = vsyncadd [#allocation10], %s263
          %s266 = sshll.u32 [#allocation9], 4
          %s267 = int_to_ptr.vmem [resolvable:$true] %s266
          %269 = dma.hbm_to_vmem [thread:$0]  %s3, 64, %s267, [#allocation10]
        $region24: #{tpu_custom_call.1} parent=11 // pred_fallthru
          _
        // Predicated region
        $region25: #{tpu_custom_call.1} parent=11 // pred_check
          %p270 = pneg %p129
        $region26: #{tpu_custom_call.1} parent=11 // pred_check_branch
          %272 = sbr.rel (%p270) target = $region28
        $region27: #{tpu_custom_call.1} parent=11 // pred_region
          %s274 = ssub.s32 64, 64
          %275 = vsyncadd [#allocation10], %s274
          %s277 = sshll.u32 [#allocation11], 4
          %s278 = int_to_ptr.vmem [resolvable:$true] %s277
          %280 = dma.hbm_to_vmem [thread:$0]  %s4, 64, %s278, [#allocation10]
        $region28: #{tpu_custom_call.1} parent=11 // pred_fallthru
          _
        // Predicated region
        $region29: #{tpu_custom_call.1} parent=11 // pred_check
          %p281 = pneg %p150
        $region30: #{tpu_custom_call.1} parent=11 // pred_check_branch
          %283 = sbr.rel (%p281) target = $region32
        $region31: #{tpu_custom_call.1} parent=11 // pred_region
          _
        $region32: #{tpu_custom_call.1} parent=11 // pred_fallthru
          _
        // Predicated region
        $region33: #{tpu_custom_call.1} parent=11 // pred_check
          %p284 = pneg %p171
        $region34: #{tpu_custom_call.1} parent=11 // pred_check_branch
          %286 = sbr.rel (%p284) target = $region36
        $region35: #{tpu_custom_call.1} parent=11 // pred_region
          _
        $region36: #{tpu_custom_call.1} parent=11 // pred_fallthru
          _
        // Predicated region
        $region37: #{tpu_custom_call.1} parent=11 // pred_check
          %p287 = pneg %p192
        $region38: #{tpu_custom_call.1} parent=11 // pred_check_branch
          %289 = sbr.rel (%p287) target = $region40
        $region39: #{tpu_custom_call.1} parent=11 // pred_region
          _
        $region40: #{tpu_custom_call.1} parent=11 // pred_fallthru
          _
      $region12: #{tpu_custom_call.1} parent=5 // pred_fallthru
        _
      %p290 = scmp.lt.s32.totalorder %s19, 2
      // Predicated region
      $region41: #{tpu_custom_call.1} parent=5 // pred_check
        %p291 = pneg %p290
      $region42: #{tpu_custom_call.1} parent=5 // pred_check_branch
        %293 = sbr.rel (%p291) target = $region44
      $region43: #{tpu_custom_call.1} parent=5 // pred_region
        // Predicated region
        $region45: #{tpu_custom_call.1} parent=43 // pred_check
          %p294 = pneg %p60
        $region46: #{tpu_custom_call.1} parent=43 // pred_check_branch
          %296 = sbr.rel (%p294) target = $region48
        $region47: #{tpu_custom_call.1} parent=43 // pred_region
          %s297 = sand.u32 %s19, 1
          %s298 = scalar_lea.sflag [#allocation7], %s297
          %s299 = sand.u32 %s50, 1
          %s300 = smul.addr %s299, 8
          %s301 = scalar_lea.vmem [#allocation6], %s300
          %s303 = ssub.s32 128, 128
          %304 = vsyncadd %s298, %s303
          %s305 = smul.addr %s19, 2
          %s306 = smul.addr %s305, 64
          %s307 = scalar_lea.hbm %s1, %s306
          %s309 = sshll.u32 %s301, 4
          %s310 = int_to_ptr.vmem [resolvable:$true] %s309
          %312 = dma.hbm_to_vmem [thread:$0]  %s307, 128, %s310, %s298
        $region48: #{tpu_custom_call.1} parent=43 // pred_fallthru
          _
      $region44: #{tpu_custom_call.1} parent=5 // pred_fallthru
        _
      %p313 = scmp.le.s32.totalorder 1, %s19
      %p314 = scmp.lt.s32.totalorder %s19, 3
      %p315 = pnand %p313, %p314
      %p316 = pneg %p315
      // Predicated region
      $region49: #{tpu_custom_call.1} parent=5 // pred_check
        _
      $region50: #{tpu_custom_call.1} parent=5 // pred_check_branch
        %318 = sbr.rel (%p315) target = $region52
      $region51: #{tpu_custom_call.1} parent=5 // pred_region
        %s319 = ssub.s32 %s19, 1
        // Predicated region
        $region53: #{tpu_custom_call.1} parent=51 // pred_check
          %p320 = pneg %p40
        $region54: #{tpu_custom_call.1} parent=51 // pred_check_branch
          %322 = sbr.rel (%p320) target = $region56
        $region55: #{tpu_custom_call.1} parent=51 // pred_region
          %323 = dma.done [#allocation5], 2560
        $region56: #{tpu_custom_call.1} parent=51 // pred_fallthru
          _
        %s324 = sand.u32 %s24, 1
        %s325 = scalar_lea.sflag [#allocation7], %s324
        %s326 = sand.u32 %s53, 1
        %s327 = smul.addr %s326, 8
        %s328 = scalar_lea.vmem [#allocation6], %s327
        // Predicated region
        $region57: #{tpu_custom_call.1} parent=51 // pred_check
          %p329 = pneg %p66
        $region58: #{tpu_custom_call.1} parent=51 // pred_check_branch
          %331 = sbr.rel (%p329) target = $region60
        $region59: #{tpu_custom_call.1} parent=51 // pred_region
          %332 = dma.done %s325, 128
        $region60: #{tpu_custom_call.1} parent=51 // pred_fallthru
          _
        // Predicated region
        $region61: #{tpu_custom_call.1} parent=51 // pred_check
          %p333 = pneg %p87
        $region62: #{tpu_custom_call.1} parent=51 // pred_check_branch
          %335 = sbr.rel (%p333) target = $region64
        $region63: #{tpu_custom_call.1} parent=51 // pred_region
          %336 = dma.done [#allocation7], 256
        $region64: #{tpu_custom_call.1} parent=51 // pred_fallthru
          _
        // Predicated region
        $region65: #{tpu_custom_call.1} parent=51 // pred_check
          %p337 = pneg %p108
        $region66: #{tpu_custom_call.1} parent=51 // pred_check_branch
          %339 = sbr.rel (%p337) target = $region68
        $region67: #{tpu_custom_call.1} parent=51 // pred_region
          %340 = dma.done [#allocation10], 64
        $region68: #{tpu_custom_call.1} parent=51 // pred_fallthru
          _
        // Predicated region
        $region69: #{tpu_custom_call.1} parent=51 // pred_check
          %p341 = pneg %p129
        $region70: #{tpu_custom_call.1} parent=51 // pred_check_branch
          %343 = sbr.rel (%p341) target = $region72
        $region71: #{tpu_custom_call.1} parent=51 // pred_region
          %344 = dma.done [#allocation10], 64
        $region72: #{tpu_custom_call.1} parent=51 // pred_fallthru
          _
        %p345 = pneg %p40
        %p346 = pneg %p37
        %s347 = sand.u32 %s24, 1
        %s348 = scalar_lea.sflag [#allocation7], %s347
        %s349 = sand.u32 %s53, 1
        %s350 = smul.addr %s349, 8
        %s351 = scalar_lea.vmem [#allocation6], %s350
        %p352 = pneg %p66
        %p353 = pneg %p63
        %p354 = pneg %p87
        %p355 = pneg %p84
        %p356 = pneg %p108
        %p357 = pneg %p105
        %p358 = pneg %p129
        %p359 = pneg %p126
        %p360 = pneg %p150
        %p361 = pneg %p147
        %p362 = pneg %p171
        %p363 = pneg %p168
        %p364 = pneg %p192
        %p365 = pneg %p189
        %p366 = pneg %p218
        %p367 = pneg %p215
        %p368 = scmp.lt.s32.totalorder %s24, 1
        %s369 = scalar_select %p368, %s24, 1
        %s370 = smul.addr %s369, 4
        %s371 = smul.addr %s370, 8
        %s372 = scalar_lea.vmem %s8, %s371
        %p373 = scmp.lt.s32.totalorder %s24, 1
        %s374 = scalar_select %p373, %s24, 1
        %s375 = smul.addr %s374, 4
        %s376 = smul.addr %s375, 8
        %s377 = scalar_lea.vmem %s8, %s376
        %378 = vst [vmem:[#allocation2] sm:$0xff] 0.0
        %379 = vst [vmem:[#allocation2 + $0x20] sm:$0xf] 0.0
        %380 = vst [vmem:[#allocation2 + $0x18] sm:$0xff] 0.0
        %381 = vst [vmem:[#allocation2 + $0x38] sm:$0xf] 0.0
        %v382 = vlaneseq
        %vm383 = vcmp.ge.s32.totalorder %v382, 0
        %vm384 = vcmp.lt.s32.totalorder %v382, 256
        %vm385 = vmand %vm383, %vm384
        %386 = vst.msk [vmem:[#allocation3] ss:$8 sm:$0x3] %vm385, 1.0
        %387 = vst.msk [vmem:[#allocation3] ss:$8 sm:$0x0] %vm385, 1.0
        %v388 = vld [vmem:[%s328] sm:$0xff]
        %v390 = vcombine.high %v388, %v388
        %392 = vst [vmem:[#allocation2 + $0x8] sm:$0xf] %v388
        %393 = vst [vmem:[#allocation2 + $0x10] sm:$0xf] %v390
        %v394 = vld [vmem:[#allocation2] sm:$0xf]
        %v395 = vld [vmem:[#allocation2 + $0x8] sm:$0xf]
        %v396 = vld [vmem:[#allocation2 + $0x10] sm:$0xf]
        %s397 = scalar_lea.vmem [#allocation4], 6
        %v398 = vld [vmem:[%s397] ss:$8 sm:$0x3]
        %v400 = vlaneseq
        %v401 = vshrl.u32 %v400, 7
        %v402 = vsub.s32 0, %v401
        %v403 = vrot.slane %v398, %v402
        %v404 = vlaneseq
        %v405 = vshrl.u32 %v404, 7
        %v406 = vsub.s32 1, %v405
        %v407 = vrot.slane %v398, %v406
        %408 = vrot.lane.b32.xlu0 %v403, 111
        %v409 = vpop.permute.xlu0 %408
        %410 = vrot.lane.b32.xlu0 %v407, 111
        %v411 = vpop.permute.xlu0 %410
        %vm412 = vcmask 908288
        %v413 = vsel %vm412, %v409, %v411
        %v417 = vmul.f32 %v394, %v409
        %v418 = vmul.f32 %v395, %v413
        %v419 = vmul.f32 %v396, %v411
        %v423 = vrot.slane %v417, 7
        %v424 = vrot.slane %v418, 7
        %v425 = vrot.slane %v419, 7
        %426 = vrot.lane.b32.xlu0 %v423, 17
        %v427 = vpop.permute.xlu0 %426
        %428 = vrot.lane.b32.xlu0 %v424, 17
        %v429 = vpop.permute.xlu0 %428
        %430 = vrot.lane.b32.xlu0 %v425, 17
        %v431 = vpop.permute.xlu0 %430
        %vm432 = vcmask 138240
        %v433 = vsel %vm432, %v427, %v429
        %v434 = vsel %vm432, %v429, %v431
        %437 = vst [vmem:[#allocation3] sm:$0x1e] %v433
        %438 = vst [vmem:[#allocation3 + $0x8] sm:$0x1e] %v434
        %v439 = vld [vmem:[#allocation2] sm:$0xf]
        %v440 = vld [vmem:[#allocation2 + $0x8] sm:$0xf]
        %v441 = vld [vmem:[#allocation2 + $0x10] sm:$0xf]
        %s442 = scalar_lea.vmem [#allocation4], 7
        %v443 = vld [vmem:[%s442] ss:$8 sm:$0x3]
        %v445 = vlaneseq
        %v446 = vshrl.u32 %v445, 7
        %v447 = vsub.s32 0, %v446
        %v448 = vrot.slane %v443, %v447
        %v449 = vlaneseq
        %v450 = vshrl.u32 %v449, 7
        %v451 = vsub.s32 1, %v450
        %v452 = vrot.slane %v443, %v451
        %453 = vrot.lane.b32.xlu0 %v448, 112
        %v454 = vpop.permute.xlu0 %453
        %455 = vrot.lane.b32.xlu0 %v452, 112
        %v456 = vpop.permute.xlu0 %455
        %vm457 = vcmask 916480
        %v458 = vsel %vm457, %v454, %v456
        %v462 = vmul.f32 %v439, %v454
        %v463 = vmul.f32 %v440, %v458
        %v464 = vmul.f32 %v441, %v456
        %v468 = vrot.slane %v462, 3
        %v469 = vrot.slane %v463, 3
        %v470 = vrot.slane %v464, 3
        %471 = vrot.lane.b32.xlu0 %v468, 16
        %v472 = vpop.permute.xlu0 %471
        %473 = vrot.lane.b32.xlu0 %v469, 16
        %v474 = vpop.permute.xlu0 %473
        %475 = vrot.lane.b32.xlu0 %v470, 16
        %v476 = vpop.permute.xlu0 %475
        %vm477 = vcmask 130048
        %v478 = vsel %vm477, %v472, %v474
        %v479 = vsel %vm477, %v474, %v476
        %482 = vst [vmem:[#allocation3] sm:$0xe0] %v478
        %483 = vst [vmem:[#allocation3 + $0x8] sm:$0xe0] %v479
        %484 = vst [vmem:[#allocation3 + $0x10] sm:$0x1] %v478
        %485 = vst [vmem:[#allocation3 + $0x18] sm:$0x1] %v479
        %v486 = vld [vmem:[#allocation2] sm:$0xf]
        %v487 = vld [vmem:[#allocation2 + $0x8] sm:$0xf]
        %v488 = vld [vmem:[#allocation2 + $0x10] sm:$0xf]
        %s489 = scalar_lea.vmem [#allocation4], 16
        %v490 = vld [vmem:[%s489] ss:$8 sm:$0x3]
        %v492 = vlaneseq
        %v493 = vshrl.u32 %v492, 7
        %v494 = vsub.s32 0, %v493
        %v495 = vrot.slane %v490, %v494
        %v496 = vlaneseq
        %v497 = vshrl.u32 %v496, 7
        %v498 = vsub.s32 1, %v497
        %v499 = vrot.slane %v490, %v498
        %500 = vrot.lane.b32.xlu0 %v495, 113
        %v501 = vpop.permute.xlu0 %500
        %502 = vrot.lane.b32.xlu0 %v499, 113
        %v503 = vpop.permute.xlu0 %502
        %vm504 = vcmask 924672
        %v505 = vsel %vm504, %v501, %v503
        %v509 = vmul.f32 %v486, %v501
        %v510 = vmul.f32 %v487, %v505
        %v511 = vmul.f32 %v488, %v503
        %v515 = vrot.slane %v509, 7
        %v516 = vrot.slane %v510, 7
        %v517 = vrot.slane %v511, 7
        %518 = vrot.lane.b32.xlu0 %v515, 15
        %v519 = vpop.permute.xlu0 %518
        %520 = vrot.lane.b32.xlu0 %v516, 15
        %v521 = vpop.permute.xlu0 %520
        %522 = vrot.lane.b32.xlu0 %v517, 15
        %v523 = vpop.permute.xlu0 %522
        %vm524 = vcmask 121856
        %v525 = vsel %vm524, %v519, %v521
        %v526 = vsel %vm524, %v521, %v523
        %529 = vst [vmem:[#allocation3 + $0x10] sm:$0x1e] %v525
        %530 = vst [vmem:[#allocation3 + $0x18] sm:$0x1e] %v526
        %v531 = vld [vmem:[#allocation2] sm:$0xf]
        %v532 = vld [vmem:[#allocation2 + $0x8] sm:$0xf]
        %v533 = vld [vmem:[#allocation2 + $0x10] sm:$0xf]
        %s534 = scalar_lea.vmem [#allocation4], 19
        %v535 = vld [vmem:[%s534] ss:$8 sm:$0x3]
        %v537 = vlaneseq
        %v538 = vshrl.u32 %v537, 7
        %v539 = vsub.s32 0, %v538
        %v540 = vrot.slane %v535, %v539
        %v541 = vlaneseq
        %v542 = vshrl.u32 %v541, 7
        %v543 = vsub.s32 1, %v542
        %v544 = vrot.slane %v535, %v543
        %545 = vrot.lane.b32.xlu0 %v540, 127
        %v546 = vpop.permute.xlu0 %545
        %547 = vrot.lane.b32.xlu0 %v544, 127
        %v548 = vpop.permute.xlu0 %547
        %vm549 = vcmask 1039360
        %v550 = vsel %vm549, %v546, %v548
        %v554 = vmul.f32 %v531, %v546
        %v555 = vmul.f32 %v532, %v550
        %v556 = vmul.f32 %v533, %v548
        %v560 = vrot.slane %v554, 3
        %v561 = vrot.slane %v555, 3
        %v562 = vrot.slane %v556, 3
        %563 = vrot.lane.b32.xlu0 %v560, 1
        %v564 = vpop.permute.xlu0 %563
        %565 = vrot.lane.b32.xlu0 %v561, 1
        %v566 = vpop.permute.xlu0 %565
        %567 = vrot.lane.b32.xlu0 %v562, 1
        %v568 = vpop.permute.xlu0 %567
        %vm569 = vcmask 7168
        %v570 = vsel %vm569, %v564, %v566
        %v571 = vsel %vm569, %v566, %v568
        %574 = vst [vmem:[#allocation3 + $0x10] sm:$0xe0] %v570
        %575 = vst [vmem:[#allocation3 + $0x18] sm:$0xe0] %v571
        %576 = vst [vmem:[#allocation3 + $0x20] sm:$0x1] %v570
        %577 = vst [vmem:[#allocation3 + $0x28] sm:$0x1] %v571
        %v578 = vld [vmem:[#allocation2 + $0x8] sm:$0xf]
        %v579 = vld [vmem:[#allocation2 + $0x10] sm:$0xf]
        %s580 = scalar_lea.vmem [#allocation4], 20
        %v581 = vld [vmem:[%s580] ss:$8 sm:$0x3]
        %v583 = vlaneseq
        %v584 = vshrl.u32 %v583, 7
        %v585 = vsub.s32 0, %v584
        %v586 = vrot.slane %v581, %v585
        %v587 = vlaneseq
        %v588 = vshrl.u32 %v587, 7
        %v589 = vsub.s32 1, %v588
        %v590 = vrot.slane %v581, %v589
        %v593 = vmul.f32 %v578, %v586
        %v594 = vmul.f32 %v579, %v590
        %v597 = vrot.slane %v593, 7
        %v598 = vrot.slane %v594, 7
        %601 = vst [vmem:[#allocation3 + $0x20] sm:$0x1e] %v597
        %602 = vst [vmem:[#allocation3 + $0x28] sm:$0x1e] %v598
        %v603 = vld [vmem:[#allocation2 + $0x8] sm:$0xf]
        %v604 = vld [vmem:[#allocation2 + $0x10] sm:$0xf]
        %v605 = vld [vmem:[#allocation2 + $0x18] sm:$0xf]
        %s606 = scalar_lea.vmem [#allocation4], 21
        %v607 = vld [vmem:[%s606] ss:$8 sm:$0x3]
        %v609 = vlaneseq
        %v610 = vshrl.u32 %v609, 7
        %v611 = vsub.s32 0, %v610
        %v612 = vrot.slane %v607, %v611
        %v613 = vlaneseq
        %v614 = vshrl.u32 %v613, 7
        %v615 = vsub.s32 1, %v614
        %v616 = vrot.slane %v607, %v615
        %617 = vrot.lane.b32.xlu0 %v612, 1
        %v618 = vpop.permute.xlu0 %617
        %619 = vrot.lane.b32.xlu0 %v616, 1
        %v620 = vpop.permute.xlu0 %619
        %v621 = vsel %vm569, %v618, %v620
        %v625 = vmul.f32 %v603, %v618
        %v626 = vmul.f32 %v604, %v621
        %v627 = vmul.f32 %v605, %v620
        %v631 = vrot.slane %v625, 3
        %v632 = vrot.slane %v626, 3
        %v633 = vrot.slane %v627, 3
        %634 = vrot.lane.b32.xlu0 %v631, 127
        %v635 = vpop.permute.xlu0 %634
        %636 = vrot.lane.b32.xlu0 %v632, 127
        %v637 = vpop.permute.xlu0 %636
        %638 = vrot.lane.b32.xlu0 %v633, 127
        %v639 = vpop.permute.xlu0 %638
        %v640 = vsel %vm549, %v635, %v637
        %v641 = vsel %vm549, %v637, %v639
        %644 = vst [vmem:[#allocation3 + $0x20] sm:$0xe0] %v640
        %645 = vst [vmem:[#allocation3 + $0x28] sm:$0xe0] %v641
        %646 = vst [vmem:[#allocation3 + $0x30] sm:$0x1] %v640
        %647 = vst [vmem:[#allocation3 + $0x38] sm:$0x1] %v641
        %v648 = vld [vmem:[#allocation2 + $0x8] sm:$0xf]
        %v649 = vld [vmem:[#allocation2 + $0x10] sm:$0xf]
        %v650 = vld [vmem:[#allocation2 + $0x18] sm:$0xf]
        %s651 = scalar_lea.vmem [#allocation4], 32
        %v652 = vld [vmem:[%s651] ss:$8 sm:$0x3]
        %v654 = vlaneseq
        %v655 = vshrl.u32 %v654, 7
        %v656 = vsub.s32 0, %v655
        %v657 = vrot.slane %v652, %v656
        %v658 = vlaneseq
        %v659 = vshrl.u32 %v658, 7
        %v660 = vsub.s32 1, %v659
        %v661 = vrot.slane %v652, %v660
        %662 = vrot.lane.b32.xlu0 %v657, 15
        %v663 = vpop.permute.xlu0 %662
        %664 = vrot.lane.b32.xlu0 %v661, 15
        %v665 = vpop.permute.xlu0 %664
        %v666 = vsel %vm524, %v663, %v665
        %v670 = vmul.f32 %v648, %v663
        %v671 = vmul.f32 %v649, %v666
        %v672 = vmul.f32 %v650, %v665
        %v676 = vrot.slane %v670, 7
        %v677 = vrot.slane %v671, 7
        %v678 = vrot.slane %v672, 7
        %679 = vrot.lane.b32.xlu0 %v676, 113
        %v680 = vpop.permute.xlu0 %679
        %681 = vrot.lane.b32.xlu0 %v677, 113
        %v682 = vpop.permute.xlu0 %681
        %683 = vrot.lane.b32.xlu0 %v678, 113
        %v684 = vpop.permute.xlu0 %683
        %v685 = vsel %vm504, %v680, %v682
        %v686 = vsel %vm504, %v682, %v684
        %689 = vst [vmem:[#allocation3 + $0x30] sm:$0x1e] %v685
        %690 = vst [vmem:[#allocation3 + $0x38] sm:$0x1e] %v686
        %v691 = vld [vmem:[#allocation2 + $0x8] sm:$0xf]
        %v692 = vld [vmem:[#allocation2 + $0x10] sm:$0xf]
        %v693 = vld [vmem:[#allocation2 + $0x18] sm:$0xf]
        %s694 = scalar_lea.vmem [#allocation4], 33
        %v695 = vld [vmem:[%s694] ss:$8 sm:$0x3]
        %v697 = vlaneseq
        %v698 = vshrl.u32 %v697, 7
        %v699 = vsub.s32 0, %v698
        %v700 = vrot.slane %v695, %v699
        %v701 = vlaneseq
        %v702 = vshrl.u32 %v701, 7
        %v703 = vsub.s32 1, %v702
        %v704 = vrot.slane %v695, %v703
        %705 = vrot.lane.b32.xlu0 %v700, 16
        %v706 = vpop.permute.xlu0 %705
        %707 = vrot.lane.b32.xlu0 %v704, 16
        %v708 = vpop.permute.xlu0 %707
        %v709 = vsel %vm477, %v706, %v708
        %v713 = vmul.f32 %v691, %v706
        %v714 = vmul.f32 %v692, %v709
        %v715 = vmul.f32 %v693, %v708
        %v719 = vrot.slane %v713, 3
        %v720 = vrot.slane %v714, 3
        %v721 = vrot.slane %v715, 3
        %722 = vrot.lane.b32.xlu0 %v719, 112
        %v723 = vpop.permute.xlu0 %722
        %724 = vrot.lane.b32.xlu0 %v720, 112
        %v725 = vpop.permute.xlu0 %724
        %726 = vrot.lane.b32.xlu0 %v721, 112
        %v727 = vpop.permute.xlu0 %726
        %v728 = vsel %vm457, %v723, %v725
        %v729 = vsel %vm457, %v725, %v727
        %732 = vst [vmem:[#allocation3 + $0x30] sm:$0xe0] %v728
        %733 = vst [vmem:[#allocation3 + $0x38] sm:$0xe0] %v729
        %734 = vst [vmem:[#allocation3 + $0x40] sm:$0x1] %v728
        %735 = vst [vmem:[#allocation3 + $0x48] sm:$0x1] %v729
        %v736 = vld [vmem:[#allocation2 + $0x8] sm:$0xf]
        %v737 = vld [vmem:[#allocation2 + $0x10] sm:$0xf]
        %v738 = vld [vmem:[#allocation2 + $0x18] sm:$0xf]
        %s739 = scalar_lea.vmem [#allocation4], 34
        %v740 = vld [vmem:[%s739] ss:$8 sm:$0x3]
        %v742 = vlaneseq
        %v743 = vshrl.u32 %v742, 7
        %v744 = vsub.s32 0, %v743
        %v745 = vrot.slane %v740, %v744
        %v746 = vlaneseq
        %v747 = vshrl.u32 %v746, 7
        %v748 = vsub.s32 1, %v747
        %v749 = vrot.slane %v740, %v748
        %750 = vrot.lane.b32.xlu0 %v745, 17
        %v751 = vpop.permute.xlu0 %750
        %752 = vrot.lane.b32.xlu0 %v749, 17
        %v753 = vpop.permute.xlu0 %752
        %v754 = vsel %vm432, %v751, %v753
        %v758 = vmul.f32 %v736, %v751
        %v759 = vmul.f32 %v737, %v754
        %v760 = vmul.f32 %v738, %v753
        %v764 = vrot.slane %v758, 7
        %v765 = vrot.slane %v759, 7
        %v766 = vrot.slane %v760, 7
        %767 = vrot.lane.b32.xlu0 %v764, 111
        %v768 = vpop.permute.xlu0 %767
        %769 = vrot.lane.b32.xlu0 %v765, 111
        %v770 = vpop.permute.xlu0 %769
        %771 = vrot.lane.b32.xlu0 %v766, 111
        %v772 = vpop.permute.xlu0 %771
        %v773 = vsel %vm412, %v768, %v770
        %v774 = vsel %vm412, %v770, %v772
        %777 = vst [vmem:[#allocation3 + $0x40] sm:$0x1e] %v773
        %778 = vst [vmem:[#allocation3 + $0x48] sm:$0x1e] %v774
        %v779 = vld [vmem:[#allocation8] sm:$0xff]
        %v780 = vld [vmem:[#allocation8 + $0x8] sm:$0xff]
        %v781 = vld [vmem:[#allocation3] sm:$0xff]
        %v782 = vld [vmem:[#allocation3 + $0x8] sm:$0xff]
        %v783 = vld [vmem:[#allocation3 + $0x10] sm:$0xff]
        %v784 = vld [vmem:[#allocation3 + $0x18] sm:$0xff]
        %v785 = vld [vmem:[#allocation3 + $0x20] sm:$0xff]
        %v786 = vld [vmem:[#allocation3 + $0x28] sm:$0xff]
        %v787 = vld [vmem:[#allocation3 + $0x30] sm:$0xff]
        %v788 = vld [vmem:[#allocation3 + $0x38] sm:$0xff]
        %v789 = vld [vmem:[#allocation3 + $0x40] sm:$0x1f]
        %v790 = vld [vmem:[#allocation3 + $0x48] sm:$0x1f]
        %vm791 = vcmask 302080
        %v793 = vsel %vm791, %v779, 0
        %v796 = vsel %vm791, %v780, 0
        %vm798 = vcmask 1044480
        %v800 = vsel %vm798, %v789, 0
        %v803 = vsel %vm798, %v790, 0
        %805 = vmatprep.subr.mxu0 %v782
        %806 = vmatpush1.msra.mxu0 %v781
        %807 = vmatprep.subr.mxu0 %v784
        %808 = vmatpush1.msra.mxu0 %v783
        %809 = vmatprep.subr.mxu0 %v786
        %810 = vmatpush1.msra.mxu0 %v785
        %811 = vmatprep.subr.mxu0 %v788
        %812 = vmatpush1.msra.mxu0 %v787
        %813 = vmatprep.subr.mxu0 %v803
        %814 = vmatpush1.msra.mxu0 %v800
        %815 = vmatprep.subr.mxu0 0.0
        %816 = vmatpush1.msra.mxu0 0.0
        %817 = vmatprep.subr.mxu0 0.0
        %818 = vmatpush1.msra.mxu0 0.0
        %819 = vmatprep.subr.mxu0 0.0
        %820 = vmatpush1.msra.mxu0 0.0
        %821 = vmatprep.subr.mxu0 0.0
        %822 = vmatpush1.msra.mxu0 0.0
        %823 = vmatprep.subr.mxu0 0.0
        %824 = vmatpush1.msra.mxu0 0.0
        %825 = vmatprep.subr.mxu0 0.0
        %826 = vmatpush1.msra.mxu0 0.0
        %827 = vmatprep.subr.mxu0 0.0
        %828 = vmatpush1.msra.mxu0 0.0
        %829 = vmatprep.subr.mxu0 0.0
        %830 = vmatpush1.msra.mxu0 0.0
        %831 = vmatprep.subr.mxu0 0.0
        %832 = vmatpush1.msra.mxu0 0.0
        %833 = vmatprep.subr.mxu0 0.0
        %834 = vmatpush1.msra.mxu0 0.0
        %835 = vmatprep.subr.mxu0 0.0
        %836 = vmatpush1.msra.mxu0 0.0
        %837 = vmatprep.subr.mxu0 0.0
        %838 = vmatpush1.msra.mxu0 0.0
        %839 = vmatprep.subr.mxu0 0.0
        %840 = vmatpush1.msra.mxu0 0.0
        %841 = vmatprep.subr.mxu0 0.0
        %842 = vmatpush1.msra.mxu0 0.0
        %843 = vmatprep.subr.mxu0 0.0
        %844 = vmatpush1.msra.mxu0 0.0
        %845 = vmatprep.subr.mxu0 0.0
        %846 = vmatpush1.msra.mxu0 0.0
        %847 = vmatprep.subr.mxu0 0.0
        %848 = vmatpush1.msra.mxu0 0.0
        %849 = vmatprep.subr.mxu0 0.0
        %850 = vmatpush1.msra.mxu0 0.0
        %851 = vmatprep.subr.mxu0 0.0
        %852 = vmatpush1.msra.mxu0 0.0
        %853 = vmatprep.subr.mxu0 0.0
        %854 = vmatpush1.msra.mxu0 0.0
        %855 = vmatprep.subr.mxu0 0.0
        %856 = vmatpush1.msra.mxu0 0.0
        %857 = vmatprep.subr.mxu0 0.0
        %858 = vmatpush1.msra.mxu0 0.0
        %859 = vmatprep.subr.mxu0 0.0
        %860 = vmatpush1.msra.mxu0 0.0
        %861 = vmatprep.subr.mxu0 0.0
        %862 = vmatpush1.msra.mxu0 0.0
        %863 = vmatprep.subr.mxu0 0.0
        %864 = vmatpush1.msra.mxu0 0.0
        %865 = vmatprep.subr.mxu0 0.0
        %866 = vmatpush1.msra.mxu0 0.0
        %867 = vmatprep.subr.mxu0 0.0
        %868 = vmatpush1.msra.mxu0 0.0
        %869 = vmatprep.mubr.f32.mxu0 0.0
        %870 = vmatmul.mubr.f32.gmra.mrb[0].mxu0 %v793
        %v871 = vpop.f32.mrb[0].mxu0
        %v872 = vadd.f32 0.0, %v871
        %v873 = vpop.f32.mrb[0].mxu0
        %v874 = vadd.f32 0.0, %v873
        %875 = vmatprep.mubr.f32.mxu0 0.0
        %876 = vmatmul.mubr.f32.gmra.mrb[0].mxu0 %v796
        %v877 = vpop.f32.mrb[0].mxu0
        %v878 = vadd.f32 0.0, %v877
        %v879 = vpop.f32.mrb[0].mxu0
        %v880 = vadd.f32 0.0, %v879
        %881 = vdwg.mxu0
        %882 = vst [vmem:[#allocation2 + $0x8] sm:$0xf] %v872
        %883 = vst [vmem:[#allocation2 + $0x10] sm:$0xf] %v874
        %v884 = vld [vmem:[#allocation2] sm:$0xf]
        %v885 = vld [vmem:[#allocation2 + $0x8] sm:$0xf]
        %v886 = vld [vmem:[#allocation2 + $0x10] sm:$0xf]
        %v887 = vld [vmem:[%s397] ss:$8 sm:$0x3]
        %v889 = vlaneseq
        %v890 = vshrl.u32 %v889, 7
        %v891 = vsub.s32 0, %v890
        %v892 = vrot.slane %v887, %v891
        %v893 = vlaneseq
        %v894 = vshrl.u32 %v893, 7
        %v895 = vsub.s32 1, %v894
        %v896 = vrot.slane %v887, %v895
        %897 = vrot.lane.b32.xlu0 %v892, 111
        %v898 = vpop.permute.xlu0 %897
        %899 = vrot.lane.b32.xlu0 %v896, 111
        %v900 = vpop.permute.xlu0 %899
        %v901 = vsel %vm412, %v898, %v900
        %v905 = vmul.f32 %v884, %v898
        %v906 = vmul.f32 %v885, %v901
        %v907 = vmul.f32 %v886, %v900
        %v911 = vrot.slane %v905, 7
        %v912 = vrot.slane %v906, 7
        %v913 = vrot.slane %v907, 7
        %914 = vrot.lane.b32.xlu0 %v911, 17
        %v915 = vpop.permute.xlu0 %914
        %916 = vrot.lane.b32.xlu0 %v912, 17
        %v917 = vpop.permute.xlu0 %916
        %918 = vrot.lane.b32.xlu0 %v913, 17
        %v919 = vpop.permute.xlu0 %918
        %v920 = vsel %vm432, %v915, %v917
        %v921 = vsel %vm432, %v917, %v919
        %924 = vst [vmem:[#allocation3] sm:$0x1e] %v920
        %925 = vst [vmem:[#allocation3 + $0x8] sm:$0x1e] %v921
        %v926 = vld [vmem:[#allocation2] sm:$0xf]
        %v927 = vld [vmem:[#allocation2 + $0x8] sm:$0xf]
        %v928 = vld [vmem:[#allocation2 + $0x10] sm:$0xf]
        %v929 = vld [vmem:[%s442] ss:$8 sm:$0x3]
        %v931 = vlaneseq
        %v932 = vshrl.u32 %v931, 7
        %v933 = vsub.s32 0, %v932
        %v934 = vrot.slane %v929, %v933
        %v935 = vlaneseq
        %v936 = vshrl.u32 %v935, 7
        %v937 = vsub.s32 1, %v936
        %v938 = vrot.slane %v929, %v937
        %939 = vrot.lane.b32.xlu0 %v934, 112
        %v940 = vpop.permute.xlu0 %939
        %941 = vrot.lane.b32.xlu0 %v938, 112
        %v942 = vpop.permute.xlu0 %941
        %v943 = vsel %vm457, %v940, %v942
        %v947 = vmul.f32 %v926, %v940
        %v948 = vmul.f32 %v927, %v943
        %v949 = vmul.f32 %v928, %v942
        %v953 = vrot.slane %v947, 3
        %v954 = vrot.slane %v948, 3
        %v955 = vrot.slane %v949, 3
        %956 = vrot.lane.b32.xlu0 %v953, 16
        %v957 = vpop.permute.xlu0 %956
        %958 = vrot.lane.b32.xlu0 %v954, 16
        %v959 = vpop.permute.xlu0 %958
        %960 = vrot.lane.b32.xlu0 %v955, 16
        %v961 = vpop.permute.xlu0 %960
        %v962 = vsel %vm477, %v957, %v959
        %v963 = vsel %vm477, %v959, %v961
        %966 = vst [vmem:[#allocation3] sm:$0xe0] %v962
        %967 = vst [vmem:[#allocation3 + $0x8] sm:$0xe0] %v963
        %968 = vst [vmem:[#allocation3 + $0x10] sm:$0x1] %v962
        %969 = vst [vmem:[#allocation3 + $0x18] sm:$0x1] %v963
        %v970 = vld [vmem:[#allocation2] sm:$0xf]
        %v971 = vld [vmem:[#allocation2 + $0x8] sm:$0xf]
        %v972 = vld [vmem:[#allocation2 + $0x10] sm:$0xf]
        %v973 = vld [vmem:[%s489] ss:$8 sm:$0x3]
        %v975 = vlaneseq
        %v976 = vshrl.u32 %v975, 7
        %v977 = vsub.s32 0, %v976
        %v978 = vrot.slane %v973, %v977
        %v979 = vlaneseq
        %v980 = vshrl.u32 %v979, 7
        %v981 = vsub.s32 1, %v980
        %v982 = vrot.slane %v973, %v981
        %983 = vrot.lane.b32.xlu0 %v978, 113
        %v984 = vpop.permute.xlu0 %983
        %985 = vrot.lane.b32.xlu0 %v982, 113
        %v986 = vpop.permute.xlu0 %985
        %v987 = vsel %vm504, %v984, %v986
        %v991 = vmul.f32 %v970, %v984
        %v992 = vmul.f32 %v971, %v987
        %v993 = vmul.f32 %v972, %v986
        %v997 = vrot.slane %v991, 7
        %v998 = vrot.slane %v992, 7
        %v999 = vrot.slane %v993, 7
        %1000 = vrot.lane.b32.xlu0 %v997, 15
        %v1001 = vpop.permute.xlu0 %1000
        %1002 = vrot.lane.b32.xlu0 %v998, 15
        %v1003 = vpop.permute.xlu0 %1002
        %1004 = vrot.lane.b32.xlu0 %v999, 15
        %v1005 = vpop.permute.xlu0 %1004
        %v1006 = vsel %vm524, %v1001, %v1003
        %v1007 = vsel %vm524, %v1003, %v1005
        %1010 = vst [vmem:[#allocation3 + $0x10] sm:$0x1e] %v1006
        %1011 = vst [vmem:[#allocation3 + $0x18] sm:$0x1e] %v1007
        %v1012 = vld [vmem:[#allocation2] sm:$0xf]
        %v1013 = vld [vmem:[#allocation2 + $0x8] sm:$0xf]
        %v1014 = vld [vmem:[#allocation2 + $0x10] sm:$0xf]
        %v1015 = vld [vmem:[%s534] ss:$8 sm:$0x3]
        %v1017 = vlaneseq
        %v1018 = vshrl.u32 %v1017, 7
        %v1019 = vsub.s32 0, %v1018
        %v1020 = vrot.slane %v1015, %v1019
        %v1021 = vlaneseq
        %v1022 = vshrl.u32 %v1021, 7
        %v1023 = vsub.s32 1, %v1022
        %v1024 = vrot.slane %v1015, %v1023
        %1025 = vrot.lane.b32.xlu0 %v1020, 127
        %v1026 = vpop.permute.xlu0 %1025
        %1027 = vrot.lane.b32.xlu0 %v1024, 127
        %v1028 = vpop.permute.xlu0 %1027
        %v1029 = vsel %vm549, %v1026, %v1028
        %v1033 = vmul.f32 %v1012, %v1026
        %v1034 = vmul.f32 %v1013, %v1029
        %v1035 = vmul.f32 %v1014, %v1028
        %v1039 = vrot.slane %v1033, 3
        %v1040 = vrot.slane %v1034, 3
        %v1041 = vrot.slane %v1035, 3
        %1042 = vrot.lane.b32.xlu0 %v1039, 1
        %v1043 = vpop.permute.xlu0 %1042
        %1044 = vrot.lane.b32.xlu0 %v1040, 1
        %v1045 = vpop.permute.xlu0 %1044
        %1046 = vrot.lane.b32.xlu0 %v1041, 1
        %v1047 = vpop.permute.xlu0 %1046
        %v1048 = vsel %vm569, %v1043, %v1045
        %v1049 = vsel %vm569, %v1045, %v1047
        %1052 = vst [vmem:[#allocation3 + $0x10] sm:$0xe0] %v1048
        %1053 = vst [vmem:[#allocation3 + $0x18] sm:$0xe0] %v1049
        %1054 = vst [vmem:[#allocation3 + $0x20] sm:$0x1] %v1048
        %1055 = vst [vmem:[#allocation3 + $0x28] sm:$0x1] %v1049
        %v1056 = vld [vmem:[#allocation2 + $0x8] sm:$0xf]
        %v1057 = vld [vmem:[#allocation2 + $0x10] sm:$0xf]
        %v1058 = vld [vmem:[%s580] ss:$8 sm:$0x3]
        %v1060 = vlaneseq
        %v1061 = vshrl.u32 %v1060, 7
        %v1062 = vsub.s32 0, %v1061
        %v1063 = vrot.slane %v1058, %v1062
        %v1064 = vlaneseq
        %v1065 = vshrl.u32 %v1064, 7
        %v1066 = vsub.s32 1, %v1065
        %v1067 = vrot.slane %v1058, %v1066
        %v1070 = vmul.f32 %v1056, %v1063
        %v1071 = vmul.f32 %v1057, %v1067
        %v1074 = vrot.slane %v1070, 7
        %v1075 = vrot.slane %v1071, 7
        %1078 = vst [vmem:[#allocation3 + $0x20] sm:$0x1e] %v1074
        %1079 = vst [vmem:[#allocation3 + $0x28] sm:$0x1e] %v1075
        %v1080 = vld [vmem:[#allocation2 + $0x8] sm:$0xf]
        %v1081 = vld [vmem:[#allocation2 + $0x10] sm:$0xf]
        %v1082 = vld [vmem:[#allocation2 + $0x18] sm:$0xf]
        %v1083 = vld [vmem:[%s606] ss:$8 sm:$0x3]
        %v1085 = vlaneseq
        %v1086 = vshrl.u32 %v1085, 7
        %v1087 = vsub.s32 0, %v1086
        %v1088 = vrot.slane %v1083, %v1087
        %v1089 = vlaneseq
        %v1090 = vshrl.u32 %v1089, 7
        %v1091 = vsub.s32 1, %v1090
        %v1092 = vrot.slane %v1083, %v1091
        %1093 = vrot.lane.b32.xlu0 %v1088, 1
        %v1094 = vpop.permute.xlu0 %1093
        %1095 = vrot.lane.b32.xlu0 %v1092, 1
        %v1096 = vpop.permute.xlu0 %1095
        %v1097 = vsel %vm569, %v1094, %v1096
        %v1101 = vmul.f32 %v1080, %v1094
        %v1102 = vmul.f32 %v1081, %v1097
        %v1103 = vmul.f32 %v1082, %v1096
        %v1107 = vrot.slane %v1101, 3
        %v1108 = vrot.slane %v1102, 3
        %v1109 = vrot.slane %v1103, 3
        %1110 = vrot.lane.b32.xlu0 %v1107, 127
        %v1111 = vpop.permute.xlu0 %1110
        %1112 = vrot.lane.b32.xlu0 %v1108, 127
        %v1113 = vpop.permute.xlu0 %1112
        %1114 = vrot.lane.b32.xlu0 %v1109, 127
        %v1115 = vpop.permute.xlu0 %1114
        %v1116 = vsel %vm549, %v1111, %v1113
        %v1117 = vsel %vm549, %v1113, %v1115
        %1120 = vst [vmem:[#allocation3 + $0x20] sm:$0xe0] %v1116
        %1121 = vst [vmem:[#allocation3 + $0x28] sm:$0xe0] %v1117
        %1122 = vst [vmem:[#allocation3 + $0x30] sm:$0x1] %v1116
        %1123 = vst [vmem:[#allocation3 + $0x38] sm:$0x1] %v1117
        %v1124 = vld [vmem:[#allocation2 + $0x8] sm:$0xf]
        %v1125 = vld [vmem:[#allocation2 + $0x10] sm:$0xf]
        %v1126 = vld [vmem:[#allocation2 + $0x18] sm:$0xf]
        %v1127 = vld [vmem:[%s651] ss:$8 sm:$0x3]
        %v1129 = vlaneseq
        %v1130 = vshrl.u32 %v1129, 7
        %v1131 = vsub.s32 0, %v1130
        %v1132 = vrot.slane %v1127, %v1131
        %v1133 = vlaneseq
        %v1134 = vshrl.u32 %v1133, 7
        %v1135 = vsub.s32 1, %v1134
        %v1136 = vrot.slane %v1127, %v1135
        %1137 = vrot.lane.b32.xlu0 %v1132, 15
        %v1138 = vpop.permute.xlu0 %1137
        %1139 = vrot.lane.b32.xlu0 %v1136, 15
        %v1140 = vpop.permute.xlu0 %1139
        %v1141 = vsel %vm524, %v1138, %v1140
        %v1145 = vmul.f32 %v1124, %v1138
        %v1146 = vmul.f32 %v1125, %v1141
        %v1147 = vmul.f32 %v1126, %v1140
        %v1151 = vrot.slane %v1145, 7
        %v1152 = vrot.slane %v1146, 7
        %v1153 = vrot.slane %v1147, 7
        %1154 = vrot.lane.b32.xlu0 %v1151, 113
        %v1155 = vpop.permute.xlu0 %1154
        %1156 = vrot.lane.b32.xlu0 %v1152, 113
        %v1157 = vpop.permute.xlu0 %1156
        %1158 = vrot.lane.b32.xlu0 %v1153, 113
        %v1159 = vpop.permute.xlu0 %1158
        %v1160 = vsel %vm504, %v1155, %v1157
        %v1161 = vsel %vm504, %v1157, %v1159
        %1164 = vst [vmem:[#allocation3 + $0x30] sm:$0x1e] %v1160
        %1165 = vst [vmem:[#allocation3 + $0x38] sm:$0x1e] %v1161
        %v1166 = vld [vmem:[#allocation2 + $0x8] sm:$0xf]
        %v1167 = vld [vmem:[#allocation2 + $0x10] sm:$0xf]
        %v1168 = vld [vmem:[#allocation2 + $0x18] sm:$0xf]
        %v1169 = vld [vmem:[%s694] ss:$8 sm:$0x3]
        %v1171 = vlaneseq
        %v1172 = vshrl.u32 %v1171, 7
        %v1173 = vsub.s32 0, %v1172
        %v1174 = vrot.slane %v1169, %v1173
        %v1175 = vlaneseq
        %v1176 = vshrl.u32 %v1175, 7
        %v1177 = vsub.s32 1, %v1176
        %v1178 = vrot.slane %v1169, %v1177
        %1179 = vrot.lane.b32.xlu0 %v1174, 16
        %v1180 = vpop.permute.xlu0 %1179
        %1181 = vrot.lane.b32.xlu0 %v1178, 16
        %v1182 = vpop.permute.xlu0 %1181
        %v1183 = vsel %vm477, %v1180, %v1182
        %v1187 = vmul.f32 %v1166, %v1180
        %v1188 = vmul.f32 %v1167, %v1183
        %v1189 = vmul.f32 %v1168, %v1182
        %v1193 = vrot.slane %v1187, 3
        %v1194 = vrot.slane %v1188, 3
        %v1195 = vrot.slane %v1189, 3
        %1196 = vrot.lane.b32.xlu0 %v1193, 112
        %v1197 = vpop.permute.xlu0 %1196
        %1198 = vrot.lane.b32.xlu0 %v1194, 112
        %v1199 = vpop.permute.xlu0 %1198
        %1200 = vrot.lane.b32.xlu0 %v1195, 112
        %v1201 = vpop.permute.xlu0 %1200
        %v1202 = vsel %vm457, %v1197, %v1199
        %v1203 = vsel %vm457, %v1199, %v1201
        %1206 = vst [vmem:[#allocation3 + $0x30] sm:$0xe0] %v1202
        %1207 = vst [vmem:[#allocation3 + $0x38] sm:$0xe0] %v1203
        %1208 = vst [vmem:[#allocation3 + $0x40] sm:$0x1] %v1202
        %1209 = vst [vmem:[#allocation3 + $0x48] sm:$0x1] %v1203
        %v1210 = vld [vmem:[#allocation2 + $0x8] sm:$0xf]
        %v1211 = vld [vmem:[#allocation2 + $0x10] sm:$0xf]
        %v1212 = vld [vmem:[#allocation2 + $0x18] sm:$0xf]
        %v1213 = vld [vmem:[%s739] ss:$8 sm:$0x3]
        %v1215 = vlaneseq
        %v1216 = vshrl.u32 %v1215, 7
        %v1217 = vsub.s32 0, %v1216
        %v1218 = vrot.slane %v1213, %v1217
        %v1219 = vlaneseq
        %v1220 = vshrl.u32 %v1219, 7
        %v1221 = vsub.s32 1, %v1220
        %v1222 = vrot.slane %v1213, %v1221
        %1223 = vrot.lane.b32.xlu0 %v1218, 17
        %v1224 = vpop.permute.xlu0 %1223
        %1225 = vrot.lane.b32.xlu0 %v1222, 17
        %v1226 = vpop.permute.xlu0 %1225
        %v1227 = vsel %vm432, %v1224, %v1226
        %v1231 = vmul.f32 %v1210, %v1224
        %v1232 = vmul.f32 %v1211, %v1227
        %v1233 = vmul.f32 %v1212, %v1226
        %v1237 = vrot.slane %v1231, 7
        %v1238 = vrot.slane %v1232, 7
        %v1239 = vrot.slane %v1233, 7
        %1240 = vrot.lane.b32.xlu0 %v1237, 111
        %v1241 = vpop.permute.xlu0 %1240
        %1242 = vrot.lane.b32.xlu0 %v1238, 111
        %v1243 = vpop.permute.xlu0 %1242
        %1244 = vrot.lane.b32.xlu0 %v1239, 111
        %v1245 = vpop.permute.xlu0 %1244
        %v1246 = vsel %vm412, %v1241, %v1243
        %v1247 = vsel %vm412, %v1243, %v1245
        %1250 = vst [vmem:[#allocation3 + $0x40] sm:$0x1e] %v1246
        %1251 = vst [vmem:[#allocation3 + $0x48] sm:$0x1e] %v1247
        %v1252 = vld [vmem:[#allocation9] sm:$0xf]
        %v1253 = vld [vmem:[#allocation3] sm:$0xff]
        %v1254 = vld [vmem:[#allocation3 + $0x8] sm:$0xff]
        %v1255 = vld [vmem:[#allocation3 + $0x10] sm:$0xff]
        %v1256 = vld [vmem:[#allocation3 + $0x18] sm:$0xff]
        %v1257 = vld [vmem:[#allocation3 + $0x20] sm:$0xff]
        %v1258 = vld [vmem:[#allocation3 + $0x28] sm:$0xff]
        %v1259 = vld [vmem:[#allocation3 + $0x30] sm:$0xff]
        %v1260 = vld [vmem:[#allocation3 + $0x38] sm:$0xff]
        %v1261 = vld [vmem:[#allocation3 + $0x40] sm:$0x1f]
        %v1262 = vld [vmem:[#allocation3 + $0x48] sm:$0x1f]
        %v1264 = vsel %vm791, %v1252, 0
        %v1267 = vsel %vm798, %v1261, 0
        %v1270 = vsel %vm798, %v1262, 0
        %1272 = vmatprep.subr.mxu0 %v1254
        %1273 = vmatpush1.msra.mxu0 %v1253
        %1274 = vmatprep.subr.mxu0 %v1256
        %1275 = vmatpush1.msra.mxu0 %v1255
        %1276 = vmatprep.subr.mxu0 %v1258
        %1277 = vmatpush1.msra.mxu0 %v1257
        %1278 = vmatprep.subr.mxu0 %v1260
        %1279 = vmatpush1.msra.mxu0 %v1259
        %1280 = vmatprep.subr.mxu0 %v1270
        %1281 = vmatpush1.msra.mxu0 %v1267
        %1282 = vmatprep.subr.mxu0 0.0
        %1283 = vmatpush1.msra.mxu0 0.0
        %1284 = vmatprep.subr.mxu0 0.0
        %1285 = vmatpush1.msra.mxu0 0.0
        %1286 = vmatprep.subr.mxu0 0.0
        %1287 = vmatpush1.msra.mxu0 0.0
        %1288 = vmatprep.subr.mxu0 0.0
        %1289 = vmatpush1.msra.mxu0 0.0
        %1290 = vmatprep.subr.mxu0 0.0
        %1291 = vmatpush1.msra.mxu0 0.0
        %1292 = vmatprep.subr.mxu0 0.0
        %1293 = vmatpush1.msra.mxu0 0.0
        %1294 = vmatprep.subr.mxu0 0.0
        %1295 = vmatpush1.msra.mxu0 0.0
        %1296 = vmatprep.subr.mxu0 0.0
        %1297 = vmatpush1.msra.mxu0 0.0
        %1298 = vmatprep.subr.mxu0 0.0
        %1299 = vmatpush1.msra.mxu0 0.0
        %1300 = vmatprep.subr.mxu0 0.0
        %1301 = vmatpush1.msra.mxu0 0.0
        %1302 = vmatprep.subr.mxu0 0.0
        %1303 = vmatpush1.msra.mxu0 0.0
        %1304 = vmatprep.subr.mxu0 0.0
        %1305 = vmatpush1.msra.mxu0 0.0
        %1306 = vmatprep.subr.mxu0 0.0
        %1307 = vmatpush1.msra.mxu0 0.0
        %1308 = vmatprep.subr.mxu0 0.0
        %1309 = vmatpush1.msra.mxu0 0.0
        %1310 = vmatprep.subr.mxu0 0.0
        %1311 = vmatpush1.msra.mxu0 0.0
        %1312 = vmatprep.subr.mxu0 0.0
        %1313 = vmatpush1.msra.mxu0 0.0
        %1314 = vmatprep.subr.mxu0 0.0
        %1315 = vmatpush1.msra.mxu0 0.0
        %1316 = vmatprep.subr.mxu0 0.0
        %1317 = vmatpush1.msra.mxu0 0.0
        %1318 = vmatprep.subr.mxu0 0.0
        %1319 = vmatpush1.msra.mxu0 0.0
        %1320 = vmatprep.subr.mxu0 0.0
        %1321 = vmatpush1.msra.mxu0 0.0
        %1322 = vmatprep.subr.mxu0 0.0
        %1323 = vmatpush1.msra.mxu0 0.0
        %1324 = vmatprep.subr.mxu0 0.0
        %1325 = vmatpush1.msra.mxu0 0.0
        %1326 = vmatprep.subr.mxu0 0.0
        %1327 = vmatpush1.msra.mxu0 0.0
        %1328 = vmatprep.subr.mxu0 0.0
        %1329 = vmatpush1.msra.mxu0 0.0
        %1330 = vmatprep.subr.mxu0 0.0
        %1331 = vmatpush1.msra.mxu0 0.0
        %1332 = vmatprep.subr.mxu0 0.0
        %1333 = vmatpush1.msra.mxu0 0.0
        %1334 = vmatprep.subr.mxu0 0.0
        %1335 = vmatpush1.msra.mxu0 0.0
        %1336 = vmatprep.mubr.f32.mxu0 0.0
        %1337 = vmatmul.mubr.f32.gmra.mrb[0].mxu0 %v1264
        %v1338 = vpop.f32.mrb[0].mxu0
        %v1339 = vadd.f32 0.0, %v1338
        %v1340 = vpop.f32.mrb[0].mxu0
        %v1341 = vadd.f32 0.0, %v1340
        %1342 = vdwg.mxu0
        %1343 = vst [vmem:[#allocation2 + $0x8] sm:$0xf] %v1339
        %1344 = vst [vmem:[#allocation2 + $0x10] sm:$0xf] %v1341
        %v1345 = vld [vmem:[#allocation2] sm:$0xf]
        %v1346 = vld [vmem:[#allocation2 + $0x8] sm:$0xf]
        %v1347 = vld [vmem:[#allocation2 + $0x10] sm:$0xf]
        %v1348 = vld [vmem:[%s397] ss:$8 sm:$0x3]
        %v1350 = vlaneseq
        %v1351 = vshrl.u32 %v1350, 7
        %v1352 = vsub.s32 0, %v1351
        %v1353 = vrot.slane %v1348, %v1352
        %v1354 = vlaneseq
        %v1355 = vshrl.u32 %v1354, 7
        %v1356 = vsub.s32 1, %v1355
        %v1357 = vrot.slane %v1348, %v1356
        %1358 = vrot.lane.b32.xlu0 %v1353, 111
        %v1359 = vpop.permute.xlu0 %1358
        %1360 = vrot.lane.b32.xlu0 %v1357, 111
        %v1361 = vpop.permute.xlu0 %1360
        %v1362 = vsel %vm412, %v1359, %v1361
        %v1366 = vmul.f32 %v1345, %v1359
        %v1367 = vmul.f32 %v1346, %v1362
        %v1368 = vmul.f32 %v1347, %v1361
        %v1372 = vrot.slane %v1366, 7
        %v1373 = vrot.slane %v1367, 7
        %v1374 = vrot.slane %v1368, 7
        %1375 = vrot.lane.b32.xlu0 %v1372, 17
        %v1376 = vpop.permute.xlu0 %1375
        %1377 = vrot.lane.b32.xlu0 %v1373, 17
        %v1378 = vpop.permute.xlu0 %1377
        %1379 = vrot.lane.b32.xlu0 %v1374, 17
        %v1380 = vpop.permute.xlu0 %1379
        %v1381 = vsel %vm432, %v1376, %v1378
        %v1382 = vsel %vm432, %v1378, %v1380
        %1385 = vst [vmem:[#allocation3] sm:$0x1e] %v1381
        %1386 = vst [vmem:[#allocation3 + $0x8] sm:$0x1e] %v1382
        %v1387 = vld [vmem:[#allocation2] sm:$0xf]
        %v1388 = vld [vmem:[#allocation2 + $0x8] sm:$0xf]
        %v1389 = vld [vmem:[#allocation2 + $0x10] sm:$0xf]
        %v1390 = vld [vmem:[%s442] ss:$8 sm:$0x3]
        %v1392 = vlaneseq
        %v1393 = vshrl.u32 %v1392, 7
        %v1394 = vsub.s32 0, %v1393
        %v1395 = vrot.slane %v1390, %v1394
        %v1396 = vlaneseq
        %v1397 = vshrl.u32 %v1396, 7
        %v1398 = vsub.s32 1, %v1397
        %v1399 = vrot.slane %v1390, %v1398
        %1400 = vrot.lane.b32.xlu0 %v1395, 112
        %v1401 = vpop.permute.xlu0 %1400
        %1402 = vrot.lane.b32.xlu0 %v1399, 112
        %v1403 = vpop.permute.xlu0 %1402
        %v1404 = vsel %vm457, %v1401, %v1403
        %v1408 = vmul.f32 %v1387, %v1401
        %v1409 = vmul.f32 %v1388, %v1404
        %v1410 = vmul.f32 %v1389, %v1403
        %v1414 = vrot.slane %v1408, 3
        %v1415 = vrot.slane %v1409, 3
        %v1416 = vrot.slane %v1410, 3
        %1417 = vrot.lane.b32.xlu0 %v1414, 16
        %v1418 = vpop.permute.xlu0 %1417
        %1419 = vrot.lane.b32.xlu0 %v1415, 16
        %v1420 = vpop.permute.xlu0 %1419
        %1421 = vrot.lane.b32.xlu0 %v1416, 16
        %v1422 = vpop.permute.xlu0 %1421
        %v1423 = vsel %vm477, %v1418, %v1420
        %v1424 = vsel %vm477, %v1420, %v1422
        %1427 = vst [vmem:[#allocation3] sm:$0xe0] %v1423
        %1428 = vst [vmem:[#allocation3 + $0x8] sm:$0xe0] %v1424
        %1429 = vst [vmem:[#allocation3 + $0x10] sm:$0x1] %v1423
        %1430 = vst [vmem:[#allocation3 + $0x18] sm:$0x1] %v1424
        %v1431 = vld [vmem:[#allocation2] sm:$0xf]
        %v1432 = vld [vmem:[#allocation2 + $0x8] sm:$0xf]
        %v1433 = vld [vmem:[#allocation2 + $0x10] sm:$0xf]
        %v1434 = vld [vmem:[%s489] ss:$8 sm:$0x3]
        %v1436 = vlaneseq
        %v1437 = vshrl.u32 %v1436, 7
        %v1438 = vsub.s32 0, %v1437
        %v1439 = vrot.slane %v1434, %v1438
        %v1440 = vlaneseq
        %v1441 = vshrl.u32 %v1440, 7
        %v1442 = vsub.s32 1, %v1441
        %v1443 = vrot.slane %v1434, %v1442
        %1444 = vrot.lane.b32.xlu0 %v1439, 113
        %v1445 = vpop.permute.xlu0 %1444
        %1446 = vrot.lane.b32.xlu0 %v1443, 113
        %v1447 = vpop.permute.xlu0 %1446
        %v1448 = vsel %vm504, %v1445, %v1447
        %v1452 = vmul.f32 %v1431, %v1445
        %v1453 = vmul.f32 %v1432, %v1448
        %v1454 = vmul.f32 %v1433, %v1447
        %v1458 = vrot.slane %v1452, 7
        %v1459 = vrot.slane %v1453, 7
        %v1460 = vrot.slane %v1454, 7
        %1461 = vrot.lane.b32.xlu0 %v1458, 15
        %v1462 = vpop.permute.xlu0 %1461
        %1463 = vrot.lane.b32.xlu0 %v1459, 15
        %v1464 = vpop.permute.xlu0 %1463
        %1465 = vrot.lane.b32.xlu0 %v1460, 15
        %v1466 = vpop.permute.xlu0 %1465
        %v1467 = vsel %vm524, %v1462, %v1464
        %v1468 = vsel %vm524, %v1464, %v1466
        %1471 = vst [vmem:[#allocation3 + $0x10] sm:$0x1e] %v1467
        %1472 = vst [vmem:[#allocation3 + $0x18] sm:$0x1e] %v1468
        %v1473 = vld [vmem:[#allocation2] sm:$0xf]
        %v1474 = vld [vmem:[#allocation2 + $0x8] sm:$0xf]
        %v1475 = vld [vmem:[#allocation2 + $0x10] sm:$0xf]
        %v1476 = vld [vmem:[%s534] ss:$8 sm:$0x3]
        %v1478 = vlaneseq
        %v1479 = vshrl.u32 %v1478, 7
        %v1480 = vsub.s32 0, %v1479
        %v1481 = vrot.slane %v1476, %v1480
        %v1482 = vlaneseq
        %v1483 = vshrl.u32 %v1482, 7
        %v1484 = vsub.s32 1, %v1483
        %v1485 = vrot.slane %v1476, %v1484
        %1486 = vrot.lane.b32.xlu0 %v1481, 127
        %v1487 = vpop.permute.xlu0 %1486
        %1488 = vrot.lane.b32.xlu0 %v1485, 127
        %v1489 = vpop.permute.xlu0 %1488
        %v1490 = vsel %vm549, %v1487, %v1489
        %v1494 = vmul.f32 %v1473, %v1487
        %v1495 = vmul.f32 %v1474, %v1490
        %v1496 = vmul.f32 %v1475, %v1489
        %v1500 = vrot.slane %v1494, 3
        %v1501 = vrot.slane %v1495, 3
        %v1502 = vrot.slane %v1496, 3
        %1503 = vrot.lane.b32.xlu0 %v1500, 1
        %v1504 = vpop.permute.xlu0 %1503
        %1505 = vrot.lane.b32.xlu0 %v1501, 1
        %v1506 = vpop.permute.xlu0 %1505
        %1507 = vrot.lane.b32.xlu0 %v1502, 1
        %v1508 = vpop.permute.xlu0 %1507
        %v1509 = vsel %vm569, %v1504, %v1506
        %v1510 = vsel %vm569, %v1506, %v1508
        %1513 = vst [vmem:[#allocation3 + $0x10] sm:$0xe0] %v1509
        %1514 = vst [vmem:[#allocation3 + $0x18] sm:$0xe0] %v1510
        %1515 = vst [vmem:[#allocation3 + $0x20] sm:$0x1] %v1509
        %1516 = vst [vmem:[#allocation3 + $0x28] sm:$0x1] %v1510
        %v1517 = vld [vmem:[#allocation2 + $0x8] sm:$0xf]
        %v1518 = vld [vmem:[#allocation2 + $0x10] sm:$0xf]
        %v1519 = vld [vmem:[%s580] ss:$8 sm:$0x3]
        %v1521 = vlaneseq
        %v1522 = vshrl.u32 %v1521, 7
        %v1523 = vsub.s32 0, %v1522
        %v1524 = vrot.slane %v1519, %v1523
        %v1525 = vlaneseq
        %v1526 = vshrl.u32 %v1525, 7
        %v1527 = vsub.s32 1, %v1526
        %v1528 = vrot.slane %v1519, %v1527
        %v1531 = vmul.f32 %v1517, %v1524
        %v1532 = vmul.f32 %v1518, %v1528
        %v1535 = vrot.slane %v1531, 7
        %v1536 = vrot.slane %v1532, 7
        %1539 = vst [vmem:[#allocation3 + $0x20] sm:$0x1e] %v1535
        %1540 = vst [vmem:[#allocation3 + $0x28] sm:$0x1e] %v1536
        %v1541 = vld [vmem:[#allocation2 + $0x8] sm:$0xf]
        %v1542 = vld [vmem:[#allocation2 + $0x10] sm:$0xf]
        %v1543 = vld [vmem:[#allocation2 + $0x18] sm:$0xf]
        %v1544 = vld [vmem:[%s606] ss:$8 sm:$0x3]
        %v1546 = vlaneseq
        %v1547 = vshrl.u32 %v1546, 7
        %v1548 = vsub.s32 0, %v1547
        %v1549 = vrot.slane %v1544, %v1548
        %v1550 = vlaneseq
        %v1551 = vshrl.u32 %v1550, 7
        %v1552 = vsub.s32 1, %v1551
        %v1553 = vrot.slane %v1544, %v1552
        %1554 = vrot.lane.b32.xlu0 %v1549, 1
        %v1555 = vpop.permute.xlu0 %1554
        %1556 = vrot.lane.b32.xlu0 %v1553, 1
        %v1557 = vpop.permute.xlu0 %1556
        %v1558 = vsel %vm569, %v1555, %v1557
        %v1562 = vmul.f32 %v1541, %v1555
        %v1563 = vmul.f32 %v1542, %v1558
        %v1564 = vmul.f32 %v1543, %v1557
        %v1568 = vrot.slane %v1562, 3
        %v1569 = vrot.slane %v1563, 3
        %v1570 = vrot.slane %v1564, 3
        %1571 = vrot.lane.b32.xlu0 %v1568, 127
        %v1572 = vpop.permute.xlu0 %1571
        %1573 = vrot.lane.b32.xlu0 %v1569, 127
        %v1574 = vpop.permute.xlu0 %1573
        %1575 = vrot.lane.b32.xlu0 %v1570, 127
        %v1576 = vpop.permute.xlu0 %1575
        %v1577 = vsel %vm549, %v1572, %v1574
        %v1578 = vsel %vm549, %v1574, %v1576
        %1581 = vst [vmem:[#allocation3 + $0x20] sm:$0xe0] %v1577
        %1582 = vst [vmem:[#allocation3 + $0x28] sm:$0xe0] %v1578
        %1583 = vst [vmem:[#allocation3 + $0x30] sm:$0x1] %v1577
        %1584 = vst [vmem:[#allocation3 + $0x38] sm:$0x1] %v1578
        %v1585 = vld [vmem:[#allocation2 + $0x8] sm:$0xf]
        %v1586 = vld [vmem:[#allocation2 + $0x10] sm:$0xf]
        %v1587 = vld [vmem:[#allocation2 + $0x18] sm:$0xf]
        %v1588 = vld [vmem:[%s651] ss:$8 sm:$0x3]
        %v1590 = vlaneseq
        %v1591 = vshrl.u32 %v1590, 7
        %v1592 = vsub.s32 0, %v1591
        %v1593 = vrot.slane %v1588, %v1592
        %v1594 = vlaneseq
        %v1595 = vshrl.u32 %v1594, 7
        %v1596 = vsub.s32 1, %v1595
        %v1597 = vrot.slane %v1588, %v1596
        %1598 = vrot.lane.b32.xlu0 %v1593, 15
        %v1599 = vpop.permute.xlu0 %1598
        %1600 = vrot.lane.b32.xlu0 %v1597, 15
        %v1601 = vpop.permute.xlu0 %1600
        %v1602 = vsel %vm524, %v1599, %v1601
        %v1606 = vmul.f32 %v1585, %v1599
        %v1607 = vmul.f32 %v1586, %v1602
        %v1608 = vmul.f32 %v1587, %v1601
        %v1612 = vrot.slane %v1606, 7
        %v1613 = vrot.slane %v1607, 7
        %v1614 = vrot.slane %v1608, 7
        %1615 = vrot.lane.b32.xlu0 %v1612, 113
        %v1616 = vpop.permute.xlu0 %1615
        %1617 = vrot.lane.b32.xlu0 %v1613, 113
        %v1618 = vpop.permute.xlu0 %1617
        %1619 = vrot.lane.b32.xlu0 %v1614, 113
        %v1620 = vpop.permute.xlu0 %1619
        %v1621 = vsel %vm504, %v1616, %v1618
        %v1622 = vsel %vm504, %v1618, %v1620
        %1625 = vst [vmem:[#allocation3 + $0x30] sm:$0x1e] %v1621
        %1626 = vst [vmem:[#allocation3 + $0x38] sm:$0x1e] %v1622
        %v1627 = vld [vmem:[#allocation2 + $0x8] sm:$0xf]
        %v1628 = vld [vmem:[#allocation2 + $0x10] sm:$0xf]
        %v1629 = vld [vmem:[#allocation2 + $0x18] sm:$0xf]
        %v1630 = vld [vmem:[%s694] ss:$8 sm:$0x3]
        %v1632 = vlaneseq
        %v1633 = vshrl.u32 %v1632, 7
        %v1634 = vsub.s32 0, %v1633
        %v1635 = vrot.slane %v1630, %v1634
        %v1636 = vlaneseq
        %v1637 = vshrl.u32 %v1636, 7
        %v1638 = vsub.s32 1, %v1637
        %v1639 = vrot.slane %v1630, %v1638
        %1640 = vrot.lane.b32.xlu0 %v1635, 16
        %v1641 = vpop.permute.xlu0 %1640
        %1642 = vrot.lane.b32.xlu0 %v1639, 16
        %v1643 = vpop.permute.xlu0 %1642
        %v1644 = vsel %vm477, %v1641, %v1643
        %v1648 = vmul.f32 %v1627, %v1641
        %v1649 = vmul.f32 %v1628, %v1644
        %v1650 = vmul.f32 %v1629, %v1643
        %v1654 = vrot.slane %v1648, 3
        %v1655 = vrot.slane %v1649, 3
        %v1656 = vrot.slane %v1650, 3
        %1657 = vrot.lane.b32.xlu0 %v1654, 112
        %v1658 = vpop.permute.xlu0 %1657
        %1659 = vrot.lane.b32.xlu0 %v1655, 112
        %v1660 = vpop.permute.xlu0 %1659
        %1661 = vrot.lane.b32.xlu0 %v1656, 112
        %v1662 = vpop.permute.xlu0 %1661
        %v1663 = vsel %vm457, %v1658, %v1660
        %v1664 = vsel %vm457, %v1660, %v1662
        %1667 = vst [vmem:[#allocation3 + $0x30] sm:$0xe0] %v1663
        %1668 = vst [vmem:[#allocation3 + $0x38] sm:$0xe0] %v1664
        %1669 = vst [vmem:[#allocation3 + $0x40] sm:$0x1] %v1663
        %1670 = vst [vmem:[#allocation3 + $0x48] sm:$0x1] %v1664
        %v1671 = vld [vmem:[#allocation2 + $0x8] sm:$0xf]
        %v1672 = vld [vmem:[#allocation2 + $0x10] sm:$0xf]
        %v1673 = vld [vmem:[#allocation2 + $0x18] sm:$0xf]
        %v1674 = vld [vmem:[%s739] ss:$8 sm:$0x3]
        %v1676 = vlaneseq
        %v1677 = vshrl.u32 %v1676, 7
        %v1678 = vsub.s32 0, %v1677
        %v1679 = vrot.slane %v1674, %v1678
        %v1680 = vlaneseq
        %v1681 = vshrl.u32 %v1680, 7
        %v1682 = vsub.s32 1, %v1681
        %v1683 = vrot.slane %v1674, %v1682
        %1684 = vrot.lane.b32.xlu0 %v1679, 17
        %v1685 = vpop.permute.xlu0 %1684
        %1686 = vrot.lane.b32.xlu0 %v1683, 17
        %v1687 = vpop.permute.xlu0 %1686
        %v1688 = vsel %vm432, %v1685, %v1687
        %v1692 = vmul.f32 %v1671, %v1685
        %v1693 = vmul.f32 %v1672, %v1688
        %v1694 = vmul.f32 %v1673, %v1687
        %v1698 = vrot.slane %v1692, 7
        %v1699 = vrot.slane %v1693, 7
        %v1700 = vrot.slane %v1694, 7
        %1701 = vrot.lane.b32.xlu0 %v1698, 111
        %v1702 = vpop.permute.xlu0 %1701
        %1703 = vrot.lane.b32.xlu0 %v1699, 111
        %v1704 = vpop.permute.xlu0 %1703
        %1705 = vrot.lane.b32.xlu0 %v1700, 111
        %v1706 = vpop.permute.xlu0 %1705
        %v1707 = vsel %vm412, %v1702, %v1704
        %v1708 = vsel %vm412, %v1704, %v1706
        %1711 = vst [vmem:[#allocation3 + $0x40] sm:$0x1e] %v1707
        %1712 = vst [vmem:[#allocation3 + $0x48] sm:$0x1e] %v1708
        %v1713 = vld [vmem:[#allocation11] sm:$0xf]
        %v1714 = vld [vmem:[#allocation3] sm:$0xff]
        %v1715 = vld [vmem:[#allocation3 + $0x8] sm:$0xff]
        %v1716 = vld [vmem:[#allocation3 + $0x10] sm:$0xff]
        %v1717 = vld [vmem:[#allocation3 + $0x18] sm:$0xff]
        %v1718 = vld [vmem:[#allocation3 + $0x20] sm:$0xff]
        %v1719 = vld [vmem:[#allocation3 + $0x28] sm:$0xff]
        %v1720 = vld [vmem:[#allocation3 + $0x30] sm:$0xff]
        %v1721 = vld [vmem:[#allocation3 + $0x38] sm:$0xff]
        %v1722 = vld [vmem:[#allocation3 + $0x40] sm:$0x1f]
        %v1723 = vld [vmem:[#allocation3 + $0x48] sm:$0x1f]
        %v1726 = vrot.slane %v872, 4
        %v1727 = vrot.slane %v874, 4
        %v1730 = vadd.f32 %v872, %v1726
        %v1731 = vadd.f32 %v874, %v1727
        %1732 = vst [vmem:[#allocation2 + $0x8] sm:$0xf] %v1730
        %1733 = vst [vmem:[#allocation2 + $0x10] sm:$0xf] %v1731
        %v1734 = vadd.f32 %v1339, %v878
        %v1735 = vadd.f32 %v1341, %v880
        %v1738 = vrot.slane %v1734, 4
        %v1739 = vrot.slane %v1735, 4
        %1742 = vst [vmem:[#allocation2 + $0x8] sm:$0xf0] %v1738
        %1743 = vst [vmem:[#allocation2 + $0x10] sm:$0xf0] %v1739
        %v1746 = vrot.slane %v878, 4
        %v1747 = vrot.slane %v880, 4
        %v1751 = vsel %vm791, %v1713, 0
        %v1754 = vsel %vm798, %v1722, 0
        %v1757 = vsel %vm798, %v1723, 0
        %1759 = vmatprep.subr.mxu0 %v1715
        %1760 = vmatpush1.msra.mxu0 %v1714
        %1761 = vmatprep.subr.mxu0 %v1717
        %1762 = vmatpush1.msra.mxu0 %v1716
        %1763 = vmatprep.subr.mxu0 %v1719
        %1764 = vmatpush1.msra.mxu0 %v1718
        %1765 = vmatprep.subr.mxu0 %v1721
        %1766 = vmatpush1.msra.mxu0 %v1720
        %1767 = vmatprep.subr.mxu0 %v1757
        %1768 = vmatpush1.msra.mxu0 %v1754
        %1769 = vmatprep.subr.mxu0 0.0
        %1770 = vmatpush1.msra.mxu0 0.0
        %1771 = vmatprep.subr.mxu0 0.0
        %1772 = vmatpush1.msra.mxu0 0.0
        %1773 = vmatprep.subr.mxu0 0.0
        %1774 = vmatpush1.msra.mxu0 0.0
        %1775 = vmatprep.subr.mxu0 0.0
        %1776 = vmatpush1.msra.mxu0 0.0
        %1777 = vmatprep.subr.mxu0 0.0
        %1778 = vmatpush1.msra.mxu0 0.0
        %1779 = vmatprep.subr.mxu0 0.0
        %1780 = vmatpush1.msra.mxu0 0.0
        %1781 = vmatprep.subr.mxu0 0.0
        %1782 = vmatpush1.msra.mxu0 0.0
        %1783 = vmatprep.subr.mxu0 0.0
        %1784 = vmatpush1.msra.mxu0 0.0
        %1785 = vmatprep.subr.mxu0 0.0
        %1786 = vmatpush1.msra.mxu0 0.0
        %1787 = vmatprep.subr.mxu0 0.0
        %1788 = vmatpush1.msra.mxu0 0.0
        %1789 = vmatprep.subr.mxu0 0.0
        %1790 = vmatpush1.msra.mxu0 0.0
        %1791 = vmatprep.subr.mxu0 0.0
        %1792 = vmatpush1.msra.mxu0 0.0
        %1793 = vmatprep.subr.mxu0 0.0
        %1794 = vmatpush1.msra.mxu0 0.0
        %1795 = vmatprep.subr.mxu0 0.0
        %1796 = vmatpush1.msra.mxu0 0.0
        %1797 = vmatprep.subr.mxu0 0.0
        %1798 = vmatpush1.msra.mxu0 0.0
        %1799 = vmatprep.subr.mxu0 0.0
        %1800 = vmatpush1.msra.mxu0 0.0
        %1801 = vmatprep.subr.mxu0 0.0
        %1802 = vmatpush1.msra.mxu0 0.0
        %1803 = vmatprep.subr.mxu0 0.0
        %1804 = vmatpush1.msra.mxu0 0.0
        %1805 = vmatprep.subr.mxu0 0.0
        %1806 = vmatpush1.msra.mxu0 0.0
        %1807 = vmatprep.subr.mxu0 0.0
        %1808 = vmatpush1.msra.mxu0 0.0
        %1809 = vmatprep.subr.mxu0 0.0
        %1810 = vmatpush1.msra.mxu0 0.0
        %1811 = vmatprep.subr.mxu0 0.0
        %1812 = vmatpush1.msra.mxu0 0.0
        %1813 = vmatprep.subr.mxu0 0.0
        %1814 = vmatpush1.msra.mxu0 0.0
        %1815 = vmatprep.subr.mxu0 0.0
        %1816 = vmatpush1.msra.mxu0 0.0
        %1817 = vmatprep.subr.mxu0 0.0
        %1818 = vmatpush1.msra.mxu0 0.0
        %1819 = vmatprep.subr.mxu0 0.0
        %1820 = vmatpush1.msra.mxu0 0.0
        %1821 = vmatprep.subr.mxu0 0.0
        %1822 = vmatpush1.msra.mxu0 0.0
        %1823 = vmatprep.mubr.f32.mxu0 0.0
        %1824 = vmatmul.mubr.f32.gmra.mrb[0].mxu0 %v1751
        %v1825 = vpop.f32.mrb[0].mxu0
        %v1826 = vadd.f32 %v1746, %v1825
        %v1827 = vpop.f32.mrb[0].mxu0
        %v1828 = vadd.f32 %v1747, %v1827
        %1829 = vdwg.mxu0
        %1830 = vst [vmem:[#allocation2 + $0x28] sm:$0xf] %v1826
        %1831 = vst [vmem:[#allocation2 + $0x30] sm:$0xf] %v1828
        %v1832 = vld [vmem:[#allocation2] sm:$0xff]
        %v1833 = vld [vmem:[#allocation2 + $0x8] sm:$0xff]
        %v1834 = vld [vmem:[#allocation2 + $0x10] sm:$0xff]
        %v1835 = vld [vmem:[#allocation2 + $0x20] sm:$0xf]
        %v1836 = vld [vmem:[#allocation2 + $0x28] sm:$0xf]
        %v1837 = vld [vmem:[#allocation2 + $0x30] sm:$0xf]
        %v1838 = vld [vmem:[#allocation4] ss:$8 sm:$0x3]
        %v1840 = vlaneseq
        %v1841 = vshrl.u32 %v1840, 7
        %v1842 = vsub.s32 0, %v1841
        %v1843 = vrot.slane %v1838, %v1842
        %v1844 = vlaneseq
        %v1845 = vshrl.u32 %v1844, 7
        %v1846 = vsub.s32 1, %v1845
        %v1847 = vrot.slane %v1838, %v1846
        %1848 = vrot.lane.b32.xlu0 %v1843, 94
        %v1849 = vpop.permute.xlu0 %1848
        %1850 = vrot.lane.b32.xlu0 %v1847, 94
        %v1851 = vpop.permute.xlu0 %1850
        %vm1852 = vcmask 769024
        %v1853 = vsel %vm1852, %v1849, %v1851
        %v1857 = vmul.f32 %v1832, %v1849
        %v1858 = vmul.f32 %v1833, %v1853
        %v1859 = vmul.f32 %v1834, %v1851
        %v1860 = vmul.f32 %v1835, %v1849
        %v1861 = vmul.f32 %v1836, %v1853
        %v1862 = vmul.f32 %v1837, %v1851
        %s1863 = scalar_lea.vmem [#allocation4], 49
        %v1864 = vld [vmem:[%s1863] ss:$8 sm:$0x3]
        %v1866 = vlaneseq
        %v1867 = vshrl.u32 %v1866, 7
        %v1868 = vsub.s32 0, %v1867
        %v1869 = vrot.slane %v1864, %v1868
        %v1870 = vlaneseq
        %v1871 = vshrl.u32 %v1870, 7
        %v1872 = vsub.s32 1, %v1871
        %v1873 = vrot.slane %v1864, %v1872
        %1874 = vrot.lane.b32.xlu0 %v1869, 94
        %v1875 = vpop.permute.xlu0 %1874
        %1876 = vrot.lane.b32.xlu0 %v1873, 94
        %v1877 = vpop.permute.xlu0 %1876
        %v1878 = vsel %vm1852, %v1875, %v1877
        %v1882 = vadd.f32 %v1857, %v1875
        %v1883 = vadd.f32 %v1858, %v1878
        %v1884 = vadd.f32 %v1859, %v1877
        %v1885 = vadd.f32 %v1860, %v1875
        %v1886 = vadd.f32 %v1861, %v1878
        %v1887 = vadd.f32 %v1862, %v1877
        %s1888 = scalar_lea.vmem [#allocation4], 98
        %v1889 = vld [vmem:[%s1888] ss:$8 sm:$0x3]
        %v1891 = vlaneseq
        %v1892 = vshrl.u32 %v1891, 7
        %v1893 = vsub.s32 0, %v1892
        %v1894 = vrot.slane %v1889, %v1893
        %v1895 = vlaneseq
        %v1896 = vshrl.u32 %v1895, 7
        %v1897 = vsub.s32 1, %v1896
        %v1898 = vrot.slane %v1889, %v1897
        %1899 = vrot.lane.b32.xlu0 %v1894, 94
        %v1900 = vpop.permute.xlu0 %1899
        %1901 = vrot.lane.b32.xlu0 %v1898, 94
        %v1902 = vpop.permute.xlu0 %1901
        %v1903 = vsel %vm1852, %v1900, %v1902
        %v1907 = vadd.f32 %v1857, %v1900
        %v1908 = vadd.f32 %v1858, %v1903
        %v1909 = vadd.f32 %v1859, %v1902
        %v1910 = vadd.f32 %v1860, %v1900
        %v1911 = vadd.f32 %v1861, %v1903
        %v1912 = vadd.f32 %v1862, %v1902
        %s1913 = scalar_lea.vmem [#allocation4], 1
        %v1914 = vld [vmem:[%s1913] ss:$8 sm:$0x3]
        %v1916 = vlaneseq
        %v1917 = vshrl.u32 %v1916, 7
        %v1918 = vsub.s32 0, %v1917
        %v1919 = vrot.slane %v1914, %v1918
        %v1920 = vlaneseq
        %v1921 = vshrl.u32 %v1920, 7
        %v1922 = vsub.s32 1, %v1921
        %v1923 = vrot.slane %v1914, %v1922
        %1924 = vrot.lane.b32.xlu0 %v1919, 95
        %v1925 = vpop.permute.xlu0 %1924
        %1926 = vrot.lane.b32.xlu0 %v1923, 95
        %v1927 = vpop.permute.xlu0 %1926
        %vm1928 = vcmask 777216
        %v1929 = vsel %vm1928, %v1925, %v1927
        %v1933 = vmul.f32 %v1832, %v1925
        %v1934 = vmul.f32 %v1833, %v1929
        %v1935 = vmul.f32 %v1834, %v1927
        %v1936 = vmul.f32 %v1835, %v1925
        %v1937 = vmul.f32 %v1836, %v1929
        %v1938 = vmul.f32 %v1837, %v1927
        %s1939 = scalar_lea.vmem [#allocation4], 50
        %v1940 = vld [vmem:[%s1939] ss:$8 sm:$0x3]
        %v1942 = vlaneseq
        %v1943 = vshrl.u32 %v1942, 7
        %v1944 = vsub.s32 0, %v1943
        %v1945 = vrot.slane %v1940, %v1944
        %v1946 = vlaneseq
        %v1947 = vshrl.u32 %v1946, 7
        %v1948 = vsub.s32 1, %v1947
        %v1949 = vrot.slane %v1940, %v1948
        %1950 = vrot.lane.b32.xlu0 %v1945, 95
        %v1951 = vpop.permute.xlu0 %1950
        %1952 = vrot.lane.b32.xlu0 %v1949, 95
        %v1953 = vpop.permute.xlu0 %1952
        %v1954 = vsel %vm1928, %v1951, %v1953
        %v1958 = vadd.f32 %v1933, %v1951
        %v1959 = vadd.f32 %v1934, %v1954
        %v1960 = vadd.f32 %v1935, %v1953
        %v1961 = vadd.f32 %v1936, %v1951
        %v1962 = vadd.f32 %v1937, %v1954
        %v1963 = vadd.f32 %v1938, %v1953
        %s1964 = scalar_lea.vmem [#allocation4], 99
        %v1965 = vld [vmem:[%s1964] ss:$8 sm:$0x3]
        %v1967 = vlaneseq
        %v1968 = vshrl.u32 %v1967, 7
        %v1969 = vsub.s32 0, %v1968
        %v1970 = vrot.slane %v1965, %v1969
        %v1971 = vlaneseq
        %v1972 = vshrl.u32 %v1971, 7
        %v1973 = vsub.s32 1, %v1972
        %v1974 = vrot.slane %v1965, %v1973
        %1975 = vrot.lane.b32.xlu0 %v1970, 95
        %v1976 = vpop.permute.xlu0 %1975
        %1977 = vrot.lane.b32.xlu0 %v1974, 95
        %v1978 = vpop.permute.xlu0 %1977
        %v1979 = vsel %vm1928, %v1976, %v1978
        %v1983 = vadd.f32 %v1933, %v1976
        %v1984 = vadd.f32 %v1934, %v1979
        %v1985 = vadd.f32 %v1935, %v1978
        %v1986 = vadd.f32 %v1936, %v1976
        %v1987 = vadd.f32 %v1937, %v1979
        %v1988 = vadd.f32 %v1938, %v1978
        %1995 = vrot.lane.b32.xlu0 %v1958, 127
        %v1996 = vpop.permute.xlu0 %1995
        %1997 = vrot.lane.b32.xlu0 %v1959, 127
        %v1998 = vpop.permute.xlu0 %1997
        %1999 = vrot.lane.b32.xlu0 %v1960, 127
        %v2000 = vpop.permute.xlu0 %1999
        %2001 = vrot.lane.b32.xlu0 %v1961, 127
        %v2002 = vpop.permute.xlu0 %2001
        %2003 = vrot.lane.b32.xlu0 %v1962, 127
        %v2004 = vpop.permute.xlu0 %2003
        %2005 = vrot.lane.b32.xlu0 %v1963, 127
        %v2006 = vpop.permute.xlu0 %2005
        %v2007 = vsel %vm549, %v1996, %v1998
        %v2008 = vsel %vm549, %v1998, %v2000
        %v2009 = vsel %vm549, %v2002, %v2004
        %v2010 = vsel %vm549, %v2004, %v2006
        %v2017 = vmax.f32 %v1882, %v2007
        %v2018 = vmax.f32 %v1883, %v2008
        %v2019 = vmax.f32 %v1884, %v2000
        %v2020 = vmax.f32 %v1885, %v2009
        %v2021 = vmax.f32 %v1886, %v2010
        %v2022 = vmax.f32 %v1887, %v2006
        %2029 = vrot.lane.b32.xlu0 %v1983, 127
        %v2030 = vpop.permute.xlu0 %2029
        %2031 = vrot.lane.b32.xlu0 %v1984, 127
        %v2032 = vpop.permute.xlu0 %2031
        %2033 = vrot.lane.b32.xlu0 %v1985, 127
        %v2034 = vpop.permute.xlu0 %2033
        %2035 = vrot.lane.b32.xlu0 %v1986, 127
        %v2036 = vpop.permute.xlu0 %2035
        %2037 = vrot.lane.b32.xlu0 %v1987, 127
        %v2038 = vpop.permute.xlu0 %2037
        %2039 = vrot.lane.b32.xlu0 %v1988, 127
        %v2040 = vpop.permute.xlu0 %2039
        %v2041 = vsel %vm549, %v2030, %v2032
        %v2042 = vsel %vm549, %v2032, %v2034
        %v2043 = vsel %vm549, %v2036, %v2038
        %v2044 = vsel %vm549, %v2038, %v2040
        %v2051 = vmin.f32 %v1907, %v2041
        %v2052 = vmin.f32 %v1908, %v2042
        %v2053 = vmin.f32 %v1909, %v2034
        %v2054 = vmin.f32 %v1910, %v2043
        %v2055 = vmin.f32 %v1911, %v2044
        %v2056 = vmin.f32 %v1912, %v2040
        %s2057 = scalar_lea.vmem [#allocation4], 2
        %v2058 = vld [vmem:[%s2057] ss:$8 sm:$0x3]
        %v2060 = vlaneseq
        %v2061 = vshrl.u32 %v2060, 7
        %v2062 = vsub.s32 0, %v2061
        %v2063 = vrot.slane %v2058, %v2062
        %v2064 = vlaneseq
        %v2065 = vshrl.u32 %v2064, 7
        %v2066 = vsub.s32 1, %v2065
        %v2067 = vrot.slane %v2058, %v2066
        %2068 = vrot.lane.b32.xlu0 %v2063, 96
        %v2069 = vpop.permute.xlu0 %2068
        %2070 = vrot.lane.b32.xlu0 %v2067, 96
        %v2071 = vpop.permute.xlu0 %2070
        %vm2072 = vcmask 785408
        %v2073 = vsel %vm2072, %v2069, %v2071
        %v2077 = vmul.f32 %v1832, %v2069
        %v2078 = vmul.f32 %v1833, %v2073
        %v2079 = vmul.f32 %v1834, %v2071
        %v2080 = vmul.f32 %v1835, %v2069
        %v2081 = vmul.f32 %v1836, %v2073
        %v2082 = vmul.f32 %v1837, %v2071
        %s2083 = scalar_lea.vmem [#allocation4], 51
        %v2084 = vld [vmem:[%s2083] ss:$8 sm:$0x3]
        %v2086 = vlaneseq
        %v2087 = vshrl.u32 %v2086, 7
        %v2088 = vsub.s32 0, %v2087
        %v2089 = vrot.slane %v2084, %v2088
        %v2090 = vlaneseq
        %v2091 = vshrl.u32 %v2090, 7
        %v2092 = vsub.s32 1, %v2091
        %v2093 = vrot.slane %v2084, %v2092
        %2094 = vrot.lane.b32.xlu0 %v2089, 96
        %v2095 = vpop.permute.xlu0 %2094
        %2096 = vrot.lane.b32.xlu0 %v2093, 96
        %v2097 = vpop.permute.xlu0 %2096
        %v2098 = vsel %vm2072, %v2095, %v2097
        %v2102 = vadd.f32 %v2077, %v2095
        %v2103 = vadd.f32 %v2078, %v2098
        %v2104 = vadd.f32 %v2079, %v2097
        %v2105 = vadd.f32 %v2080, %v2095
        %v2106 = vadd.f32 %v2081, %v2098
        %v2107 = vadd.f32 %v2082, %v2097
        %s2108 = scalar_lea.vmem [#allocation4], 100
        %v2109 = vld [vmem:[%s2108] ss:$8 sm:$0x3]
        %v2111 = vlaneseq
        %v2112 = vshrl.u32 %v2111, 7
        %v2113 = vsub.s32 0, %v2112
        %v2114 = vrot.slane %v2109, %v2113
        %v2115 = vlaneseq
        %v2116 = vshrl.u32 %v2115, 7
        %v2117 = vsub.s32 1, %v2116
        %v2118 = vrot.slane %v2109, %v2117
        %2119 = vrot.lane.b32.xlu0 %v2114, 96
        %v2120 = vpop.permute.xlu0 %2119
        %2121 = vrot.lane.b32.xlu0 %v2118, 96
        %v2122 = vpop.permute.xlu0 %2121
        %v2123 = vsel %vm2072, %v2120, %v2122
        %v2127 = vadd.f32 %v2077, %v2120
        %v2128 = vadd.f32 %v2078, %v2123
        %v2129 = vadd.f32 %v2079, %v2122
        %v2130 = vadd.f32 %v2080, %v2120
        %v2131 = vadd.f32 %v2081, %v2123
        %v2132 = vadd.f32 %v2082, %v2122
        %2139 = vrot.lane.b32.xlu0 %v2102, 126
        %v2140 = vpop.permute.xlu0 %2139
        %2141 = vrot.lane.b32.xlu0 %v2103, 126
        %v2142 = vpop.permute.xlu0 %2141
        %2143 = vrot.lane.b32.xlu0 %v2104, 126
        %v2144 = vpop.permute.xlu0 %2143
        %2145 = vrot.lane.b32.xlu0 %v2105, 126
        %v2146 = vpop.permute.xlu0 %2145
        %2147 = vrot.lane.b32.xlu0 %v2106, 126
        %v2148 = vpop.permute.xlu0 %2147
        %2149 = vrot.lane.b32.xlu0 %v2107, 126
        %v2150 = vpop.permute.xlu0 %2149
        %vm2151 = vcmask 1031168
        %v2152 = vsel %vm2151, %v2140, %v2142
        %v2153 = vsel %vm2151, %v2142, %v2144
        %v2154 = vsel %vm2151, %v2146, %v2148
        %v2155 = vsel %vm2151, %v2148, %v2150
        %v2162 = vmax.f32 %v2017, %v2152
        %v2163 = vmax.f32 %v2018, %v2153
        %v2164 = vmax.f32 %v2019, %v2144
        %v2165 = vmax.f32 %v2020, %v2154
        %v2166 = vmax.f32 %v2021, %v2155
        %v2167 = vmax.f32 %v2022, %v2150
        %2174 = vrot.lane.b32.xlu0 %v2127, 126
        %v2175 = vpop.permute.xlu0 %2174
        %2176 = vrot.lane.b32.xlu0 %v2128, 126
        %v2177 = vpop.permute.xlu0 %2176
        %2178 = vrot.lane.b32.xlu0 %v2129, 126
        %v2179 = vpop.permute.xlu0 %2178
        %2180 = vrot.lane.b32.xlu0 %v2130, 126
        %v2181 = vpop.permute.xlu0 %2180
        %2182 = vrot.lane.b32.xlu0 %v2131, 126
        %v2183 = vpop.permute.xlu0 %2182
        %2184 = vrot.lane.b32.xlu0 %v2132, 126
        %v2185 = vpop.permute.xlu0 %2184
        %v2186 = vsel %vm2151, %v2175, %v2177
        %v2187 = vsel %vm2151, %v2177, %v2179
        %v2188 = vsel %vm2151, %v2181, %v2183
        %v2189 = vsel %vm2151, %v2183, %v2185
        %v2196 = vmin.f32 %v2051, %v2186
        %v2197 = vmin.f32 %v2052, %v2187
        %v2198 = vmin.f32 %v2053, %v2179
        %v2199 = vmin.f32 %v2054, %v2188
        %v2200 = vmin.f32 %v2055, %v2189
        %v2201 = vmin.f32 %v2056, %v2185
        %s2202 = scalar_lea.vmem [#allocation4], 3
        %v2203 = vld [vmem:[%s2202] ss:$8 sm:$0x3]
        %v2205 = vlaneseq
        %v2206 = vshrl.u32 %v2205, 7
        %v2207 = vsub.s32 0, %v2206
        %v2208 = vrot.slane %v2203, %v2207
        %v2209 = vlaneseq
        %v2210 = vshrl.u32 %v2209, 7
        %v2211 = vsub.s32 1, %v2210
        %v2212 = vrot.slane %v2203, %v2211
        %2213 = vrot.lane.b32.xlu0 %v2208, 97
        %v2214 = vpop.permute.xlu0 %2213
        %2215 = vrot.lane.b32.xlu0 %v2212, 97
        %v2216 = vpop.permute.xlu0 %2215
        %vm2217 = vcmask 793600
        %v2218 = vsel %vm2217, %v2214, %v2216
        %v2222 = vmul.f32 %v1832, %v2214
        %v2223 = vmul.f32 %v1833, %v2218
        %v2224 = vmul.f32 %v1834, %v2216
        %v2225 = vmul.f32 %v1835, %v2214
        %v2226 = vmul.f32 %v1836, %v2218
        %v2227 = vmul.f32 %v1837, %v2216
        %s2228 = scalar_lea.vmem [#allocation4], 52
        %v2229 = vld [vmem:[%s2228] ss:$8 sm:$0x3]
        %v2231 = vlaneseq
        %v2232 = vshrl.u32 %v2231, 7
        %v2233 = vsub.s32 0, %v2232
        %v2234 = vrot.slane %v2229, %v2233
        %v2235 = vlaneseq
        %v2236 = vshrl.u32 %v2235, 7
        %v2237 = vsub.s32 1, %v2236
        %v2238 = vrot.slane %v2229, %v2237
        %2239 = vrot.lane.b32.xlu0 %v2234, 97
        %v2240 = vpop.permute.xlu0 %2239
        %2241 = vrot.lane.b32.xlu0 %v2238, 97
        %v2242 = vpop.permute.xlu0 %2241
        %v2243 = vsel %vm2217, %v2240, %v2242
        %v2247 = vadd.f32 %v2222, %v2240
        %v2248 = vadd.f32 %v2223, %v2243
        %v2249 = vadd.f32 %v2224, %v2242
        %v2250 = vadd.f32 %v2225, %v2240
        %v2251 = vadd.f32 %v2226, %v2243
        %v2252 = vadd.f32 %v2227, %v2242
        %s2253 = scalar_lea.vmem [#allocation4], 101
        %v2254 = vld [vmem:[%s2253] ss:$8 sm:$0x3]
        %v2256 = vlaneseq
        %v2257 = vshrl.u32 %v2256, 7
        %v2258 = vsub.s32 0, %v2257
        %v2259 = vrot.slane %v2254, %v2258
        %v2260 = vlaneseq
        %v2261 = vshrl.u32 %v2260, 7
        %v2262 = vsub.s32 1, %v2261
        %v2263 = vrot.slane %v2254, %v2262
        %2264 = vrot.lane.b32.xlu0 %v2259, 97
        %v2265 = vpop.permute.xlu0 %2264
        %2266 = vrot.lane.b32.xlu0 %v2263, 97
        %v2267 = vpop.permute.xlu0 %2266
        %v2268 = vsel %vm2217, %v2265, %v2267
        %v2272 = vadd.f32 %v2222, %v2265
        %v2273 = vadd.f32 %v2223, %v2268
        %v2274 = vadd.f32 %v2224, %v2267
        %v2275 = vadd.f32 %v2225, %v2265
        %v2276 = vadd.f32 %v2226, %v2268
        %v2277 = vadd.f32 %v2227, %v2267
        %2284 = vrot.lane.b32.xlu0 %v2247, 125
        %v2285 = vpop.permute.xlu0 %2284
        %2286 = vrot.lane.b32.xlu0 %v2248, 125
        %v2287 = vpop.permute.xlu0 %2286
        %2288 = vrot.lane.b32.xlu0 %v2249, 125
        %v2289 = vpop.permute.xlu0 %2288
        %2290 = vrot.lane.b32.xlu0 %v2250, 125
        %v2291 = vpop.permute.xlu0 %2290
        %2292 = vrot.lane.b32.xlu0 %v2251, 125
        %v2293 = vpop.permute.xlu0 %2292
        %2294 = vrot.lane.b32.xlu0 %v2252, 125
        %v2295 = vpop.permute.xlu0 %2294
        %vm2296 = vcmask 1022976
        %v2297 = vsel %vm2296, %v2285, %v2287
        %v2298 = vsel %vm2296, %v2287, %v2289
        %v2299 = vsel %vm2296, %v2291, %v2293
        %v2300 = vsel %vm2296, %v2293, %v2295
        %v2307 = vmax.f32 %v2162, %v2297
        %v2308 = vmax.f32 %v2163, %v2298
        %v2309 = vmax.f32 %v2164, %v2289
        %v2310 = vmax.f32 %v2165, %v2299
        %v2311 = vmax.f32 %v2166, %v2300
        %v2312 = vmax.f32 %v2167, %v2295
        %2319 = vrot.lane.b32.xlu0 %v2272, 125
        %v2320 = vpop.permute.xlu0 %2319
        %2321 = vrot.lane.b32.xlu0 %v2273, 125
        %v2322 = vpop.permute.xlu0 %2321
        %2323 = vrot.lane.b32.xlu0 %v2274, 125
        %v2324 = vpop.permute.xlu0 %2323
        %2325 = vrot.lane.b32.xlu0 %v2275, 125
        %v2326 = vpop.permute.xlu0 %2325
        %2327 = vrot.lane.b32.xlu0 %v2276, 125
        %v2328 = vpop.permute.xlu0 %2327
        %2329 = vrot.lane.b32.xlu0 %v2277, 125
        %v2330 = vpop.permute.xlu0 %2329
        %v2331 = vsel %vm2296, %v2320, %v2322
        %v2332 = vsel %vm2296, %v2322, %v2324
        %v2333 = vsel %vm2296, %v2326, %v2328
        %v2334 = vsel %vm2296, %v2328, %v2330
        %v2341 = vmin.f32 %v2196, %v2331
        %v2342 = vmin.f32 %v2197, %v2332
        %v2343 = vmin.f32 %v2198, %v2324
        %v2344 = vmin.f32 %v2199, %v2333
        %v2345 = vmin.f32 %v2200, %v2334
        %v2346 = vmin.f32 %v2201, %v2330
        %s2347 = scalar_lea.vmem [#allocation4], 4
        %v2348 = vld [vmem:[%s2347] ss:$8 sm:$0x3]
        %v2350 = vlaneseq
        %v2351 = vshrl.u32 %v2350, 7
        %v2352 = vsub.s32 0, %v2351
        %v2353 = vrot.slane %v2348, %v2352
        %v2354 = vlaneseq
        %v2355 = vshrl.u32 %v2354, 7
        %v2356 = vsub.s32 1, %v2355
        %v2357 = vrot.slane %v2348, %v2356
        %2358 = vrot.lane.b32.xlu0 %v2353, 98
        %v2359 = vpop.permute.xlu0 %2358
        %2360 = vrot.lane.b32.xlu0 %v2357, 98
        %v2361 = vpop.permute.xlu0 %2360
        %vm2362 = vcmask 801792
        %v2363 = vsel %vm2362, %v2359, %v2361
        %v2367 = vmul.f32 %v1832, %v2359
        %v2368 = vmul.f32 %v1833, %v2363
        %v2369 = vmul.f32 %v1834, %v2361
        %v2370 = vmul.f32 %v1835, %v2359
        %v2371 = vmul.f32 %v1836, %v2363
        %v2372 = vmul.f32 %v1837, %v2361
        %s2373 = scalar_lea.vmem [#allocation4], 53
        %v2374 = vld [vmem:[%s2373] ss:$8 sm:$0x3]
        %v2376 = vlaneseq
        %v2377 = vshrl.u32 %v2376, 7
        %v2378 = vsub.s32 0, %v2377
        %v2379 = vrot.slane %v2374, %v2378
        %v2380 = vlaneseq
        %v2381 = vshrl.u32 %v2380, 7
        %v2382 = vsub.s32 1, %v2381
        %v2383 = vrot.slane %v2374, %v2382
        %2384 = vrot.lane.b32.xlu0 %v2379, 98
        %v2385 = vpop.permute.xlu0 %2384
        %2386 = vrot.lane.b32.xlu0 %v2383, 98
        %v2387 = vpop.permute.xlu0 %2386
        %v2388 = vsel %vm2362, %v2385, %v2387
        %v2392 = vadd.f32 %v2367, %v2385
        %v2393 = vadd.f32 %v2368, %v2388
        %v2394 = vadd.f32 %v2369, %v2387
        %v2395 = vadd.f32 %v2370, %v2385
        %v2396 = vadd.f32 %v2371, %v2388
        %v2397 = vadd.f32 %v2372, %v2387
        %s2398 = scalar_lea.vmem [#allocation4], 102
        %v2399 = vld [vmem:[%s2398] ss:$8 sm:$0x3]
        %v2401 = vlaneseq
        %v2402 = vshrl.u32 %v2401, 7
        %v2403 = vsub.s32 0, %v2402
        %v2404 = vrot.slane %v2399, %v2403
        %v2405 = vlaneseq
        %v2406 = vshrl.u32 %v2405, 7
        %v2407 = vsub.s32 1, %v2406
        %v2408 = vrot.slane %v2399, %v2407
        %2409 = vrot.lane.b32.xlu0 %v2404, 98
        %v2410 = vpop.permute.xlu0 %2409
        %2411 = vrot.lane.b32.xlu0 %v2408, 98
        %v2412 = vpop.permute.xlu0 %2411
        %v2413 = vsel %vm2362, %v2410, %v2412
        %v2417 = vadd.f32 %v2367, %v2410
        %v2418 = vadd.f32 %v2368, %v2413
        %v2419 = vadd.f32 %v2369, %v2412
        %v2420 = vadd.f32 %v2370, %v2410
        %v2421 = vadd.f32 %v2371, %v2413
        %v2422 = vadd.f32 %v2372, %v2412
        %2429 = vrot.lane.b32.xlu0 %v2392, 124
        %v2430 = vpop.permute.xlu0 %2429
        %2431 = vrot.lane.b32.xlu0 %v2393, 124
        %v2432 = vpop.permute.xlu0 %2431
        %2433 = vrot.lane.b32.xlu0 %v2394, 124
        %v2434 = vpop.permute.xlu0 %2433
        %2435 = vrot.lane.b32.xlu0 %v2395, 124
        %v2436 = vpop.permute.xlu0 %2435
        %2437 = vrot.lane.b32.xlu0 %v2396, 124
        %v2438 = vpop.permute.xlu0 %2437
        %2439 = vrot.lane.b32.xlu0 %v2397, 124
        %v2440 = vpop.permute.xlu0 %2439
        %vm2441 = vcmask 1014784
        %v2442 = vsel %vm2441, %v2430, %v2432
        %v2443 = vsel %vm2441, %v2432, %v2434
        %v2444 = vsel %vm2441, %v2436, %v2438
        %v2445 = vsel %vm2441, %v2438, %v2440
        %v2452 = vmax.f32 %v2307, %v2442
        %v2453 = vmax.f32 %v2308, %v2443
        %v2454 = vmax.f32 %v2309, %v2434
        %v2455 = vmax.f32 %v2310, %v2444
        %v2456 = vmax.f32 %v2311, %v2445
        %v2457 = vmax.f32 %v2312, %v2440
        %2464 = vrot.lane.b32.xlu0 %v2417, 124
        %v2465 = vpop.permute.xlu0 %2464
        %2466 = vrot.lane.b32.xlu0 %v2418, 124
        %v2467 = vpop.permute.xlu0 %2466
        %2468 = vrot.lane.b32.xlu0 %v2419, 124
        %v2469 = vpop.permute.xlu0 %2468
        %2470 = vrot.lane.b32.xlu0 %v2420, 124
        %v2471 = vpop.permute.xlu0 %2470
        %2472 = vrot.lane.b32.xlu0 %v2421, 124
        %v2473 = vpop.permute.xlu0 %2472
        %2474 = vrot.lane.b32.xlu0 %v2422, 124
        %v2475 = vpop.permute.xlu0 %2474
        %v2476 = vsel %vm2441, %v2465, %v2467
        %v2477 = vsel %vm2441, %v2467, %v2469
        %v2478 = vsel %vm2441, %v2471, %v2473
        %v2479 = vsel %vm2441, %v2473, %v2475
        %v2486 = vmin.f32 %v2341, %v2476
        %v2487 = vmin.f32 %v2342, %v2477
        %v2488 = vmin.f32 %v2343, %v2469
        %v2489 = vmin.f32 %v2344, %v2478
        %v2490 = vmin.f32 %v2345, %v2479
        %v2491 = vmin.f32 %v2346, %v2475
        %s2492 = scalar_lea.vmem [#allocation4], 5
        %v2493 = vld [vmem:[%s2492] ss:$8 sm:$0x3]
        %v2495 = vlaneseq
        %v2496 = vshrl.u32 %v2495, 7
        %v2497 = vsub.s32 0, %v2496
        %v2498 = vrot.slane %v2493, %v2497
        %v2499 = vlaneseq
        %v2500 = vshrl.u32 %v2499, 7
        %v2501 = vsub.s32 1, %v2500
        %v2502 = vrot.slane %v2493, %v2501
        %2503 = vrot.lane.b32.xlu0 %v2498, 110
        %v2504 = vpop.permute.xlu0 %2503
        %2505 = vrot.lane.b32.xlu0 %v2502, 110
        %v2506 = vpop.permute.xlu0 %2505
        %vm2507 = vcmask 900096
        %v2508 = vsel %vm2507, %v2504, %v2506
        %v2512 = vmul.f32 %v1832, %v2504
        %v2513 = vmul.f32 %v1833, %v2508
        %v2514 = vmul.f32 %v1834, %v2506
        %v2515 = vmul.f32 %v1835, %v2504
        %v2516 = vmul.f32 %v1836, %v2508
        %v2517 = vmul.f32 %v1837, %v2506
        %s2518 = scalar_lea.vmem [#allocation4], 54
        %v2519 = vld [vmem:[%s2518] ss:$8 sm:$0x3]
        %v2521 = vlaneseq
        %v2522 = vshrl.u32 %v2521, 7
        %v2523 = vsub.s32 0, %v2522
        %v2524 = vrot.slane %v2519, %v2523
        %v2525 = vlaneseq
        %v2526 = vshrl.u32 %v2525, 7
        %v2527 = vsub.s32 1, %v2526
        %v2528 = vrot.slane %v2519, %v2527
        %2529 = vrot.lane.b32.xlu0 %v2524, 110
        %v2530 = vpop.permute.xlu0 %2529
        %2531 = vrot.lane.b32.xlu0 %v2528, 110
        %v2532 = vpop.permute.xlu0 %2531
        %v2533 = vsel %vm2507, %v2530, %v2532
        %v2537 = vadd.f32 %v2512, %v2530
        %v2538 = vadd.f32 %v2513, %v2533
        %v2539 = vadd.f32 %v2514, %v2532
        %v2540 = vadd.f32 %v2515, %v2530
        %v2541 = vadd.f32 %v2516, %v2533
        %v2542 = vadd.f32 %v2517, %v2532
        %s2543 = scalar_lea.vmem [#allocation4], 103
        %v2544 = vld [vmem:[%s2543] ss:$8 sm:$0x3]
        %v2546 = vlaneseq
        %v2547 = vshrl.u32 %v2546, 7
        %v2548 = vsub.s32 0, %v2547
        %v2549 = vrot.slane %v2544, %v2548
        %v2550 = vlaneseq
        %v2551 = vshrl.u32 %v2550, 7
        %v2552 = vsub.s32 1, %v2551
        %v2553 = vrot.slane %v2544, %v2552
        %2554 = vrot.lane.b32.xlu0 %v2549, 110
        %v2555 = vpop.permute.xlu0 %2554
        %2556 = vrot.lane.b32.xlu0 %v2553, 110
        %v2557 = vpop.permute.xlu0 %2556
        %v2558 = vsel %vm2507, %v2555, %v2557
        %v2562 = vadd.f32 %v2512, %v2555
        %v2563 = vadd.f32 %v2513, %v2558
        %v2564 = vadd.f32 %v2514, %v2557
        %v2565 = vadd.f32 %v2515, %v2555
        %v2566 = vadd.f32 %v2516, %v2558
        %v2567 = vadd.f32 %v2517, %v2557
        %2574 = vrot.lane.b32.xlu0 %v2537, 112
        %v2575 = vpop.permute.xlu0 %2574
        %2576 = vrot.lane.b32.xlu0 %v2538, 112
        %v2577 = vpop.permute.xlu0 %2576
        %2578 = vrot.lane.b32.xlu0 %v2539, 112
        %v2579 = vpop.permute.xlu0 %2578
        %2580 = vrot.lane.b32.xlu0 %v2540, 112
        %v2581 = vpop.permute.xlu0 %2580
        %2582 = vrot.lane.b32.xlu0 %v2541, 112
        %v2583 = vpop.permute.xlu0 %2582
        %2584 = vrot.lane.b32.xlu0 %v2542, 112
        %v2585 = vpop.permute.xlu0 %2584
        %v2586 = vsel %vm457, %v2575, %v2577
        %v2587 = vsel %vm457, %v2577, %v2579
        %v2588 = vsel %vm457, %v2581, %v2583
        %v2589 = vsel %vm457, %v2583, %v2585
        %v2596 = vmax.f32 %v2452, %v2586
        %v2597 = vmax.f32 %v2453, %v2587
        %v2598 = vmax.f32 %v2454, %v2579
        %v2599 = vmax.f32 %v2455, %v2588
        %v2600 = vmax.f32 %v2456, %v2589
        %v2601 = vmax.f32 %v2457, %v2585
        %2608 = vrot.lane.b32.xlu0 %v2562, 112
        %v2609 = vpop.permute.xlu0 %2608
        %2610 = vrot.lane.b32.xlu0 %v2563, 112
        %v2611 = vpop.permute.xlu0 %2610
        %2612 = vrot.lane.b32.xlu0 %v2564, 112
        %v2613 = vpop.permute.xlu0 %2612
        %2614 = vrot.lane.b32.xlu0 %v2565, 112
        %v2615 = vpop.permute.xlu0 %2614
        %2616 = vrot.lane.b32.xlu0 %v2566, 112
        %v2617 = vpop.permute.xlu0 %2616
        %2618 = vrot.lane.b32.xlu0 %v2567, 112
        %v2619 = vpop.permute.xlu0 %2618
        %v2620 = vsel %vm457, %v2609, %v2611
        %v2621 = vsel %vm457, %v2611, %v2613
        %v2622 = vsel %vm457, %v2615, %v2617
        %v2623 = vsel %vm457, %v2617, %v2619
        %v2630 = vmin.f32 %v2486, %v2620
        %v2631 = vmin.f32 %v2487, %v2621
        %v2632 = vmin.f32 %v2488, %v2613
        %v2633 = vmin.f32 %v2489, %v2622
        %v2634 = vmin.f32 %v2490, %v2623
        %v2635 = vmin.f32 %v2491, %v2619
        %v2636 = vld [vmem:[%s397] ss:$8 sm:$0x3]
        %v2638 = vlaneseq
        %v2639 = vshrl.u32 %v2638, 7
        %v2640 = vsub.s32 0, %v2639
        %v2641 = vrot.slane %v2636, %v2640
        %v2642 = vlaneseq
        %v2643 = vshrl.u32 %v2642, 7
        %v2644 = vsub.s32 1, %v2643
        %v2645 = vrot.slane %v2636, %v2644
        %2646 = vrot.lane.b32.xlu0 %v2641, 111
        %v2647 = vpop.permute.xlu0 %2646
        %2648 = vrot.lane.b32.xlu0 %v2645, 111
        %v2649 = vpop.permute.xlu0 %2648
        %v2650 = vsel %vm412, %v2647, %v2649
        %v2654 = vmul.f32 %v1832, %v2647
        %v2655 = vmul.f32 %v1833, %v2650
        %v2656 = vmul.f32 %v1834, %v2649
        %v2657 = vmul.f32 %v1835, %v2647
        %v2658 = vmul.f32 %v1836, %v2650
        %v2659 = vmul.f32 %v1837, %v2649
        %s2660 = scalar_lea.vmem [#allocation4], 55
        %v2661 = vld [vmem:[%s2660] ss:$8 sm:$0x3]
        %v2663 = vlaneseq
        %v2664 = vshrl.u32 %v2663, 7
        %v2665 = vsub.s32 0, %v2664
        %v2666 = vrot.slane %v2661, %v2665
        %v2667 = vlaneseq
        %v2668 = vshrl.u32 %v2667, 7
        %v2669 = vsub.s32 1, %v2668
        %v2670 = vrot.slane %v2661, %v2669
        %2671 = vrot.lane.b32.xlu0 %v2666, 111
        %v2672 = vpop.permute.xlu0 %2671
        %2673 = vrot.lane.b32.xlu0 %v2670, 111
        %v2674 = vpop.permute.xlu0 %2673
        %v2675 = vsel %vm412, %v2672, %v2674
        %v2679 = vadd.f32 %v2654, %v2672
        %v2680 = vadd.f32 %v2655, %v2675
        %v2681 = vadd.f32 %v2656, %v2674
        %v2682 = vadd.f32 %v2657, %v2672
        %v2683 = vadd.f32 %v2658, %v2675
        %v2684 = vadd.f32 %v2659, %v2674
        %s2685 = scalar_lea.vmem [#allocation4], 112
        %v2686 = vld [vmem:[%s2685] ss:$8 sm:$0x3]
        %v2688 = vlaneseq
        %v2689 = vshrl.u32 %v2688, 7
        %v2690 = vsub.s32 0, %v2689
        %v2691 = vrot.slane %v2686, %v2690
        %v2692 = vlaneseq
        %v2693 = vshrl.u32 %v2692, 7
        %v2694 = vsub.s32 1, %v2693
        %v2695 = vrot.slane %v2686, %v2694
        %2696 = vrot.lane.b32.xlu0 %v2691, 111
        %v2697 = vpop.permute.xlu0 %2696
        %2698 = vrot.lane.b32.xlu0 %v2695, 111
        %v2699 = vpop.permute.xlu0 %2698
        %v2700 = vsel %vm412, %v2697, %v2699
        %v2704 = vadd.f32 %v2654, %v2697
        %v2705 = vadd.f32 %v2655, %v2700
        %v2706 = vadd.f32 %v2656, %v2699
        %v2707 = vadd.f32 %v2657, %v2697
        %v2708 = vadd.f32 %v2658, %v2700
        %v2709 = vadd.f32 %v2659, %v2699
        %2716 = vrot.lane.b32.xlu0 %v2679, 111
        %v2717 = vpop.permute.xlu0 %2716
        %2718 = vrot.lane.b32.xlu0 %v2680, 111
        %v2719 = vpop.permute.xlu0 %2718
        %2720 = vrot.lane.b32.xlu0 %v2681, 111
        %v2721 = vpop.permute.xlu0 %2720
        %2722 = vrot.lane.b32.xlu0 %v2682, 111
        %v2723 = vpop.permute.xlu0 %2722
        %2724 = vrot.lane.b32.xlu0 %v2683, 111
        %v2725 = vpop.permute.xlu0 %2724
        %2726 = vrot.lane.b32.xlu0 %v2684, 111
        %v2727 = vpop.permute.xlu0 %2726
        %v2728 = vsel %vm412, %v2717, %v2719
        %v2729 = vsel %vm412, %v2719, %v2721
        %v2730 = vsel %vm412, %v2723, %v2725
        %v2731 = vsel %vm412, %v2725, %v2727
        %v2738 = vmax.f32 %v2596, %v2728
        %v2739 = vmax.f32 %v2597, %v2729
        %v2740 = vmax.f32 %v2598, %v2721
        %v2741 = vmax.f32 %v2599, %v2730
        %v2742 = vmax.f32 %v2600, %v2731
        %v2743 = vmax.f32 %v2601, %v2727
        %2750 = vrot.lane.b32.xlu0 %v2704, 111
        %v2751 = vpop.permute.xlu0 %2750
        %2752 = vrot.lane.b32.xlu0 %v2705, 111
        %v2753 = vpop.permute.xlu0 %2752
        %2754 = vrot.lane.b32.xlu0 %v2706, 111
        %v2755 = vpop.permute.xlu0 %2754
        %2756 = vrot.lane.b32.xlu0 %v2707, 111
        %v2757 = vpop.permute.xlu0 %2756
        %2758 = vrot.lane.b32.xlu0 %v2708, 111
        %v2759 = vpop.permute.xlu0 %2758
        %2760 = vrot.lane.b32.xlu0 %v2709, 111
        %v2761 = vpop.permute.xlu0 %2760
        %v2762 = vsel %vm412, %v2751, %v2753
        %v2763 = vsel %vm412, %v2753, %v2755
        %v2764 = vsel %vm412, %v2757, %v2759
        %v2765 = vsel %vm412, %v2759, %v2761
        %v2772 = vmin.f32 %v2630, %v2762
        %v2773 = vmin.f32 %v2631, %v2763
        %v2774 = vmin.f32 %v2632, %v2755
        %v2775 = vmin.f32 %v2633, %v2764
        %v2776 = vmin.f32 %v2634, %v2765
        %v2777 = vmin.f32 %v2635, %v2761
        %v2778 = vld [vmem:[%s442] ss:$8 sm:$0x3]
        %v2780 = vlaneseq
        %v2781 = vshrl.u32 %v2780, 7
        %v2782 = vsub.s32 0, %v2781
        %v2783 = vrot.slane %v2778, %v2782
        %v2784 = vlaneseq
        %v2785 = vshrl.u32 %v2784, 7
        %v2786 = vsub.s32 1, %v2785
        %v2787 = vrot.slane %v2778, %v2786
        %2788 = vrot.lane.b32.xlu0 %v2783, 112
        %v2789 = vpop.permute.xlu0 %2788
        %2790 = vrot.lane.b32.xlu0 %v2787, 112
        %v2791 = vpop.permute.xlu0 %2790
        %v2792 = vsel %vm457, %v2789, %v2791
        %v2796 = vmul.f32 %v1832, %v2789
        %v2797 = vmul.f32 %v1833, %v2792
        %v2798 = vmul.f32 %v1834, %v2791
        %v2799 = vmul.f32 %v1835, %v2789
        %v2800 = vmul.f32 %v1836, %v2792
        %v2801 = vmul.f32 %v1837, %v2791
        %s2802 = scalar_lea.vmem [#allocation4], 64
        %v2803 = vld [vmem:[%s2802] ss:$8 sm:$0x3]
        %v2805 = vlaneseq
        %v2806 = vshrl.u32 %v2805, 7
        %v2807 = vsub.s32 0, %v2806
        %v2808 = vrot.slane %v2803, %v2807
        %v2809 = vlaneseq
        %v2810 = vshrl.u32 %v2809, 7
        %v2811 = vsub.s32 1, %v2810
        %v2812 = vrot.slane %v2803, %v2811
        %2813 = vrot.lane.b32.xlu0 %v2808, 112
        %v2814 = vpop.permute.xlu0 %2813
        %2815 = vrot.lane.b32.xlu0 %v2812, 112
        %v2816 = vpop.permute.xlu0 %2815
        %v2817 = vsel %vm457, %v2814, %v2816
        %v2821 = vadd.f32 %v2796, %v2814
        %v2822 = vadd.f32 %v2797, %v2817
        %v2823 = vadd.f32 %v2798, %v2816
        %v2824 = vadd.f32 %v2799, %v2814
        %v2825 = vadd.f32 %v2800, %v2817
        %v2826 = vadd.f32 %v2801, %v2816
        %s2827 = scalar_lea.vmem [#allocation4], 113
        %v2828 = vld [vmem:[%s2827] ss:$8 sm:$0x3]
        %v2830 = vlaneseq
        %v2831 = vshrl.u32 %v2830, 7
        %v2832 = vsub.s32 0, %v2831
        %v2833 = vrot.slane %v2828, %v2832
        %v2834 = vlaneseq
        %v2835 = vshrl.u32 %v2834, 7
        %v2836 = vsub.s32 1, %v2835
        %v2837 = vrot.slane %v2828, %v2836
        %2838 = vrot.lane.b32.xlu0 %v2833, 112
        %v2839 = vpop.permute.xlu0 %2838
        %2840 = vrot.lane.b32.xlu0 %v2837, 112
        %v2841 = vpop.permute.xlu0 %2840
        %v2842 = vsel %vm457, %v2839, %v2841
        %v2846 = vadd.f32 %v2796, %v2839
        %v2847 = vadd.f32 %v2797, %v2842
        %v2848 = vadd.f32 %v2798, %v2841
        %v2849 = vadd.f32 %v2799, %v2839
        %v2850 = vadd.f32 %v2800, %v2842
        %v2851 = vadd.f32 %v2801, %v2841
        %2858 = vrot.lane.b32.xlu0 %v2821, 110
        %v2859 = vpop.permute.xlu0 %2858
        %2860 = vrot.lane.b32.xlu0 %v2822, 110
        %v2861 = vpop.permute.xlu0 %2860
        %2862 = vrot.lane.b32.xlu0 %v2823, 110
        %v2863 = vpop.permute.xlu0 %2862
        %2864 = vrot.lane.b32.xlu0 %v2824, 110
        %v2865 = vpop.permute.xlu0 %2864
        %2866 = vrot.lane.b32.xlu0 %v2825, 110
        %v2867 = vpop.permute.xlu0 %2866
        %2868 = vrot.lane.b32.xlu0 %v2826, 110
        %v2869 = vpop.permute.xlu0 %2868
        %v2870 = vsel %vm2507, %v2859, %v2861
        %v2871 = vsel %vm2507, %v2861, %v2863
        %v2872 = vsel %vm2507, %v2865, %v2867
        %v2873 = vsel %vm2507, %v2867, %v2869
        %v2880 = vmax.f32 %v2738, %v2870
        %v2881 = vmax.f32 %v2739, %v2871
        %v2882 = vmax.f32 %v2740, %v2863
        %v2883 = vmax.f32 %v2741, %v2872
        %v2884 = vmax.f32 %v2742, %v2873
        %v2885 = vmax.f32 %v2743, %v2869
        %2892 = vrot.lane.b32.xlu0 %v2846, 110
        %v2893 = vpop.permute.xlu0 %2892
        %2894 = vrot.lane.b32.xlu0 %v2847, 110
        %v2895 = vpop.permute.xlu0 %2894
        %2896 = vrot.lane.b32.xlu0 %v2848, 110
        %v2897 = vpop.permute.xlu0 %2896
        %2898 = vrot.lane.b32.xlu0 %v2849, 110
        %v2899 = vpop.permute.xlu0 %2898
        %2900 = vrot.lane.b32.xlu0 %v2850, 110
        %v2901 = vpop.permute.xlu0 %2900
        %2902 = vrot.lane.b32.xlu0 %v2851, 110
        %v2903 = vpop.permute.xlu0 %2902
        %v2904 = vsel %vm2507, %v2893, %v2895
        %v2905 = vsel %vm2507, %v2895, %v2897
        %v2906 = vsel %vm2507, %v2899, %v2901
        %v2907 = vsel %vm2507, %v2901, %v2903
        %v2914 = vmin.f32 %v2772, %v2904
        %v2915 = vmin.f32 %v2773, %v2905
        %v2916 = vmin.f32 %v2774, %v2897
        %v2917 = vmin.f32 %v2775, %v2906
        %v2918 = vmin.f32 %v2776, %v2907
        %v2919 = vmin.f32 %v2777, %v2903
        %v2920 = vld [vmem:[%s489] ss:$8 sm:$0x3]
        %v2922 = vlaneseq
        %v2923 = vshrl.u32 %v2922, 7
        %v2924 = vsub.s32 0, %v2923
        %v2925 = vrot.slane %v2920, %v2924
        %v2926 = vlaneseq
        %v2927 = vshrl.u32 %v2926, 7
        %v2928 = vsub.s32 1, %v2927
        %v2929 = vrot.slane %v2920, %v2928
        %2930 = vrot.lane.b32.xlu0 %v2925, 113
        %v2931 = vpop.permute.xlu0 %2930
        %2932 = vrot.lane.b32.xlu0 %v2929, 113
        %v2933 = vpop.permute.xlu0 %2932
        %v2934 = vsel %vm504, %v2931, %v2933
        %v2938 = vmul.f32 %v1832, %v2931
        %v2939 = vmul.f32 %v1833, %v2934
        %v2940 = vmul.f32 %v1834, %v2933
        %v2941 = vmul.f32 %v1835, %v2931
        %v2942 = vmul.f32 %v1836, %v2934
        %v2943 = vmul.f32 %v1837, %v2933
        %s2944 = scalar_lea.vmem [#allocation4], 65
        %v2945 = vld [vmem:[%s2944] ss:$8 sm:$0x3]
        %v2947 = vlaneseq
        %v2948 = vshrl.u32 %v2947, 7
        %v2949 = vsub.s32 0, %v2948
        %v2950 = vrot.slane %v2945, %v2949
        %v2951 = vlaneseq
        %v2952 = vshrl.u32 %v2951, 7
        %v2953 = vsub.s32 1, %v2952
        %v2954 = vrot.slane %v2945, %v2953
        %2955 = vrot.lane.b32.xlu0 %v2950, 113
        %v2956 = vpop.permute.xlu0 %2955
        %2957 = vrot.lane.b32.xlu0 %v2954, 113
        %v2958 = vpop.permute.xlu0 %2957
        %v2959 = vsel %vm504, %v2956, %v2958
        %v2963 = vadd.f32 %v2938, %v2956
        %v2964 = vadd.f32 %v2939, %v2959
        %v2965 = vadd.f32 %v2940, %v2958
        %v2966 = vadd.f32 %v2941, %v2956
        %v2967 = vadd.f32 %v2942, %v2959
        %v2968 = vadd.f32 %v2943, %v2958
        %s2969 = scalar_lea.vmem [#allocation4], 114
        %v2970 = vld [vmem:[%s2969] ss:$8 sm:$0x3]
        %v2972 = vlaneseq
        %v2973 = vshrl.u32 %v2972, 7
        %v2974 = vsub.s32 0, %v2973
        %v2975 = vrot.slane %v2970, %v2974
        %v2976 = vlaneseq
        %v2977 = vshrl.u32 %v2976, 7
        %v2978 = vsub.s32 1, %v2977
        %v2979 = vrot.slane %v2970, %v2978
        %2980 = vrot.lane.b32.xlu0 %v2975, 113
        %v2981 = vpop.permute.xlu0 %2980
        %2982 = vrot.lane.b32.xlu0 %v2979, 113
        %v2983 = vpop.permute.xlu0 %2982
        %v2984 = vsel %vm504, %v2981, %v2983
        %v2988 = vadd.f32 %v2938, %v2981
        %v2989 = vadd.f32 %v2939, %v2984
        %v2990 = vadd.f32 %v2940, %v2983
        %v2991 = vadd.f32 %v2941, %v2981
        %v2992 = vadd.f32 %v2942, %v2984
        %v2993 = vadd.f32 %v2943, %v2983
        %3000 = vrot.lane.b32.xlu0 %v2963, 109
        %v3001 = vpop.permute.xlu0 %3000
        %3002 = vrot.lane.b32.xlu0 %v2964, 109
        %v3003 = vpop.permute.xlu0 %3002
        %3004 = vrot.lane.b32.xlu0 %v2965, 109
        %v3005 = vpop.permute.xlu0 %3004
        %3006 = vrot.lane.b32.xlu0 %v2966, 109
        %v3007 = vpop.permute.xlu0 %3006
        %3008 = vrot.lane.b32.xlu0 %v2967, 109
        %v3009 = vpop.permute.xlu0 %3008
        %3010 = vrot.lane.b32.xlu0 %v2968, 109
        %v3011 = vpop.permute.xlu0 %3010
        %vm3012 = vcmask 891904
        %v3013 = vsel %vm3012, %v3001, %v3003
        %v3014 = vsel %vm3012, %v3003, %v3005
        %v3015 = vsel %vm3012, %v3007, %v3009
        %v3016 = vsel %vm3012, %v3009, %v3011
        %v3023 = vmax.f32 %v2880, %v3013
        %v3024 = vmax.f32 %v2881, %v3014
        %v3025 = vmax.f32 %v2882, %v3005
        %v3026 = vmax.f32 %v2883, %v3015
        %v3027 = vmax.f32 %v2884, %v3016
        %v3028 = vmax.f32 %v2885, %v3011
        %3035 = vrot.lane.b32.xlu0 %v2988, 109
        %v3036 = vpop.permute.xlu0 %3035
        %3037 = vrot.lane.b32.xlu0 %v2989, 109
        %v3038 = vpop.permute.xlu0 %3037
        %3039 = vrot.lane.b32.xlu0 %v2990, 109
        %v3040 = vpop.permute.xlu0 %3039
        %3041 = vrot.lane.b32.xlu0 %v2991, 109
        %v3042 = vpop.permute.xlu0 %3041
        %3043 = vrot.lane.b32.xlu0 %v2992, 109
        %v3044 = vpop.permute.xlu0 %3043
        %3045 = vrot.lane.b32.xlu0 %v2993, 109
        %v3046 = vpop.permute.xlu0 %3045
        %v3047 = vsel %vm3012, %v3036, %v3038
        %v3048 = vsel %vm3012, %v3038, %v3040
        %v3049 = vsel %vm3012, %v3042, %v3044
        %v3050 = vsel %vm3012, %v3044, %v3046
        %v3057 = vmin.f32 %v2914, %v3047
        %v3058 = vmin.f32 %v2915, %v3048
        %v3059 = vmin.f32 %v2916, %v3040
        %v3060 = vmin.f32 %v2917, %v3049
        %v3061 = vmin.f32 %v2918, %v3050
        %v3062 = vmin.f32 %v2919, %v3046
        %s3063 = scalar_lea.vmem [#allocation4], 17
        %v3064 = vld [vmem:[%s3063] ss:$8 sm:$0x3]
        %v3066 = vlaneseq
        %v3067 = vshrl.u32 %v3066, 7
        %v3068 = vsub.s32 0, %v3067
        %v3069 = vrot.slane %v3064, %v3068
        %v3070 = vlaneseq
        %v3071 = vshrl.u32 %v3070, 7
        %v3072 = vsub.s32 1, %v3071
        %v3073 = vrot.slane %v3064, %v3072
        %3074 = vrot.lane.b32.xlu0 %v3069, 114
        %v3075 = vpop.permute.xlu0 %3074
        %3076 = vrot.lane.b32.xlu0 %v3073, 114
        %v3077 = vpop.permute.xlu0 %3076
        %vm3078 = vcmask 932864
        %v3079 = vsel %vm3078, %v3075, %v3077
        %v3083 = vmul.f32 %v1832, %v3075
        %v3084 = vmul.f32 %v1833, %v3079
        %v3085 = vmul.f32 %v1834, %v3077
        %v3086 = vmul.f32 %v1835, %v3075
        %v3087 = vmul.f32 %v1836, %v3079
        %v3088 = vmul.f32 %v1837, %v3077
        %s3089 = scalar_lea.vmem [#allocation4], 66
        %v3090 = vld [vmem:[%s3089] ss:$8 sm:$0x3]
        %v3092 = vlaneseq
        %v3093 = vshrl.u32 %v3092, 7
        %v3094 = vsub.s32 0, %v3093
        %v3095 = vrot.slane %v3090, %v3094
        %v3096 = vlaneseq
        %v3097 = vshrl.u32 %v3096, 7
        %v3098 = vsub.s32 1, %v3097
        %v3099 = vrot.slane %v3090, %v3098
        %3100 = vrot.lane.b32.xlu0 %v3095, 114
        %v3101 = vpop.permute.xlu0 %3100
        %3102 = vrot.lane.b32.xlu0 %v3099, 114
        %v3103 = vpop.permute.xlu0 %3102
        %v3104 = vsel %vm3078, %v3101, %v3103
        %v3108 = vadd.f32 %v3083, %v3101
        %v3109 = vadd.f32 %v3084, %v3104
        %v3110 = vadd.f32 %v3085, %v3103
        %v3111 = vadd.f32 %v3086, %v3101
        %v3112 = vadd.f32 %v3087, %v3104
        %v3113 = vadd.f32 %v3088, %v3103
        %s3114 = scalar_lea.vmem [#allocation4], 115
        %v3115 = vld [vmem:[%s3114] ss:$8 sm:$0x3]
        %v3117 = vlaneseq
        %v3118 = vshrl.u32 %v3117, 7
        %v3119 = vsub.s32 0, %v3118
        %v3120 = vrot.slane %v3115, %v3119
        %v3121 = vlaneseq
        %v3122 = vshrl.u32 %v3121, 7
        %v3123 = vsub.s32 1, %v3122
        %v3124 = vrot.slane %v3115, %v3123
        %3125 = vrot.lane.b32.xlu0 %v3120, 114
        %v3126 = vpop.permute.xlu0 %3125
        %3127 = vrot.lane.b32.xlu0 %v3124, 114
        %v3128 = vpop.permute.xlu0 %3127
        %v3129 = vsel %vm3078, %v3126, %v3128
        %v3133 = vadd.f32 %v3083, %v3126
        %v3134 = vadd.f32 %v3084, %v3129
        %v3135 = vadd.f32 %v3085, %v3128
        %v3136 = vadd.f32 %v3086, %v3126
        %v3137 = vadd.f32 %v3087, %v3129
        %v3138 = vadd.f32 %v3088, %v3128
        %3145 = vrot.lane.b32.xlu0 %v3108, 108
        %v3146 = vpop.permute.xlu0 %3145
        %3147 = vrot.lane.b32.xlu0 %v3109, 108
        %v3148 = vpop.permute.xlu0 %3147
        %3149 = vrot.lane.b32.xlu0 %v3110, 108
        %v3150 = vpop.permute.xlu0 %3149
        %3151 = vrot.lane.b32.xlu0 %v3111, 108
        %v3152 = vpop.permute.xlu0 %3151
        %3153 = vrot.lane.b32.xlu0 %v3112, 108
        %v3154 = vpop.permute.xlu0 %3153
        %3155 = vrot.lane.b32.xlu0 %v3113, 108
        %v3156 = vpop.permute.xlu0 %3155
        %vm3157 = vcmask 883712
        %v3158 = vsel %vm3157, %v3146, %v3148
        %v3159 = vsel %vm3157, %v3148, %v3150
        %v3160 = vsel %vm3157, %v3152, %v3154
        %v3161 = vsel %vm3157, %v3154, %v3156
        %v3168 = vmax.f32 %v3023, %v3158
        %v3169 = vmax.f32 %v3024, %v3159
        %v3170 = vmax.f32 %v3025, %v3150
        %v3171 = vmax.f32 %v3026, %v3160
        %v3172 = vmax.f32 %v3027, %v3161
        %v3173 = vmax.f32 %v3028, %v3156
        %3180 = vrot.lane.b32.xlu0 %v3133, 108
        %v3181 = vpop.permute.xlu0 %3180
        %3182 = vrot.lane.b32.xlu0 %v3134, 108
        %v3183 = vpop.permute.xlu0 %3182
        %3184 = vrot.lane.b32.xlu0 %v3135, 108
        %v3185 = vpop.permute.xlu0 %3184
        %3186 = vrot.lane.b32.xlu0 %v3136, 108
        %v3187 = vpop.permute.xlu0 %3186
        %3188 = vrot.lane.b32.xlu0 %v3137, 108
        %v3189 = vpop.permute.xlu0 %3188
        %3190 = vrot.lane.b32.xlu0 %v3138, 108
        %v3191 = vpop.permute.xlu0 %3190
        %v3192 = vsel %vm3157, %v3181, %v3183
        %v3193 = vsel %vm3157, %v3183, %v3185
        %v3194 = vsel %vm3157, %v3187, %v3189
        %v3195 = vsel %vm3157, %v3189, %v3191
        %v3202 = vmin.f32 %v3057, %v3192
        %v3203 = vmin.f32 %v3058, %v3193
        %v3204 = vmin.f32 %v3059, %v3185
        %v3205 = vmin.f32 %v3060, %v3194
        %v3206 = vmin.f32 %v3061, %v3195
        %v3207 = vmin.f32 %v3062, %v3191
        %s3208 = scalar_lea.vmem [#allocation4], 18
        %v3209 = vld [vmem:[%s3208] ss:$8 sm:$0x3]
        %v3211 = vlaneseq
        %v3212 = vshrl.u32 %v3211, 7
        %v3213 = vsub.s32 0, %v3212
        %v3214 = vrot.slane %v3209, %v3213
        %v3215 = vlaneseq
        %v3216 = vshrl.u32 %v3215, 7
        %v3217 = vsub.s32 1, %v3216
        %v3218 = vrot.slane %v3209, %v3217
        %3219 = vrot.lane.b32.xlu0 %v3214, 126
        %v3220 = vpop.permute.xlu0 %3219
        %3221 = vrot.lane.b32.xlu0 %v3218, 126
        %v3222 = vpop.permute.xlu0 %3221
        %v3223 = vsel %vm2151, %v3220, %v3222
        %v3227 = vmul.f32 %v1832, %v3220
        %v3228 = vmul.f32 %v1833, %v3223
        %v3229 = vmul.f32 %v1834, %v3222
        %v3230 = vmul.f32 %v1835, %v3220
        %v3231 = vmul.f32 %v1836, %v3223
        %v3232 = vmul.f32 %v1837, %v3222
        %s3233 = scalar_lea.vmem [#allocation4], 67
        %v3234 = vld [vmem:[%s3233] ss:$8 sm:$0x3]
        %v3236 = vlaneseq
        %v3237 = vshrl.u32 %v3236, 7
        %v3238 = vsub.s32 0, %v3237
        %v3239 = vrot.slane %v3234, %v3238
        %v3240 = vlaneseq
        %v3241 = vshrl.u32 %v3240, 7
        %v3242 = vsub.s32 1, %v3241
        %v3243 = vrot.slane %v3234, %v3242
        %3244 = vrot.lane.b32.xlu0 %v3239, 126
        %v3245 = vpop.permute.xlu0 %3244
        %3246 = vrot.lane.b32.xlu0 %v3243, 126
        %v3247 = vpop.permute.xlu0 %3246
        %v3248 = vsel %vm2151, %v3245, %v3247
        %v3252 = vadd.f32 %v3227, %v3245
        %v3253 = vadd.f32 %v3228, %v3248
        %v3254 = vadd.f32 %v3229, %v3247
        %v3255 = vadd.f32 %v3230, %v3245
        %v3256 = vadd.f32 %v3231, %v3248
        %v3257 = vadd.f32 %v3232, %v3247
        %s3258 = scalar_lea.vmem [#allocation4], 116
        %v3259 = vld [vmem:[%s3258] ss:$8 sm:$0x3]
        %v3261 = vlaneseq
        %v3262 = vshrl.u32 %v3261, 7
        %v3263 = vsub.s32 0, %v3262
        %v3264 = vrot.slane %v3259, %v3263
        %v3265 = vlaneseq
        %v3266 = vshrl.u32 %v3265, 7
        %v3267 = vsub.s32 1, %v3266
        %v3268 = vrot.slane %v3259, %v3267
        %3269 = vrot.lane.b32.xlu0 %v3264, 126
        %v3270 = vpop.permute.xlu0 %3269
        %3271 = vrot.lane.b32.xlu0 %v3268, 126
        %v3272 = vpop.permute.xlu0 %3271
        %v3273 = vsel %vm2151, %v3270, %v3272
        %v3277 = vadd.f32 %v3227, %v3270
        %v3278 = vadd.f32 %v3228, %v3273
        %v3279 = vadd.f32 %v3229, %v3272
        %v3280 = vadd.f32 %v3230, %v3270
        %v3281 = vadd.f32 %v3231, %v3273
        %v3282 = vadd.f32 %v3232, %v3272
        %3289 = vrot.lane.b32.xlu0 %v3252, 96
        %v3290 = vpop.permute.xlu0 %3289
        %3291 = vrot.lane.b32.xlu0 %v3253, 96
        %v3292 = vpop.permute.xlu0 %3291
        %3293 = vrot.lane.b32.xlu0 %v3254, 96
        %v3294 = vpop.permute.xlu0 %3293
        %3295 = vrot.lane.b32.xlu0 %v3255, 96
        %v3296 = vpop.permute.xlu0 %3295
        %3297 = vrot.lane.b32.xlu0 %v3256, 96
        %v3298 = vpop.permute.xlu0 %3297
        %3299 = vrot.lane.b32.xlu0 %v3257, 96
        %v3300 = vpop.permute.xlu0 %3299
        %v3301 = vsel %vm2072, %v3290, %v3292
        %v3302 = vsel %vm2072, %v3292, %v3294
        %v3303 = vsel %vm2072, %v3296, %v3298
        %v3304 = vsel %vm2072, %v3298, %v3300
        %v3311 = vmax.f32 %v3168, %v3301
        %v3312 = vmax.f32 %v3169, %v3302
        %v3313 = vmax.f32 %v3170, %v3294
        %v3314 = vmax.f32 %v3171, %v3303
        %v3315 = vmax.f32 %v3172, %v3304
        %v3316 = vmax.f32 %v3173, %v3300
        %3323 = vrot.lane.b32.xlu0 %v3277, 96
        %v3324 = vpop.permute.xlu0 %3323
        %3325 = vrot.lane.b32.xlu0 %v3278, 96
        %v3326 = vpop.permute.xlu0 %3325
        %3327 = vrot.lane.b32.xlu0 %v3279, 96
        %v3328 = vpop.permute.xlu0 %3327
        %3329 = vrot.lane.b32.xlu0 %v3280, 96
        %v3330 = vpop.permute.xlu0 %3329
        %3331 = vrot.lane.b32.xlu0 %v3281, 96
        %v3332 = vpop.permute.xlu0 %3331
        %3333 = vrot.lane.b32.xlu0 %v3282, 96
        %v3334 = vpop.permute.xlu0 %3333
        %v3335 = vsel %vm2072, %v3324, %v3326
        %v3336 = vsel %vm2072, %v3326, %v3328
        %v3337 = vsel %vm2072, %v3330, %v3332
        %v3338 = vsel %vm2072, %v3332, %v3334
        %v3345 = vmin.f32 %v3202, %v3335
        %v3346 = vmin.f32 %v3203, %v3336
        %v3347 = vmin.f32 %v3204, %v3328
        %v3348 = vmin.f32 %v3205, %v3337
        %v3349 = vmin.f32 %v3206, %v3338
        %v3350 = vmin.f32 %v3207, %v3334
        %v3351 = vld [vmem:[%s534] ss:$8 sm:$0x3]
        %v3353 = vlaneseq
        %v3354 = vshrl.u32 %v3353, 7
        %v3355 = vsub.s32 0, %v3354
        %v3356 = vrot.slane %v3351, %v3355
        %v3357 = vlaneseq
        %v3358 = vshrl.u32 %v3357, 7
        %v3359 = vsub.s32 1, %v3358
        %v3360 = vrot.slane %v3351, %v3359
        %3361 = vrot.lane.b32.xlu0 %v3356, 127
        %v3362 = vpop.permute.xlu0 %3361
        %3363 = vrot.lane.b32.xlu0 %v3360, 127
        %v3364 = vpop.permute.xlu0 %3363
        %v3365 = vsel %vm549, %v3362, %v3364
        %v3369 = vmul.f32 %v1832, %v3362
        %v3370 = vmul.f32 %v1833, %v3365
        %v3371 = vmul.f32 %v1834, %v3364
        %v3372 = vmul.f32 %v1835, %v3362
        %v3373 = vmul.f32 %v1836, %v3365
        %v3374 = vmul.f32 %v1837, %v3364
        %s3375 = scalar_lea.vmem [#allocation4], 68
        %v3376 = vld [vmem:[%s3375] ss:$8 sm:$0x3]
        %v3378 = vlaneseq
        %v3379 = vshrl.u32 %v3378, 7
        %v3380 = vsub.s32 0, %v3379
        %v3381 = vrot.slane %v3376, %v3380
        %v3382 = vlaneseq
        %v3383 = vshrl.u32 %v3382, 7
        %v3384 = vsub.s32 1, %v3383
        %v3385 = vrot.slane %v3376, %v3384
        %3386 = vrot.lane.b32.xlu0 %v3381, 127
        %v3387 = vpop.permute.xlu0 %3386
        %3388 = vrot.lane.b32.xlu0 %v3385, 127
        %v3389 = vpop.permute.xlu0 %3388
        %v3390 = vsel %vm549, %v3387, %v3389
        %v3394 = vadd.f32 %v3369, %v3387
        %v3395 = vadd.f32 %v3370, %v3390
        %v3396 = vadd.f32 %v3371, %v3389
        %v3397 = vadd.f32 %v3372, %v3387
        %v3398 = vadd.f32 %v3373, %v3390
        %v3399 = vadd.f32 %v3374, %v3389
        %s3400 = scalar_lea.vmem [#allocation4], 117
        %v3401 = vld [vmem:[%s3400] ss:$8 sm:$0x3]
        %v3403 = vlaneseq
        %v3404 = vshrl.u32 %v3403, 7
        %v3405 = vsub.s32 0, %v3404
        %v3406 = vrot.slane %v3401, %v3405
        %v3407 = vlaneseq
        %v3408 = vshrl.u32 %v3407, 7
        %v3409 = vsub.s32 1, %v3408
        %v3410 = vrot.slane %v3401, %v3409
        %3411 = vrot.lane.b32.xlu0 %v3406, 127
        %v3412 = vpop.permute.xlu0 %3411
        %3413 = vrot.lane.b32.xlu0 %v3410, 127
        %v3414 = vpop.permute.xlu0 %3413
        %v3415 = vsel %vm549, %v3412, %v3414
        %v3419 = vadd.f32 %v3369, %v3412
        %v3420 = vadd.f32 %v3370, %v3415
        %v3421 = vadd.f32 %v3371, %v3414
        %v3422 = vadd.f32 %v3372, %v3412
        %v3423 = vadd.f32 %v3373, %v3415
        %v3424 = vadd.f32 %v3374, %v3414
        %3431 = vrot.lane.b32.xlu0 %v3394, 95
        %v3432 = vpop.permute.xlu0 %3431
        %3433 = vrot.lane.b32.xlu0 %v3395, 95
        %v3434 = vpop.permute.xlu0 %3433
        %3435 = vrot.lane.b32.xlu0 %v3396, 95
        %v3436 = vpop.permute.xlu0 %3435
        %3437 = vrot.lane.b32.xlu0 %v3397, 95
        %v3438 = vpop.permute.xlu0 %3437
        %3439 = vrot.lane.b32.xlu0 %v3398, 95
        %v3440 = vpop.permute.xlu0 %3439
        %3441 = vrot.lane.b32.xlu0 %v3399, 95
        %v3442 = vpop.permute.xlu0 %3441
        %v3443 = vsel %vm1928, %v3432, %v3434
        %v3444 = vsel %vm1928, %v3434, %v3436
        %v3445 = vsel %vm1928, %v3438, %v3440
        %v3446 = vsel %vm1928, %v3440, %v3442
        %v3453 = vmax.f32 %v3311, %v3443
        %v3454 = vmax.f32 %v3312, %v3444
        %v3455 = vmax.f32 %v3313, %v3436
        %v3456 = vmax.f32 %v3314, %v3445
        %v3457 = vmax.f32 %v3315, %v3446
        %v3458 = vmax.f32 %v3316, %v3442
        %3465 = vrot.lane.b32.xlu0 %v3419, 95
        %v3466 = vpop.permute.xlu0 %3465
        %3467 = vrot.lane.b32.xlu0 %v3420, 95
        %v3468 = vpop.permute.xlu0 %3467
        %3469 = vrot.lane.b32.xlu0 %v3421, 95
        %v3470 = vpop.permute.xlu0 %3469
        %3471 = vrot.lane.b32.xlu0 %v3422, 95
        %v3472 = vpop.permute.xlu0 %3471
        %3473 = vrot.lane.b32.xlu0 %v3423, 95
        %v3474 = vpop.permute.xlu0 %3473
        %3475 = vrot.lane.b32.xlu0 %v3424, 95
        %v3476 = vpop.permute.xlu0 %3475
        %v3477 = vsel %vm1928, %v3466, %v3468
        %v3478 = vsel %vm1928, %v3468, %v3470
        %v3479 = vsel %vm1928, %v3472, %v3474
        %v3480 = vsel %vm1928, %v3474, %v3476
        %v3487 = vmin.f32 %v3345, %v3477
        %v3488 = vmin.f32 %v3346, %v3478
        %v3489 = vmin.f32 %v3347, %v3470
        %v3490 = vmin.f32 %v3348, %v3479
        %v3491 = vmin.f32 %v3349, %v3480
        %v3492 = vmin.f32 %v3350, %v3476
        %v3493 = vld [vmem:[#allocation2 + $0x18] sm:$0xff]
        %v3494 = vld [vmem:[#allocation2 + $0x38] sm:$0xf]
        %v3495 = vld [vmem:[%s606] ss:$8 sm:$0x3]
        %v3497 = vlaneseq
        %v3498 = vshrl.u32 %v3497, 7
        %v3499 = vsub.s32 0, %v3498
        %v3500 = vrot.slane %v3495, %v3499
        %v3501 = vlaneseq
        %v3502 = vshrl.u32 %v3501, 7
        %v3503 = vsub.s32 1, %v3502
        %v3504 = vrot.slane %v3495, %v3503
        %3505 = vrot.lane.b32.xlu0 %v3500, 1
        %v3506 = vpop.permute.xlu0 %3505
        %3507 = vrot.lane.b32.xlu0 %v3504, 1
        %v3508 = vpop.permute.xlu0 %3507
        %v3509 = vsel %vm569, %v3506, %v3508
        %v3513 = vmul.f32 %v1833, %v3506
        %v3514 = vmul.f32 %v1834, %v3509
        %v3515 = vmul.f32 %v3493, %v3508
        %v3516 = vmul.f32 %v1836, %v3506
        %v3517 = vmul.f32 %v1837, %v3509
        %v3518 = vmul.f32 %v3494, %v3508
        %s3519 = scalar_lea.vmem [#allocation4], 70
        %v3520 = vld [vmem:[%s3519] ss:$8 sm:$0x3]
        %v3522 = vlaneseq
        %v3523 = vshrl.u32 %v3522, 7
        %v3524 = vsub.s32 0, %v3523
        %v3525 = vrot.slane %v3520, %v3524
        %v3526 = vlaneseq
        %v3527 = vshrl.u32 %v3526, 7
        %v3528 = vsub.s32 1, %v3527
        %v3529 = vrot.slane %v3520, %v3528
        %3530 = vrot.lane.b32.xlu0 %v3525, 1
        %v3531 = vpop.permute.xlu0 %3530
        %3532 = vrot.lane.b32.xlu0 %v3529, 1
        %v3533 = vpop.permute.xlu0 %3532
        %v3534 = vsel %vm569, %v3531, %v3533
        %v3538 = vadd.f32 %v3513, %v3531
        %v3539 = vadd.f32 %v3514, %v3534
        %v3540 = vadd.f32 %v3515, %v3533
        %v3541 = vadd.f32 %v3516, %v3531
        %v3542 = vadd.f32 %v3517, %v3534
        %v3543 = vadd.f32 %v3518, %v3533
        %s3544 = scalar_lea.vmem [#allocation4], 119
        %v3545 = vld [vmem:[%s3544] ss:$8 sm:$0x3]
        %v3547 = vlaneseq
        %v3548 = vshrl.u32 %v3547, 7
        %v3549 = vsub.s32 0, %v3548
        %v3550 = vrot.slane %v3545, %v3549
        %v3551 = vlaneseq
        %v3552 = vshrl.u32 %v3551, 7
        %v3553 = vsub.s32 1, %v3552
        %v3554 = vrot.slane %v3545, %v3553
        %3555 = vrot.lane.b32.xlu0 %v3550, 1
        %v3556 = vpop.permute.xlu0 %3555
        %3557 = vrot.lane.b32.xlu0 %v3554, 1
        %v3558 = vpop.permute.xlu0 %3557
        %v3559 = vsel %vm569, %v3556, %v3558
        %v3563 = vadd.f32 %v3513, %v3556
        %v3564 = vadd.f32 %v3514, %v3559
        %v3565 = vadd.f32 %v3515, %v3558
        %v3566 = vadd.f32 %v3516, %v3556
        %v3567 = vadd.f32 %v3517, %v3559
        %v3568 = vadd.f32 %v3518, %v3558
        %3575 = vrot.lane.b32.xlu0 %v3538, 93
        %v3576 = vpop.permute.xlu0 %3575
        %3577 = vrot.lane.b32.xlu0 %v3539, 93
        %v3578 = vpop.permute.xlu0 %3577
        %3579 = vrot.lane.b32.xlu0 %v3540, 93
        %v3580 = vpop.permute.xlu0 %3579
        %3581 = vrot.lane.b32.xlu0 %v3541, 93
        %v3582 = vpop.permute.xlu0 %3581
        %3583 = vrot.lane.b32.xlu0 %v3542, 93
        %v3584 = vpop.permute.xlu0 %3583
        %3585 = vrot.lane.b32.xlu0 %v3543, 93
        %v3586 = vpop.permute.xlu0 %3585
        %vm3587 = vcmask 760832
        %v3588 = vsel %vm3587, %v3576, %v3578
        %v3589 = vsel %vm3587, %v3578, %v3580
        %v3590 = vsel %vm3587, %v3582, %v3584
        %v3591 = vsel %vm3587, %v3584, %v3586
        %v3598 = vmax.f32 %v3453, %v3576
        %v3599 = vmax.f32 %v3454, %v3588
        %v3600 = vmax.f32 %v3455, %v3589
        %v3601 = vmax.f32 %v3456, %v3582
        %v3602 = vmax.f32 %v3457, %v3590
        %v3603 = vmax.f32 %v3458, %v3591
        %3610 = vrot.lane.b32.xlu0 %v3563, 93
        %v3611 = vpop.permute.xlu0 %3610
        %3612 = vrot.lane.b32.xlu0 %v3564, 93
        %v3613 = vpop.permute.xlu0 %3612
        %3614 = vrot.lane.b32.xlu0 %v3565, 93
        %v3615 = vpop.permute.xlu0 %3614
        %3616 = vrot.lane.b32.xlu0 %v3566, 93
        %v3617 = vpop.permute.xlu0 %3616
        %3618 = vrot.lane.b32.xlu0 %v3567, 93
        %v3619 = vpop.permute.xlu0 %3618
        %3620 = vrot.lane.b32.xlu0 %v3568, 93
        %v3621 = vpop.permute.xlu0 %3620
        %v3622 = vsel %vm3587, %v3611, %v3613
        %v3623 = vsel %vm3587, %v3613, %v3615
        %v3624 = vsel %vm3587, %v3617, %v3619
        %v3625 = vsel %vm3587, %v3619, %v3621
        %v3632 = vmin.f32 %v3487, %v3611
        %v3633 = vmin.f32 %v3488, %v3622
        %v3634 = vmin.f32 %v3489, %v3623
        %v3635 = vmin.f32 %v3490, %v3617
        %v3636 = vmin.f32 %v3491, %v3624
        %v3637 = vmin.f32 %v3492, %v3625
        %s3638 = scalar_lea.vmem [#allocation4], 22
        %v3639 = vld [vmem:[%s3638] ss:$8 sm:$0x3]
        %v3641 = vlaneseq
        %v3642 = vshrl.u32 %v3641, 7
        %v3643 = vsub.s32 0, %v3642
        %v3644 = vrot.slane %v3639, %v3643
        %v3645 = vlaneseq
        %v3646 = vshrl.u32 %v3645, 7
        %v3647 = vsub.s32 1, %v3646
        %v3648 = vrot.slane %v3639, %v3647
        %3649 = vrot.lane.b32.xlu0 %v3644, 2
        %v3650 = vpop.permute.xlu0 %3649
        %3651 = vrot.lane.b32.xlu0 %v3648, 2
        %v3652 = vpop.permute.xlu0 %3651
        %vm3653 = vcmask 15360
        %v3654 = vsel %vm3653, %v3650, %v3652
        %v3658 = vmul.f32 %v1833, %v3650
        %v3659 = vmul.f32 %v1834, %v3654
        %v3660 = vmul.f32 %v3493, %v3652
        %v3661 = vmul.f32 %v1836, %v3650
        %v3662 = vmul.f32 %v1837, %v3654
        %v3663 = vmul.f32 %v3494, %v3652
        %s3664 = scalar_lea.vmem [#allocation4], 71
        %v3665 = vld [vmem:[%s3664] ss:$8 sm:$0x3]
        %v3667 = vlaneseq
        %v3668 = vshrl.u32 %v3667, 7
        %v3669 = vsub.s32 0, %v3668
        %v3670 = vrot.slane %v3665, %v3669
        %v3671 = vlaneseq
        %v3672 = vshrl.u32 %v3671, 7
        %v3673 = vsub.s32 1, %v3672
        %v3674 = vrot.slane %v3665, %v3673
        %3675 = vrot.lane.b32.xlu0 %v3670, 2
        %v3676 = vpop.permute.xlu0 %3675
        %3677 = vrot.lane.b32.xlu0 %v3674, 2
        %v3678 = vpop.permute.xlu0 %3677
        %v3679 = vsel %vm3653, %v3676, %v3678
        %v3683 = vadd.f32 %v3658, %v3676
        %v3684 = vadd.f32 %v3659, %v3679
        %v3685 = vadd.f32 %v3660, %v3678
        %v3686 = vadd.f32 %v3661, %v3676
        %v3687 = vadd.f32 %v3662, %v3679
        %v3688 = vadd.f32 %v3663, %v3678
        %s3689 = scalar_lea.vmem [#allocation4], 128
        %v3690 = vld [vmem:[%s3689] ss:$8 sm:$0x3]
        %v3692 = vlaneseq
        %v3693 = vshrl.u32 %v3692, 7
        %v3694 = vsub.s32 0, %v3693
        %v3695 = vrot.slane %v3690, %v3694
        %v3696 = vlaneseq
        %v3697 = vshrl.u32 %v3696, 7
        %v3698 = vsub.s32 1, %v3697
        %v3699 = vrot.slane %v3690, %v3698
        %3700 = vrot.lane.b32.xlu0 %v3695, 2
        %v3701 = vpop.permute.xlu0 %3700
        %3702 = vrot.lane.b32.xlu0 %v3699, 2
        %v3703 = vpop.permute.xlu0 %3702
        %v3704 = vsel %vm3653, %v3701, %v3703
        %v3708 = vadd.f32 %v3658, %v3701
        %v3709 = vadd.f32 %v3659, %v3704
        %v3710 = vadd.f32 %v3660, %v3703
        %v3711 = vadd.f32 %v3661, %v3701
        %v3712 = vadd.f32 %v3662, %v3704
        %v3713 = vadd.f32 %v3663, %v3703
        %3720 = vrot.lane.b32.xlu0 %v3683, 92
        %v3721 = vpop.permute.xlu0 %3720
        %3722 = vrot.lane.b32.xlu0 %v3684, 92
        %v3723 = vpop.permute.xlu0 %3722
        %3724 = vrot.lane.b32.xlu0 %v3685, 92
        %v3725 = vpop.permute.xlu0 %3724
        %3726 = vrot.lane.b32.xlu0 %v3686, 92
        %v3727 = vpop.permute.xlu0 %3726
        %3728 = vrot.lane.b32.xlu0 %v3687, 92
        %v3729 = vpop.permute.xlu0 %3728
        %3730 = vrot.lane.b32.xlu0 %v3688, 92
        %v3731 = vpop.permute.xlu0 %3730
        %vm3732 = vcmask 752640
        %v3733 = vsel %vm3732, %v3721, %v3723
        %v3734 = vsel %vm3732, %v3723, %v3725
        %v3735 = vsel %vm3732, %v3727, %v3729
        %v3736 = vsel %vm3732, %v3729, %v3731
        %v3743 = vmax.f32 %v3598, %v3721
        %v3744 = vmax.f32 %v3599, %v3733
        %v3745 = vmax.f32 %v3600, %v3734
        %v3746 = vmax.f32 %v3601, %v3727
        %v3747 = vmax.f32 %v3602, %v3735
        %v3748 = vmax.f32 %v3603, %v3736
        %3755 = vrot.lane.b32.xlu0 %v3708, 92
        %v3756 = vpop.permute.xlu0 %3755
        %3757 = vrot.lane.b32.xlu0 %v3709, 92
        %v3758 = vpop.permute.xlu0 %3757
        %3759 = vrot.lane.b32.xlu0 %v3710, 92
        %v3760 = vpop.permute.xlu0 %3759
        %3761 = vrot.lane.b32.xlu0 %v3711, 92
        %v3762 = vpop.permute.xlu0 %3761
        %3763 = vrot.lane.b32.xlu0 %v3712, 92
        %v3764 = vpop.permute.xlu0 %3763
        %3765 = vrot.lane.b32.xlu0 %v3713, 92
        %v3766 = vpop.permute.xlu0 %3765
        %v3767 = vsel %vm3732, %v3756, %v3758
        %v3768 = vsel %vm3732, %v3758, %v3760
        %v3769 = vsel %vm3732, %v3762, %v3764
        %v3770 = vsel %vm3732, %v3764, %v3766
        %v3777 = vmin.f32 %v3632, %v3756
        %v3778 = vmin.f32 %v3633, %v3767
        %v3779 = vmin.f32 %v3634, %v3768
        %v3780 = vmin.f32 %v3635, %v3762
        %v3781 = vmin.f32 %v3636, %v3769
        %v3782 = vmin.f32 %v3637, %v3770
        %s3783 = scalar_lea.vmem [#allocation4], 23
        %v3784 = vld [vmem:[%s3783] ss:$8 sm:$0x3]
        %v3786 = vlaneseq
        %v3787 = vshrl.u32 %v3786, 7
        %v3788 = vsub.s32 0, %v3787
        %v3789 = vrot.slane %v3784, %v3788
        %v3790 = vlaneseq
        %v3791 = vshrl.u32 %v3790, 7
        %v3792 = vsub.s32 1, %v3791
        %v3793 = vrot.slane %v3784, %v3792
        %3794 = vrot.lane.b32.xlu0 %v3789, 14
        %v3795 = vpop.permute.xlu0 %3794
        %3796 = vrot.lane.b32.xlu0 %v3793, 14
        %v3797 = vpop.permute.xlu0 %3796
        %vm3798 = vcmask 113664
        %v3799 = vsel %vm3798, %v3795, %v3797
        %v3803 = vmul.f32 %v1833, %v3795
        %v3804 = vmul.f32 %v1834, %v3799
        %v3805 = vmul.f32 %v3493, %v3797
        %v3806 = vmul.f32 %v1836, %v3795
        %v3807 = vmul.f32 %v1837, %v3799
        %v3808 = vmul.f32 %v3494, %v3797
        %s3809 = scalar_lea.vmem [#allocation4], 80
        %v3810 = vld [vmem:[%s3809] ss:$8 sm:$0x3]
        %v3812 = vlaneseq
        %v3813 = vshrl.u32 %v3812, 7
        %v3814 = vsub.s32 0, %v3813
        %v3815 = vrot.slane %v3810, %v3814
        %v3816 = vlaneseq
        %v3817 = vshrl.u32 %v3816, 7
        %v3818 = vsub.s32 1, %v3817
        %v3819 = vrot.slane %v3810, %v3818
        %3820 = vrot.lane.b32.xlu0 %v3815, 14
        %v3821 = vpop.permute.xlu0 %3820
        %3822 = vrot.lane.b32.xlu0 %v3819, 14
        %v3823 = vpop.permute.xlu0 %3822
        %v3824 = vsel %vm3798, %v3821, %v3823
        %v3828 = vadd.f32 %v3803, %v3821
        %v3829 = vadd.f32 %v3804, %v3824
        %v3830 = vadd.f32 %v3805, %v3823
        %v3831 = vadd.f32 %v3806, %v3821
        %v3832 = vadd.f32 %v3807, %v3824
        %v3833 = vadd.f32 %v3808, %v3823
        %s3834 = scalar_lea.vmem [#allocation4], 129
        %v3835 = vld [vmem:[%s3834] ss:$8 sm:$0x3]
        %v3837 = vlaneseq
        %v3838 = vshrl.u32 %v3837, 7
        %v3839 = vsub.s32 0, %v3838
        %v3840 = vrot.slane %v3835, %v3839
        %v3841 = vlaneseq
        %v3842 = vshrl.u32 %v3841, 7
        %v3843 = vsub.s32 1, %v3842
        %v3844 = vrot.slane %v3835, %v3843
        %3845 = vrot.lane.b32.xlu0 %v3840, 14
        %v3846 = vpop.permute.xlu0 %3845
        %3847 = vrot.lane.b32.xlu0 %v3844, 14
        %v3848 = vpop.permute.xlu0 %3847
        %v3849 = vsel %vm3798, %v3846, %v3848
        %v3853 = vadd.f32 %v3803, %v3846
        %v3854 = vadd.f32 %v3804, %v3849
        %v3855 = vadd.f32 %v3805, %v3848
        %v3856 = vadd.f32 %v3806, %v3846
        %v3857 = vadd.f32 %v3807, %v3849
        %v3858 = vadd.f32 %v3808, %v3848
        %3865 = vrot.lane.b32.xlu0 %v3828, 80
        %v3866 = vpop.permute.xlu0 %3865
        %3867 = vrot.lane.b32.xlu0 %v3829, 80
        %v3868 = vpop.permute.xlu0 %3867
        %3869 = vrot.lane.b32.xlu0 %v3830, 80
        %v3870 = vpop.permute.xlu0 %3869
        %3871 = vrot.lane.b32.xlu0 %v3831, 80
        %v3872 = vpop.permute.xlu0 %3871
        %3873 = vrot.lane.b32.xlu0 %v3832, 80
        %v3874 = vpop.permute.xlu0 %3873
        %3875 = vrot.lane.b32.xlu0 %v3833, 80
        %v3876 = vpop.permute.xlu0 %3875
        %vm3877 = vcmask 654336
        %v3878 = vsel %vm3877, %v3866, %v3868
        %v3879 = vsel %vm3877, %v3868, %v3870
        %v3880 = vsel %vm3877, %v3872, %v3874
        %v3881 = vsel %vm3877, %v3874, %v3876
        %v3888 = vmax.f32 %v3743, %v3866
        %v3889 = vmax.f32 %v3744, %v3878
        %v3890 = vmax.f32 %v3745, %v3879
        %v3891 = vmax.f32 %v3746, %v3872
        %v3892 = vmax.f32 %v3747, %v3880
        %v3893 = vmax.f32 %v3748, %v3881
        %3900 = vrot.lane.b32.xlu0 %v3853, 80
        %v3901 = vpop.permute.xlu0 %3900
        %3902 = vrot.lane.b32.xlu0 %v3854, 80
        %v3903 = vpop.permute.xlu0 %3902
        %3904 = vrot.lane.b32.xlu0 %v3855, 80
        %v3905 = vpop.permute.xlu0 %3904
        %3906 = vrot.lane.b32.xlu0 %v3856, 80
        %v3907 = vpop.permute.xlu0 %3906
        %3908 = vrot.lane.b32.xlu0 %v3857, 80
        %v3909 = vpop.permute.xlu0 %3908
        %3910 = vrot.lane.b32.xlu0 %v3858, 80
        %v3911 = vpop.permute.xlu0 %3910
        %v3912 = vsel %vm3877, %v3901, %v3903
        %v3913 = vsel %vm3877, %v3903, %v3905
        %v3914 = vsel %vm3877, %v3907, %v3909
        %v3915 = vsel %vm3877, %v3909, %v3911
        %v3922 = vmin.f32 %v3777, %v3901
        %v3923 = vmin.f32 %v3778, %v3912
        %v3924 = vmin.f32 %v3779, %v3913
        %v3925 = vmin.f32 %v3780, %v3907
        %v3926 = vmin.f32 %v3781, %v3914
        %v3927 = vmin.f32 %v3782, %v3915
        %v3928 = vld [vmem:[%s651] ss:$8 sm:$0x3]
        %v3930 = vlaneseq
        %v3931 = vshrl.u32 %v3930, 7
        %v3932 = vsub.s32 0, %v3931
        %v3933 = vrot.slane %v3928, %v3932
        %v3934 = vlaneseq
        %v3935 = vshrl.u32 %v3934, 7
        %v3936 = vsub.s32 1, %v3935
        %v3937 = vrot.slane %v3928, %v3936
        %3938 = vrot.lane.b32.xlu0 %v3933, 15
        %v3939 = vpop.permute.xlu0 %3938
        %3940 = vrot.lane.b32.xlu0 %v3937, 15
        %v3941 = vpop.permute.xlu0 %3940
        %v3942 = vsel %vm524, %v3939, %v3941
        %v3946 = vmul.f32 %v1833, %v3939
        %v3947 = vmul.f32 %v1834, %v3942
        %v3948 = vmul.f32 %v3493, %v3941
        %v3949 = vmul.f32 %v1836, %v3939
        %v3950 = vmul.f32 %v1837, %v3942
        %v3951 = vmul.f32 %v3494, %v3941
        %s3952 = scalar_lea.vmem [#allocation4], 81
        %v3953 = vld [vmem:[%s3952] ss:$8 sm:$0x3]
        %v3955 = vlaneseq
        %v3956 = vshrl.u32 %v3955, 7
        %v3957 = vsub.s32 0, %v3956
        %v3958 = vrot.slane %v3953, %v3957
        %v3959 = vlaneseq
        %v3960 = vshrl.u32 %v3959, 7
        %v3961 = vsub.s32 1, %v3960
        %v3962 = vrot.slane %v3953, %v3961
        %3963 = vrot.lane.b32.xlu0 %v3958, 15
        %v3964 = vpop.permute.xlu0 %3963
        %3965 = vrot.lane.b32.xlu0 %v3962, 15
        %v3966 = vpop.permute.xlu0 %3965
        %v3967 = vsel %vm524, %v3964, %v3966
        %v3971 = vadd.f32 %v3946, %v3964
        %v3972 = vadd.f32 %v3947, %v3967
        %v3973 = vadd.f32 %v3948, %v3966
        %v3974 = vadd.f32 %v3949, %v3964
        %v3975 = vadd.f32 %v3950, %v3967
        %v3976 = vadd.f32 %v3951, %v3966
        %s3977 = scalar_lea.vmem [#allocation4], 130
        %v3978 = vld [vmem:[%s3977] ss:$8 sm:$0x3]
        %v3980 = vlaneseq
        %v3981 = vshrl.u32 %v3980, 7
        %v3982 = vsub.s32 0, %v3981
        %v3983 = vrot.slane %v3978, %v3982
        %v3984 = vlaneseq
        %v3985 = vshrl.u32 %v3984, 7
        %v3986 = vsub.s32 1, %v3985
        %v3987 = vrot.slane %v3978, %v3986
        %3988 = vrot.lane.b32.xlu0 %v3983, 15
        %v3989 = vpop.permute.xlu0 %3988
        %3990 = vrot.lane.b32.xlu0 %v3987, 15
        %v3991 = vpop.permute.xlu0 %3990
        %v3992 = vsel %vm524, %v3989, %v3991
        %v3996 = vadd.f32 %v3946, %v3989
        %v3997 = vadd.f32 %v3947, %v3992
        %v3998 = vadd.f32 %v3948, %v3991
        %v3999 = vadd.f32 %v3949, %v3989
        %v4000 = vadd.f32 %v3950, %v3992
        %v4001 = vadd.f32 %v3951, %v3991
        %4008 = vrot.lane.b32.xlu0 %v3971, 79
        %v4009 = vpop.permute.xlu0 %4008
        %4010 = vrot.lane.b32.xlu0 %v3972, 79
        %v4011 = vpop.permute.xlu0 %4010
        %4012 = vrot.lane.b32.xlu0 %v3973, 79
        %v4013 = vpop.permute.xlu0 %4012
        %4014 = vrot.lane.b32.xlu0 %v3974, 79
        %v4015 = vpop.permute.xlu0 %4014
        %4016 = vrot.lane.b32.xlu0 %v3975, 79
        %v4017 = vpop.permute.xlu0 %4016
        %4018 = vrot.lane.b32.xlu0 %v3976, 79
        %v4019 = vpop.permute.xlu0 %4018
        %vm4020 = vcmask 646144
        %v4021 = vsel %vm4020, %v4009, %v4011
        %v4022 = vsel %vm4020, %v4011, %v4013
        %v4023 = vsel %vm4020, %v4015, %v4017
        %v4024 = vsel %vm4020, %v4017, %v4019
        %v4031 = vmax.f32 %v3888, %v4009
        %v4032 = vmax.f32 %v3889, %v4021
        %v4033 = vmax.f32 %v3890, %v4022
        %v4034 = vmax.f32 %v3891, %v4015
        %v4035 = vmax.f32 %v3892, %v4023
        %v4036 = vmax.f32 %v3893, %v4024
        %4043 = vrot.lane.b32.xlu0 %v3996, 79
        %v4044 = vpop.permute.xlu0 %4043
        %4045 = vrot.lane.b32.xlu0 %v3997, 79
        %v4046 = vpop.permute.xlu0 %4045
        %4047 = vrot.lane.b32.xlu0 %v3998, 79
        %v4048 = vpop.permute.xlu0 %4047
        %4049 = vrot.lane.b32.xlu0 %v3999, 79
        %v4050 = vpop.permute.xlu0 %4049
        %4051 = vrot.lane.b32.xlu0 %v4000, 79
        %v4052 = vpop.permute.xlu0 %4051
        %4053 = vrot.lane.b32.xlu0 %v4001, 79
        %v4054 = vpop.permute.xlu0 %4053
        %v4055 = vsel %vm4020, %v4044, %v4046
        %v4056 = vsel %vm4020, %v4046, %v4048
        %v4057 = vsel %vm4020, %v4050, %v4052
        %v4058 = vsel %vm4020, %v4052, %v4054
        %v4065 = vmin.f32 %v3922, %v4044
        %v4066 = vmin.f32 %v3923, %v4055
        %v4067 = vmin.f32 %v3924, %v4056
        %v4068 = vmin.f32 %v3925, %v4050
        %v4069 = vmin.f32 %v3926, %v4057
        %v4070 = vmin.f32 %v3927, %v4058
        %v4071 = vld [vmem:[%s694] ss:$8 sm:$0x3]
        %v4073 = vlaneseq
        %v4074 = vshrl.u32 %v4073, 7
        %v4075 = vsub.s32 0, %v4074
        %v4076 = vrot.slane %v4071, %v4075
        %v4077 = vlaneseq
        %v4078 = vshrl.u32 %v4077, 7
        %v4079 = vsub.s32 1, %v4078
        %v4080 = vrot.slane %v4071, %v4079
        %4081 = vrot.lane.b32.xlu0 %v4076, 16
        %v4082 = vpop.permute.xlu0 %4081
        %4083 = vrot.lane.b32.xlu0 %v4080, 16
        %v4084 = vpop.permute.xlu0 %4083
        %v4085 = vsel %vm477, %v4082, %v4084
        %v4089 = vmul.f32 %v1833, %v4082
        %v4090 = vmul.f32 %v1834, %v4085
        %v4091 = vmul.f32 %v3493, %v4084
        %v4092 = vmul.f32 %v1836, %v4082
        %v4093 = vmul.f32 %v1837, %v4085
        %v4094 = vmul.f32 %v3494, %v4084
        %s4095 = scalar_lea.vmem [#allocation4], 82
        %v4096 = vld [vmem:[%s4095] ss:$8 sm:$0x3]
        %v4098 = vlaneseq
        %v4099 = vshrl.u32 %v4098, 7
        %v4100 = vsub.s32 0, %v4099
        %v4101 = vrot.slane %v4096, %v4100
        %v4102 = vlaneseq
        %v4103 = vshrl.u32 %v4102, 7
        %v4104 = vsub.s32 1, %v4103
        %v4105 = vrot.slane %v4096, %v4104
        %4106 = vrot.lane.b32.xlu0 %v4101, 16
        %v4107 = vpop.permute.xlu0 %4106
        %4108 = vrot.lane.b32.xlu0 %v4105, 16
        %v4109 = vpop.permute.xlu0 %4108
        %v4110 = vsel %vm477, %v4107, %v4109
        %v4114 = vadd.f32 %v4089, %v4107
        %v4115 = vadd.f32 %v4090, %v4110
        %v4116 = vadd.f32 %v4091, %v4109
        %v4117 = vadd.f32 %v4092, %v4107
        %v4118 = vadd.f32 %v4093, %v4110
        %v4119 = vadd.f32 %v4094, %v4109
        %s4120 = scalar_lea.vmem [#allocation4], 131
        %v4121 = vld [vmem:[%s4120] ss:$8 sm:$0x3]
        %v4123 = vlaneseq
        %v4124 = vshrl.u32 %v4123, 7
        %v4125 = vsub.s32 0, %v4124
        %v4126 = vrot.slane %v4121, %v4125
        %v4127 = vlaneseq
        %v4128 = vshrl.u32 %v4127, 7
        %v4129 = vsub.s32 1, %v4128
        %v4130 = vrot.slane %v4121, %v4129
        %4131 = vrot.lane.b32.xlu0 %v4126, 16
        %v4132 = vpop.permute.xlu0 %4131
        %4133 = vrot.lane.b32.xlu0 %v4130, 16
        %v4134 = vpop.permute.xlu0 %4133
        %v4135 = vsel %vm477, %v4132, %v4134
        %v4139 = vadd.f32 %v4089, %v4132
        %v4140 = vadd.f32 %v4090, %v4135
        %v4141 = vadd.f32 %v4091, %v4134
        %v4142 = vadd.f32 %v4092, %v4132
        %v4143 = vadd.f32 %v4093, %v4135
        %v4144 = vadd.f32 %v4094, %v4134
        %4151 = vrot.lane.b32.xlu0 %v4114, 78
        %v4152 = vpop.permute.xlu0 %4151
        %4153 = vrot.lane.b32.xlu0 %v4115, 78
        %v4154 = vpop.permute.xlu0 %4153
        %4155 = vrot.lane.b32.xlu0 %v4116, 78
        %v4156 = vpop.permute.xlu0 %4155
        %4157 = vrot.lane.b32.xlu0 %v4117, 78
        %v4158 = vpop.permute.xlu0 %4157
        %4159 = vrot.lane.b32.xlu0 %v4118, 78
        %v4160 = vpop.permute.xlu0 %4159
        %4161 = vrot.lane.b32.xlu0 %v4119, 78
        %v4162 = vpop.permute.xlu0 %4161
        %vm4163 = vcmask 637952
        %v4164 = vsel %vm4163, %v4152, %v4154
        %v4165 = vsel %vm4163, %v4154, %v4156
        %v4166 = vsel %vm4163, %v4158, %v4160
        %v4167 = vsel %vm4163, %v4160, %v4162
        %v4174 = vmax.f32 %v4031, %v4152
        %v4175 = vmax.f32 %v4032, %v4164
        %v4176 = vmax.f32 %v4033, %v4165
        %v4177 = vmax.f32 %v4034, %v4158
        %v4178 = vmax.f32 %v4035, %v4166
        %v4179 = vmax.f32 %v4036, %v4167
        %4186 = vrot.lane.b32.xlu0 %v4139, 78
        %v4187 = vpop.permute.xlu0 %4186
        %4188 = vrot.lane.b32.xlu0 %v4140, 78
        %v4189 = vpop.permute.xlu0 %4188
        %4190 = vrot.lane.b32.xlu0 %v4141, 78
        %v4191 = vpop.permute.xlu0 %4190
        %4192 = vrot.lane.b32.xlu0 %v4142, 78
        %v4193 = vpop.permute.xlu0 %4192
        %4194 = vrot.lane.b32.xlu0 %v4143, 78
        %v4195 = vpop.permute.xlu0 %4194
        %4196 = vrot.lane.b32.xlu0 %v4144, 78
        %v4197 = vpop.permute.xlu0 %4196
        %v4198 = vsel %vm4163, %v4187, %v4189
        %v4199 = vsel %vm4163, %v4189, %v4191
        %v4200 = vsel %vm4163, %v4193, %v4195
        %v4201 = vsel %vm4163, %v4195, %v4197
        %v4208 = vmin.f32 %v4065, %v4187
        %v4209 = vmin.f32 %v4066, %v4198
        %v4210 = vmin.f32 %v4067, %v4199
        %v4211 = vmin.f32 %v4068, %v4193
        %v4212 = vmin.f32 %v4069, %v4200
        %v4213 = vmin.f32 %v4070, %v4201
        %v4214 = vld [vmem:[%s739] ss:$8 sm:$0x3]
        %v4216 = vlaneseq
        %v4217 = vshrl.u32 %v4216, 7
        %v4218 = vsub.s32 0, %v4217
        %v4219 = vrot.slane %v4214, %v4218
        %v4220 = vlaneseq
        %v4221 = vshrl.u32 %v4220, 7
        %v4222 = vsub.s32 1, %v4221
        %v4223 = vrot.slane %v4214, %v4222
        %4224 = vrot.lane.b32.xlu0 %v4219, 17
        %v4225 = vpop.permute.xlu0 %4224
        %4226 = vrot.lane.b32.xlu0 %v4223, 17
        %v4227 = vpop.permute.xlu0 %4226
        %v4228 = vsel %vm432, %v4225, %v4227
        %v4232 = vmul.f32 %v1833, %v4225
        %v4233 = vmul.f32 %v1834, %v4228
        %v4234 = vmul.f32 %v3493, %v4227
        %v4235 = vmul.f32 %v1836, %v4225
        %v4236 = vmul.f32 %v1837, %v4228
        %v4237 = vmul.f32 %v3494, %v4227
        %s4238 = scalar_lea.vmem [#allocation4], 83
        %v4239 = vld [vmem:[%s4238] ss:$8 sm:$0x3]
        %v4241 = vlaneseq
        %v4242 = vshrl.u32 %v4241, 7
        %v4243 = vsub.s32 0, %v4242
        %v4244 = vrot.slane %v4239, %v4243
        %v4245 = vlaneseq
        %v4246 = vshrl.u32 %v4245, 7
        %v4247 = vsub.s32 1, %v4246
        %v4248 = vrot.slane %v4239, %v4247
        %4249 = vrot.lane.b32.xlu0 %v4244, 17
        %v4250 = vpop.permute.xlu0 %4249
        %4251 = vrot.lane.b32.xlu0 %v4248, 17
        %v4252 = vpop.permute.xlu0 %4251
        %v4253 = vsel %vm432, %v4250, %v4252
        %v4257 = vadd.f32 %v4232, %v4250
        %v4258 = vadd.f32 %v4233, %v4253
        %v4259 = vadd.f32 %v4234, %v4252
        %v4260 = vadd.f32 %v4235, %v4250
        %v4261 = vadd.f32 %v4236, %v4253
        %v4262 = vadd.f32 %v4237, %v4252
        %s4263 = scalar_lea.vmem [#allocation4], 132
        %v4264 = vld [vmem:[%s4263] ss:$8 sm:$0x3]
        %v4266 = vlaneseq
        %v4267 = vshrl.u32 %v4266, 7
        %v4268 = vsub.s32 0, %v4267
        %v4269 = vrot.slane %v4264, %v4268
        %v4270 = vlaneseq
        %v4271 = vshrl.u32 %v4270, 7
        %v4272 = vsub.s32 1, %v4271
        %v4273 = vrot.slane %v4264, %v4272
        %4274 = vrot.lane.b32.xlu0 %v4269, 17
        %v4275 = vpop.permute.xlu0 %4274
        %4276 = vrot.lane.b32.xlu0 %v4273, 17
        %v4277 = vpop.permute.xlu0 %4276
        %v4278 = vsel %vm432, %v4275, %v4277
        %v4282 = vadd.f32 %v4232, %v4275
        %v4283 = vadd.f32 %v4233, %v4278
        %v4284 = vadd.f32 %v4234, %v4277
        %v4285 = vadd.f32 %v4235, %v4275
        %v4286 = vadd.f32 %v4236, %v4278
        %v4287 = vadd.f32 %v4237, %v4277
        %4294 = vrot.lane.b32.xlu0 %v4257, 77
        %v4295 = vpop.permute.xlu0 %4294
        %4296 = vrot.lane.b32.xlu0 %v4258, 77
        %v4297 = vpop.permute.xlu0 %4296
        %4298 = vrot.lane.b32.xlu0 %v4259, 77
        %v4299 = vpop.permute.xlu0 %4298
        %4300 = vrot.lane.b32.xlu0 %v4260, 77
        %v4301 = vpop.permute.xlu0 %4300
        %4302 = vrot.lane.b32.xlu0 %v4261, 77
        %v4303 = vpop.permute.xlu0 %4302
        %4304 = vrot.lane.b32.xlu0 %v4262, 77
        %v4305 = vpop.permute.xlu0 %4304
        %vm4306 = vcmask 629760
        %v4307 = vsel %vm4306, %v4295, %v4297
        %v4308 = vsel %vm4306, %v4297, %v4299
        %v4309 = vsel %vm4306, %v4301, %v4303
        %v4310 = vsel %vm4306, %v4303, %v4305
        %v4317 = vmax.f32 %v4174, %v4295
        %v4318 = vmax.f32 %v4175, %v4307
        %v4319 = vmax.f32 %v4176, %v4308
        %v4320 = vmax.f32 %v4177, %v4301
        %v4321 = vmax.f32 %v4178, %v4309
        %v4322 = vmax.f32 %v4179, %v4310
        %4329 = vrot.lane.b32.xlu0 %v4282, 77
        %v4330 = vpop.permute.xlu0 %4329
        %4331 = vrot.lane.b32.xlu0 %v4283, 77
        %v4332 = vpop.permute.xlu0 %4331
        %4333 = vrot.lane.b32.xlu0 %v4284, 77
        %v4334 = vpop.permute.xlu0 %4333
        %4335 = vrot.lane.b32.xlu0 %v4285, 77
        %v4336 = vpop.permute.xlu0 %4335
        %4337 = vrot.lane.b32.xlu0 %v4286, 77
        %v4338 = vpop.permute.xlu0 %4337
        %4339 = vrot.lane.b32.xlu0 %v4287, 77
        %v4340 = vpop.permute.xlu0 %4339
        %v4341 = vsel %vm4306, %v4330, %v4332
        %v4342 = vsel %vm4306, %v4332, %v4334
        %v4343 = vsel %vm4306, %v4336, %v4338
        %v4344 = vsel %vm4306, %v4338, %v4340
        %v4351 = vmin.f32 %v4208, %v4330
        %v4352 = vmin.f32 %v4209, %v4341
        %v4353 = vmin.f32 %v4210, %v4342
        %v4354 = vmin.f32 %v4211, %v4336
        %v4355 = vmin.f32 %v4212, %v4343
        %v4356 = vmin.f32 %v4213, %v4344
        %s4357 = scalar_lea.vmem [#allocation4], 35
        %v4358 = vld [vmem:[%s4357] ss:$8 sm:$0x3]
        %v4360 = vlaneseq
        %v4361 = vshrl.u32 %v4360, 7
        %v4362 = vsub.s32 0, %v4361
        %v4363 = vrot.slane %v4358, %v4362
        %v4364 = vlaneseq
        %v4365 = vshrl.u32 %v4364, 7
        %v4366 = vsub.s32 1, %v4365
        %v4367 = vrot.slane %v4358, %v4366
        %4368 = vrot.lane.b32.xlu0 %v4363, 18
        %v4369 = vpop.permute.xlu0 %4368
        %4370 = vrot.lane.b32.xlu0 %v4367, 18
        %v4371 = vpop.permute.xlu0 %4370
        %vm4372 = vcmask 146432
        %v4373 = vsel %vm4372, %v4369, %v4371
        %v4377 = vmul.f32 %v1833, %v4369
        %v4378 = vmul.f32 %v1834, %v4373
        %v4379 = vmul.f32 %v3493, %v4371
        %v4380 = vmul.f32 %v1836, %v4369
        %v4381 = vmul.f32 %v1837, %v4373
        %v4382 = vmul.f32 %v3494, %v4371
        %s4383 = scalar_lea.vmem [#allocation4], 84
        %v4384 = vld [vmem:[%s4383] ss:$8 sm:$0x3]
        %v4386 = vlaneseq
        %v4387 = vshrl.u32 %v4386, 7
        %v4388 = vsub.s32 0, %v4387
        %v4389 = vrot.slane %v4384, %v4388
        %v4390 = vlaneseq
        %v4391 = vshrl.u32 %v4390, 7
        %v4392 = vsub.s32 1, %v4391
        %v4393 = vrot.slane %v4384, %v4392
        %4394 = vrot.lane.b32.xlu0 %v4389, 18
        %v4395 = vpop.permute.xlu0 %4394
        %4396 = vrot.lane.b32.xlu0 %v4393, 18
        %v4397 = vpop.permute.xlu0 %4396
        %v4398 = vsel %vm4372, %v4395, %v4397
        %v4402 = vadd.f32 %v4377, %v4395
        %v4403 = vadd.f32 %v4378, %v4398
        %v4404 = vadd.f32 %v4379, %v4397
        %v4405 = vadd.f32 %v4380, %v4395
        %v4406 = vadd.f32 %v4381, %v4398
        %v4407 = vadd.f32 %v4382, %v4397
        %s4408 = scalar_lea.vmem [#allocation4], 133
        %v4409 = vld [vmem:[%s4408] ss:$8 sm:$0x3]
        %v4411 = vlaneseq
        %v4412 = vshrl.u32 %v4411, 7
        %v4413 = vsub.s32 0, %v4412
        %v4414 = vrot.slane %v4409, %v4413
        %v4415 = vlaneseq
        %v4416 = vshrl.u32 %v4415, 7
        %v4417 = vsub.s32 1, %v4416
        %v4418 = vrot.slane %v4409, %v4417
        %4419 = vrot.lane.b32.xlu0 %v4414, 18
        %v4420 = vpop.permute.xlu0 %4419
        %4421 = vrot.lane.b32.xlu0 %v4418, 18
        %v4422 = vpop.permute.xlu0 %4421
        %v4423 = vsel %vm4372, %v4420, %v4422
        %v4427 = vadd.f32 %v4377, %v4420
        %v4428 = vadd.f32 %v4378, %v4423
        %v4429 = vadd.f32 %v4379, %v4422
        %v4430 = vadd.f32 %v4380, %v4420
        %v4431 = vadd.f32 %v4381, %v4423
        %v4432 = vadd.f32 %v4382, %v4422
        %4439 = vrot.lane.b32.xlu0 %v4402, 76
        %v4440 = vpop.permute.xlu0 %4439
        %4441 = vrot.lane.b32.xlu0 %v4403, 76
        %v4442 = vpop.permute.xlu0 %4441
        %4443 = vrot.lane.b32.xlu0 %v4404, 76
        %v4444 = vpop.permute.xlu0 %4443
        %4445 = vrot.lane.b32.xlu0 %v4405, 76
        %v4446 = vpop.permute.xlu0 %4445
        %4447 = vrot.lane.b32.xlu0 %v4406, 76
        %v4448 = vpop.permute.xlu0 %4447
        %4449 = vrot.lane.b32.xlu0 %v4407, 76
        %v4450 = vpop.permute.xlu0 %4449
        %vm4451 = vcmask 621568
        %v4452 = vsel %vm4451, %v4440, %v4442
        %v4453 = vsel %vm4451, %v4442, %v4444
        %v4454 = vsel %vm4451, %v4446, %v4448
        %v4455 = vsel %vm4451, %v4448, %v4450
        %v4462 = vmax.f32 %v4317, %v4440
        %v4463 = vmax.f32 %v4318, %v4452
        %v4464 = vmax.f32 %v4319, %v4453
        %v4465 = vmax.f32 %v4320, %v4446
        %v4466 = vmax.f32 %v4321, %v4454
        %v4467 = vmax.f32 %v4322, %v4455
        %4474 = vrot.lane.b32.xlu0 %v4427, 76
        %v4475 = vpop.permute.xlu0 %4474
        %4476 = vrot.lane.b32.xlu0 %v4428, 76
        %v4477 = vpop.permute.xlu0 %4476
        %4478 = vrot.lane.b32.xlu0 %v4429, 76
        %v4479 = vpop.permute.xlu0 %4478
        %4480 = vrot.lane.b32.xlu0 %v4430, 76
        %v4481 = vpop.permute.xlu0 %4480
        %4482 = vrot.lane.b32.xlu0 %v4431, 76
        %v4483 = vpop.permute.xlu0 %4482
        %4484 = vrot.lane.b32.xlu0 %v4432, 76
        %v4485 = vpop.permute.xlu0 %4484
        %v4486 = vsel %vm4451, %v4475, %v4477
        %v4487 = vsel %vm4451, %v4477, %v4479
        %v4488 = vsel %vm4451, %v4481, %v4483
        %v4489 = vsel %vm4451, %v4483, %v4485
        %v4496 = vmin.f32 %v4351, %v4475
        %v4497 = vmin.f32 %v4352, %v4486
        %v4498 = vmin.f32 %v4353, %v4487
        %v4499 = vmin.f32 %v4354, %v4481
        %v4500 = vmin.f32 %v4355, %v4488
        %v4501 = vmin.f32 %v4356, %v4489
        %s4502 = scalar_lea.vmem [#allocation4], 36
        %v4503 = vld [vmem:[%s4502] ss:$8 sm:$0x3]
        %v4505 = vlaneseq
        %v4506 = vshrl.u32 %v4505, 7
        %v4507 = vsub.s32 0, %v4506
        %v4508 = vrot.slane %v4503, %v4507
        %v4509 = vlaneseq
        %v4510 = vshrl.u32 %v4509, 7
        %v4511 = vsub.s32 1, %v4510
        %v4512 = vrot.slane %v4503, %v4511
        %4513 = vrot.lane.b32.xlu0 %v4508, 30
        %v4514 = vpop.permute.xlu0 %4513
        %4515 = vrot.lane.b32.xlu0 %v4512, 30
        %v4516 = vpop.permute.xlu0 %4515
        %vm4517 = vcmask 244736
        %v4518 = vsel %vm4517, %v4514, %v4516
        %v4522 = vmul.f32 %v1833, %v4514
        %v4523 = vmul.f32 %v1834, %v4518
        %v4524 = vmul.f32 %v3493, %v4516
        %v4525 = vmul.f32 %v1836, %v4514
        %v4526 = vmul.f32 %v1837, %v4518
        %v4527 = vmul.f32 %v3494, %v4516
        %s4528 = scalar_lea.vmem [#allocation4], 85
        %v4529 = vld [vmem:[%s4528] ss:$8 sm:$0x3]
        %v4531 = vlaneseq
        %v4532 = vshrl.u32 %v4531, 7
        %v4533 = vsub.s32 0, %v4532
        %v4534 = vrot.slane %v4529, %v4533
        %v4535 = vlaneseq
        %v4536 = vshrl.u32 %v4535, 7
        %v4537 = vsub.s32 1, %v4536
        %v4538 = vrot.slane %v4529, %v4537
        %4539 = vrot.lane.b32.xlu0 %v4534, 30
        %v4540 = vpop.permute.xlu0 %4539
        %4541 = vrot.lane.b32.xlu0 %v4538, 30
        %v4542 = vpop.permute.xlu0 %4541
        %v4543 = vsel %vm4517, %v4540, %v4542
        %v4547 = vadd.f32 %v4522, %v4540
        %v4548 = vadd.f32 %v4523, %v4543
        %v4549 = vadd.f32 %v4524, %v4542
        %v4550 = vadd.f32 %v4525, %v4540
        %v4551 = vadd.f32 %v4526, %v4543
        %v4552 = vadd.f32 %v4527, %v4542
        %s4553 = scalar_lea.vmem [#allocation4], 134
        %v4554 = vld [vmem:[%s4553] ss:$8 sm:$0x3]
        %v4556 = vlaneseq
        %v4557 = vshrl.u32 %v4556, 7
        %v4558 = vsub.s32 0, %v4557
        %v4559 = vrot.slane %v4554, %v4558
        %v4560 = vlaneseq
        %v4561 = vshrl.u32 %v4560, 7
        %v4562 = vsub.s32 1, %v4561
        %v4563 = vrot.slane %v4554, %v4562
        %4564 = vrot.lane.b32.xlu0 %v4559, 30
        %v4565 = vpop.permute.xlu0 %4564
        %4566 = vrot.lane.b32.xlu0 %v4563, 30
        %v4567 = vpop.permute.xlu0 %4566
        %v4568 = vsel %vm4517, %v4565, %v4567
        %v4572 = vadd.f32 %v4522, %v4565
        %v4573 = vadd.f32 %v4523, %v4568
        %v4574 = vadd.f32 %v4524, %v4567
        %v4575 = vadd.f32 %v4525, %v4565
        %v4576 = vadd.f32 %v4526, %v4568
        %v4577 = vadd.f32 %v4527, %v4567
        %4584 = vrot.lane.b32.xlu0 %v4547, 64
        %v4585 = vpop.permute.xlu0 %4584
        %4586 = vrot.lane.b32.xlu0 %v4548, 64
        %v4587 = vpop.permute.xlu0 %4586
        %4588 = vrot.lane.b32.xlu0 %v4549, 64
        %v4589 = vpop.permute.xlu0 %4588
        %4590 = vrot.lane.b32.xlu0 %v4550, 64
        %v4591 = vpop.permute.xlu0 %4590
        %4592 = vrot.lane.b32.xlu0 %v4551, 64
        %v4593 = vpop.permute.xlu0 %4592
        %4594 = vrot.lane.b32.xlu0 %v4552, 64
        %v4595 = vpop.permute.xlu0 %4594
        %vm4596 = vcmask 523264
        %v4597 = vsel %vm4596, %v4585, %v4587
        %v4598 = vsel %vm4596, %v4587, %v4589
        %v4599 = vsel %vm4596, %v4591, %v4593
        %v4600 = vsel %vm4596, %v4593, %v4595
        %v4607 = vmax.f32 %v4462, %v4585
        %v4608 = vmax.f32 %v4463, %v4597
        %v4609 = vmax.f32 %v4464, %v4598
        %v4610 = vmax.f32 %v4465, %v4591
        %v4611 = vmax.f32 %v4466, %v4599
        %v4612 = vmax.f32 %v4467, %v4600
        %4619 = vrot.lane.b32.xlu0 %v4572, 64
        %v4620 = vpop.permute.xlu0 %4619
        %4621 = vrot.lane.b32.xlu0 %v4573, 64
        %v4622 = vpop.permute.xlu0 %4621
        %4623 = vrot.lane.b32.xlu0 %v4574, 64
        %v4624 = vpop.permute.xlu0 %4623
        %4625 = vrot.lane.b32.xlu0 %v4575, 64
        %v4626 = vpop.permute.xlu0 %4625
        %4627 = vrot.lane.b32.xlu0 %v4576, 64
        %v4628 = vpop.permute.xlu0 %4627
        %4629 = vrot.lane.b32.xlu0 %v4577, 64
        %v4630 = vpop.permute.xlu0 %4629
        %v4631 = vsel %vm4596, %v4620, %v4622
        %v4632 = vsel %vm4596, %v4622, %v4624
        %v4633 = vsel %vm4596, %v4626, %v4628
        %v4634 = vsel %vm4596, %v4628, %v4630
        %v4641 = vmin.f32 %v4496, %v4620
        %v4642 = vmin.f32 %v4497, %v4631
        %v4643 = vmin.f32 %v4498, %v4632
        %v4644 = vmin.f32 %v4499, %v4626
        %v4645 = vmin.f32 %v4500, %v4633
        %v4646 = vmin.f32 %v4501, %v4634
        %s4647 = scalar_lea.vmem [#allocation4], 37
        %v4648 = vld [vmem:[%s4647] ss:$8 sm:$0x3]
        %v4650 = vlaneseq
        %v4651 = vshrl.u32 %v4650, 7
        %v4652 = vsub.s32 0, %v4651
        %v4653 = vrot.slane %v4648, %v4652
        %v4654 = vlaneseq
        %v4655 = vshrl.u32 %v4654, 7
        %v4656 = vsub.s32 1, %v4655
        %v4657 = vrot.slane %v4648, %v4656
        %4658 = vrot.lane.b32.xlu0 %v4653, 31
        %v4659 = vpop.permute.xlu0 %4658
        %4660 = vrot.lane.b32.xlu0 %v4657, 31
        %v4661 = vpop.permute.xlu0 %4660
        %vm4662 = vcmask 252928
        %v4663 = vsel %vm4662, %v4659, %v4661
        %v4667 = vmul.f32 %v1833, %v4659
        %v4668 = vmul.f32 %v1834, %v4663
        %v4669 = vmul.f32 %v3493, %v4661
        %v4670 = vmul.f32 %v1836, %v4659
        %v4671 = vmul.f32 %v1837, %v4663
        %v4672 = vmul.f32 %v3494, %v4661
        %s4673 = scalar_lea.vmem [#allocation4], 86
        %v4674 = vld [vmem:[%s4673] ss:$8 sm:$0x3]
        %v4676 = vlaneseq
        %v4677 = vshrl.u32 %v4676, 7
        %v4678 = vsub.s32 0, %v4677
        %v4679 = vrot.slane %v4674, %v4678
        %v4680 = vlaneseq
        %v4681 = vshrl.u32 %v4680, 7
        %v4682 = vsub.s32 1, %v4681
        %v4683 = vrot.slane %v4674, %v4682
        %4684 = vrot.lane.b32.xlu0 %v4679, 31
        %v4685 = vpop.permute.xlu0 %4684
        %4686 = vrot.lane.b32.xlu0 %v4683, 31
        %v4687 = vpop.permute.xlu0 %4686
        %v4688 = vsel %vm4662, %v4685, %v4687
        %v4692 = vadd.f32 %v4667, %v4685
        %v4693 = vadd.f32 %v4668, %v4688
        %v4694 = vadd.f32 %v4669, %v4687
        %v4695 = vadd.f32 %v4670, %v4685
        %v4696 = vadd.f32 %v4671, %v4688
        %v4697 = vadd.f32 %v4672, %v4687
        %s4698 = scalar_lea.vmem [#allocation4], 135
        %v4699 = vld [vmem:[%s4698] ss:$8 sm:$0x3]
        %v4701 = vlaneseq
        %v4702 = vshrl.u32 %v4701, 7
        %v4703 = vsub.s32 0, %v4702
        %v4704 = vrot.slane %v4699, %v4703
        %v4705 = vlaneseq
        %v4706 = vshrl.u32 %v4705, 7
        %v4707 = vsub.s32 1, %v4706
        %v4708 = vrot.slane %v4699, %v4707
        %4709 = vrot.lane.b32.xlu0 %v4704, 31
        %v4710 = vpop.permute.xlu0 %4709
        %4711 = vrot.lane.b32.xlu0 %v4708, 31
        %v4712 = vpop.permute.xlu0 %4711
        %v4713 = vsel %vm4662, %v4710, %v4712
        %v4717 = vadd.f32 %v4667, %v4710
        %v4718 = vadd.f32 %v4668, %v4713
        %v4719 = vadd.f32 %v4669, %v4712
        %v4720 = vadd.f32 %v4670, %v4710
        %v4721 = vadd.f32 %v4671, %v4713
        %v4722 = vadd.f32 %v4672, %v4712
        %4729 = vrot.lane.b32.xlu0 %v4692, 63
        %v4730 = vpop.permute.xlu0 %4729
        %4731 = vrot.lane.b32.xlu0 %v4693, 63
        %v4732 = vpop.permute.xlu0 %4731
        %4733 = vrot.lane.b32.xlu0 %v4694, 63
        %v4734 = vpop.permute.xlu0 %4733
        %4735 = vrot.lane.b32.xlu0 %v4695, 63
        %v4736 = vpop.permute.xlu0 %4735
        %4737 = vrot.lane.b32.xlu0 %v4696, 63
        %v4738 = vpop.permute.xlu0 %4737
        %4739 = vrot.lane.b32.xlu0 %v4697, 63
        %v4740 = vpop.permute.xlu0 %4739
        %vm4741 = vcmask 515072
        %v4742 = vsel %vm4741, %v4730, %v4732
        %v4743 = vsel %vm4741, %v4732, %v4734
        %v4744 = vsel %vm4741, %v4736, %v4738
        %v4745 = vsel %vm4741, %v4738, %v4740
        %v4752 = vmax.f32 %v4607, %v4730
        %v4753 = vmax.f32 %v4608, %v4742
        %v4754 = vmax.f32 %v4609, %v4743
        %v4755 = vmax.f32 %v4610, %v4736
        %v4756 = vmax.f32 %v4611, %v4744
        %v4757 = vmax.f32 %v4612, %v4745
        %4764 = vrot.lane.b32.xlu0 %v4717, 63
        %v4765 = vpop.permute.xlu0 %4764
        %4766 = vrot.lane.b32.xlu0 %v4718, 63
        %v4767 = vpop.permute.xlu0 %4766
        %4768 = vrot.lane.b32.xlu0 %v4719, 63
        %v4769 = vpop.permute.xlu0 %4768
        %4770 = vrot.lane.b32.xlu0 %v4720, 63
        %v4771 = vpop.permute.xlu0 %4770
        %4772 = vrot.lane.b32.xlu0 %v4721, 63
        %v4773 = vpop.permute.xlu0 %4772
        %4774 = vrot.lane.b32.xlu0 %v4722, 63
        %v4775 = vpop.permute.xlu0 %4774
        %v4776 = vsel %vm4741, %v4765, %v4767
        %v4777 = vsel %vm4741, %v4767, %v4769
        %v4778 = vsel %vm4741, %v4771, %v4773
        %v4779 = vsel %vm4741, %v4773, %v4775
        %v4786 = vmin.f32 %v4641, %v4765
        %v4787 = vmin.f32 %v4642, %v4776
        %v4788 = vmin.f32 %v4643, %v4777
        %v4789 = vmin.f32 %v4644, %v4771
        %v4790 = vmin.f32 %v4645, %v4778
        %v4791 = vmin.f32 %v4646, %v4779
        %s4792 = scalar_lea.vmem [#allocation4], 38
        %v4793 = vld [vmem:[%s4792] ss:$8 sm:$0x3]
        %v4795 = vlaneseq
        %v4796 = vshrl.u32 %v4795, 7
        %v4797 = vsub.s32 0, %v4796
        %v4798 = vrot.slane %v4793, %v4797
        %v4799 = vlaneseq
        %v4800 = vshrl.u32 %v4799, 7
        %v4801 = vsub.s32 1, %v4800
        %v4802 = vrot.slane %v4793, %v4801
        %4803 = vrot.lane.b32.xlu0 %v4798, 32
        %v4804 = vpop.permute.xlu0 %4803
        %4805 = vrot.lane.b32.xlu0 %v4802, 32
        %v4806 = vpop.permute.xlu0 %4805
        %vm4807 = vcmask 261120
        %v4808 = vsel %vm4807, %v4804, %v4806
        %v4812 = vmul.f32 %v1833, %v4804
        %v4813 = vmul.f32 %v1834, %v4808
        %v4814 = vmul.f32 %v3493, %v4806
        %v4815 = vmul.f32 %v1836, %v4804
        %v4816 = vmul.f32 %v1837, %v4808
        %v4817 = vmul.f32 %v3494, %v4806
        %s4818 = scalar_lea.vmem [#allocation4], 87
        %v4819 = vld [vmem:[%s4818] ss:$8 sm:$0x3]
        %v4821 = vlaneseq
        %v4822 = vshrl.u32 %v4821, 7
        %v4823 = vsub.s32 0, %v4822
        %v4824 = vrot.slane %v4819, %v4823
        %v4825 = vlaneseq
        %v4826 = vshrl.u32 %v4825, 7
        %v4827 = vsub.s32 1, %v4826
        %v4828 = vrot.slane %v4819, %v4827
        %4829 = vrot.lane.b32.xlu0 %v4824, 32
        %v4830 = vpop.permute.xlu0 %4829
        %4831 = vrot.lane.b32.xlu0 %v4828, 32
        %v4832 = vpop.permute.xlu0 %4831
        %v4833 = vsel %vm4807, %v4830, %v4832
        %v4837 = vadd.f32 %v4812, %v4830
        %v4838 = vadd.f32 %v4813, %v4833
        %v4839 = vadd.f32 %v4814, %v4832
        %v4840 = vadd.f32 %v4815, %v4830
        %v4841 = vadd.f32 %v4816, %v4833
        %v4842 = vadd.f32 %v4817, %v4832
        %s4843 = scalar_lea.vmem [#allocation4], 144
        %v4844 = vld [vmem:[%s4843] ss:$8 sm:$0x3]
        %v4846 = vlaneseq
        %v4847 = vshrl.u32 %v4846, 7
        %v4848 = vsub.s32 0, %v4847
        %v4849 = vrot.slane %v4844, %v4848
        %v4850 = vlaneseq
        %v4851 = vshrl.u32 %v4850, 7
        %v4852 = vsub.s32 1, %v4851
        %v4853 = vrot.slane %v4844, %v4852
        %4854 = vrot.lane.b32.xlu0 %v4849, 32
        %v4855 = vpop.permute.xlu0 %4854
        %4856 = vrot.lane.b32.xlu0 %v4853, 32
        %v4857 = vpop.permute.xlu0 %4856
        %v4858 = vsel %vm4807, %v4855, %v4857
        %v4862 = vadd.f32 %v4812, %v4855
        %v4863 = vadd.f32 %v4813, %v4858
        %v4864 = vadd.f32 %v4814, %v4857
        %v4865 = vadd.f32 %v4815, %v4855
        %v4866 = vadd.f32 %v4816, %v4858
        %v4867 = vadd.f32 %v4817, %v4857
        %4874 = vrot.lane.b32.xlu0 %v4837, 62
        %v4875 = vpop.permute.xlu0 %4874
        %4876 = vrot.lane.b32.xlu0 %v4838, 62
        %v4877 = vpop.permute.xlu0 %4876
        %4878 = vrot.lane.b32.xlu0 %v4839, 62
        %v4879 = vpop.permute.xlu0 %4878
        %4880 = vrot.lane.b32.xlu0 %v4840, 62
        %v4881 = vpop.permute.xlu0 %4880
        %4882 = vrot.lane.b32.xlu0 %v4841, 62
        %v4883 = vpop.permute.xlu0 %4882
        %4884 = vrot.lane.b32.xlu0 %v4842, 62
        %v4885 = vpop.permute.xlu0 %4884
        %vm4886 = vcmask 506880
        %v4887 = vsel %vm4886, %v4875, %v4877
        %v4888 = vsel %vm4886, %v4877, %v4879
        %v4889 = vsel %vm4886, %v4881, %v4883
        %v4890 = vsel %vm4886, %v4883, %v4885
        %v4897 = vmax.f32 %v4752, %v4875
        %v4898 = vmax.f32 %v4753, %v4887
        %v4899 = vmax.f32 %v4754, %v4888
        %v4900 = vmax.f32 %v4755, %v4881
        %v4901 = vmax.f32 %v4756, %v4889
        %v4902 = vmax.f32 %v4757, %v4890
        %4909 = vrot.lane.b32.xlu0 %v4862, 62
        %v4910 = vpop.permute.xlu0 %4909
        %4911 = vrot.lane.b32.xlu0 %v4863, 62
        %v4912 = vpop.permute.xlu0 %4911
        %4913 = vrot.lane.b32.xlu0 %v4864, 62
        %v4914 = vpop.permute.xlu0 %4913
        %4915 = vrot.lane.b32.xlu0 %v4865, 62
        %v4916 = vpop.permute.xlu0 %4915
        %4917 = vrot.lane.b32.xlu0 %v4866, 62
        %v4918 = vpop.permute.xlu0 %4917
        %4919 = vrot.lane.b32.xlu0 %v4867, 62
        %v4920 = vpop.permute.xlu0 %4919
        %v4921 = vsel %vm4886, %v4910, %v4912
        %v4922 = vsel %vm4886, %v4912, %v4914
        %v4923 = vsel %vm4886, %v4916, %v4918
        %v4924 = vsel %vm4886, %v4918, %v4920
        %v4931 = vmin.f32 %v4786, %v4910
        %v4932 = vmin.f32 %v4787, %v4921
        %v4933 = vmin.f32 %v4788, %v4922
        %v4934 = vmin.f32 %v4789, %v4916
        %v4935 = vmin.f32 %v4790, %v4923
        %v4936 = vmin.f32 %v4791, %v4924
        %s4937 = scalar_lea.vmem [#allocation4], 39
        %v4938 = vld [vmem:[%s4937] ss:$8 sm:$0x3]
        %v4940 = vlaneseq
        %v4941 = vshrl.u32 %v4940, 7
        %v4942 = vsub.s32 0, %v4941
        %v4943 = vrot.slane %v4938, %v4942
        %v4944 = vlaneseq
        %v4945 = vshrl.u32 %v4944, 7
        %v4946 = vsub.s32 1, %v4945
        %v4947 = vrot.slane %v4938, %v4946
        %4948 = vrot.lane.b32.xlu0 %v4943, 33
        %v4949 = vpop.permute.xlu0 %4948
        %4950 = vrot.lane.b32.xlu0 %v4947, 33
        %v4951 = vpop.permute.xlu0 %4950
        %vm4952 = vcmask 269312
        %v4953 = vsel %vm4952, %v4949, %v4951
        %v4957 = vmul.f32 %v1833, %v4949
        %v4958 = vmul.f32 %v1834, %v4953
        %v4959 = vmul.f32 %v3493, %v4951
        %v4960 = vmul.f32 %v1836, %v4949
        %v4961 = vmul.f32 %v1837, %v4953
        %v4962 = vmul.f32 %v3494, %v4951
        %s4963 = scalar_lea.vmem [#allocation4], 96
        %v4964 = vld [vmem:[%s4963] ss:$8 sm:$0x3]
        %v4966 = vlaneseq
        %v4967 = vshrl.u32 %v4966, 7
        %v4968 = vsub.s32 0, %v4967
        %v4969 = vrot.slane %v4964, %v4968
        %v4970 = vlaneseq
        %v4971 = vshrl.u32 %v4970, 7
        %v4972 = vsub.s32 1, %v4971
        %v4973 = vrot.slane %v4964, %v4972
        %4974 = vrot.lane.b32.xlu0 %v4969, 33
        %v4975 = vpop.permute.xlu0 %4974
        %4976 = vrot.lane.b32.xlu0 %v4973, 33
        %v4977 = vpop.permute.xlu0 %4976
        %v4978 = vsel %vm4952, %v4975, %v4977
        %v4982 = vadd.f32 %v4957, %v4975
        %v4983 = vadd.f32 %v4958, %v4978
        %v4984 = vadd.f32 %v4959, %v4977
        %v4985 = vadd.f32 %v4960, %v4975
        %v4986 = vadd.f32 %v4961, %v4978
        %v4987 = vadd.f32 %v4962, %v4977
        %s4988 = scalar_lea.vmem [#allocation4], 145
        %v4989 = vld [vmem:[%s4988] ss:$8 sm:$0x3]
        %v4991 = vlaneseq
        %v4992 = vshrl.u32 %v4991, 7
        %v4993 = vsub.s32 0, %v4992
        %v4994 = vrot.slane %v4989, %v4993
        %v4995 = vlaneseq
        %v4996 = vshrl.u32 %v4995, 7
        %v4997 = vsub.s32 1, %v4996
        %v4998 = vrot.slane %v4989, %v4997
        %4999 = vrot.lane.b32.xlu0 %v4994, 33
        %v5000 = vpop.permute.xlu0 %4999
        %5001 = vrot.lane.b32.xlu0 %v4998, 33
        %v5002 = vpop.permute.xlu0 %5001
        %v5003 = vsel %vm4952, %v5000, %v5002
        %v5007 = vadd.f32 %v4957, %v5000
        %v5008 = vadd.f32 %v4958, %v5003
        %v5009 = vadd.f32 %v4959, %v5002
        %v5010 = vadd.f32 %v4960, %v5000
        %v5011 = vadd.f32 %v4961, %v5003
        %v5012 = vadd.f32 %v4962, %v5002
        %5019 = vrot.lane.b32.xlu0 %v4982, 61
        %v5020 = vpop.permute.xlu0 %5019
        %5021 = vrot.lane.b32.xlu0 %v4983, 61
        %v5022 = vpop.permute.xlu0 %5021
        %5023 = vrot.lane.b32.xlu0 %v4984, 61
        %v5024 = vpop.permute.xlu0 %5023
        %5025 = vrot.lane.b32.xlu0 %v4985, 61
        %v5026 = vpop.permute.xlu0 %5025
        %5027 = vrot.lane.b32.xlu0 %v4986, 61
        %v5028 = vpop.permute.xlu0 %5027
        %5029 = vrot.lane.b32.xlu0 %v4987, 61
        %v5030 = vpop.permute.xlu0 %5029
        %vm5031 = vcmask 498688
        %v5032 = vsel %vm5031, %v5020, %v5022
        %v5033 = vsel %vm5031, %v5022, %v5024
        %v5034 = vsel %vm5031, %v5026, %v5028
        %v5035 = vsel %vm5031, %v5028, %v5030
        %v5042 = vmax.f32 %v4897, %v5020
        %v5043 = vmax.f32 %v4898, %v5032
        %v5044 = vmax.f32 %v4899, %v5033
        %v5045 = vmax.f32 %v4900, %v5026
        %v5046 = vmax.f32 %v4901, %v5034
        %v5047 = vmax.f32 %v4902, %v5035
        %5054 = vrot.lane.b32.xlu0 %v5007, 61
        %v5055 = vpop.permute.xlu0 %5054
        %5056 = vrot.lane.b32.xlu0 %v5008, 61
        %v5057 = vpop.permute.xlu0 %5056
        %5058 = vrot.lane.b32.xlu0 %v5009, 61
        %v5059 = vpop.permute.xlu0 %5058
        %5060 = vrot.lane.b32.xlu0 %v5010, 61
        %v5061 = vpop.permute.xlu0 %5060
        %5062 = vrot.lane.b32.xlu0 %v5011, 61
        %v5063 = vpop.permute.xlu0 %5062
        %5064 = vrot.lane.b32.xlu0 %v5012, 61
        %v5065 = vpop.permute.xlu0 %5064
        %v5066 = vsel %vm5031, %v5055, %v5057
        %v5067 = vsel %vm5031, %v5057, %v5059
        %v5068 = vsel %vm5031, %v5061, %v5063
        %v5069 = vsel %vm5031, %v5063, %v5065
        %v5076 = vmin.f32 %v4931, %v5055
        %v5077 = vmin.f32 %v4932, %v5066
        %v5078 = vmin.f32 %v4933, %v5067
        %v5079 = vmin.f32 %v4934, %v5061
        %v5080 = vmin.f32 %v4935, %v5068
        %v5081 = vmin.f32 %v4936, %v5069
        %s5082 = scalar_lea.vmem [#allocation4], 48
        %v5083 = vld [vmem:[%s5082] ss:$8 sm:$0x3]
        %v5085 = vlaneseq
        %v5086 = vshrl.u32 %v5085, 7
        %v5087 = vsub.s32 0, %v5086
        %v5088 = vrot.slane %v5083, %v5087
        %v5089 = vlaneseq
        %v5090 = vshrl.u32 %v5089, 7
        %v5091 = vsub.s32 1, %v5090
        %v5092 = vrot.slane %v5083, %v5091
        %5093 = vrot.lane.b32.xlu0 %v5088, 34
        %v5094 = vpop.permute.xlu0 %5093
        %5095 = vrot.lane.b32.xlu0 %v5092, 34
        %v5096 = vpop.permute.xlu0 %5095
        %vm5097 = vcmask 277504
        %v5098 = vsel %vm5097, %v5094, %v5096
        %v5102 = vmul.f32 %v1833, %v5094
        %v5103 = vmul.f32 %v1834, %v5098
        %v5104 = vmul.f32 %v3493, %v5096
        %v5105 = vmul.f32 %v1836, %v5094
        %v5106 = vmul.f32 %v1837, %v5098
        %v5107 = vmul.f32 %v3494, %v5096
        %s5108 = scalar_lea.vmem [#allocation4], 97
        %v5109 = vld [vmem:[%s5108] ss:$8 sm:$0x3]
        %v5111 = vlaneseq
        %v5112 = vshrl.u32 %v5111, 7
        %v5113 = vsub.s32 0, %v5112
        %v5114 = vrot.slane %v5109, %v5113
        %v5115 = vlaneseq
        %v5116 = vshrl.u32 %v5115, 7
        %v5117 = vsub.s32 1, %v5116
        %v5118 = vrot.slane %v5109, %v5117
        %5119 = vrot.lane.b32.xlu0 %v5114, 34
        %v5120 = vpop.permute.xlu0 %5119
        %5121 = vrot.lane.b32.xlu0 %v5118, 34
        %v5122 = vpop.permute.xlu0 %5121
        %v5123 = vsel %vm5097, %v5120, %v5122
        %v5127 = vadd.f32 %v5102, %v5120
        %v5128 = vadd.f32 %v5103, %v5123
        %v5129 = vadd.f32 %v5104, %v5122
        %v5130 = vadd.f32 %v5105, %v5120
        %v5131 = vadd.f32 %v5106, %v5123
        %v5132 = vadd.f32 %v5107, %v5122
        %s5133 = scalar_lea.vmem [#allocation4], 146
        %v5134 = vld [vmem:[%s5133] ss:$8 sm:$0x3]
        %v5136 = vlaneseq
        %v5137 = vshrl.u32 %v5136, 7
        %v5138 = vsub.s32 0, %v5137
        %v5139 = vrot.slane %v5134, %v5138
        %v5140 = vlaneseq
        %v5141 = vshrl.u32 %v5140, 7
        %v5142 = vsub.s32 1, %v5141
        %v5143 = vrot.slane %v5134, %v5142
        %5144 = vrot.lane.b32.xlu0 %v5139, 34
        %v5145 = vpop.permute.xlu0 %5144
        %5146 = vrot.lane.b32.xlu0 %v5143, 34
        %v5147 = vpop.permute.xlu0 %5146
        %v5148 = vsel %vm5097, %v5145, %v5147
        %v5152 = vadd.f32 %v5102, %v5145
        %v5153 = vadd.f32 %v5103, %v5148
        %v5154 = vadd.f32 %v5104, %v5147
        %v5155 = vadd.f32 %v5105, %v5145
        %v5156 = vadd.f32 %v5106, %v5148
        %v5157 = vadd.f32 %v5107, %v5147
        %5164 = vrot.lane.b32.xlu0 %v5127, 60
        %v5165 = vpop.permute.xlu0 %5164
        %5166 = vrot.lane.b32.xlu0 %v5128, 60
        %v5167 = vpop.permute.xlu0 %5166
        %5168 = vrot.lane.b32.xlu0 %v5129, 60
        %v5169 = vpop.permute.xlu0 %5168
        %5170 = vrot.lane.b32.xlu0 %v5130, 60
        %v5171 = vpop.permute.xlu0 %5170
        %5172 = vrot.lane.b32.xlu0 %v5131, 60
        %v5173 = vpop.permute.xlu0 %5172
        %5174 = vrot.lane.b32.xlu0 %v5132, 60
        %v5175 = vpop.permute.xlu0 %5174
        %vm5176 = vcmask 490496
        %v5177 = vsel %vm5176, %v5165, %v5167
        %v5178 = vsel %vm5176, %v5167, %v5169
        %v5179 = vsel %vm5176, %v5171, %v5173
        %v5180 = vsel %vm5176, %v5173, %v5175
        %v5187 = vmax.f32 %v5042, %v5165
        %v5188 = vmax.f32 %v5043, %v5177
        %v5189 = vmax.f32 %v5044, %v5178
        %v5190 = vmax.f32 %v5045, %v5171
        %v5191 = vmax.f32 %v5046, %v5179
        %v5192 = vmax.f32 %v5047, %v5180
        %5199 = vrot.lane.b32.xlu0 %v5152, 60
        %v5200 = vpop.permute.xlu0 %5199
        %5201 = vrot.lane.b32.xlu0 %v5153, 60
        %v5202 = vpop.permute.xlu0 %5201
        %5203 = vrot.lane.b32.xlu0 %v5154, 60
        %v5204 = vpop.permute.xlu0 %5203
        %5205 = vrot.lane.b32.xlu0 %v5155, 60
        %v5206 = vpop.permute.xlu0 %5205
        %5207 = vrot.lane.b32.xlu0 %v5156, 60
        %v5208 = vpop.permute.xlu0 %5207
        %5209 = vrot.lane.b32.xlu0 %v5157, 60
        %v5210 = vpop.permute.xlu0 %5209
        %v5211 = vsel %vm5176, %v5200, %v5202
        %v5212 = vsel %vm5176, %v5202, %v5204
        %v5213 = vsel %vm5176, %v5206, %v5208
        %v5214 = vsel %vm5176, %v5208, %v5210
        %v5221 = vmin.f32 %v5076, %v5200
        %v5222 = vmin.f32 %v5077, %v5211
        %v5223 = vmin.f32 %v5078, %v5212
        %v5224 = vmin.f32 %v5079, %v5206
        %v5225 = vmin.f32 %v5080, %v5213
        %v5226 = vmin.f32 %v5081, %v5214
        %v5227 = vsub.f32 %v5187, %v5221
        %v5228 = vsub.f32 %v5188, %v5222
        %v5229 = vsub.f32 %v5189, %v5223
        %v5230 = vsub.f32 %v5190, %v5224
        %v5231 = vsub.f32 %v5191, %v5225
        %v5232 = vsub.f32 %v5192, %v5226
        %vm5239 = vcmask 1040384
        %v5240 = vrot.slane %v2654, 7
        %v5241 = vrot.slane %v2655, 7
        %v5242 = vrot.slane %v2656, 7
        %v5243 = vrot.slane %v2657, 7
        %v5244 = vsel %vm5239, %v5240, %v5243
        %v5245 = vrot.slane %v2658, 7
        %v5246 = vsel %vm5239, %v5241, %v5245
        %v5247 = vrot.slane %v2659, 7
        %v5248 = vsel %vm5239, %v5242, %v5247
        %5249 = vrot.lane.b32.xlu0 %v5240, 17
        %v5250 = vpop.permute.xlu0 %5249
        %5251 = vrot.lane.b32.xlu0 %v5241, 17
        %v5252 = vpop.permute.xlu0 %5251
        %5253 = vrot.lane.b32.xlu0 %v5242, 17
        %v5254 = vpop.permute.xlu0 %5253
        %5255 = vrot.lane.b32.xlu0 %v5244, 17
        %v5256 = vpop.permute.xlu0 %5255
        %5257 = vrot.lane.b32.xlu0 %v5246, 17
        %v5258 = vpop.permute.xlu0 %5257
        %5259 = vrot.lane.b32.xlu0 %v5248, 17
        %v5260 = vpop.permute.xlu0 %5259
        %v5261 = vsel %vm432, %v5250, %v5252
        %v5262 = vsel %vm432, %v5252, %v5254
        %v5263 = vsel %vm432, %v5256, %v5258
        %v5264 = vsel %vm432, %v5258, %v5260
        %5269 = vst [vmem:[#allocation3] sm:$0xfe] %v5261
        %5270 = vst [vmem:[#allocation3 + $0x8] sm:$0xfe] %v5262
        %5271 = vst [vmem:[#allocation3 + $0x10] sm:$0x1f] %v5263
        %5272 = vst [vmem:[#allocation3 + $0x18] sm:$0x1f] %v5264
        %v5273 = vld [vmem:[#allocation2] sm:$0xff]
        %v5274 = vld [vmem:[#allocation2 + $0x8] sm:$0xff]
        %v5275 = vld [vmem:[#allocation2 + $0x10] sm:$0xff]
        %v5276 = vld [vmem:[#allocation2 + $0x20] sm:$0xf]
        %v5277 = vld [vmem:[#allocation2 + $0x28] sm:$0xf]
        %v5278 = vld [vmem:[#allocation2 + $0x30] sm:$0xf]
        %v5279 = vld [vmem:[%s442] ss:$8 sm:$0x3]
        %v5281 = vlaneseq
        %v5282 = vshrl.u32 %v5281, 7
        %v5283 = vsub.s32 0, %v5282
        %v5284 = vrot.slane %v5279, %v5283
        %v5285 = vlaneseq
        %v5286 = vshrl.u32 %v5285, 7
        %v5287 = vsub.s32 1, %v5286
        %v5288 = vrot.slane %v5279, %v5287
        %5289 = vrot.lane.b32.xlu0 %v5284, 112
        %v5290 = vpop.permute.xlu0 %5289
        %5291 = vrot.lane.b32.xlu0 %v5288, 112
        %v5292 = vpop.permute.xlu0 %5291
        %v5293 = vsel %vm457, %v5290, %v5292
        %v5297 = vmul.f32 %v5273, %v5290
        %v5298 = vmul.f32 %v5274, %v5293
        %v5299 = vmul.f32 %v5275, %v5292
        %v5300 = vmul.f32 %v5276, %v5290
        %v5301 = vmul.f32 %v5277, %v5293
        %v5302 = vmul.f32 %v5278, %v5292
        %v5309 = vrot.slane %v5297, 3
        %v5310 = vrot.slane %v5298, 3
        %v5311 = vrot.slane %v5299, 3
        %v5312 = vrot.slane %v5300, 3
        %v5313 = vsel %vm798, %v5309, %v5312
        %v5314 = vrot.slane %v5301, 3
        %v5315 = vsel %vm798, %v5310, %v5314
        %v5316 = vrot.slane %v5302, 3
        %v5317 = vsel %vm798, %v5311, %v5316
        %5318 = vrot.lane.b32.xlu0 %v5309, 16
        %v5319 = vpop.permute.xlu0 %5318
        %5320 = vrot.lane.b32.xlu0 %v5310, 16
        %v5321 = vpop.permute.xlu0 %5320
        %5322 = vrot.lane.b32.xlu0 %v5311, 16
        %v5323 = vpop.permute.xlu0 %5322
        %5324 = vrot.lane.b32.xlu0 %v5313, 16
        %v5325 = vpop.permute.xlu0 %5324
        %5326 = vrot.lane.b32.xlu0 %v5315, 16
        %v5327 = vpop.permute.xlu0 %5326
        %5328 = vrot.lane.b32.xlu0 %v5317, 16
        %v5329 = vpop.permute.xlu0 %5328
        %5330 = vrot.lane.b32.xlu0 %v5312, 16
        %v5331 = vpop.permute.xlu0 %5330
        %5332 = vrot.lane.b32.xlu0 %v5314, 16
        %v5333 = vpop.permute.xlu0 %5332
        %5334 = vrot.lane.b32.xlu0 %v5316, 16
        %v5335 = vpop.permute.xlu0 %5334
        %v5336 = vsel %vm477, %v5319, %v5321
        %v5337 = vsel %vm477, %v5321, %v5323
        %v5338 = vsel %vm477, %v5325, %v5327
        %v5339 = vsel %vm477, %v5327, %v5329
        %v5340 = vsel %vm477, %v5331, %v5333
        %v5341 = vsel %vm477, %v5333, %v5335
        %5348 = vst [vmem:[#allocation3 + $0x10] sm:$0xe0] %v5336
        %5349 = vst [vmem:[#allocation3 + $0x18] sm:$0xe0] %v5337
        %5350 = vst [vmem:[#allocation3 + $0x20] sm:$0xff] %v5338
        %5351 = vst [vmem:[#allocation3 + $0x28] sm:$0xff] %v5339
        %5352 = vst [vmem:[#allocation3 + $0x30] sm:$0x1] %v5340
        %5353 = vst [vmem:[#allocation3 + $0x38] sm:$0x1] %v5341
        %v5354 = vld [vmem:[#allocation2] sm:$0xff]
        %v5355 = vld [vmem:[#allocation2 + $0x8] sm:$0xff]
        %v5356 = vld [vmem:[#allocation2 + $0x10] sm:$0xff]
        %v5357 = vld [vmem:[#allocation2 + $0x20] sm:$0xf]
        %v5358 = vld [vmem:[#allocation2 + $0x28] sm:$0xf]
        %v5359 = vld [vmem:[#allocation2 + $0x30] sm:$0xf]
        %v5360 = vld [vmem:[%s489] ss:$8 sm:$0x3]
        %v5362 = vlaneseq
        %v5363 = vshrl.u32 %v5362, 7
        %v5364 = vsub.s32 0, %v5363
        %v5365 = vrot.slane %v5360, %v5364
        %v5366 = vlaneseq
        %v5367 = vshrl.u32 %v5366, 7
        %v5368 = vsub.s32 1, %v5367
        %v5369 = vrot.slane %v5360, %v5368
        %5370 = vrot.lane.b32.xlu0 %v5365, 113
        %v5371 = vpop.permute.xlu0 %5370
        %5372 = vrot.lane.b32.xlu0 %v5369, 113
        %v5373 = vpop.permute.xlu0 %5372
        %v5374 = vsel %vm504, %v5371, %v5373
        %v5378 = vmul.f32 %v5354, %v5371
        %v5379 = vmul.f32 %v5355, %v5374
        %v5380 = vmul.f32 %v5356, %v5373
        %v5381 = vmul.f32 %v5357, %v5371
        %v5382 = vmul.f32 %v5358, %v5374
        %v5383 = vmul.f32 %v5359, %v5373
        %v5390 = vrot.slane %v5378, 7
        %v5391 = vrot.slane %v5379, 7
        %v5392 = vrot.slane %v5380, 7
        %v5393 = vrot.slane %v5381, 7
        %v5394 = vsel %vm5239, %v5390, %v5393
        %v5395 = vrot.slane %v5382, 7
        %v5396 = vsel %vm5239, %v5391, %v5395
        %v5397 = vrot.slane %v5383, 7
        %v5398 = vsel %vm5239, %v5392, %v5397
        %5399 = vrot.lane.b32.xlu0 %v5390, 15
        %v5400 = vpop.permute.xlu0 %5399
        %5401 = vrot.lane.b32.xlu0 %v5391, 15
        %v5402 = vpop.permute.xlu0 %5401
        %5403 = vrot.lane.b32.xlu0 %v5392, 15
        %v5404 = vpop.permute.xlu0 %5403
        %5405 = vrot.lane.b32.xlu0 %v5394, 15
        %v5406 = vpop.permute.xlu0 %5405
        %5407 = vrot.lane.b32.xlu0 %v5396, 15
        %v5408 = vpop.permute.xlu0 %5407
        %5409 = vrot.lane.b32.xlu0 %v5398, 15
        %v5410 = vpop.permute.xlu0 %5409
        %v5411 = vsel %vm524, %v5400, %v5402
        %v5412 = vsel %vm524, %v5402, %v5404
        %v5413 = vsel %vm524, %v5406, %v5408
        %v5414 = vsel %vm524, %v5408, %v5410
        %5419 = vst [vmem:[#allocation3 + $0x30] sm:$0xfe] %v5411
        %5420 = vst [vmem:[#allocation3 + $0x38] sm:$0xfe] %v5412
        %5421 = vst [vmem:[#allocation3 + $0x40] sm:$0x1f] %v5413
        %5422 = vst [vmem:[#allocation3 + $0x48] sm:$0x1f] %v5414
        %v5423 = vld [vmem:[#allocation2] sm:$0xff]
        %v5424 = vld [vmem:[#allocation2 + $0x8] sm:$0xff]
        %v5425 = vld [vmem:[#allocation2 + $0x10] sm:$0xff]
        %v5426 = vld [vmem:[#allocation2 + $0x20] sm:$0xf]
        %v5427 = vld [vmem:[#allocation2 + $0x28] sm:$0xf]
        %v5428 = vld [vmem:[#allocation2 + $0x30] sm:$0xf]
        %v5429 = vld [vmem:[%s534] ss:$8 sm:$0x3]
        %v5431 = vlaneseq
        %v5432 = vshrl.u32 %v5431, 7
        %v5433 = vsub.s32 0, %v5432
        %v5434 = vrot.slane %v5429, %v5433
        %v5435 = vlaneseq
        %v5436 = vshrl.u32 %v5435, 7
        %v5437 = vsub.s32 1, %v5436
        %v5438 = vrot.slane %v5429, %v5437
        %5439 = vrot.lane.b32.xlu0 %v5434, 127
        %v5440 = vpop.permute.xlu0 %5439
        %5441 = vrot.lane.b32.xlu0 %v5438, 127
        %v5442 = vpop.permute.xlu0 %5441
        %v5443 = vsel %vm549, %v5440, %v5442
        %v5447 = vmul.f32 %v5423, %v5440
        %v5448 = vmul.f32 %v5424, %v5443
        %v5449 = vmul.f32 %v5425, %v5442
        %v5450 = vmul.f32 %v5426, %v5440
        %v5451 = vmul.f32 %v5427, %v5443
        %v5452 = vmul.f32 %v5428, %v5442
        %v5459 = vrot.slane %v5447, 3
        %v5460 = vrot.slane %v5448, 3
        %v5461 = vrot.slane %v5449, 3
        %v5462 = vrot.slane %v5450, 3
        %v5463 = vsel %vm798, %v5459, %v5462
        %v5464 = vrot.slane %v5451, 3
        %v5465 = vsel %vm798, %v5460, %v5464
        %v5466 = vrot.slane %v5452, 3
        %v5467 = vsel %vm798, %v5461, %v5466
        %5468 = vrot.lane.b32.xlu0 %v5459, 1
        %v5469 = vpop.permute.xlu0 %5468
        %5470 = vrot.lane.b32.xlu0 %v5460, 1
        %v5471 = vpop.permute.xlu0 %5470
        %5472 = vrot.lane.b32.xlu0 %v5461, 1
        %v5473 = vpop.permute.xlu0 %5472
        %5474 = vrot.lane.b32.xlu0 %v5463, 1
        %v5475 = vpop.permute.xlu0 %5474
        %5476 = vrot.lane.b32.xlu0 %v5465, 1
        %v5477 = vpop.permute.xlu0 %5476
        %5478 = vrot.lane.b32.xlu0 %v5467, 1
        %v5479 = vpop.permute.xlu0 %5478
        %5480 = vrot.lane.b32.xlu0 %v5462, 1
        %v5481 = vpop.permute.xlu0 %5480
        %5482 = vrot.lane.b32.xlu0 %v5464, 1
        %v5483 = vpop.permute.xlu0 %5482
        %5484 = vrot.lane.b32.xlu0 %v5466, 1
        %v5485 = vpop.permute.xlu0 %5484
        %v5486 = vsel %vm569, %v5469, %v5471
        %v5487 = vsel %vm569, %v5471, %v5473
        %v5488 = vsel %vm569, %v5475, %v5477
        %v5489 = vsel %vm569, %v5477, %v5479
        %v5490 = vsel %vm569, %v5481, %v5483
        %v5491 = vsel %vm569, %v5483, %v5485
        %5498 = vst [vmem:[#allocation3 + $0x40] sm:$0xe0] %v5486
        %5499 = vst [vmem:[#allocation3 + $0x48] sm:$0xe0] %v5487
        %5500 = vst [vmem:[#allocation3 + $0x50] sm:$0xff] %v5488
        %5501 = vst [vmem:[#allocation3 + $0x58] sm:$0xff] %v5489
        %5502 = vst [vmem:[#allocation3 + $0x60] sm:$0x1] %v5490
        %5503 = vst [vmem:[#allocation3 + $0x68] sm:$0x1] %v5491
        %v5504 = vld [vmem:[#allocation2 + $0x8] sm:$0xff]
        %v5505 = vld [vmem:[#allocation2 + $0x10] sm:$0xff]
        %v5506 = vld [vmem:[#allocation2 + $0x28] sm:$0xf]
        %v5507 = vld [vmem:[#allocation2 + $0x30] sm:$0xf]
        %v5508 = vld [vmem:[%s580] ss:$8 sm:$0x3]
        %v5510 = vlaneseq
        %v5511 = vshrl.u32 %v5510, 7
        %v5512 = vsub.s32 0, %v5511
        %v5513 = vrot.slane %v5508, %v5512
        %v5514 = vlaneseq
        %v5515 = vshrl.u32 %v5514, 7
        %v5516 = vsub.s32 1, %v5515
        %v5517 = vrot.slane %v5508, %v5516
        %v5520 = vmul.f32 %v5504, %v5513
        %v5521 = vmul.f32 %v5505, %v5517
        %v5522 = vmul.f32 %v5506, %v5513
        %v5523 = vmul.f32 %v5507, %v5517
        %v5528 = vrot.slane %v5520, 7
        %v5529 = vrot.slane %v5521, 7
        %v5530 = vrot.slane %v5522, 7
        %v5531 = vsel %vm5239, %v5528, %v5530
        %v5532 = vrot.slane %v5523, 7
        %v5533 = vsel %vm5239, %v5529, %v5532
        %5538 = vst [vmem:[#allocation3 + $0x60] sm:$0xfe] %v5528
        %5539 = vst [vmem:[#allocation3 + $0x68] sm:$0xfe] %v5529
        %5540 = vst [vmem:[#allocation3 + $0x70] sm:$0x1f] %v5531
        %5541 = vst [vmem:[#allocation3 + $0x78] sm:$0x1f] %v5533
        %v5542 = vld [vmem:[#allocation2 + $0x8] sm:$0xff]
        %v5543 = vld [vmem:[#allocation2 + $0x10] sm:$0xff]
        %v5544 = vld [vmem:[#allocation2 + $0x18] sm:$0xff]
        %v5545 = vld [vmem:[#allocation2 + $0x28] sm:$0xf]
        %v5546 = vld [vmem:[#allocation2 + $0x30] sm:$0xf]
        %v5547 = vld [vmem:[#allocation2 + $0x38] sm:$0xf]
        %v5548 = vld [vmem:[%s606] ss:$8 sm:$0x3]
        %v5550 = vlaneseq
        %v5551 = vshrl.u32 %v5550, 7
        %v5552 = vsub.s32 0, %v5551
        %v5553 = vrot.slane %v5548, %v5552
        %v5554 = vlaneseq
        %v5555 = vshrl.u32 %v5554, 7
        %v5556 = vsub.s32 1, %v5555
        %v5557 = vrot.slane %v5548, %v5556
        %5558 = vrot.lane.b32.xlu0 %v5553, 1
        %v5559 = vpop.permute.xlu0 %5558
        %5560 = vrot.lane.b32.xlu0 %v5557, 1
        %v5561 = vpop.permute.xlu0 %5560
        %v5562 = vsel %vm569, %v5559, %v5561
        %v5566 = vmul.f32 %v5542, %v5559
        %v5567 = vmul.f32 %v5543, %v5562
        %v5568 = vmul.f32 %v5544, %v5561
        %v5569 = vmul.f32 %v5545, %v5559
        %v5570 = vmul.f32 %v5546, %v5562
        %v5571 = vmul.f32 %v5547, %v5561
        %v5578 = vrot.slane %v5566, 3
        %v5579 = vrot.slane %v5567, 3
        %v5580 = vrot.slane %v5568, 3
        %v5581 = vrot.slane %v5569, 3
        %v5582 = vsel %vm798, %v5578, %v5581
        %v5583 = vrot.slane %v5570, 3
        %v5584 = vsel %vm798, %v5579, %v5583
        %v5585 = vrot.slane %v5571, 3
        %v5586 = vsel %vm798, %v5580, %v5585
        %5587 = vrot.lane.b32.xlu0 %v5578, 127
        %v5588 = vpop.permute.xlu0 %5587
        %5589 = vrot.lane.b32.xlu0 %v5579, 127
        %v5590 = vpop.permute.xlu0 %5589
        %5591 = vrot.lane.b32.xlu0 %v5580, 127
        %v5592 = vpop.permute.xlu0 %5591
        %5593 = vrot.lane.b32.xlu0 %v5582, 127
        %v5594 = vpop.permute.xlu0 %5593
        %5595 = vrot.lane.b32.xlu0 %v5584, 127
        %v5596 = vpop.permute.xlu0 %5595
        %5597 = vrot.lane.b32.xlu0 %v5586, 127
        %v5598 = vpop.permute.xlu0 %5597
        %5599 = vrot.lane.b32.xlu0 %v5581, 127
        %v5600 = vpop.permute.xlu0 %5599
        %5601 = vrot.lane.b32.xlu0 %v5583, 127
        %v5602 = vpop.permute.xlu0 %5601
        %5603 = vrot.lane.b32.xlu0 %v5585, 127
        %v5604 = vpop.permute.xlu0 %5603
        %v5605 = vsel %vm549, %v5588, %v5590
        %v5606 = vsel %vm549, %v5590, %v5592
        %v5607 = vsel %vm549, %v5594, %v5596
        %v5608 = vsel %vm549, %v5596, %v5598
        %v5609 = vsel %vm549, %v5600, %v5602
        %v5610 = vsel %vm549, %v5602, %v5604
        %5617 = vst [vmem:[#allocation3 + $0x70] sm:$0xe0] %v5605
        %5618 = vst [vmem:[#allocation3 + $0x78] sm:$0xe0] %v5606
        %5619 = vst [vmem:[#allocation3 + $0x80] sm:$0xff] %v5607
        %5620 = vst [vmem:[#allocation3 + $0x88] sm:$0xff] %v5608
        %5621 = vst [vmem:[#allocation3 + $0x90] sm:$0x1] %v5609
        %5622 = vst [vmem:[#allocation3 + $0x98] sm:$0x1] %v5610
        %v5623 = vld [vmem:[#allocation2 + $0x8] sm:$0xff]
        %v5624 = vld [vmem:[#allocation2 + $0x10] sm:$0xff]
        %v5625 = vld [vmem:[#allocation2 + $0x18] sm:$0xff]
        %v5626 = vld [vmem:[#allocation2 + $0x28] sm:$0xf]
        %v5627 = vld [vmem:[#allocation2 + $0x30] sm:$0xf]
        %v5628 = vld [vmem:[#allocation2 + $0x38] sm:$0xf]
        %v5629 = vld [vmem:[%s651] ss:$8 sm:$0x3]
        %v5631 = vlaneseq
        %v5632 = vshrl.u32 %v5631, 7
        %v5633 = vsub.s32 0, %v5632
        %v5634 = vrot.slane %v5629, %v5633
        %v5635 = vlaneseq
        %v5636 = vshrl.u32 %v5635, 7
        %v5637 = vsub.s32 1, %v5636
        %v5638 = vrot.slane %v5629, %v5637
        %5639 = vrot.lane.b32.xlu0 %v5634, 15
        %v5640 = vpop.permute.xlu0 %5639
        %5641 = vrot.lane.b32.xlu0 %v5638, 15
        %v5642 = vpop.permute.xlu0 %5641
        %v5643 = vsel %vm524, %v5640, %v5642
        %v5647 = vmul.f32 %v5623, %v5640
        %v5648 = vmul.f32 %v5624, %v5643
        %v5649 = vmul.f32 %v5625, %v5642
        %v5650 = vmul.f32 %v5626, %v5640
        %v5651 = vmul.f32 %v5627, %v5643
        %v5652 = vmul.f32 %v5628, %v5642
        %v5659 = vrot.slane %v5647, 7
        %v5660 = vrot.slane %v5648, 7
        %v5661 = vrot.slane %v5649, 7
        %v5662 = vrot.slane %v5650, 7
        %v5663 = vsel %vm5239, %v5659, %v5662
        %v5664 = vrot.slane %v5651, 7
        %v5665 = vsel %vm5239, %v5660, %v5664
        %v5666 = vrot.slane %v5652, 7
        %v5667 = vsel %vm5239, %v5661, %v5666
        %5668 = vrot.lane.b32.xlu0 %v5659, 113
        %v5669 = vpop.permute.xlu0 %5668
        %5670 = vrot.lane.b32.xlu0 %v5660, 113
        %v5671 = vpop.permute.xlu0 %5670
        %5672 = vrot.lane.b32.xlu0 %v5661, 113
        %v5673 = vpop.permute.xlu0 %5672
        %5674 = vrot.lane.b32.xlu0 %v5663, 113
        %v5675 = vpop.permute.xlu0 %5674
        %5676 = vrot.lane.b32.xlu0 %v5665, 113
        %v5677 = vpop.permute.xlu0 %5676
        %5678 = vrot.lane.b32.xlu0 %v5667, 113
        %v5679 = vpop.permute.xlu0 %5678
        %v5680 = vsel %vm504, %v5669, %v5671
        %v5681 = vsel %vm504, %v5671, %v5673
        %v5682 = vsel %vm504, %v5675, %v5677
        %v5683 = vsel %vm504, %v5677, %v5679
        %5688 = vst [vmem:[#allocation3 + $0x90] sm:$0xfe] %v5680
        %5689 = vst [vmem:[#allocation3 + $0x98] sm:$0xfe] %v5681
        %5690 = vst [vmem:[#allocation3 + $0xa0] sm:$0x1f] %v5682
        %5691 = vst [vmem:[#allocation3 + $0xa8] sm:$0x1f] %v5683
        %v5692 = vld [vmem:[#allocation2 + $0x8] sm:$0xff]
        %v5693 = vld [vmem:[#allocation2 + $0x10] sm:$0xff]
        %v5694 = vld [vmem:[#allocation2 + $0x18] sm:$0xff]
        %v5695 = vld [vmem:[#allocation2 + $0x28] sm:$0xf]
        %v5696 = vld [vmem:[#allocation2 + $0x30] sm:$0xf]
        %v5697 = vld [vmem:[#allocation2 + $0x38] sm:$0xf]
        %v5698 = vld [vmem:[%s694] ss:$8 sm:$0x3]
        %v5700 = vlaneseq
        %v5701 = vshrl.u32 %v5700, 7
        %v5702 = vsub.s32 0, %v5701
        %v5703 = vrot.slane %v5698, %v5702
        %v5704 = vlaneseq
        %v5705 = vshrl.u32 %v5704, 7
        %v5706 = vsub.s32 1, %v5705
        %v5707 = vrot.slane %v5698, %v5706
        %5708 = vrot.lane.b32.xlu0 %v5703, 16
        %v5709 = vpop.permute.xlu0 %5708
        %5710 = vrot.lane.b32.xlu0 %v5707, 16
        %v5711 = vpop.permute.xlu0 %5710
        %v5712 = vsel %vm477, %v5709, %v5711
        %v5716 = vmul.f32 %v5692, %v5709
        %v5717 = vmul.f32 %v5693, %v5712
        %v5718 = vmul.f32 %v5694, %v5711
        %v5719 = vmul.f32 %v5695, %v5709
        %v5720 = vmul.f32 %v5696, %v5712
        %v5721 = vmul.f32 %v5697, %v5711
        %v5728 = vrot.slane %v5716, 3
        %v5729 = vrot.slane %v5717, 3
        %v5730 = vrot.slane %v5718, 3
        %v5731 = vrot.slane %v5719, 3
        %v5732 = vsel %vm798, %v5728, %v5731
        %v5733 = vrot.slane %v5720, 3
        %v5734 = vsel %vm798, %v5729, %v5733
        %v5735 = vrot.slane %v5721, 3
        %v5736 = vsel %vm798, %v5730, %v5735
        %5737 = vrot.lane.b32.xlu0 %v5728, 112
        %v5738 = vpop.permute.xlu0 %5737
        %5739 = vrot.lane.b32.xlu0 %v5729, 112
        %v5740 = vpop.permute.xlu0 %5739
        %5741 = vrot.lane.b32.xlu0 %v5730, 112
        %v5742 = vpop.permute.xlu0 %5741
        %5743 = vrot.lane.b32.xlu0 %v5732, 112
        %v5744 = vpop.permute.xlu0 %5743
        %5745 = vrot.lane.b32.xlu0 %v5734, 112
        %v5746 = vpop.permute.xlu0 %5745
        %5747 = vrot.lane.b32.xlu0 %v5736, 112
        %v5748 = vpop.permute.xlu0 %5747
        %5749 = vrot.lane.b32.xlu0 %v5731, 112
        %v5750 = vpop.permute.xlu0 %5749
        %5751 = vrot.lane.b32.xlu0 %v5733, 112
        %v5752 = vpop.permute.xlu0 %5751
        %5753 = vrot.lane.b32.xlu0 %v5735, 112
        %v5754 = vpop.permute.xlu0 %5753
        %v5755 = vsel %vm457, %v5738, %v5740
        %v5756 = vsel %vm457, %v5740, %v5742
        %v5757 = vsel %vm457, %v5744, %v5746
        %v5758 = vsel %vm457, %v5746, %v5748
        %v5759 = vsel %vm457, %v5750, %v5752
        %v5760 = vsel %vm457, %v5752, %v5754
        %5767 = vst [vmem:[#allocation3 + $0xa0] sm:$0xe0] %v5755
        %5768 = vst [vmem:[#allocation3 + $0xa8] sm:$0xe0] %v5756
        %5769 = vst [vmem:[#allocation3 + $0xb0] sm:$0xff] %v5757
        %5770 = vst [vmem:[#allocation3 + $0xb8] sm:$0xff] %v5758
        %5771 = vst [vmem:[#allocation3 + $0xc0] sm:$0x1] %v5759
        %5772 = vst [vmem:[#allocation3 + $0xc8] sm:$0x1] %v5760
        %v5773 = vld [vmem:[#allocation2 + $0x8] sm:$0xff]
        %v5774 = vld [vmem:[#allocation2 + $0x10] sm:$0xff]
        %v5775 = vld [vmem:[#allocation2 + $0x18] sm:$0xff]
        %v5776 = vld [vmem:[#allocation2 + $0x28] sm:$0xf]
        %v5777 = vld [vmem:[#allocation2 + $0x30] sm:$0xf]
        %v5778 = vld [vmem:[#allocation2 + $0x38] sm:$0xf]
        %v5779 = vld [vmem:[%s739] ss:$8 sm:$0x3]
        %v5781 = vlaneseq
        %v5782 = vshrl.u32 %v5781, 7
        %v5783 = vsub.s32 0, %v5782
        %v5784 = vrot.slane %v5779, %v5783
        %v5785 = vlaneseq
        %v5786 = vshrl.u32 %v5785, 7
        %v5787 = vsub.s32 1, %v5786
        %v5788 = vrot.slane %v5779, %v5787
        %5789 = vrot.lane.b32.xlu0 %v5784, 17
        %v5790 = vpop.permute.xlu0 %5789
        %5791 = vrot.lane.b32.xlu0 %v5788, 17
        %v5792 = vpop.permute.xlu0 %5791
        %v5793 = vsel %vm432, %v5790, %v5792
        %v5797 = vmul.f32 %v5773, %v5790
        %v5798 = vmul.f32 %v5774, %v5793
        %v5799 = vmul.f32 %v5775, %v5792
        %v5800 = vmul.f32 %v5776, %v5790
        %v5801 = vmul.f32 %v5777, %v5793
        %v5802 = vmul.f32 %v5778, %v5792
        %v5809 = vrot.slane %v5797, 7
        %v5810 = vrot.slane %v5798, 7
        %v5811 = vrot.slane %v5799, 7
        %v5812 = vrot.slane %v5800, 7
        %v5813 = vsel %vm5239, %v5809, %v5812
        %v5814 = vrot.slane %v5801, 7
        %v5815 = vsel %vm5239, %v5810, %v5814
        %v5816 = vrot.slane %v5802, 7
        %v5817 = vsel %vm5239, %v5811, %v5816
        %5818 = vrot.lane.b32.xlu0 %v5809, 111
        %v5819 = vpop.permute.xlu0 %5818
        %5820 = vrot.lane.b32.xlu0 %v5810, 111
        %v5821 = vpop.permute.xlu0 %5820
        %5822 = vrot.lane.b32.xlu0 %v5811, 111
        %v5823 = vpop.permute.xlu0 %5822
        %5824 = vrot.lane.b32.xlu0 %v5813, 111
        %v5825 = vpop.permute.xlu0 %5824
        %5826 = vrot.lane.b32.xlu0 %v5815, 111
        %v5827 = vpop.permute.xlu0 %5826
        %5828 = vrot.lane.b32.xlu0 %v5817, 111
        %v5829 = vpop.permute.xlu0 %5828
        %v5830 = vsel %vm412, %v5819, %v5821
        %v5831 = vsel %vm412, %v5821, %v5823
        %v5832 = vsel %vm412, %v5825, %v5827
        %v5833 = vsel %vm412, %v5827, %v5829
        %5838 = vst [vmem:[#allocation3 + $0xc0] sm:$0xfe] %v5830
        %5839 = vst [vmem:[#allocation3 + $0xc8] sm:$0xfe] %v5831
        %5840 = vst [vmem:[#allocation3 + $0xd0] sm:$0x1f] %v5832
        %5841 = vst [vmem:[#allocation3 + $0xd8] sm:$0x1f] %v5833
        %v5842 = vld [vmem:[%s5] sm:$0xff]
        %v5843 = vld [vmem:[%s5 + $0x8] sm:$0xff]
        %v5844 = vld [vmem:[#allocation3] sm:$0xff]
        %v5845 = vld [vmem:[#allocation3 + $0x8] sm:$0xff]
        %v5846 = vld [vmem:[#allocation3 + $0x10] sm:$0xff]
        %v5847 = vld [vmem:[#allocation3 + $0x18] sm:$0xff]
        %v5848 = vld [vmem:[#allocation3 + $0x20] sm:$0xff]
        %v5849 = vld [vmem:[#allocation3 + $0x28] sm:$0xff]
        %v5850 = vld [vmem:[#allocation3 + $0x30] sm:$0xff]
        %v5851 = vld [vmem:[#allocation3 + $0x38] sm:$0xff]
        %v5852 = vld [vmem:[#allocation3 + $0x40] sm:$0xff]
        %v5853 = vld [vmem:[#allocation3 + $0x48] sm:$0xff]
        %v5854 = vld [vmem:[#allocation3 + $0x50] sm:$0xff]
        %v5855 = vld [vmem:[#allocation3 + $0x58] sm:$0xff]
        %v5856 = vld [vmem:[#allocation3 + $0x60] sm:$0xff]
        %v5857 = vld [vmem:[#allocation3 + $0x68] sm:$0xff]
        %v5858 = vld [vmem:[#allocation3 + $0x70] sm:$0xff]
        %v5859 = vld [vmem:[#allocation3 + $0x78] sm:$0xff]
        %v5860 = vld [vmem:[#allocation3 + $0x80] sm:$0xff]
        %v5861 = vld [vmem:[#allocation3 + $0x88] sm:$0xff]
        %v5862 = vld [vmem:[#allocation3 + $0x90] sm:$0xff]
        %v5863 = vld [vmem:[#allocation3 + $0x98] sm:$0xff]
        %v5864 = vld [vmem:[#allocation3 + $0xa0] sm:$0xff]
        %v5865 = vld [vmem:[#allocation3 + $0xa8] sm:$0xff]
        %v5866 = vld [vmem:[#allocation3 + $0xb0] sm:$0xff]
        %v5867 = vld [vmem:[#allocation3 + $0xb8] sm:$0xff]
        %v5868 = vld [vmem:[#allocation3 + $0xc0] sm:$0xff]
        %v5869 = vld [vmem:[#allocation3 + $0xc8] sm:$0xff]
        %v5870 = vld [vmem:[#allocation3 + $0xd0] sm:$0x1f]
        %v5871 = vld [vmem:[#allocation3 + $0xd8] sm:$0x1f]
        %v5873 = vsel %vm3012, %v5842, 0
        %v5876 = vsel %vm3012, %v5843, 0
        %v5879 = vsel %vm798, %v5870, 0
        %v5882 = vsel %vm798, %v5871, 0
        %5884 = vmatprep.subr.mxu0 %v5845
        %5885 = vmatpush1.msra.mxu0 %v5844
        %5886 = vmatprep.subr.mxu0 %v5847
        %5887 = vmatpush1.msra.mxu0 %v5846
        %5888 = vmatprep.subr.mxu0 %v5849
        %5889 = vmatpush1.msra.mxu0 %v5848
        %5890 = vmatprep.subr.mxu0 %v5851
        %5891 = vmatpush1.msra.mxu0 %v5850
        %5892 = vmatprep.subr.mxu0 %v5853
        %5893 = vmatpush1.msra.mxu0 %v5852
        %5894 = vmatprep.subr.mxu0 %v5855
        %5895 = vmatpush1.msra.mxu0 %v5854
        %5896 = vmatprep.subr.mxu0 %v5857
        %5897 = vmatpush1.msra.mxu0 %v5856
        %5898 = vmatprep.subr.mxu0 %v5859
        %5899 = vmatpush1.msra.mxu0 %v5858
        %5900 = vmatprep.subr.mxu0 %v5861
        %5901 = vmatpush1.msra.mxu0 %v5860
        %5902 = vmatprep.subr.mxu0 %v5863
        %5903 = vmatpush1.msra.mxu0 %v5862
        %5904 = vmatprep.subr.mxu0 %v5865
        %5905 = vmatpush1.msra.mxu0 %v5864
        %5906 = vmatprep.subr.mxu0 %v5867
        %5907 = vmatpush1.msra.mxu0 %v5866
        %5908 = vmatprep.subr.mxu0 %v5869
        %5909 = vmatpush1.msra.mxu0 %v5868
        %5910 = vmatprep.subr.mxu0 %v5882
        %5911 = vmatpush1.msra.mxu0 %v5879
        %5912 = vmatprep.subr.mxu0 0.0
        %5913 = vmatpush1.msra.mxu0 0.0
        %5914 = vmatprep.subr.mxu0 0.0
        %5915 = vmatpush1.msra.mxu0 0.0
        %5916 = vmatprep.subr.mxu0 0.0
        %5917 = vmatpush1.msra.mxu0 0.0
        %5918 = vmatprep.subr.mxu0 0.0
        %5919 = vmatpush1.msra.mxu0 0.0
        %5920 = vmatprep.subr.mxu0 0.0
        %5921 = vmatpush1.msra.mxu0 0.0
        %5922 = vmatprep.subr.mxu0 0.0
        %5923 = vmatpush1.msra.mxu0 0.0
        %5924 = vmatprep.subr.mxu0 0.0
        %5925 = vmatpush1.msra.mxu0 0.0
        %5926 = vmatprep.subr.mxu0 0.0
        %5927 = vmatpush1.msra.mxu0 0.0
        %5928 = vmatprep.subr.mxu0 0.0
        %5929 = vmatpush1.msra.mxu0 0.0
        %5930 = vmatprep.subr.mxu0 0.0
        %5931 = vmatpush1.msra.mxu0 0.0
        %5932 = vmatprep.subr.mxu0 0.0
        %5933 = vmatpush1.msra.mxu0 0.0
        %5934 = vmatprep.subr.mxu0 0.0
        %5935 = vmatpush1.msra.mxu0 0.0
        %5936 = vmatprep.subr.mxu0 0.0
        %5937 = vmatpush1.msra.mxu0 0.0
        %5938 = vmatprep.subr.mxu0 0.0
        %5939 = vmatpush1.msra.mxu0 0.0
        %5940 = vmatprep.subr.mxu0 0.0
        %5941 = vmatpush1.msra.mxu0 0.0
        %5942 = vmatprep.subr.mxu0 0.0
        %5943 = vmatpush1.msra.mxu0 0.0
        %5944 = vmatprep.subr.mxu0 0.0
        %5945 = vmatpush1.msra.mxu0 0.0
        %5946 = vmatprep.subr.mxu0 0.0
        %5947 = vmatpush1.msra.mxu0 0.0
        %5948 = vmatprep.mubr.f32.mxu0 0.0
        %5949 = vmatmul.mubr.f32.gmra.mrb[0].mxu0 %v5873
        %v5950 = vpop.f32.mrb[0].mxu0
        %v5951 = vadd.f32 0.0, %v5950
        %v5952 = vpop.f32.mrb[0].mxu0
        %v5953 = vadd.f32 0.0, %v5952
        %5954 = vmatprep.mubr.f32.mxu0 0.0
        %5955 = vmatmul.mubr.f32.gmra.mrb[0].mxu0 %v5876
        %v5956 = vpop.f32.mrb[0].mxu0
        %v5957 = vadd.f32 0.0, %v5956
        %v5958 = vpop.f32.mrb[0].mxu0
        %v5959 = vadd.f32 0.0, %v5958
        %5960 = vdwg.mxu0
        %5961 = vst [vmem:[#allocation2 + $0x8] sm:$0xf] %v5951
        %5962 = vst [vmem:[#allocation2 + $0x10] sm:$0xf] %v5953
        %v5963 = vld [vmem:[#allocation2] sm:$0xf]
        %v5964 = vld [vmem:[#allocation2 + $0x8] sm:$0xf]
        %v5965 = vld [vmem:[#allocation2 + $0x10] sm:$0xf]
        %v5966 = vld [vmem:[%s397] ss:$8 sm:$0x3]
        %v5968 = vlaneseq
        %v5969 = vshrl.u32 %v5968, 7
        %v5970 = vsub.s32 0, %v5969
        %v5971 = vrot.slane %v5966, %v5970
        %v5972 = vlaneseq
        %v5973 = vshrl.u32 %v5972, 7
        %v5974 = vsub.s32 1, %v5973
        %v5975 = vrot.slane %v5966, %v5974
        %5976 = vrot.lane.b32.xlu0 %v5971, 111
        %v5977 = vpop.permute.xlu0 %5976
        %5978 = vrot.lane.b32.xlu0 %v5975, 111
        %v5979 = vpop.permute.xlu0 %5978
        %v5980 = vsel %vm412, %v5977, %v5979
        %v5984 = vmul.f32 %v5963, %v5977
        %v5985 = vmul.f32 %v5964, %v5980
        %v5986 = vmul.f32 %v5965, %v5979
        %v5990 = vrot.slane %v5984, 7
        %v5991 = vrot.slane %v5985, 7
        %v5992 = vrot.slane %v5986, 7
        %5993 = vrot.lane.b32.xlu0 %v5990, 17
        %v5994 = vpop.permute.xlu0 %5993
        %5995 = vrot.lane.b32.xlu0 %v5991, 17
        %v5996 = vpop.permute.xlu0 %5995
        %5997 = vrot.lane.b32.xlu0 %v5992, 17
        %v5998 = vpop.permute.xlu0 %5997
        %v5999 = vsel %vm432, %v5994, %v5996
        %v6000 = vsel %vm432, %v5996, %v5998
        %6003 = vst [vmem:[#allocation3] sm:$0x1e] %v5999
        %6004 = vst [vmem:[#allocation3 + $0x8] sm:$0x1e] %v6000
        %v6005 = vld [vmem:[#allocation2] sm:$0xf]
        %v6006 = vld [vmem:[#allocation2 + $0x8] sm:$0xf]
        %v6007 = vld [vmem:[#allocation2 + $0x10] sm:$0xf]
        %v6008 = vld [vmem:[%s442] ss:$8 sm:$0x3]
        %v6010 = vlaneseq
        %v6011 = vshrl.u32 %v6010, 7
        %v6012 = vsub.s32 0, %v6011
        %v6013 = vrot.slane %v6008, %v6012
        %v6014 = vlaneseq
        %v6015 = vshrl.u32 %v6014, 7
        %v6016 = vsub.s32 1, %v6015
        %v6017 = vrot.slane %v6008, %v6016
        %6018 = vrot.lane.b32.xlu0 %v6013, 112
        %v6019 = vpop.permute.xlu0 %6018
        %6020 = vrot.lane.b32.xlu0 %v6017, 112
        %v6021 = vpop.permute.xlu0 %6020
        %v6022 = vsel %vm457, %v6019, %v6021
        %v6026 = vmul.f32 %v6005, %v6019
        %v6027 = vmul.f32 %v6006, %v6022
        %v6028 = vmul.f32 %v6007, %v6021
        %v6032 = vrot.slane %v6026, 3
        %v6033 = vrot.slane %v6027, 3
        %v6034 = vrot.slane %v6028, 3
        %6035 = vrot.lane.b32.xlu0 %v6032, 16
        %v6036 = vpop.permute.xlu0 %6035
        %6037 = vrot.lane.b32.xlu0 %v6033, 16
        %v6038 = vpop.permute.xlu0 %6037
        %6039 = vrot.lane.b32.xlu0 %v6034, 16
        %v6040 = vpop.permute.xlu0 %6039
        %v6041 = vsel %vm477, %v6036, %v6038
        %v6042 = vsel %vm477, %v6038, %v6040
        %6045 = vst [vmem:[#allocation3] sm:$0xe0] %v6041
        %6046 = vst [vmem:[#allocation3 + $0x8] sm:$0xe0] %v6042
        %6047 = vst [vmem:[#allocation3 + $0x10] sm:$0x1] %v6041
        %6048 = vst [vmem:[#allocation3 + $0x18] sm:$0x1] %v6042
        %v6049 = vld [vmem:[#allocation2] sm:$0xf]
        %v6050 = vld [vmem:[#allocation2 + $0x8] sm:$0xf]
        %v6051 = vld [vmem:[#allocation2 + $0x10] sm:$0xf]
        %v6052 = vld [vmem:[%s489] ss:$8 sm:$0x3]
        %v6054 = vlaneseq
        %v6055 = vshrl.u32 %v6054, 7
        %v6056 = vsub.s32 0, %v6055
        %v6057 = vrot.slane %v6052, %v6056
        %v6058 = vlaneseq
        %v6059 = vshrl.u32 %v6058, 7
        %v6060 = vsub.s32 1, %v6059
        %v6061 = vrot.slane %v6052, %v6060
        %6062 = vrot.lane.b32.xlu0 %v6057, 113
        %v6063 = vpop.permute.xlu0 %6062
        %6064 = vrot.lane.b32.xlu0 %v6061, 113
        %v6065 = vpop.permute.xlu0 %6064
        %v6066 = vsel %vm504, %v6063, %v6065
        %v6070 = vmul.f32 %v6049, %v6063
        %v6071 = vmul.f32 %v6050, %v6066
        %v6072 = vmul.f32 %v6051, %v6065
        %v6076 = vrot.slane %v6070, 7
        %v6077 = vrot.slane %v6071, 7
        %v6078 = vrot.slane %v6072, 7
        %6079 = vrot.lane.b32.xlu0 %v6076, 15
        %v6080 = vpop.permute.xlu0 %6079
        %6081 = vrot.lane.b32.xlu0 %v6077, 15
        %v6082 = vpop.permute.xlu0 %6081
        %6083 = vrot.lane.b32.xlu0 %v6078, 15
        %v6084 = vpop.permute.xlu0 %6083
        %v6085 = vsel %vm524, %v6080, %v6082
        %v6086 = vsel %vm524, %v6082, %v6084
        %6089 = vst [vmem:[#allocation3 + $0x10] sm:$0x1e] %v6085
        %6090 = vst [vmem:[#allocation3 + $0x18] sm:$0x1e] %v6086
        %v6091 = vld [vmem:[#allocation2] sm:$0xf]
        %v6092 = vld [vmem:[#allocation2 + $0x8] sm:$0xf]
        %v6093 = vld [vmem:[#allocation2 + $0x10] sm:$0xf]
        %v6094 = vld [vmem:[%s534] ss:$8 sm:$0x3]
        %v6096 = vlaneseq
        %v6097 = vshrl.u32 %v6096, 7
        %v6098 = vsub.s32 0, %v6097
        %v6099 = vrot.slane %v6094, %v6098
        %v6100 = vlaneseq
        %v6101 = vshrl.u32 %v6100, 7
        %v6102 = vsub.s32 1, %v6101
        %v6103 = vrot.slane %v6094, %v6102
        %6104 = vrot.lane.b32.xlu0 %v6099, 127
        %v6105 = vpop.permute.xlu0 %6104
        %6106 = vrot.lane.b32.xlu0 %v6103, 127
        %v6107 = vpop.permute.xlu0 %6106
        %v6108 = vsel %vm549, %v6105, %v6107
        %v6112 = vmul.f32 %v6091, %v6105
        %v6113 = vmul.f32 %v6092, %v6108
        %v6114 = vmul.f32 %v6093, %v6107
        %v6118 = vrot.slane %v6112, 3
        %v6119 = vrot.slane %v6113, 3
        %v6120 = vrot.slane %v6114, 3
        %6121 = vrot.lane.b32.xlu0 %v6118, 1
        %v6122 = vpop.permute.xlu0 %6121
        %6123 = vrot.lane.b32.xlu0 %v6119, 1
        %v6124 = vpop.permute.xlu0 %6123
        %6125 = vrot.lane.b32.xlu0 %v6120, 1
        %v6126 = vpop.permute.xlu0 %6125
        %v6127 = vsel %vm569, %v6122, %v6124
        %v6128 = vsel %vm569, %v6124, %v6126
        %6131 = vst [vmem:[#allocation3 + $0x10] sm:$0xe0] %v6127
        %6132 = vst [vmem:[#allocation3 + $0x18] sm:$0xe0] %v6128
        %6133 = vst [vmem:[#allocation3 + $0x20] sm:$0x1] %v6127
        %6134 = vst [vmem:[#allocation3 + $0x28] sm:$0x1] %v6128
        %v6135 = vld [vmem:[#allocation2 + $0x8] sm:$0xf]
        %v6136 = vld [vmem:[#allocation2 + $0x10] sm:$0xf]
        %v6137 = vld [vmem:[%s580] ss:$8 sm:$0x3]
        %v6139 = vlaneseq
        %v6140 = vshrl.u32 %v6139, 7
        %v6141 = vsub.s32 0, %v6140
        %v6142 = vrot.slane %v6137, %v6141
        %v6143 = vlaneseq
        %v6144 = vshrl.u32 %v6143, 7
        %v6145 = vsub.s32 1, %v6144
        %v6146 = vrot.slane %v6137, %v6145
        %v6149 = vmul.f32 %v6135, %v6142
        %v6150 = vmul.f32 %v6136, %v6146
        %v6153 = vrot.slane %v6149, 7
        %v6154 = vrot.slane %v6150, 7
        %6157 = vst [vmem:[#allocation3 + $0x20] sm:$0x1e] %v6153
        %6158 = vst [vmem:[#allocation3 + $0x28] sm:$0x1e] %v6154
        %v6159 = vld [vmem:[#allocation2 + $0x8] sm:$0xf]
        %v6160 = vld [vmem:[#allocation2 + $0x10] sm:$0xf]
        %v6161 = vld [vmem:[#allocation2 + $0x18] sm:$0xf]
        %v6162 = vld [vmem:[%s606] ss:$8 sm:$0x3]
        %v6164 = vlaneseq
        %v6165 = vshrl.u32 %v6164, 7
        %v6166 = vsub.s32 0, %v6165
        %v6167 = vrot.slane %v6162, %v6166
        %v6168 = vlaneseq
        %v6169 = vshrl.u32 %v6168, 7
        %v6170 = vsub.s32 1, %v6169
        %v6171 = vrot.slane %v6162, %v6170
        %6172 = vrot.lane.b32.xlu0 %v6167, 1
        %v6173 = vpop.permute.xlu0 %6172
        %6174 = vrot.lane.b32.xlu0 %v6171, 1
        %v6175 = vpop.permute.xlu0 %6174
        %v6176 = vsel %vm569, %v6173, %v6175
        %v6180 = vmul.f32 %v6159, %v6173
        %v6181 = vmul.f32 %v6160, %v6176
        %v6182 = vmul.f32 %v6161, %v6175
        %v6186 = vrot.slane %v6180, 3
        %v6187 = vrot.slane %v6181, 3
        %v6188 = vrot.slane %v6182, 3
        %6189 = vrot.lane.b32.xlu0 %v6186, 127
        %v6190 = vpop.permute.xlu0 %6189
        %6191 = vrot.lane.b32.xlu0 %v6187, 127
        %v6192 = vpop.permute.xlu0 %6191
        %6193 = vrot.lane.b32.xlu0 %v6188, 127
        %v6194 = vpop.permute.xlu0 %6193
        %v6195 = vsel %vm549, %v6190, %v6192
        %v6196 = vsel %vm549, %v6192, %v6194
        %6199 = vst [vmem:[#allocation3 + $0x20] sm:$0xe0] %v6195
        %6200 = vst [vmem:[#allocation3 + $0x28] sm:$0xe0] %v6196
        %6201 = vst [vmem:[#allocation3 + $0x30] sm:$0x1] %v6195
        %6202 = vst [vmem:[#allocation3 + $0x38] sm:$0x1] %v6196
        %v6203 = vld [vmem:[#allocation2 + $0x8] sm:$0xf]
        %v6204 = vld [vmem:[#allocation2 + $0x10] sm:$0xf]
        %v6205 = vld [vmem:[#allocation2 + $0x18] sm:$0xf]
        %v6206 = vld [vmem:[%s651] ss:$8 sm:$0x3]
        %v6208 = vlaneseq
        %v6209 = vshrl.u32 %v6208, 7
        %v6210 = vsub.s32 0, %v6209
        %v6211 = vrot.slane %v6206, %v6210
        %v6212 = vlaneseq
        %v6213 = vshrl.u32 %v6212, 7
        %v6214 = vsub.s32 1, %v6213
        %v6215 = vrot.slane %v6206, %v6214
        %6216 = vrot.lane.b32.xlu0 %v6211, 15
        %v6217 = vpop.permute.xlu0 %6216
        %6218 = vrot.lane.b32.xlu0 %v6215, 15
        %v6219 = vpop.permute.xlu0 %6218
        %v6220 = vsel %vm524, %v6217, %v6219
        %v6224 = vmul.f32 %v6203, %v6217
        %v6225 = vmul.f32 %v6204, %v6220
        %v6226 = vmul.f32 %v6205, %v6219
        %v6230 = vrot.slane %v6224, 7
        %v6231 = vrot.slane %v6225, 7
        %v6232 = vrot.slane %v6226, 7
        %6233 = vrot.lane.b32.xlu0 %v6230, 113
        %v6234 = vpop.permute.xlu0 %6233
        %6235 = vrot.lane.b32.xlu0 %v6231, 113
        %v6236 = vpop.permute.xlu0 %6235
        %6237 = vrot.lane.b32.xlu0 %v6232, 113
        %v6238 = vpop.permute.xlu0 %6237
        %v6239 = vsel %vm504, %v6234, %v6236
        %v6240 = vsel %vm504, %v6236, %v6238
        %6243 = vst [vmem:[#allocation3 + $0x30] sm:$0x1e] %v6239
        %6244 = vst [vmem:[#allocation3 + $0x38] sm:$0x1e] %v6240
        %v6245 = vld [vmem:[#allocation2 + $0x8] sm:$0xf]
        %v6246 = vld [vmem:[#allocation2 + $0x10] sm:$0xf]
        %v6247 = vld [vmem:[#allocation2 + $0x18] sm:$0xf]
        %v6248 = vld [vmem:[%s694] ss:$8 sm:$0x3]
        %v6250 = vlaneseq
        %v6251 = vshrl.u32 %v6250, 7
        %v6252 = vsub.s32 0, %v6251
        %v6253 = vrot.slane %v6248, %v6252
        %v6254 = vlaneseq
        %v6255 = vshrl.u32 %v6254, 7
        %v6256 = vsub.s32 1, %v6255
        %v6257 = vrot.slane %v6248, %v6256
        %6258 = vrot.lane.b32.xlu0 %v6253, 16
        %v6259 = vpop.permute.xlu0 %6258
        %6260 = vrot.lane.b32.xlu0 %v6257, 16
        %v6261 = vpop.permute.xlu0 %6260
        %v6262 = vsel %vm477, %v6259, %v6261
        %v6266 = vmul.f32 %v6245, %v6259
        %v6267 = vmul.f32 %v6246, %v6262
        %v6268 = vmul.f32 %v6247, %v6261
        %v6272 = vrot.slane %v6266, 3
        %v6273 = vrot.slane %v6267, 3
        %v6274 = vrot.slane %v6268, 3
        %6275 = vrot.lane.b32.xlu0 %v6272, 112
        %v6276 = vpop.permute.xlu0 %6275
        %6277 = vrot.lane.b32.xlu0 %v6273, 112
        %v6278 = vpop.permute.xlu0 %6277
        %6279 = vrot.lane.b32.xlu0 %v6274, 112
        %v6280 = vpop.permute.xlu0 %6279
        %v6281 = vsel %vm457, %v6276, %v6278
        %v6282 = vsel %vm457, %v6278, %v6280
        %6285 = vst [vmem:[#allocation3 + $0x30] sm:$0xe0] %v6281
        %6286 = vst [vmem:[#allocation3 + $0x38] sm:$0xe0] %v6282
        %6287 = vst [vmem:[#allocation3 + $0x40] sm:$0x1] %v6281
        %6288 = vst [vmem:[#allocation3 + $0x48] sm:$0x1] %v6282
        %v6289 = vld [vmem:[#allocation2 + $0x8] sm:$0xf]
        %v6290 = vld [vmem:[#allocation2 + $0x10] sm:$0xf]
        %v6291 = vld [vmem:[#allocation2 + $0x18] sm:$0xf]
        %v6292 = vld [vmem:[%s739] ss:$8 sm:$0x3]
        %v6294 = vlaneseq
        %v6295 = vshrl.u32 %v6294, 7
        %v6296 = vsub.s32 0, %v6295
        %v6297 = vrot.slane %v6292, %v6296
        %v6298 = vlaneseq
        %v6299 = vshrl.u32 %v6298, 7
        %v6300 = vsub.s32 1, %v6299
        %v6301 = vrot.slane %v6292, %v6300
        %6302 = vrot.lane.b32.xlu0 %v6297, 17
        %v6303 = vpop.permute.xlu0 %6302
        %6304 = vrot.lane.b32.xlu0 %v6301, 17
        %v6305 = vpop.permute.xlu0 %6304
        %v6306 = vsel %vm432, %v6303, %v6305
        %v6310 = vmul.f32 %v6289, %v6303
        %v6311 = vmul.f32 %v6290, %v6306
        %v6312 = vmul.f32 %v6291, %v6305
        %v6316 = vrot.slane %v6310, 7
        %v6317 = vrot.slane %v6311, 7
        %v6318 = vrot.slane %v6312, 7
        %6319 = vrot.lane.b32.xlu0 %v6316, 111
        %v6320 = vpop.permute.xlu0 %6319
        %6321 = vrot.lane.b32.xlu0 %v6317, 111
        %v6322 = vpop.permute.xlu0 %6321
        %6323 = vrot.lane.b32.xlu0 %v6318, 111
        %v6324 = vpop.permute.xlu0 %6323
        %v6325 = vsel %vm412, %v6320, %v6322
        %v6326 = vsel %vm412, %v6322, %v6324
        %6329 = vst [vmem:[#allocation3 + $0x40] sm:$0x1e] %v6325
        %6330 = vst [vmem:[#allocation3 + $0x48] sm:$0x1e] %v6326
        %v6331 = vld [vmem:[%s6] sm:$0xf]
        %v6332 = vld [vmem:[#allocation3] sm:$0xff]
        %v6333 = vld [vmem:[#allocation3 + $0x8] sm:$0xff]
        %v6334 = vld [vmem:[#allocation3 + $0x10] sm:$0xff]
        %v6335 = vld [vmem:[#allocation3 + $0x18] sm:$0xff]
        %v6336 = vld [vmem:[#allocation3 + $0x20] sm:$0xff]
        %v6337 = vld [vmem:[#allocation3 + $0x28] sm:$0xff]
        %v6338 = vld [vmem:[#allocation3 + $0x30] sm:$0xff]
        %v6339 = vld [vmem:[#allocation3 + $0x38] sm:$0xff]
        %v6340 = vld [vmem:[#allocation3 + $0x40] sm:$0x1f]
        %v6341 = vld [vmem:[#allocation3 + $0x48] sm:$0x1f]
        %v6343 = vsel %vm791, %v6331, 0
        %v6346 = vsel %vm798, %v6340, 0
        %v6349 = vsel %vm798, %v6341, 0
        %6351 = vmatprep.subr.mxu0 %v6333
        %6352 = vmatpush1.msra.mxu0 %v6332
        %6353 = vmatprep.subr.mxu0 %v6335
        %6354 = vmatpush1.msra.mxu0 %v6334
        %6355 = vmatprep.subr.mxu0 %v6337
        %6356 = vmatpush1.msra.mxu0 %v6336
        %6357 = vmatprep.subr.mxu0 %v6339
        %6358 = vmatpush1.msra.mxu0 %v6338
        %6359 = vmatprep.subr.mxu0 %v6349
        %6360 = vmatpush1.msra.mxu0 %v6346
        %6361 = vmatprep.subr.mxu0 0.0
        %6362 = vmatpush1.msra.mxu0 0.0
        %6363 = vmatprep.subr.mxu0 0.0
        %6364 = vmatpush1.msra.mxu0 0.0
        %6365 = vmatprep.subr.mxu0 0.0
        %6366 = vmatpush1.msra.mxu0 0.0
        %6367 = vmatprep.subr.mxu0 0.0
        %6368 = vmatpush1.msra.mxu0 0.0
        %6369 = vmatprep.subr.mxu0 0.0
        %6370 = vmatpush1.msra.mxu0 0.0
        %6371 = vmatprep.subr.mxu0 0.0
        %6372 = vmatpush1.msra.mxu0 0.0
        %6373 = vmatprep.subr.mxu0 0.0
        %6374 = vmatpush1.msra.mxu0 0.0
        %6375 = vmatprep.subr.mxu0 0.0
        %6376 = vmatpush1.msra.mxu0 0.0
        %6377 = vmatprep.subr.mxu0 0.0
        %6378 = vmatpush1.msra.mxu0 0.0
        %6379 = vmatprep.subr.mxu0 0.0
        %6380 = vmatpush1.msra.mxu0 0.0
        %6381 = vmatprep.subr.mxu0 0.0
        %6382 = vmatpush1.msra.mxu0 0.0
        %6383 = vmatprep.subr.mxu0 0.0
        %6384 = vmatpush1.msra.mxu0 0.0
        %6385 = vmatprep.subr.mxu0 0.0
        %6386 = vmatpush1.msra.mxu0 0.0
        %6387 = vmatprep.subr.mxu0 0.0
        %6388 = vmatpush1.msra.mxu0 0.0
        %6389 = vmatprep.subr.mxu0 0.0
        %6390 = vmatpush1.msra.mxu0 0.0
        %6391 = vmatprep.subr.mxu0 0.0
        %6392 = vmatpush1.msra.mxu0 0.0
        %6393 = vmatprep.subr.mxu0 0.0
        %6394 = vmatpush1.msra.mxu0 0.0
        %6395 = vmatprep.subr.mxu0 0.0
        %6396 = vmatpush1.msra.mxu0 0.0
        %6397 = vmatprep.subr.mxu0 0.0
        %6398 = vmatpush1.msra.mxu0 0.0
        %6399 = vmatprep.subr.mxu0 0.0
        %6400 = vmatpush1.msra.mxu0 0.0
        %6401 = vmatprep.subr.mxu0 0.0
        %6402 = vmatpush1.msra.mxu0 0.0
        %6403 = vmatprep.subr.mxu0 0.0
        %6404 = vmatpush1.msra.mxu0 0.0
        %6405 = vmatprep.subr.mxu0 0.0
        %6406 = vmatpush1.msra.mxu0 0.0
        %6407 = vmatprep.subr.mxu0 0.0
        %6408 = vmatpush1.msra.mxu0 0.0
        %6409 = vmatprep.subr.mxu0 0.0
        %6410 = vmatpush1.msra.mxu0 0.0
        %6411 = vmatprep.subr.mxu0 0.0
        %6412 = vmatpush1.msra.mxu0 0.0
        %6413 = vmatprep.subr.mxu0 0.0
        %6414 = vmatpush1.msra.mxu0 0.0
        %6415 = vmatprep.mubr.f32.mxu0 0.0
        %6416 = vmatmul.mubr.f32.gmra.mrb[0].mxu0 %v6343
        %v6417 = vpop.f32.mrb[0].mxu0
        %v6418 = vadd.f32 0.0, %v6417
        %v6419 = vpop.f32.mrb[0].mxu0
        %v6420 = vadd.f32 0.0, %v6419
        %6421 = vdwg.mxu0
        %6422 = vst [vmem:[#allocation2 + $0x8] sm:$0xf] %v6418
        %6423 = vst [vmem:[#allocation2 + $0x10] sm:$0xf] %v6420
        %v6424 = vld [vmem:[#allocation2] sm:$0xf]
        %v6425 = vld [vmem:[#allocation2 + $0x8] sm:$0xf]
        %v6426 = vld [vmem:[#allocation2 + $0x10] sm:$0xf]
        %v6427 = vld [vmem:[%s397] ss:$8 sm:$0x3]
        %v6429 = vlaneseq
        %v6430 = vshrl.u32 %v6429, 7
        %v6431 = vsub.s32 0, %v6430
        %v6432 = vrot.slane %v6427, %v6431
        %v6433 = vlaneseq
        %v6434 = vshrl.u32 %v6433, 7
        %v6435 = vsub.s32 1, %v6434
        %v6436 = vrot.slane %v6427, %v6435
        %6437 = vrot.lane.b32.xlu0 %v6432, 111
        %v6438 = vpop.permute.xlu0 %6437
        %6439 = vrot.lane.b32.xlu0 %v6436, 111
        %v6440 = vpop.permute.xlu0 %6439
        %v6441 = vsel %vm412, %v6438, %v6440
        %v6445 = vmul.f32 %v6424, %v6438
        %v6446 = vmul.f32 %v6425, %v6441
        %v6447 = vmul.f32 %v6426, %v6440
        %v6451 = vrot.slane %v6445, 7
        %v6452 = vrot.slane %v6446, 7
        %v6453 = vrot.slane %v6447, 7
        %6454 = vrot.lane.b32.xlu0 %v6451, 17
        %v6455 = vpop.permute.xlu0 %6454
        %6456 = vrot.lane.b32.xlu0 %v6452, 17
        %v6457 = vpop.permute.xlu0 %6456
        %6458 = vrot.lane.b32.xlu0 %v6453, 17
        %v6459 = vpop.permute.xlu0 %6458
        %v6460 = vsel %vm432, %v6455, %v6457
        %v6461 = vsel %vm432, %v6457, %v6459
        %6464 = vst [vmem:[#allocation3] sm:$0x1e] %v6460
        %6465 = vst [vmem:[#allocation3 + $0x8] sm:$0x1e] %v6461
        %v6466 = vld [vmem:[#allocation2] sm:$0xf]
        %v6467 = vld [vmem:[#allocation2 + $0x8] sm:$0xf]
        %v6468 = vld [vmem:[#allocation2 + $0x10] sm:$0xf]
        %v6469 = vld [vmem:[%s442] ss:$8 sm:$0x3]
        %v6471 = vlaneseq
        %v6472 = vshrl.u32 %v6471, 7
        %v6473 = vsub.s32 0, %v6472
        %v6474 = vrot.slane %v6469, %v6473
        %v6475 = vlaneseq
        %v6476 = vshrl.u32 %v6475, 7
        %v6477 = vsub.s32 1, %v6476
        %v6478 = vrot.slane %v6469, %v6477
        %6479 = vrot.lane.b32.xlu0 %v6474, 112
        %v6480 = vpop.permute.xlu0 %6479
        %6481 = vrot.lane.b32.xlu0 %v6478, 112
        %v6482 = vpop.permute.xlu0 %6481
        %v6483 = vsel %vm457, %v6480, %v6482
        %v6487 = vmul.f32 %v6466, %v6480
        %v6488 = vmul.f32 %v6467, %v6483
        %v6489 = vmul.f32 %v6468, %v6482
        %v6493 = vrot.slane %v6487, 3
        %v6494 = vrot.slane %v6488, 3
        %v6495 = vrot.slane %v6489, 3
        %6496 = vrot.lane.b32.xlu0 %v6493, 16
        %v6497 = vpop.permute.xlu0 %6496
        %6498 = vrot.lane.b32.xlu0 %v6494, 16
        %v6499 = vpop.permute.xlu0 %6498
        %6500 = vrot.lane.b32.xlu0 %v6495, 16
        %v6501 = vpop.permute.xlu0 %6500
        %v6502 = vsel %vm477, %v6497, %v6499
        %v6503 = vsel %vm477, %v6499, %v6501
        %6506 = vst [vmem:[#allocation3] sm:$0xe0] %v6502
        %6507 = vst [vmem:[#allocation3 + $0x8] sm:$0xe0] %v6503
        %6508 = vst [vmem:[#allocation3 + $0x10] sm:$0x1] %v6502
        %6509 = vst [vmem:[#allocation3 + $0x18] sm:$0x1] %v6503
        %v6510 = vld [vmem:[#allocation2] sm:$0xf]
        %v6511 = vld [vmem:[#allocation2 + $0x8] sm:$0xf]
        %v6512 = vld [vmem:[#allocation2 + $0x10] sm:$0xf]
        %v6513 = vld [vmem:[%s489] ss:$8 sm:$0x3]
        %v6515 = vlaneseq
        %v6516 = vshrl.u32 %v6515, 7
        %v6517 = vsub.s32 0, %v6516
        %v6518 = vrot.slane %v6513, %v6517
        %v6519 = vlaneseq
        %v6520 = vshrl.u32 %v6519, 7
        %v6521 = vsub.s32 1, %v6520
        %v6522 = vrot.slane %v6513, %v6521
        %6523 = vrot.lane.b32.xlu0 %v6518, 113
        %v6524 = vpop.permute.xlu0 %6523
        %6525 = vrot.lane.b32.xlu0 %v6522, 113
        %v6526 = vpop.permute.xlu0 %6525
        %v6527 = vsel %vm504, %v6524, %v6526
        %v6531 = vmul.f32 %v6510, %v6524
        %v6532 = vmul.f32 %v6511, %v6527
        %v6533 = vmul.f32 %v6512, %v6526
        %v6537 = vrot.slane %v6531, 7
        %v6538 = vrot.slane %v6532, 7
        %v6539 = vrot.slane %v6533, 7
        %6540 = vrot.lane.b32.xlu0 %v6537, 15
        %v6541 = vpop.permute.xlu0 %6540
        %6542 = vrot.lane.b32.xlu0 %v6538, 15
        %v6543 = vpop.permute.xlu0 %6542
        %6544 = vrot.lane.b32.xlu0 %v6539, 15
        %v6545 = vpop.permute.xlu0 %6544
        %v6546 = vsel %vm524, %v6541, %v6543
        %v6547 = vsel %vm524, %v6543, %v6545
        %6550 = vst [vmem:[#allocation3 + $0x10] sm:$0x1e] %v6546
        %6551 = vst [vmem:[#allocation3 + $0x18] sm:$0x1e] %v6547
        %v6552 = vld [vmem:[#allocation2] sm:$0xf]
        %v6553 = vld [vmem:[#allocation2 + $0x8] sm:$0xf]
        %v6554 = vld [vmem:[#allocation2 + $0x10] sm:$0xf]
        %v6555 = vld [vmem:[%s534] ss:$8 sm:$0x3]
        %v6557 = vlaneseq
        %v6558 = vshrl.u32 %v6557, 7
        %v6559 = vsub.s32 0, %v6558
        %v6560 = vrot.slane %v6555, %v6559
        %v6561 = vlaneseq
        %v6562 = vshrl.u32 %v6561, 7
        %v6563 = vsub.s32 1, %v6562
        %v6564 = vrot.slane %v6555, %v6563
        %6565 = vrot.lane.b32.xlu0 %v6560, 127
        %v6566 = vpop.permute.xlu0 %6565
        %6567 = vrot.lane.b32.xlu0 %v6564, 127
        %v6568 = vpop.permute.xlu0 %6567
        %v6569 = vsel %vm549, %v6566, %v6568
        %v6573 = vmul.f32 %v6552, %v6566
        %v6574 = vmul.f32 %v6553, %v6569
        %v6575 = vmul.f32 %v6554, %v6568
        %v6579 = vrot.slane %v6573, 3
        %v6580 = vrot.slane %v6574, 3
        %v6581 = vrot.slane %v6575, 3
        %6582 = vrot.lane.b32.xlu0 %v6579, 1
        %v6583 = vpop.permute.xlu0 %6582
        %6584 = vrot.lane.b32.xlu0 %v6580, 1
        %v6585 = vpop.permute.xlu0 %6584
        %6586 = vrot.lane.b32.xlu0 %v6581, 1
        %v6587 = vpop.permute.xlu0 %6586
        %v6588 = vsel %vm569, %v6583, %v6585
        %v6589 = vsel %vm569, %v6585, %v6587
        %6592 = vst [vmem:[#allocation3 + $0x10] sm:$0xe0] %v6588
        %6593 = vst [vmem:[#allocation3 + $0x18] sm:$0xe0] %v6589
        %6594 = vst [vmem:[#allocation3 + $0x20] sm:$0x1] %v6588
        %6595 = vst [vmem:[#allocation3 + $0x28] sm:$0x1] %v6589
        %v6596 = vld [vmem:[#allocation2 + $0x8] sm:$0xf]
        %v6597 = vld [vmem:[#allocation2 + $0x10] sm:$0xf]
        %v6598 = vld [vmem:[%s580] ss:$8 sm:$0x3]
        %v6600 = vlaneseq
        %v6601 = vshrl.u32 %v6600, 7
        %v6602 = vsub.s32 0, %v6601
        %v6603 = vrot.slane %v6598, %v6602
        %v6604 = vlaneseq
        %v6605 = vshrl.u32 %v6604, 7
        %v6606 = vsub.s32 1, %v6605
        %v6607 = vrot.slane %v6598, %v6606
        %v6610 = vmul.f32 %v6596, %v6603
        %v6611 = vmul.f32 %v6597, %v6607
        %v6614 = vrot.slane %v6610, 7
        %v6615 = vrot.slane %v6611, 7
        %6618 = vst [vmem:[#allocation3 + $0x20] sm:$0x1e] %v6614
        %6619 = vst [vmem:[#allocation3 + $0x28] sm:$0x1e] %v6615
        %v6620 = vld [vmem:[#allocation2 + $0x8] sm:$0xf]
        %v6621 = vld [vmem:[#allocation2 + $0x10] sm:$0xf]
        %v6622 = vld [vmem:[#allocation2 + $0x18] sm:$0xf]
        %v6623 = vld [vmem:[%s606] ss:$8 sm:$0x3]
        %v6625 = vlaneseq
        %v6626 = vshrl.u32 %v6625, 7
        %v6627 = vsub.s32 0, %v6626
        %v6628 = vrot.slane %v6623, %v6627
        %v6629 = vlaneseq
        %v6630 = vshrl.u32 %v6629, 7
        %v6631 = vsub.s32 1, %v6630
        %v6632 = vrot.slane %v6623, %v6631
        %6633 = vrot.lane.b32.xlu0 %v6628, 1
        %v6634 = vpop.permute.xlu0 %6633
        %6635 = vrot.lane.b32.xlu0 %v6632, 1
        %v6636 = vpop.permute.xlu0 %6635
        %v6637 = vsel %vm569, %v6634, %v6636
        %v6641 = vmul.f32 %v6620, %v6634
        %v6642 = vmul.f32 %v6621, %v6637
        %v6643 = vmul.f32 %v6622, %v6636
        %v6647 = vrot.slane %v6641, 3
        %v6648 = vrot.slane %v6642, 3
        %v6649 = vrot.slane %v6643, 3
        %6650 = vrot.lane.b32.xlu0 %v6647, 127
        %v6651 = vpop.permute.xlu0 %6650
        %6652 = vrot.lane.b32.xlu0 %v6648, 127
        %v6653 = vpop.permute.xlu0 %6652
        %6654 = vrot.lane.b32.xlu0 %v6649, 127
        %v6655 = vpop.permute.xlu0 %6654
        %v6656 = vsel %vm549, %v6651, %v6653
        %v6657 = vsel %vm549, %v6653, %v6655
        %6660 = vst [vmem:[#allocation3 + $0x20] sm:$0xe0] %v6656
        %6661 = vst [vmem:[#allocation3 + $0x28] sm:$0xe0] %v6657
        %6662 = vst [vmem:[#allocation3 + $0x30] sm:$0x1] %v6656
        %6663 = vst [vmem:[#allocation3 + $0x38] sm:$0x1] %v6657
        %v6664 = vld [vmem:[#allocation2 + $0x8] sm:$0xf]
        %v6665 = vld [vmem:[#allocation2 + $0x10] sm:$0xf]
        %v6666 = vld [vmem:[#allocation2 + $0x18] sm:$0xf]
        %v6667 = vld [vmem:[%s651] ss:$8 sm:$0x3]
        %v6669 = vlaneseq
        %v6670 = vshrl.u32 %v6669, 7
        %v6671 = vsub.s32 0, %v6670
        %v6672 = vrot.slane %v6667, %v6671
        %v6673 = vlaneseq
        %v6674 = vshrl.u32 %v6673, 7
        %v6675 = vsub.s32 1, %v6674
        %v6676 = vrot.slane %v6667, %v6675
        %6677 = vrot.lane.b32.xlu0 %v6672, 15
        %v6678 = vpop.permute.xlu0 %6677
        %6679 = vrot.lane.b32.xlu0 %v6676, 15
        %v6680 = vpop.permute.xlu0 %6679
        %v6681 = vsel %vm524, %v6678, %v6680
        %v6685 = vmul.f32 %v6664, %v6678
        %v6686 = vmul.f32 %v6665, %v6681
        %v6687 = vmul.f32 %v6666, %v6680
        %v6691 = vrot.slane %v6685, 7
        %v6692 = vrot.slane %v6686, 7
        %v6693 = vrot.slane %v6687, 7
        %6694 = vrot.lane.b32.xlu0 %v6691, 113
        %v6695 = vpop.permute.xlu0 %6694
        %6696 = vrot.lane.b32.xlu0 %v6692, 113
        %v6697 = vpop.permute.xlu0 %6696
        %6698 = vrot.lane.b32.xlu0 %v6693, 113
        %v6699 = vpop.permute.xlu0 %6698
        %v6700 = vsel %vm504, %v6695, %v6697
        %v6701 = vsel %vm504, %v6697, %v6699
        %6704 = vst [vmem:[#allocation3 + $0x30] sm:$0x1e] %v6700
        %6705 = vst [vmem:[#allocation3 + $0x38] sm:$0x1e] %v6701
        %v6706 = vld [vmem:[#allocation2 + $0x8] sm:$0xf]
        %v6707 = vld [vmem:[#allocation2 + $0x10] sm:$0xf]
        %v6708 = vld [vmem:[#allocation2 + $0x18] sm:$0xf]
        %v6709 = vld [vmem:[%s694] ss:$8 sm:$0x3]
        %v6711 = vlaneseq
        %v6712 = vshrl.u32 %v6711, 7
        %v6713 = vsub.s32 0, %v6712
        %v6714 = vrot.slane %v6709, %v6713
        %v6715 = vlaneseq
        %v6716 = vshrl.u32 %v6715, 7
        %v6717 = vsub.s32 1, %v6716
        %v6718 = vrot.slane %v6709, %v6717
        %6719 = vrot.lane.b32.xlu0 %v6714, 16
        %v6720 = vpop.permute.xlu0 %6719
        %6721 = vrot.lane.b32.xlu0 %v6718, 16
        %v6722 = vpop.permute.xlu0 %6721
        %v6723 = vsel %vm477, %v6720, %v6722
        %v6727 = vmul.f32 %v6706, %v6720
        %v6728 = vmul.f32 %v6707, %v6723
        %v6729 = vmul.f32 %v6708, %v6722
        %v6733 = vrot.slane %v6727, 3
        %v6734 = vrot.slane %v6728, 3
        %v6735 = vrot.slane %v6729, 3
        %6736 = vrot.lane.b32.xlu0 %v6733, 112
        %v6737 = vpop.permute.xlu0 %6736
        %6738 = vrot.lane.b32.xlu0 %v6734, 112
        %v6739 = vpop.permute.xlu0 %6738
        %6740 = vrot.lane.b32.xlu0 %v6735, 112
        %v6741 = vpop.permute.xlu0 %6740
        %v6742 = vsel %vm457, %v6737, %v6739
        %v6743 = vsel %vm457, %v6739, %v6741
        %6746 = vst [vmem:[#allocation3 + $0x30] sm:$0xe0] %v6742
        %6747 = vst [vmem:[#allocation3 + $0x38] sm:$0xe0] %v6743
        %6748 = vst [vmem:[#allocation3 + $0x40] sm:$0x1] %v6742
        %6749 = vst [vmem:[#allocation3 + $0x48] sm:$0x1] %v6743
        %v6750 = vld [vmem:[#allocation2 + $0x8] sm:$0xf]
        %v6751 = vld [vmem:[#allocation2 + $0x10] sm:$0xf]
        %v6752 = vld [vmem:[#allocation2 + $0x18] sm:$0xf]
        %v6753 = vld [vmem:[%s739] ss:$8 sm:$0x3]
        %v6755 = vlaneseq
        %v6756 = vshrl.u32 %v6755, 7
        %v6757 = vsub.s32 0, %v6756
        %v6758 = vrot.slane %v6753, %v6757
        %v6759 = vlaneseq
        %v6760 = vshrl.u32 %v6759, 7
        %v6761 = vsub.s32 1, %v6760
        %v6762 = vrot.slane %v6753, %v6761
        %6763 = vrot.lane.b32.xlu0 %v6758, 17
        %v6764 = vpop.permute.xlu0 %6763
        %6765 = vrot.lane.b32.xlu0 %v6762, 17
        %v6766 = vpop.permute.xlu0 %6765
        %v6767 = vsel %vm432, %v6764, %v6766
        %v6771 = vmul.f32 %v6750, %v6764
        %v6772 = vmul.f32 %v6751, %v6767
        %v6773 = vmul.f32 %v6752, %v6766
        %v6777 = vrot.slane %v6771, 7
        %v6778 = vrot.slane %v6772, 7
        %v6779 = vrot.slane %v6773, 7
        %6780 = vrot.lane.b32.xlu0 %v6777, 111
        %v6781 = vpop.permute.xlu0 %6780
        %6782 = vrot.lane.b32.xlu0 %v6778, 111
        %v6783 = vpop.permute.xlu0 %6782
        %6784 = vrot.lane.b32.xlu0 %v6779, 111
        %v6785 = vpop.permute.xlu0 %6784
        %v6786 = vsel %vm412, %v6781, %v6783
        %v6787 = vsel %vm412, %v6783, %v6785
        %6790 = vst [vmem:[#allocation3 + $0x40] sm:$0x1e] %v6786
        %6791 = vst [vmem:[#allocation3 + $0x48] sm:$0x1e] %v6787
        %v6792 = vld [vmem:[%s7] sm:$0xf]
        %v6793 = vld [vmem:[#allocation3] sm:$0xff]
        %v6794 = vld [vmem:[#allocation3 + $0x8] sm:$0xff]
        %v6795 = vld [vmem:[#allocation3 + $0x10] sm:$0xff]
        %v6796 = vld [vmem:[#allocation3 + $0x18] sm:$0xff]
        %v6797 = vld [vmem:[#allocation3 + $0x20] sm:$0xff]
        %v6798 = vld [vmem:[#allocation3 + $0x28] sm:$0xff]
        %v6799 = vld [vmem:[#allocation3 + $0x30] sm:$0xff]
        %v6800 = vld [vmem:[#allocation3 + $0x38] sm:$0xff]
        %v6801 = vld [vmem:[#allocation3 + $0x40] sm:$0x1f]
        %v6802 = vld [vmem:[#allocation3 + $0x48] sm:$0x1f]
        %v6804 = vsel %vm791, %v6792, 0
        %v6807 = vsel %vm798, %v6801, 0
        %v6810 = vsel %vm798, %v6802, 0
        %6812 = vmatprep.subr.mxu0 %v6794
        %6813 = vmatpush1.msra.mxu0 %v6793
        %6814 = vmatprep.subr.mxu0 %v6796
        %6815 = vmatpush1.msra.mxu0 %v6795
        %6816 = vmatprep.subr.mxu0 %v6798
        %6817 = vmatpush1.msra.mxu0 %v6797
        %6818 = vmatprep.subr.mxu0 %v6800
        %6819 = vmatpush1.msra.mxu0 %v6799
        %6820 = vmatprep.subr.mxu0 %v6810
        %6821 = vmatpush1.msra.mxu0 %v6807
        %6822 = vmatprep.subr.mxu0 0.0
        %6823 = vmatpush1.msra.mxu0 0.0
        %6824 = vmatprep.subr.mxu0 0.0
        %6825 = vmatpush1.msra.mxu0 0.0
        %6826 = vmatprep.subr.mxu0 0.0
        %6827 = vmatpush1.msra.mxu0 0.0
        %6828 = vmatprep.subr.mxu0 0.0
        %6829 = vmatpush1.msra.mxu0 0.0
        %6830 = vmatprep.subr.mxu0 0.0
        %6831 = vmatpush1.msra.mxu0 0.0
        %6832 = vmatprep.subr.mxu0 0.0
        %6833 = vmatpush1.msra.mxu0 0.0
        %6834 = vmatprep.subr.mxu0 0.0
        %6835 = vmatpush1.msra.mxu0 0.0
        %6836 = vmatprep.subr.mxu0 0.0
        %6837 = vmatpush1.msra.mxu0 0.0
        %6838 = vmatprep.subr.mxu0 0.0
        %6839 = vmatpush1.msra.mxu0 0.0
        %6840 = vmatprep.subr.mxu0 0.0
        %6841 = vmatpush1.msra.mxu0 0.0
        %6842 = vmatprep.subr.mxu0 0.0
        %6843 = vmatpush1.msra.mxu0 0.0
        %6844 = vmatprep.subr.mxu0 0.0
        %6845 = vmatpush1.msra.mxu0 0.0
        %6846 = vmatprep.subr.mxu0 0.0
        %6847 = vmatpush1.msra.mxu0 0.0
        %6848 = vmatprep.subr.mxu0 0.0
        %6849 = vmatpush1.msra.mxu0 0.0
        %6850 = vmatprep.subr.mxu0 0.0
        %6851 = vmatpush1.msra.mxu0 0.0
        %6852 = vmatprep.subr.mxu0 0.0
        %6853 = vmatpush1.msra.mxu0 0.0
        %6854 = vmatprep.subr.mxu0 0.0
        %6855 = vmatpush1.msra.mxu0 0.0
        %6856 = vmatprep.subr.mxu0 0.0
        %6857 = vmatpush1.msra.mxu0 0.0
        %6858 = vmatprep.subr.mxu0 0.0
        %6859 = vmatpush1.msra.mxu0 0.0
        %6860 = vmatprep.subr.mxu0 0.0
        %6861 = vmatpush1.msra.mxu0 0.0
        %6862 = vmatprep.subr.mxu0 0.0
        %6863 = vmatpush1.msra.mxu0 0.0
        %6864 = vmatprep.subr.mxu0 0.0
        %6865 = vmatpush1.msra.mxu0 0.0
        %6866 = vmatprep.subr.mxu0 0.0
        %6867 = vmatpush1.msra.mxu0 0.0
        %6868 = vmatprep.subr.mxu0 0.0
        %6869 = vmatpush1.msra.mxu0 0.0
        %6870 = vmatprep.subr.mxu0 0.0
        %6871 = vmatpush1.msra.mxu0 0.0
        %6872 = vmatprep.subr.mxu0 0.0
        %6873 = vmatpush1.msra.mxu0 0.0
        %6874 = vmatprep.subr.mxu0 0.0
        %6875 = vmatpush1.msra.mxu0 0.0
        %6876 = vmatprep.mubr.f32.mxu0 0.0
        %6877 = vmatmul.mubr.f32.gmra.mrb[0].mxu0 %v6804
        %v6878 = vpop.f32.mrb[0].mxu0
        %v6879 = vadd.f32 0.0, %v6878
        %v6880 = vpop.f32.mrb[0].mxu0
        %v6881 = vadd.f32 0.0, %v6880
        %6882 = vdwg.mxu0
        %6885 = vrot.lane.b32.xlu0 %v5951, 94
        %v6886 = vpop.permute.xlu0 %6885
        %6887 = vrot.lane.b32.xlu0 %v5953, 94
        %v6888 = vpop.permute.xlu0 %6887
        %v6889 = vsel %vm1852, %v6886, %v6888
        %v6893 = vadd.f32 %v5227, %v6886
        %v6894 = vadd.f32 %v5228, %v6889
        %v6895 = vadd.f32 %v5229, %v6888
        %v6896 = vrot.slane %v5951, 4
        %v6897 = vrot.slane %v5953, 4
        %6898 = vrot.lane.b32.xlu0 %v6896, 94
        %v6899 = vpop.permute.xlu0 %6898
        %6900 = vrot.lane.b32.xlu0 %v6897, 94
        %v6901 = vpop.permute.xlu0 %6900
        %v6902 = vsel %vm1852, %v6899, %v6901
        %v6906 = vadd.f32 %v6893, %v6899
        %v6907 = vadd.f32 %v6894, %v6902
        %v6908 = vadd.f32 %v6895, %v6901
        %6912 = vrot.lane.b32.xlu0 %v6906, 34
        %v6913 = vpop.permute.xlu0 %6912
        %6914 = vrot.lane.b32.xlu0 %v6907, 34
        %v6915 = vpop.permute.xlu0 %6914
        %6916 = vrot.lane.b32.xlu0 %v6908, 34
        %v6917 = vpop.permute.xlu0 %6916
        %v6918 = vsel %vm5097, %v6913, %v6915
        %v6919 = vsel %vm5097, %v6915, %v6917
        %6922 = vst [vmem:[%s377] sm:$0xf] %v6918
        %6923 = vst [vmem:[%s377 + $0x8] sm:$0xf] %v6919
        %v6926 = vrot.slane %v6418, 4
        %v6927 = vrot.slane %v6420, 4
        %6928 = vrot.lane.b32.xlu0 %v6926, 94
        %v6929 = vpop.permute.xlu0 %6928
        %6930 = vrot.lane.b32.xlu0 %v6927, 94
        %v6931 = vpop.permute.xlu0 %6930
        %v6932 = vsel %vm1852, %v6929, %v6931
        %v6936 = vadd.f32 %v5227, %v6929
        %v6937 = vadd.f32 %v5228, %v6932
        %v6938 = vadd.f32 %v5229, %v6931
        %v6941 = vrot.slane %v5957, 4
        %v6942 = vrot.slane %v5959, 4
        %6943 = vrot.lane.b32.xlu0 %v6941, 94
        %v6944 = vpop.permute.xlu0 %6943
        %6945 = vrot.lane.b32.xlu0 %v6942, 94
        %v6946 = vpop.permute.xlu0 %6945
        %v6947 = vsel %vm1852, %v6944, %v6946
        %v6951 = vadd.f32 %v6936, %v6944
        %v6952 = vadd.f32 %v6937, %v6947
        %v6953 = vadd.f32 %v6938, %v6946
        %6957 = vrot.lane.b32.xlu0 %v6951, 34
        %v6958 = vpop.permute.xlu0 %6957
        %6959 = vrot.lane.b32.xlu0 %v6952, 34
        %v6960 = vpop.permute.xlu0 %6959
        %6961 = vrot.lane.b32.xlu0 %v6953, 34
        %v6962 = vpop.permute.xlu0 %6961
        %v6963 = vsel %vm5097, %v6958, %v6960
        %v6964 = vsel %vm5097, %v6960, %v6962
        %6967 = vst [vmem:[%s377] sm:$0xf0] %v6963
        %6968 = vst [vmem:[%s377 + $0x8] sm:$0xf0] %v6964
        %6971 = vrot.lane.b32.xlu0 %v6879, 94
        %v6972 = vpop.permute.xlu0 %6971
        %6973 = vrot.lane.b32.xlu0 %v6881, 94
        %v6974 = vpop.permute.xlu0 %6973
        %v6975 = vsel %vm1852, %v6972, %v6974
        %v6979 = vadd.f32 %v5230, %v6972
        %v6980 = vadd.f32 %v5231, %v6975
        %v6981 = vadd.f32 %v5232, %v6974
        %v6982 = vadd.f32 %v6979, %v6944
        %v6983 = vadd.f32 %v6980, %v6947
        %v6984 = vadd.f32 %v6981, %v6946
        %6988 = vrot.lane.b32.xlu0 %v6982, 34
        %v6989 = vpop.permute.xlu0 %6988
        %6990 = vrot.lane.b32.xlu0 %v6983, 34
        %v6991 = vpop.permute.xlu0 %6990
        %6992 = vrot.lane.b32.xlu0 %v6984, 34
        %v6993 = vpop.permute.xlu0 %6992
        %v6994 = vsel %vm5097, %v6989, %v6991
        %v6995 = vsel %vm5097, %v6991, %v6993
        %6998 = vst [vmem:[%s377 + $0x10] sm:$0xf] %v6994
        %6999 = vst [vmem:[%s377 + $0x18] sm:$0xf] %v6995
        %p7000 = scmp.lt.s32.totalorder %s24, 1
        %s7001 = scalar_select %p7000, %s24, 1
        %s7002 = smul.addr %s7001, 4
        %s7003 = smul.addr %s7002, 8
        %s7004 = scalar_lea.vmem %s8, %s7003
        // Predicated region
        $region73: #{tpu_custom_call.1} parent=51 // pred_check
          %p7005 = pneg %p215
        $region74: #{tpu_custom_call.1} parent=51 // pred_check_branch
          %7007 = sbr.rel (%p7005) target = $region76
        $region75: #{tpu_custom_call.1} parent=51 // pred_region
          _
        $region76: #{tpu_custom_call.1} parent=51 // pred_fallthru
          _
      $region52: #{tpu_custom_call.1} parent=5 // pred_fallthru
        _
      %p7008 = scmp.le.s32.totalorder 2, %s19
      // Predicated region
      $region77: #{tpu_custom_call.1} parent=5 // pred_check
        %p7009 = pneg %p7008
      $region78: #{tpu_custom_call.1} parent=5 // pred_check_branch
        %7011 = sbr.rel (%p7009) target = $region80
      $region79: #{tpu_custom_call.1} parent=5 // pred_region
        %s7012 = ssub.s32 %s19, 2
        // Predicated region
        $region81: #{tpu_custom_call.1} parent=79 // pred_check
          %p7013 = pneg %p221
        $region82: #{tpu_custom_call.1} parent=79 // pred_check_branch
          %7015 = sbr.rel (%p7013) target = $region84
        $region83: #{tpu_custom_call.1} parent=79 // pred_region
          %p7016 = scmp.lt.s32.totalorder %s25, 1
          %s7017 = scalar_select %p7016, %s25, 1
          %s7018 = smul.addr %s7017, 4
          %s7019 = smul.addr %s7018, 8
          %s7020 = scalar_lea.vmem %s8, %s7019
        $region84: #{tpu_custom_call.1} parent=79 // pred_fallthru
          _
      $region80: #{tpu_custom_call.1} parent=5 // pred_fallthru
        _
    $region6: #{tpu_custom_call.1} parent=1 // loop_footer
      %s23 = sadd.s32 1, %s19
    $region7: #{tpu_custom_call.1} parent=1 // loop_footer_branch
      %18 = sbr.rel target = $region3
    $region8: #{tpu_custom_call.1} parent=1 // loop_exit
      _
    %7021 = vsyncpa [#allocation5], 1
    %s7022 = scalar_lea.sflag [#allocation5], 1
    %7023 = vsyncpa %s7022, 1
    %7024 = vsyncpa [#allocation7], 1
    %s7025 = scalar_lea.sflag [#allocation7], 1
    %7026 = vsyncpa %s7025, 1
    %7027 = vsyncpa [#allocation10], 1

</llo_original>
